<compile_context>
chip_gen: v5e
topology: v5e:2x2
jax: 0.10.0
libtpu: 0.0.40
codegen_flags: <defaults>
</compile_context>

<pallas_src>
import functools

import numpy as np
import jax
import jax.numpy as jnp
from jax import lax
from jax.experimental import pallas as pl
from jax.experimental.pallas import tpu as pltpu


_GN_EPS = 1e-5
_MXU_DTYPE = jnp.bfloat16   # matmul operands; accumulation is always f32

# (name, cin split along input channels, cout, groups)
_CONV_SPECS = (
    ("inc1",  (2,),        32, 8),
    ("inc2",  (32,),       32, 8),
    ("enc1a", (32,),       64, 8),
    ("enc1b", (64,),       64, 8),
    ("enc2a", (64,),      128, 8),
    ("enc2b", (128,),     128, 8),
    ("bna",   (128,),     256, 1),
    ("bnb",   (256,),     256, 1),
    ("dec1a", (256, 128), 128, 8),   # conv over cat([up(bottle), e2])
    ("dec1b", (128,),     128, 8),
    ("dec2a", (128, 64),   64, 8),   # conv over cat([up(d1), e1])
    ("dec2b", (64,),       64, 8),
    ("outc1", (64, 32),    32, 8),   # conv over cat([d2, e0])
)
_GMAP_KEYS = ((32, 8), (64, 8), (128, 8))          # groups==1 handled without a map
_TPROJ_NAMES = ("t_inc", "t_enc1", "t_enc2", "t_bn", "t_dec1", "t_dec2")
_TPROJ_DIMS = (32, 64, 128, 256, 128, 64)


# ----------------------------------------------------------------------------
# In-kernel math helpers
# ----------------------------------------------------------------------------
def _gelu(x):
    # TODO(synk): PyTorch nn.GELU() uses exact erf; this is the tanh approximation
    # (pushes the transcendental onto the otherwise idle EUP slot).
    return 0.5 * x * (1.0 + jnp.tanh(0.7978845608028654 * (x + 0.044715 * x * x * x)))


# ----------------------------------------------------------------------------
# The single fused UNet kernel (one program per batch element)
# ----------------------------------------------------------------------------
def _unet_kernel(*refs):
    it = iter(refs)

    def nxt():
        return next(it)

    # ---- unpack refs (order must match forward()) ---------------------------
    tsin_ref = nxt()
    x_ref = nxt()
    up1_ref = nxt()
    up2_ref = nxt()
    gmaps = {}
    for key in _GMAP_KEYS:
        g = nxt()[...]
        gt = nxt()[...]
        gmaps[key] = (g, gt)
    conv = {}
    for name, cin_parts, cout, groups in _CONV_SPECS:
        w_refs = tuple(nxt() for _ in cin_parts)
        bgb_ref = nxt()
        conv[name] = (w_refs, bgb_ref, cout, groups)
    tm1_w, tm1_b, tm2_w, tm2_b = nxt(), nxt(), nxt(), nxt()
    tproj = {name: (nxt(), nxt()) for name in _TPROJ_NAMES}
    out_wT_ref, out_b_ref = nxt(), nxt()
    o_ref = nxt()
    pool_scr = nxt()                               # VMEM scratch for MaxPool1d(2)

    def dot32(a, b):                               # exact f32 matmul (tiny / stats)
        return jnp.dot(a, b, preferred_element_type=jnp.float32)

    def mxu_dot(a, b):                             # bf16 operands, f32 accumulation
        return jnp.dot(a.astype(_MXU_DTYPE), b.astype(_MXU_DTYPE),
                       preferred_element_type=jnp.float32)

    def halo3(x):
        # [x(l-1), x, x(l+1)] along the channel axis -> single K=3*Cin matmul.
        lb = x.shape[0]
        row = lax.broadcasted_iota(jnp.int32, x.shape, 0)
        xm = jnp.where(row == 0, 0.0, pltpu.roll(x, 1, axis=0))
        xp = jnp.where(row == lb - 1, 0.0, pltpu.roll(x, lb - 1, axis=0))
        return jnp.concatenate([xm, x, xp], axis=1)

    # ---- Conv1d(k=3, pad=1) + GroupNorm + GELU (+ optional time bias) --------
    def conv_block(parts, name, tadd=None):
        w_refs, bgb_ref, cout, groups = conv[name]
        acc = None
        for xin, w_ref in zip(parts, w_refs):
            c = mxu_dot(halo3(xin), w_ref[...])
            acc = c if acc is None else acc + c
        bgb = bgb_ref[...]                         # rows: conv bias / GN gamma / GN beta
        y = acc + bgb[0:1, :]                      # (Lb, cout)
        lb = y.shape[0]
        inv_n = 1.0 / float(lb * (cout // groups))

        # Two-pass (centered) GroupNorm statistics, all in f32.
        sum_c = jnp.sum(y, axis=0, keepdims=True)                  # (1, cout)
        if groups == 1:
            mean = jnp.sum(sum_c, axis=1, keepdims=True) * inv_n   # (1, 1)
            centered = y - mean
            ss = jnp.sum(centered * centered, axis=0, keepdims=True)
            var = jnp.sum(ss, axis=1, keepdims=True) * inv_n
            inv_std = lax.rsqrt(var + _GN_EPS)                     # (1, 1)
        else:
            gmap, gmapt = gmaps[(cout, groups)]                    # (cout,G), (G,cout)
            mean_c = dot32(dot32(sum_c, gmap) * inv_n, gmapt)      # (1, cout)
            centered = y - mean_c
            ss = jnp.sum(centered * centered, axis=0, keepdims=True)
            var_g = dot32(ss, gmap) * inv_n                        # (1, G)
            inv_std = dot32(lax.rsqrt(var_g + _GN_EPS), gmapt)     # (1, cout)
        out = _gelu(centered * (bgb[1:2, :] * inv_std) + bgb[2:3, :])
        if tadd is not None:
            out = out + tadd                                       # (1, cout) broadcast
        return out

    def maxpool2(x):
        # MaxPool1d(2): max of even / odd rows via strided VMEM reads.
        lb, c = x.shape
        pool_scr[pl.ds(0, lb), pl.ds(0, c)] = x
        even = pool_scr[pl.ds(0, lb // 2, stride=2), pl.ds(0, c)]
        odd = pool_scr[pl.ds(1, lb // 2, stride=2), pl.ds(0, c)]
        return jnp.maximum(even, odd)

    # ---- time MLP + all six per-stage projections (tiny, f32) ----------------
    ts = tsin_ref[0]                                               # (1, time_dim)
    h = _gelu(dot32(ts, tm1_w[...]) + tm1_b[...])
    temb = dot32(h, tm2_w[...]) + tm2_b[...]                       # (1, time_dim)
    tadds = {n: dot32(temb, tproj[n][0][...]) + tproj[n][1][...]
             for n in _TPROJ_NAMES}                                # (1, cout) each

    # ---- UNet wiring: every activation stays in VMEM (per-sample) ------------
    x0 = x_ref[0]                                                  # (L, Cin)
    h = conv_block((x0,), "inc1")
    e0 = conv_block((h,), "inc2", tadds["t_inc"])                  # (L, 32)
    h = conv_block((e0,), "enc1a")
    e1 = conv_block((h,), "enc1b", tadds["t_enc1"])                # (L, 64)
    e1d = maxpool2(e1)                                             # (L/2, 64)
    h = conv_block((e1d,), "enc2a")
    e2 = conv_block((h,), "enc2b", tadds["t_enc2"])                # (L/2, 128)
    e2d = maxpool2(e2)                                             # (L/4, 128)
    h = conv_block((e2d,), "bna")
    bot = conv_block((h,), "bnb", tadds["t_bn"])                   # (L/4, 256)

    d1u = mxu_dot(up1_ref[...], bot)                               # (L/2, 256) upsample
    h = conv_block((d1u, e2), "dec1a")                             # skip concat = split conv
    d1 = conv_block((h,), "dec1b", tadds["t_dec1"])                # (L/2, 128)
    d2u = mxu_dot(up2_ref[...], d1)                                # (L, 128)
    h = conv_block((d2u, e1), "dec2a")
    d2 = conv_block((h,), "dec2b", tadds["t_dec2"])                # (L, 64)
    oc = conv_block((d2, e0), "outc1")                             # (L, 32)

    # Final 1x1 conv, lane-dense: (out_channels, 32) @ (L, 32)^T -> (out_channels, L)
    res = lax.dot_general(out_wT_ref[...], oc.astype(_MXU_DTYPE),
                          dimension_numbers=(((1,), (1,)), ((), ())),
                          preferred_element_type=jnp.float32) + out_b_ref[...]
    o_ref[0] = res


# ----------------------------------------------------------------------------
# Trace-time structural constants (per-sample; built with numpy)
# ----------------------------------------------------------------------------
def _upsample_matrix(l_in, l_out):
    # nn.Upsample(mode='linear', align_corners=True) as an (l_out, l_in) matrix.
    A = np.zeros((l_out, l_in), dtype=np.float32)
    if l_out == 1 or l_in == 1:
        A[:, 0] = 1.0
        return A
    scale = (l_in - 1) / (l_out - 1)
    for j in range(l_out):
        src = j * scale
        i0 = min(int(np.floor(src)), l_in - 1)
        i1 = min(i0 + 1, l_in - 1)
        f = src - i0
        A[j, i0] += 1.0 - f
        A[j, i1] += f
    return A


def _build_structurals(L):
    """Per-sample constants: linear-upsample matrices (bf16) and tiny group one-hot
    maps (f32) for the GroupNorm statistics."""
    arrs = [jnp.asarray(_upsample_matrix(L // 4, L // 2), dtype=jnp.bfloat16),
            jnp.asarray(_upsample_matrix(L // 2, L), dtype=jnp.bfloat16)]
    for cout, g in _GMAP_KEYS:
        gmap = (np.arange(cout)[:, None] // (cout // g)
                == np.arange(g)[None, :]).astype(np.float32)
        arrs += [jnp.asarray(gmap), jnp.asarray(np.ascontiguousarray(gmap.T))]
    return arrs


def _sinusoidal_emb(t, dim):
    # TODO(synk): sinusoidal time embedding + NCL->NLC transpose are plain-JAX glue
    # (negligible work); everything else runs in the single fused kernel.
    t = t.astype(jnp.float32)
    if t.ndim > 1:
        t = jnp.squeeze(t, axis=-1)
    half = dim // 2
    scale = jnp.log(jnp.float32(10000.0)) / (half - 1)
    freqs = jnp.exp(jnp.arange(half, dtype=jnp.float32) * -scale)
    ang = t[:, None] * freqs[None, :]
    return jnp.concatenate([jnp.sin(ang), jnp.cos(ang)], axis=-1)    # (B, dim)


# ----------------------------------------------------------------------------
# Parameter construction (deterministic, synthetic)
# ----------------------------------------------------------------------------
def _init_conv(key, cin_parts, cout):
    keys = jax.random.split(key, len(cin_parts) + 1)
    # fused tap layout: rows ordered (tap k, channel c) -> k * cin + c
    ws = tuple(jax.random.normal(k, (3 * c, cout), jnp.float32) * 0.05
               for k, c in zip(keys[:-1], cin_parts))
    bias = jax.random.normal(keys[-1], (1, cout), jnp.float32) * 0.05
    bgb = jnp.concatenate([bias,
                           jnp.ones((1, cout), jnp.float32),     # GN gamma
                           jnp.zeros((1, cout), jnp.float32)],   # GN beta
                          axis=0)
    return dict(ws=ws, bgb=bgb)


def _init_dense(key, din, dout):
    k1, k2 = jax.random.split(key)
    return dict(w=jax.random.normal(k1, (din, dout), jnp.float32) * 0.05,
                b=jax.random.normal(k2, (1, dout), jnp.float32) * 0.05)


def init_params(key, out_channels=1, time_dim=128):
    # in_channels is fixed to 2 via _CONV_SPECS (matches the module default).
    keys = iter(jax.random.split(key, 32))
    p = {}
    for name, cin_parts, cout, _ in _CONV_SPECS:
        p[name] = _init_conv(next(keys), cin_parts, cout)
    p["outc2"] = _init_dense(next(keys), 32, out_channels)          # final 1x1 conv
    p["tm1"] = _init_dense(next(keys), time_dim, time_dim * 2)
    p["tm2"] = _init_dense(next(keys), time_dim * 2, time_dim)
    for name, dim in zip(_TPROJ_NAMES, _TPROJ_DIMS):
        p[name] = _init_dense(next(keys), time_dim, dim)
    return p


# ----------------------------------------------------------------------------
# Forward pass (ImprovedDiffusionUNet, skip_last_downsample=False)
# ----------------------------------------------------------------------------
def forward(params, x, t, time_dim=128):
    # x: [B, C, L] (PyTorch NCL), t: [B, 1]
    B, cin, L = x.shape
    assert L % 4 == 0 and L // 2 > 2, "standard (non-skip) downsample path assumed"
    # Best layouts when every resolution level (L, L/2, L/4) is a multiple of 8.
    x_nlc = jnp.transpose(x.astype(jnp.float32), (0, 2, 1))          # (B, L, Cin)
    t_sin = _sinusoidal_emb(t, time_dim)[:, None, :]                 # (B, 1, time_dim)

    args, in_specs = [], []

    def add_bcast(a):
        nd = a.ndim
        args.append(a)
        in_specs.append(pl.BlockSpec(a.shape, lambda b: (0,) * nd))

    args.append(t_sin)
    in_specs.append(pl.BlockSpec((1, 1, time_dim), lambda b: (b, 0, 0)))
    args.append(x_nlc)
    in_specs.append(pl.BlockSpec((1, L, cin), lambda b: (b, 0, 0)))

    for a in _build_structurals(L):
        add_bcast(a)
    for name, _, _, _ in _CONV_SPECS:
        for w in params[name]["ws"]:
            add_bcast(w.astype(jnp.bfloat16))                       # bf16 weight storage
        add_bcast(params[name]["bgb"])
    for a in (params["tm1"]["w"], params["tm1"]["b"],
              params["tm2"]["w"], params["tm2"]["b"]):
        add_bcast(a)
    for name in _TPROJ_NAMES:
        add_bcast(params[name]["w"])
        add_bcast(params[name]["b"])
    out_ch = params["outc2"]["w"].shape[1]
    add_bcast(jnp.transpose(params["outc2"]["w"]).astype(jnp.bfloat16))  # (out_ch, 32)
    add_bcast(jnp.transpose(params["outc2"]["b"]))                        # (out_ch, 1)

    return pl.pallas_call(
        _unet_kernel,
        out_shape=jax.ShapeDtypeStruct((B, out_ch, L), jnp.float32),
        grid=(B,),
        in_specs=in_specs,
        out_specs=pl.BlockSpec((1, out_ch, L), lambda b: (b, 0, 0)),
        scratch_shapes=[pltpu.VMEM((L, 128), jnp.float32)],
        compiler_params=pltpu.CompilerParams(
            dimension_semantics=("parallel",),
            vmem_limit_bytes=32 * 1024 * 1024),
    )(*args)


if __name__ == "__main__":
    key = jax.random.PRNGKey(0)
    kx, kt, kp = jax.random.split(key, 3)
    B, Cin, L = 2, 2, 32
    x = jax.random.normal(kx, (B, Cin, L), jnp.float32)
    t = jax.random.randint(kt, (B, 1), 0, 1000).astype(jnp.float32)
    params = init_params(kp)

    out = jax.jit(forward)(params, x, t)
    out = jax.block_until_ready(out)
    assert out.shape == (B, 1, L), out.shape
    assert bool(jnp.all(jnp.isfinite(out)))
    print("KERNEL_OK")
</pallas_src>

<mosaic_0001>
module attributes {stable_mosaic.version = 11 : i64} {
  func.func @_unet_kernel(%arg0: i32, %arg1: memref<1x1x128xf32, #tpu.memory_space<vmem>>, %arg2: memref<1x32x2xf32, #tpu.memory_space<vmem>>, %arg3: memref<16x8xbf16, #tpu.memory_space<vmem>>, %arg4: memref<32x16xbf16, #tpu.memory_space<vmem>>, %arg5: memref<32x8xf32, #tpu.memory_space<vmem>>, %arg6: memref<8x32xf32, #tpu.memory_space<vmem>>, %arg7: memref<64x8xf32, #tpu.memory_space<vmem>>, %arg8: memref<8x64xf32, #tpu.memory_space<vmem>>, %arg9: memref<128x8xf32, #tpu.memory_space<vmem>>, %arg10: memref<8x128xf32, #tpu.memory_space<vmem>>, %arg11: memref<6x32xbf16, #tpu.memory_space<vmem>>, %arg12: memref<3x32xf32, #tpu.memory_space<vmem>>, %arg13: memref<96x32xbf16, #tpu.memory_space<vmem>>, %arg14: memref<3x32xf32, #tpu.memory_space<vmem>>, %arg15: memref<96x64xbf16, #tpu.memory_space<vmem>>, %arg16: memref<3x64xf32, #tpu.memory_space<vmem>>, %arg17: memref<192x64xbf16, #tpu.memory_space<vmem>>, %arg18: memref<3x64xf32, #tpu.memory_space<vmem>>, %arg19: memref<192x128xbf16, #tpu.memory_space<vmem>>, %arg20: memref<3x128xf32, #tpu.memory_space<vmem>>, %arg21: memref<384x128xbf16, #tpu.memory_space<vmem>>, %arg22: memref<3x128xf32, #tpu.memory_space<vmem>>, %arg23: memref<384x256xbf16, #tpu.memory_space<vmem>>, %arg24: memref<3x256xf32, #tpu.memory_space<vmem>>, %arg25: memref<768x256xbf16, #tpu.memory_space<vmem>>, %arg26: memref<3x256xf32, #tpu.memory_space<vmem>>, %arg27: memref<768x128xbf16, #tpu.memory_space<vmem>>, %arg28: memref<384x128xbf16, #tpu.memory_space<vmem>>, %arg29: memref<3x128xf32, #tpu.memory_space<vmem>>, %arg30: memref<384x128xbf16, #tpu.memory_space<vmem>>, %arg31: memref<3x128xf32, #tpu.memory_space<vmem>>, %arg32: memref<384x64xbf16, #tpu.memory_space<vmem>>, %arg33: memref<192x64xbf16, #tpu.memory_space<vmem>>, %arg34: memref<3x64xf32, #tpu.memory_space<vmem>>, %arg35: memref<192x64xbf16, #tpu.memory_space<vmem>>, %arg36: memref<3x64xf32, #tpu.memory_space<vmem>>, %arg37: memref<192x32xbf16, #tpu.memory_space<vmem>>, %arg38: memref<96x32xbf16, #tpu.memory_space<vmem>>, %arg39: memref<3x32xf32, #tpu.memory_space<vmem>>, %arg40: memref<128x256xf32, #tpu.memory_space<vmem>>, %arg41: memref<1x256xf32, #tpu.memory_space<vmem>>, %arg42: memref<256x128xf32, #tpu.memory_space<vmem>>, %arg43: memref<1x128xf32, #tpu.memory_space<vmem>>, %arg44: memref<128x32xf32, #tpu.memory_space<vmem>>, %arg45: memref<1x32xf32, #tpu.memory_space<vmem>>, %arg46: memref<128x64xf32, #tpu.memory_space<vmem>>, %arg47: memref<1x64xf32, #tpu.memory_space<vmem>>, %arg48: memref<128x128xf32, #tpu.memory_space<vmem>>, %arg49: memref<1x128xf32, #tpu.memory_space<vmem>>, %arg50: memref<128x256xf32, #tpu.memory_space<vmem>>, %arg51: memref<1x256xf32, #tpu.memory_space<vmem>>, %arg52: memref<128x128xf32, #tpu.memory_space<vmem>>, %arg53: memref<1x128xf32, #tpu.memory_space<vmem>>, %arg54: memref<128x64xf32, #tpu.memory_space<vmem>>, %arg55: memref<1x64xf32, #tpu.memory_space<vmem>>, %arg56: memref<1x32xbf16, #tpu.memory_space<vmem>>, %arg57: memref<1x1xf32, #tpu.memory_space<vmem>>, %arg58: memref<1x1x32xf32, #tpu.memory_space<vmem>>, %arg59: memref<32x128xf32, #tpu.memory_space<vmem>>) attributes {dimension_semantics = [#tpu.dimension_semantics<parallel>], iteration_bounds = array<i64: 2>, scalar_prefetch = 0 : i64, scratch_operands = 1 : i64, tpu.core_type = #tpu.core_type<tc>, window_params = [{transform_indices = @transform_0, window_bounds = array<i64: 1, 1, 128>}, {transform_indices = @transform_1, window_bounds = array<i64: 1, 32, 2>}, {pipeline_mode = #tpu.pipeline_mode<synchronous>, transform_indices = @transform_2, window_bounds = array<i64: 16, 8>}, {pipeline_mode = #tpu.pipeline_mode<synchronous>, transform_indices = @transform_3, window_bounds = array<i64: 32, 16>}, {pipeline_mode = #tpu.pipeline_mode<synchronous>, transform_indices = @transform_4, window_bounds = array<i64: 32, 8>}, {pipeline_mode = #tpu.pipeline_mode<synchronous>, transform_indices = @transform_5, window_bounds = array<i64: 8, 32>}, {pipeline_mode = #tpu.pipeline_mode<synchronous>, transform_indices = @transform_6, window_bounds = array<i64: 64, 8>}, {pipeline_mode = #tpu.pipeline_mode<synchronous>, transform_indices = @transform_7, window_bounds = array<i64: 8, 64>}, {pipeline_mode = #tpu.pipeline_mode<synchronous>, transform_indices = @transform_8, window_bounds = array<i64: 128, 8>}, {pipeline_mode = #tpu.pipeline_mode<synchronous>, transform_indices = @transform_9, window_bounds = array<i64: 8, 128>}, {pipeline_mode = #tpu.pipeline_mode<synchronous>, transform_indices = @transform_10, window_bounds = array<i64: 6, 32>}, {pipeline_mode = #tpu.pipeline_mode<synchronous>, transform_indices = @transform_11, window_bounds = array<i64: 3, 32>}, {pipeline_mode = #tpu.pipeline_mode<synchronous>, transform_indices = @transform_12, window_bounds = array<i64: 96, 32>}, {pipeline_mode = #tpu.pipeline_mode<synchronous>, transform_indices = @transform_13, window_bounds = array<i64: 3, 32>}, {pipeline_mode = #tpu.pipeline_mode<synchronous>, transform_indices = @transform_14, window_bounds = array<i64: 96, 64>}, {pipeline_mode = #tpu.pipeline_mode<synchronous>, transform_indices = @transform_15, window_bounds = array<i64: 3, 64>}, {pipeline_mode = #tpu.pipeline_mode<synchronous>, transform_indices = @transform_16, window_bounds = array<i64: 192, 64>}, {pipeline_mode = #tpu.pipeline_mode<synchronous>, transform_indices = @transform_17, window_bounds = array<i64: 3, 64>}, {pipeline_mode = #tpu.pipeline_mode<synchronous>, transform_indices = @transform_18, window_bounds = array<i64: 192, 128>}, {pipeline_mode = #tpu.pipeline_mode<synchronous>, transform_indices = @transform_19, window_bounds = array<i64: 3, 128>}, {pipeline_mode = #tpu.pipeline_mode<synchronous>, transform_indices = @transform_20, window_bounds = array<i64: 384, 128>}, {pipeline_mode = #tpu.pipeline_mode<synchronous>, transform_indices = @transform_21, window_bounds = array<i64: 3, 128>}, {pipeline_mode = #tpu.pipeline_mode<synchronous>, transform_indices = @transform_22, window_bounds = array<i64: 384, 256>}, {pipeline_mode = #tpu.pipeline_mode<synchronous>, transform_indices = @transform_23, window_bounds = array<i64: 3, 256>}, {pipeline_mode = #tpu.pipeline_mode<synchronous>, transform_indices = @transform_24, window_bounds = array<i64: 768, 256>}, {pipeline_mode = #tpu.pipeline_mode<synchronous>, transform_indices = @transform_25, window_bounds = array<i64: 3, 256>}, {pipeline_mode = #tpu.pipeline_mode<synchronous>, transform_indices = @transform_26, window_bounds = array<i64: 768, 128>}, {pipeline_mode = #tpu.pipeline_mode<synchronous>, transform_indices = @transform_27, window_bounds = array<i64: 384, 128>}, {pipeline_mode = #tpu.pipeline_mode<synchronous>, transform_indices = @transform_28, window_bounds = array<i64: 3, 128>}, {pipeline_mode = #tpu.pipeline_mode<synchronous>, transform_indices = @transform_29, window_bounds = array<i64: 384, 128>}, {pipeline_mode = #tpu.pipeline_mode<synchronous>, transform_indices = @transform_30, window_bounds = array<i64: 3, 128>}, {pipeline_mode = #tpu.pipeline_mode<synchronous>, transform_indices = @transform_31, window_bounds = array<i64: 384, 64>}, {pipeline_mode = #tpu.pipeline_mode<synchronous>, transform_indices = @transform_32, window_bounds = array<i64: 192, 64>}, {pipeline_mode = #tpu.pipeline_mode<synchronous>, transform_indices = @transform_33, window_bounds = array<i64: 3, 64>}, {pipeline_mode = #tpu.pipeline_mode<synchronous>, transform_indices = @transform_34, window_bounds = array<i64: 192, 64>}, {pipeline_mode = #tpu.pipeline_mode<synchronous>, transform_indices = @transform_35, window_bounds = array<i64: 3, 64>}, {pipeline_mode = #tpu.pipeline_mode<synchronous>, transform_indices = @transform_36, window_bounds = array<i64: 192, 32>}, {pipeline_mode = #tpu.pipeline_mode<synchronous>, transform_indices = @transform_37, window_bounds = array<i64: 96, 32>}, {pipeline_mode = #tpu.pipeline_mode<synchronous>, transform_indices = @transform_38, window_bounds = array<i64: 3, 32>}, {pipeline_mode = #tpu.pipeline_mode<synchronous>, transform_indices = @transform_39, window_bounds = array<i64: 128, 256>}, {pipeline_mode = #tpu.pipeline_mode<synchronous>, transform_indices = @transform_40, window_bounds = array<i64: 1, 256>}, {pipeline_mode = #tpu.pipeline_mode<synchronous>, transform_indices = @transform_41, window_bounds = array<i64: 256, 128>}, {pipeline_mode = #tpu.pipeline_mode<synchronous>, transform_indices = @transform_42, window_bounds = array<i64: 1, 128>}, {pipeline_mode = #tpu.pipeline_mode<synchronous>, transform_indices = @transform_43, window_bounds = array<i64: 128, 32>}, {pipeline_mode = #tpu.pipeline_mode<synchronous>, transform_indices = @transform_44, window_bounds = array<i64: 1, 32>}, {pipeline_mode = #tpu.pipeline_mode<synchronous>, transform_indices = @transform_45, window_bounds = array<i64: 128, 64>}, {pipeline_mode = #tpu.pipeline_mode<synchronous>, transform_indices = @transform_46, window_bounds = array<i64: 1, 64>}, {pipeline_mode = #tpu.pipeline_mode<synchronous>, transform_indices = @transform_47, window_bounds = array<i64: 128, 128>}, {pipeline_mode = #tpu.pipeline_mode<synchronous>, transform_indices = @transform_48, window_bounds = array<i64: 1, 128>}, {pipeline_mode = #tpu.pipeline_mode<synchronous>, transform_indices = @transform_49, window_bounds = array<i64: 128, 256>}, {pipeline_mode = #tpu.pipeline_mode<synchronous>, transform_indices = @transform_50, window_bounds = array<i64: 1, 256>}, {pipeline_mode = #tpu.pipeline_mode<synchronous>, transform_indices = @transform_51, window_bounds = array<i64: 128, 128>}, {pipeline_mode = #tpu.pipeline_mode<synchronous>, transform_indices = @transform_52, window_bounds = array<i64: 1, 128>}, {pipeline_mode = #tpu.pipeline_mode<synchronous>, transform_indices = @transform_53, window_bounds = array<i64: 128, 64>}, {pipeline_mode = #tpu.pipeline_mode<synchronous>, transform_indices = @transform_54, window_bounds = array<i64: 1, 64>}, {pipeline_mode = #tpu.pipeline_mode<synchronous>, transform_indices = @transform_55, window_bounds = array<i64: 1, 32>}, {pipeline_mode = #tpu.pipeline_mode<synchronous>, transform_indices = @transform_56, window_bounds = array<i64: 1, 1>}, {transform_indices = @transform_57, window_bounds = array<i64: 1, 1, 32>}]} {
    %c0 = arith.constant 0 : index
    %c0_0 = arith.constant 0 : index
    %0 = vector.load %arg5[%c0, %c0_0] : memref<32x8xf32, #tpu.memory_space<vmem>>, vector<32x8xf32>
    %c0_1 = arith.constant 0 : index
    %c0_2 = arith.constant 0 : index
    %1 = vector.load %arg6[%c0_1, %c0_2] : memref<8x32xf32, #tpu.memory_space<vmem>>, vector<8x32xf32>
    %c0_3 = arith.constant 0 : index
    %c0_4 = arith.constant 0 : index
    %2 = vector.load %arg7[%c0_3, %c0_4] : memref<64x8xf32, #tpu.memory_space<vmem>>, vector<64x8xf32>
    %c0_5 = arith.constant 0 : index
    %c0_6 = arith.constant 0 : index
    %3 = vector.load %arg8[%c0_5, %c0_6] : memref<8x64xf32, #tpu.memory_space<vmem>>, vector<8x64xf32>
    %c0_7 = arith.constant 0 : index
    %c0_8 = arith.constant 0 : index
    %4 = vector.load %arg9[%c0_7, %c0_8] : memref<128x8xf32, #tpu.memory_space<vmem>>, vector<128x8xf32>
    %c0_9 = arith.constant 0 : index
    %c0_10 = arith.constant 0 : index
    %5 = vector.load %arg10[%c0_9, %c0_10] : memref<8x128xf32, #tpu.memory_space<vmem>>, vector<8x128xf32>
    %c0_11 = arith.constant 0 : index
    %c0_12 = arith.constant 0 : index
    %c0_13 = arith.constant 0 : index
    %6 = vector.load %arg1[%c0_11, %c0_12, %c0_13] : memref<1x1x128xf32, #tpu.memory_space<vmem>>, vector<1x1x128xf32>
    %7 = vector.shape_cast %6 : vector<1x1x128xf32> to vector<1x128xf32>
    %c0_14 = arith.constant 0 : index
    %c0_15 = arith.constant 0 : index
    %8 = vector.load %arg40[%c0_14, %c0_15] : memref<128x256xf32, #tpu.memory_space<vmem>>, vector<128x256xf32>
    %cst = arith.constant dense<0.000000e+00> : vector<1x256xf32>
    %9 = tpu.matmul %7, %8, %cst {dimension_numbers = #tpu.dot_dimension_numbers<[1], [0], [0], [1], [0, 0, 1, 1], [], []>} : vector<1x128xf32>, vector<128x256xf32>, vector<1x256xf32> -> vector<1x256xf32>
    %c0_16 = arith.constant 0 : index
    %c0_17 = arith.constant 0 : index
    %10 = vector.load %arg41[%c0_16, %c0_17] : memref<1x256xf32, #tpu.memory_space<vmem>>, vector<1x256xf32>
    %11 = arith.addf %9, %10 : vector<1x256xf32>
    %cst_18 = arith.constant 5.000000e-01 : f32
    %12 = vector.broadcast %cst_18 : f32 to vector<1x256xf32>
    %13 = arith.mulf %12, %11 : vector<1x256xf32>
    %cst_19 = arith.constant 4.471500e-02 : f32
    %14 = vector.broadcast %cst_19 : f32 to vector<1x256xf32>
    %15 = arith.mulf %14, %11 : vector<1x256xf32>
    %16 = arith.mulf %15, %11 : vector<1x256xf32>
    %17 = arith.mulf %16, %11 : vector<1x256xf32>
    %18 = arith.addf %11, %17 : vector<1x256xf32>
    %cst_20 = arith.constant 0.797884583 : f32
    %19 = vector.broadcast %cst_20 : f32 to vector<1x256xf32>
    %20 = arith.mulf %19, %18 : vector<1x256xf32>
    %21 = math.tanh %20 : vector<1x256xf32>
    %cst_21 = arith.constant 1.000000e+00 : f32
    %22 = vector.broadcast %cst_21 : f32 to vector<1x256xf32>
    %23 = arith.addf %22, %21 : vector<1x256xf32>
    %24 = arith.mulf %13, %23 : vector<1x256xf32>
    %c0_22 = arith.constant 0 : index
    %c0_23 = arith.constant 0 : index
    %25 = vector.load %arg42[%c0_22, %c0_23] : memref<256x128xf32, #tpu.memory_space<vmem>>, vector<256x128xf32>
    %cst_24 = arith.constant dense<0.000000e+00> : vector<1x128xf32>
    %26 = tpu.matmul %24, %25, %cst_24 {dimension_numbers = #tpu.dot_dimension_numbers<[1], [0], [0], [1], [0, 0, 1, 1], [], []>} : vector<1x256xf32>, vector<256x128xf32>, vector<1x128xf32> -> vector<1x128xf32>
    %c0_25 = arith.constant 0 : index
    %c0_26 = arith.constant 0 : index
    %27 = vector.load %arg43[%c0_25, %c0_26] : memref<1x128xf32, #tpu.memory_space<vmem>>, vector<1x128xf32>
    %28 = arith.addf %26, %27 : vector<1x128xf32>
    %c0_27 = arith.constant 0 : index
    %c0_28 = arith.constant 0 : index
    %29 = vector.load %arg44[%c0_27, %c0_28] : memref<128x32xf32, #tpu.memory_space<vmem>>, vector<128x32xf32>
    %cst_29 = arith.constant dense<0.000000e+00> : vector<1x32xf32>
    %30 = tpu.matmul %28, %29, %cst_29 {dimension_numbers = #tpu.dot_dimension_numbers<[1], [0], [0], [1], [0, 0, 1, 1], [], []>} : vector<1x128xf32>, vector<128x32xf32>, vector<1x32xf32> -> vector<1x32xf32>
    %c0_30 = arith.constant 0 : index
    %c0_31 = arith.constant 0 : index
    %31 = vector.load %arg45[%c0_30, %c0_31] : memref<1x32xf32, #tpu.memory_space<vmem>>, vector<1x32xf32>
    %32 = arith.addf %30, %31 : vector<1x32xf32>
    %c0_32 = arith.constant 0 : index
    %c0_33 = arith.constant 0 : index
    %33 = vector.load %arg46[%c0_32, %c0_33] : memref<128x64xf32, #tpu.memory_space<vmem>>, vector<128x64xf32>
    %cst_34 = arith.constant dense<0.000000e+00> : vector<1x64xf32>
    %34 = tpu.matmul %28, %33, %cst_34 {dimension_numbers = #tpu.dot_dimension_numbers<[1], [0], [0], [1], [0, 0, 1, 1], [], []>} : vector<1x128xf32>, vector<128x64xf32>, vector<1x64xf32> -> vector<1x64xf32>
    %c0_35 = arith.constant 0 : index
    %c0_36 = arith.constant 0 : index
    %35 = vector.load %arg47[%c0_35, %c0_36] : memref<1x64xf32, #tpu.memory_space<vmem>>, vector<1x64xf32>
    %36 = arith.addf %34, %35 : vector<1x64xf32>
    %c0_37 = arith.constant 0 : index
    %c0_38 = arith.constant 0 : index
    %37 = vector.load %arg48[%c0_37, %c0_38] : memref<128x128xf32, #tpu.memory_space<vmem>>, vector<128x128xf32>
    %cst_39 = arith.constant dense<0.000000e+00> : vector<1x128xf32>
    %38 = tpu.matmul %28, %37, %cst_39 {dimension_numbers = #tpu.dot_dimension_numbers<[1], [0], [0], [1], [0, 0, 1, 1], [], []>} : vector<1x128xf32>, vector<128x128xf32>, vector<1x128xf32> -> vector<1x128xf32>
    %c0_40 = arith.constant 0 : index
    %c0_41 = arith.constant 0 : index
    %39 = vector.load %arg49[%c0_40, %c0_41] : memref<1x128xf32, #tpu.memory_space<vmem>>, vector<1x128xf32>
    %40 = arith.addf %38, %39 : vector<1x128xf32>
    %c0_42 = arith.constant 0 : index
    %c0_43 = arith.constant 0 : index
    %41 = vector.load %arg50[%c0_42, %c0_43] : memref<128x256xf32, #tpu.memory_space<vmem>>, vector<128x256xf32>
    %cst_44 = arith.constant dense<0.000000e+00> : vector<1x256xf32>
    %42 = tpu.matmul %28, %41, %cst_44 {dimension_numbers = #tpu.dot_dimension_numbers<[1], [0], [0], [1], [0, 0, 1, 1], [], []>} : vector<1x128xf32>, vector<128x256xf32>, vector<1x256xf32> -> vector<1x256xf32>
    %c0_45 = arith.constant 0 : index
    %c0_46 = arith.constant 0 : index
    %43 = vector.load %arg51[%c0_45, %c0_46] : memref<1x256xf32, #tpu.memory_space<vmem>>, vector<1x256xf32>
    %44 = arith.addf %42, %43 : vector<1x256xf32>
    %c0_47 = arith.constant 0 : index
    %c0_48 = arith.constant 0 : index
    %45 = vector.load %arg52[%c0_47, %c0_48] : memref<128x128xf32, #tpu.memory_space<vmem>>, vector<128x128xf32>
    %cst_49 = arith.constant dense<0.000000e+00> : vector<1x128xf32>
    %46 = tpu.matmul %28, %45, %cst_49 {dimension_numbers = #tpu.dot_dimension_numbers<[1], [0], [0], [1], [0, 0, 1, 1], [], []>} : vector<1x128xf32>, vector<128x128xf32>, vector<1x128xf32> -> vector<1x128xf32>
    %c0_50 = arith.constant 0 : index
    %c0_51 = arith.constant 0 : index
    %47 = vector.load %arg53[%c0_50, %c0_51] : memref<1x128xf32, #tpu.memory_space<vmem>>, vector<1x128xf32>
    %48 = arith.addf %46, %47 : vector<1x128xf32>
    %c0_52 = arith.constant 0 : index
    %c0_53 = arith.constant 0 : index
    %49 = vector.load %arg54[%c0_52, %c0_53] : memref<128x64xf32, #tpu.memory_space<vmem>>, vector<128x64xf32>
    %cst_54 = arith.constant dense<0.000000e+00> : vector<1x64xf32>
    %50 = tpu.matmul %28, %49, %cst_54 {dimension_numbers = #tpu.dot_dimension_numbers<[1], [0], [0], [1], [0, 0, 1, 1], [], []>} : vector<1x128xf32>, vector<128x64xf32>, vector<1x64xf32> -> vector<1x64xf32>
    %c0_55 = arith.constant 0 : index
    %c0_56 = arith.constant 0 : index
    %51 = vector.load %arg55[%c0_55, %c0_56] : memref<1x64xf32, #tpu.memory_space<vmem>>, vector<1x64xf32>
    %52 = arith.addf %50, %51 : vector<1x64xf32>
    %c0_57 = arith.constant 0 : index
    %c0_58 = arith.constant 0 : index
    %c0_59 = arith.constant 0 : index
    %53 = vector.load %arg2[%c0_57, %c0_58, %c0_59] : memref<1x32x2xf32, #tpu.memory_space<vmem>>, vector<1x32x2xf32>
    %54 = vector.shape_cast %53 : vector<1x32x2xf32> to vector<32x2xf32>
    %55 = tpu.iota {dimensions = array<i32: 0>} : vector<32x2xi32>
    %c0_i32 = arith.constant 0 : i32
    %56 = vector.broadcast %c0_i32 : i32 to vector<32x2xi32>
    %57 = arith.cmpi eq, %55, %56 : vector<32x2xi32>
    %c1_i32 = arith.constant 1 : i32
    %58 = tpu.dynamic_rotate %54 by %c1_i32 dim 0 : vector<32x2xf32>, i32 -> vector<32x2xf32>
    %cst_60 = arith.constant 0.000000e+00 : f32
    %59 = vector.broadcast %cst_60 : f32 to vector<32x2xf32>
    %60 = arith.select %57, %59, %58 : vector<32x2xi1>, vector<32x2xf32>
    %c31_i32 = arith.constant 31 : i32
    %61 = vector.broadcast %c31_i32 : i32 to vector<32x2xi32>
    %62 = arith.cmpi eq, %55, %61 : vector<32x2xi32>
    %c31_i32_61 = arith.constant 31 : i32
    %63 = tpu.dynamic_rotate %54 by %c31_i32_61 dim 0 : vector<32x2xf32>, i32 -> vector<32x2xf32>
    %cst_62 = arith.constant 0.000000e+00 : f32
    %64 = vector.broadcast %cst_62 : f32 to vector<32x2xf32>
    %65 = arith.select %62, %64, %63 : vector<32x2xi1>, vector<32x2xf32>
    %66 = tpu.concatenate %60, %54, %65 in 1 : vector<32x2xf32>, vector<32x2xf32>, vector<32x2xf32> -> vector<32x6xf32>
    %c0_63 = arith.constant 0 : index
    %c0_64 = arith.constant 0 : index
    %67 = vector.load %arg11[%c0_63, %c0_64] : memref<6x32xbf16, #tpu.memory_space<vmem>>, vector<6x32xbf16>
    %68 = arith.truncf %66 : vector<32x6xf32> to vector<32x6xbf16>
    %cst_65 = arith.constant dense<0.000000e+00> : vector<32x32xf32>
    %69 = tpu.matmul %68, %67, %cst_65 {dimension_numbers = #tpu.dot_dimension_numbers<[1], [0], [0], [1], [0, 0, 1, 1], [], []>} : vector<32x6xbf16>, vector<6x32xbf16>, vector<32x32xf32> -> vector<32x32xf32>
    %c0_66 = arith.constant 0 : index
    %c0_67 = arith.constant 0 : index
    %70 = vector.load %arg12[%c0_66, %c0_67] : memref<3x32xf32, #tpu.memory_space<vmem>>, vector<3x32xf32>
    %71 = vector.extract_strided_slice %70 {offsets = [0, 0], sizes = [1, 32], strides = [1, 1]} : vector<3x32xf32> to vector<1x32xf32>
    %72 = vector.broadcast %71 : vector<1x32xf32> to vector<32x32xf32>
    %73 = arith.addf %69, %72 : vector<32x32xf32>
    %cst_68 = arith.constant dense<0.000000e+00> : vector<32xf32>
    %74 = vector.multi_reduction <add>, %73, %cst_68 [0] : vector<32x32xf32> to vector<32xf32>
    %75 = vector.shape_cast %74 : vector<32xf32> to vector<1x32xf32>
    %cst_69 = arith.constant dense<0.000000e+00> : vector<1x8xf32>
    %76 = tpu.matmul %75, %0, %cst_69 {dimension_numbers = #tpu.dot_dimension_numbers<[1], [0], [0], [1], [0, 0, 1, 1], [], []>} : vector<1x32xf32>, vector<32x8xf32>, vector<1x8xf32> -> vector<1x8xf32>
    %cst_70 = arith.constant 7.812500e-03 : f32
    %77 = vector.broadcast %cst_70 : f32 to vector<1x8xf32>
    %78 = arith.mulf %76, %77 : vector<1x8xf32>
    %cst_71 = arith.constant dense<0.000000e+00> : vector<1x32xf32>
    %79 = tpu.matmul %78, %1, %cst_71 {dimension_numbers = #tpu.dot_dimension_numbers<[1], [0], [0], [1], [0, 0, 1, 1], [], []>} : vector<1x8xf32>, vector<8x32xf32>, vector<1x32xf32> -> vector<1x32xf32>
    %80 = vector.broadcast %79 : vector<1x32xf32> to vector<32x32xf32>
    %81 = arith.subf %73, %80 : vector<32x32xf32>
    %82 = arith.mulf %81, %81 : vector<32x32xf32>
    %cst_72 = arith.constant dense<0.000000e+00> : vector<32xf32>
    %83 = vector.multi_reduction <add>, %82, %cst_72 [0] : vector<32x32xf32> to vector<32xf32>
    %84 = vector.shape_cast %83 : vector<32xf32> to vector<1x32xf32>
    %cst_73 = arith.constant dense<0.000000e+00> : vector<1x8xf32>
    %85 = tpu.matmul %84, %0, %cst_73 {dimension_numbers = #tpu.dot_dimension_numbers<[1], [0], [0], [1], [0, 0, 1, 1], [], []>} : vector<1x32xf32>, vector<32x8xf32>, vector<1x8xf32> -> vector<1x8xf32>
    %cst_74 = arith.constant 7.812500e-03 : f32
    %86 = vector.broadcast %cst_74 : f32 to vector<1x8xf32>
    %87 = arith.mulf %85, %86 : vector<1x8xf32>
    %cst_75 = arith.constant 9.99999974E-6 : f32
    %88 = vector.broadcast %cst_75 : f32 to vector<1x8xf32>
    %89 = arith.addf %87, %88 : vector<1x8xf32>
    %90 = math.rsqrt %89 : vector<1x8xf32>
    %cst_76 = arith.constant dense<0.000000e+00> : vector<1x32xf32>
    %91 = tpu.matmul %90, %1, %cst_76 {dimension_numbers = #tpu.dot_dimension_numbers<[1], [0], [0], [1], [0, 0, 1, 1], [], []>} : vector<1x8xf32>, vector<8x32xf32>, vector<1x32xf32> -> vector<1x32xf32>
    %92 = vector.extract_strided_slice %70 {offsets = [1, 0], sizes = [1, 32], strides = [1, 1]} : vector<3x32xf32> to vector<1x32xf32>
    %93 = arith.mulf %92, %91 : vector<1x32xf32>
    %94 = vector.broadcast %93 : vector<1x32xf32> to vector<32x32xf32>
    %95 = arith.mulf %81, %94 : vector<32x32xf32>
    %96 = vector.extract_strided_slice %70 {offsets = [2, 0], sizes = [1, 32], strides = [1, 1]} : vector<3x32xf32> to vector<1x32xf32>
    %97 = vector.broadcast %96 : vector<1x32xf32> to vector<32x32xf32>
    %98 = arith.addf %95, %97 : vector<32x32xf32>
    %cst_77 = arith.constant 5.000000e-01 : f32
    %99 = vector.broadcast %cst_77 : f32 to vector<32x32xf32>
    %100 = arith.mulf %99, %98 : vector<32x32xf32>
    %cst_78 = arith.constant 4.471500e-02 : f32
    %101 = vector.broadcast %cst_78 : f32 to vector<32x32xf32>
    %102 = arith.mulf %101, %98 : vector<32x32xf32>
    %103 = arith.mulf %102, %98 : vector<32x32xf32>
    %104 = arith.mulf %103, %98 : vector<32x32xf32>
    %105 = arith.addf %98, %104 : vector<32x32xf32>
    %cst_79 = arith.constant 0.797884583 : f32
    %106 = vector.broadcast %cst_79 : f32 to vector<32x32xf32>
    %107 = arith.mulf %106, %105 : vector<32x32xf32>
    %108 = math.tanh %107 : vector<32x32xf32>
    %cst_80 = arith.constant 1.000000e+00 : f32
    %109 = vector.broadcast %cst_80 : f32 to vector<32x32xf32>
    %110 = arith.addf %109, %108 : vector<32x32xf32>
    %111 = arith.mulf %100, %110 : vector<32x32xf32>
    %112 = tpu.iota {dimensions = array<i32: 0>} : vector<32x32xi32>
    %c0_i32_81 = arith.constant 0 : i32
    %113 = vector.broadcast %c0_i32_81 : i32 to vector<32x32xi32>
    %114 = arith.cmpi eq, %112, %113 : vector<32x32xi32>
    %c1_i32_82 = arith.constant 1 : i32
    %115 = tpu.dynamic_rotate %111 by %c1_i32_82 dim 0 : vector<32x32xf32>, i32 -> vector<32x32xf32>
    %cst_83 = arith.constant 0.000000e+00 : f32
    %116 = vector.broadcast %cst_83 : f32 to vector<32x32xf32>
    %117 = arith.select %114, %116, %115 : vector<32x32xi1>, vector<32x32xf32>
    %c31_i32_84 = arith.constant 31 : i32
    %118 = vector.broadcast %c31_i32_84 : i32 to vector<32x32xi32>
    %119 = arith.cmpi eq, %112, %118 : vector<32x32xi32>
    %c31_i32_85 = arith.constant 31 : i32
    %120 = tpu.dynamic_rotate %111 by %c31_i32_85 dim 0 : vector<32x32xf32>, i32 -> vector<32x32xf32>
    %cst_86 = arith.constant 0.000000e+00 : f32
    %121 = vector.broadcast %cst_86 : f32 to vector<32x32xf32>
    %122 = arith.select %119, %121, %120 : vector<32x32xi1>, vector<32x32xf32>
    %123 = tpu.concatenate %117, %111, %122 in 1 : vector<32x32xf32>, vector<32x32xf32>, vector<32x32xf32> -> vector<32x96xf32>
    %c0_87 = arith.constant 0 : index
    %c0_88 = arith.constant 0 : index
    %124 = vector.load %arg13[%c0_87, %c0_88] : memref<96x32xbf16, #tpu.memory_space<vmem>>, vector<96x32xbf16>
    %125 = arith.truncf %123 : vector<32x96xf32> to vector<32x96xbf16>
    %cst_89 = arith.constant dense<0.000000e+00> : vector<32x32xf32>
    %126 = tpu.matmul %125, %124, %cst_89 {dimension_numbers = #tpu.dot_dimension_numbers<[1], [0], [0], [1], [0, 0, 1, 1], [], []>} : vector<32x96xbf16>, vector<96x32xbf16>, vector<32x32xf32> -> vector<32x32xf32>
    %c0_90 = arith.constant 0 : index
    %c0_91 = arith.constant 0 : index
    %127 = vector.load %arg14[%c0_90, %c0_91] : memref<3x32xf32, #tpu.memory_space<vmem>>, vector<3x32xf32>
    %128 = vector.extract_strided_slice %127 {offsets = [0, 0], sizes = [1, 32], strides = [1, 1]} : vector<3x32xf32> to vector<1x32xf32>
    %129 = vector.broadcast %128 : vector<1x32xf32> to vector<32x32xf32>
    %130 = arith.addf %126, %129 : vector<32x32xf32>
    %cst_92 = arith.constant dense<0.000000e+00> : vector<32xf32>
    %131 = vector.multi_reduction <add>, %130, %cst_92 [0] : vector<32x32xf32> to vector<32xf32>
    %132 = vector.shape_cast %131 : vector<32xf32> to vector<1x32xf32>
    %cst_93 = arith.constant dense<0.000000e+00> : vector<1x8xf32>
    %133 = tpu.matmul %132, %0, %cst_93 {dimension_numbers = #tpu.dot_dimension_numbers<[1], [0], [0], [1], [0, 0, 1, 1], [], []>} : vector<1x32xf32>, vector<32x8xf32>, vector<1x8xf32> -> vector<1x8xf32>
    %cst_94 = arith.constant 7.812500e-03 : f32
    %134 = vector.broadcast %cst_94 : f32 to vector<1x8xf32>
    %135 = arith.mulf %133, %134 : vector<1x8xf32>
    %cst_95 = arith.constant dense<0.000000e+00> : vector<1x32xf32>
    %136 = tpu.matmul %135, %1, %cst_95 {dimension_numbers = #tpu.dot_dimension_numbers<[1], [0], [0], [1], [0, 0, 1, 1], [], []>} : vector<1x8xf32>, vector<8x32xf32>, vector<1x32xf32> -> vector<1x32xf32>
    %137 = vector.broadcast %136 : vector<1x32xf32> to vector<32x32xf32>
    %138 = arith.subf %130, %137 : vector<32x32xf32>
    %139 = arith.mulf %138, %138 : vector<32x32xf32>
    %cst_96 = arith.constant dense<0.000000e+00> : vector<32xf32>
    %140 = vector.multi_reduction <add>, %139, %cst_96 [0] : vector<32x32xf32> to vector<32xf32>
    %141 = vector.shape_cast %140 : vector<32xf32> to vector<1x32xf32>
    %cst_97 = arith.constant dense<0.000000e+00> : vector<1x8xf32>
    %142 = tpu.matmul %141, %0, %cst_97 {dimension_numbers = #tpu.dot_dimension_numbers<[1], [0], [0], [1], [0, 0, 1, 1], [], []>} : vector<1x32xf32>, vector<32x8xf32>, vector<1x8xf32> -> vector<1x8xf32>
    %cst_98 = arith.constant 7.812500e-03 : f32
    %143 = vector.broadcast %cst_98 : f32 to vector<1x8xf32>
    %144 = arith.mulf %142, %143 : vector<1x8xf32>
    %cst_99 = arith.constant 9.99999974E-6 : f32
    %145 = vector.broadcast %cst_99 : f32 to vector<1x8xf32>
    %146 = arith.addf %144, %145 : vector<1x8xf32>
    %147 = math.rsqrt %146 : vector<1x8xf32>
    %cst_100 = arith.constant dense<0.000000e+00> : vector<1x32xf32>
    %148 = tpu.matmul %147, %1, %cst_100 {dimension_numbers = #tpu.dot_dimension_numbers<[1], [0], [0], [1], [0, 0, 1, 1], [], []>} : vector<1x8xf32>, vector<8x32xf32>, vector<1x32xf32> -> vector<1x32xf32>
    %149 = vector.extract_strided_slice %127 {offsets = [1, 0], sizes = [1, 32], strides = [1, 1]} : vector<3x32xf32> to vector<1x32xf32>
    %150 = arith.mulf %149, %148 : vector<1x32xf32>
    %151 = vector.broadcast %150 : vector<1x32xf32> to vector<32x32xf32>
    %152 = arith.mulf %138, %151 : vector<32x32xf32>
    %153 = vector.extract_strided_slice %127 {offsets = [2, 0], sizes = [1, 32], strides = [1, 1]} : vector<3x32xf32> to vector<1x32xf32>
    %154 = vector.broadcast %153 : vector<1x32xf32> to vector<32x32xf32>
    %155 = arith.addf %152, %154 : vector<32x32xf32>
    %cst_101 = arith.constant 5.000000e-01 : f32
    %156 = vector.broadcast %cst_101 : f32 to vector<32x32xf32>
    %157 = arith.mulf %156, %155 : vector<32x32xf32>
    %cst_102 = arith.constant 4.471500e-02 : f32
    %158 = vector.broadcast %cst_102 : f32 to vector<32x32xf32>
    %159 = arith.mulf %158, %155 : vector<32x32xf32>
    %160 = arith.mulf %159, %155 : vector<32x32xf32>
    %161 = arith.mulf %160, %155 : vector<32x32xf32>
    %162 = arith.addf %155, %161 : vector<32x32xf32>
    %cst_103 = arith.constant 0.797884583 : f32
    %163 = vector.broadcast %cst_103 : f32 to vector<32x32xf32>
    %164 = arith.mulf %163, %162 : vector<32x32xf32>
    %165 = math.tanh %164 : vector<32x32xf32>
    %cst_104 = arith.constant 1.000000e+00 : f32
    %166 = vector.broadcast %cst_104 : f32 to vector<32x32xf32>
    %167 = arith.addf %166, %165 : vector<32x32xf32>
    %168 = arith.mulf %157, %167 : vector<32x32xf32>
    %169 = vector.broadcast %32 : vector<1x32xf32> to vector<32x32xf32>
    %170 = arith.addf %168, %169 : vector<32x32xf32>
    %171 = tpu.iota {dimensions = array<i32: 0>} : vector<32x32xi32>
    %c0_i32_105 = arith.constant 0 : i32
    %172 = vector.broadcast %c0_i32_105 : i32 to vector<32x32xi32>
    %173 = arith.cmpi eq, %171, %172 : vector<32x32xi32>
    %c1_i32_106 = arith.constant 1 : i32
    %174 = tpu.dynamic_rotate %170 by %c1_i32_106 dim 0 : vector<32x32xf32>, i32 -> vector<32x32xf32>
    %cst_107 = arith.constant 0.000000e+00 : f32
    %175 = vector.broadcast %cst_107 : f32 to vector<32x32xf32>
    %176 = arith.select %173, %175, %174 : vector<32x32xi1>, vector<32x32xf32>
    %c31_i32_108 = arith.constant 31 : i32
    %177 = vector.broadcast %c31_i32_108 : i32 to vector<32x32xi32>
    %178 = arith.cmpi eq, %171, %177 : vector<32x32xi32>
    %c31_i32_109 = arith.constant 31 : i32
    %179 = tpu.dynamic_rotate %170 by %c31_i32_109 dim 0 : vector<32x32xf32>, i32 -> vector<32x32xf32>
    %cst_110 = arith.constant 0.000000e+00 : f32
    %180 = vector.broadcast %cst_110 : f32 to vector<32x32xf32>
    %181 = arith.select %178, %180, %179 : vector<32x32xi1>, vector<32x32xf32>
    %182 = tpu.concatenate %176, %170, %181 in 1 : vector<32x32xf32>, vector<32x32xf32>, vector<32x32xf32> -> vector<32x96xf32>
    %c0_111 = arith.constant 0 : index
    %c0_112 = arith.constant 0 : index
    %183 = vector.load %arg15[%c0_111, %c0_112] : memref<96x64xbf16, #tpu.memory_space<vmem>>, vector<96x64xbf16>
    %184 = arith.truncf %182 : vector<32x96xf32> to vector<32x96xbf16>
    %cst_113 = arith.constant dense<0.000000e+00> : vector<32x64xf32>
    %185 = tpu.matmul %184, %183, %cst_113 {dimension_numbers = #tpu.dot_dimension_numbers<[1], [0], [0], [1], [0, 0, 1, 1], [], []>} : vector<32x96xbf16>, vector<96x64xbf16>, vector<32x64xf32> -> vector<32x64xf32>
    %c0_114 = arith.constant 0 : index
    %c0_115 = arith.constant 0 : index
    %186 = vector.load %arg16[%c0_114, %c0_115] : memref<3x64xf32, #tpu.memory_space<vmem>>, vector<3x64xf32>
    %187 = vector.extract_strided_slice %186 {offsets = [0, 0], sizes = [1, 64], strides = [1, 1]} : vector<3x64xf32> to vector<1x64xf32>
    %188 = vector.broadcast %187 : vector<1x64xf32> to vector<32x64xf32>
    %189 = arith.addf %185, %188 : vector<32x64xf32>
    %cst_116 = arith.constant dense<0.000000e+00> : vector<64xf32>
    %190 = vector.multi_reduction <add>, %189, %cst_116 [0] : vector<32x64xf32> to vector<64xf32>
    %191 = vector.shape_cast %190 : vector<64xf32> to vector<1x64xf32>
    %cst_117 = arith.constant dense<0.000000e+00> : vector<1x8xf32>
    %192 = tpu.matmul %191, %2, %cst_117 {dimension_numbers = #tpu.dot_dimension_numbers<[1], [0], [0], [1], [0, 0, 1, 1], [], []>} : vector<1x64xf32>, vector<64x8xf32>, vector<1x8xf32> -> vector<1x8xf32>
    %cst_118 = arith.constant 3.906250e-03 : f32
    %193 = vector.broadcast %cst_118 : f32 to vector<1x8xf32>
    %194 = arith.mulf %192, %193 : vector<1x8xf32>
    %cst_119 = arith.constant dense<0.000000e+00> : vector<1x64xf32>
    %195 = tpu.matmul %194, %3, %cst_119 {dimension_numbers = #tpu.dot_dimension_numbers<[1], [0], [0], [1], [0, 0, 1, 1], [], []>} : vector<1x8xf32>, vector<8x64xf32>, vector<1x64xf32> -> vector<1x64xf32>
    %196 = vector.broadcast %195 : vector<1x64xf32> to vector<32x64xf32>
    %197 = arith.subf %189, %196 : vector<32x64xf32>
    %198 = arith.mulf %197, %197 : vector<32x64xf32>
    %cst_120 = arith.constant dense<0.000000e+00> : vector<64xf32>
    %199 = vector.multi_reduction <add>, %198, %cst_120 [0] : vector<32x64xf32> to vector<64xf32>
    %200 = vector.shape_cast %199 : vector<64xf32> to vector<1x64xf32>
    %cst_121 = arith.constant dense<0.000000e+00> : vector<1x8xf32>
    %201 = tpu.matmul %200, %2, %cst_121 {dimension_numbers = #tpu.dot_dimension_numbers<[1], [0], [0], [1], [0, 0, 1, 1], [], []>} : vector<1x64xf32>, vector<64x8xf32>, vector<1x8xf32> -> vector<1x8xf32>
    %cst_122 = arith.constant 3.906250e-03 : f32
    %202 = vector.broadcast %cst_122 : f32 to vector<1x8xf32>
    %203 = arith.mulf %201, %202 : vector<1x8xf32>
    %cst_123 = arith.constant 9.99999974E-6 : f32
    %204 = vector.broadcast %cst_123 : f32 to vector<1x8xf32>
    %205 = arith.addf %203, %204 : vector<1x8xf32>
    %206 = math.rsqrt %205 : vector<1x8xf32>
    %cst_124 = arith.constant dense<0.000000e+00> : vector<1x64xf32>
    %207 = tpu.matmul %206, %3, %cst_124 {dimension_numbers = #tpu.dot_dimension_numbers<[1], [0], [0], [1], [0, 0, 1, 1], [], []>} : vector<1x8xf32>, vector<8x64xf32>, vector<1x64xf32> -> vector<1x64xf32>
    %208 = vector.extract_strided_slice %186 {offsets = [1, 0], sizes = [1, 64], strides = [1, 1]} : vector<3x64xf32> to vector<1x64xf32>
    %209 = arith.mulf %208, %207 : vector<1x64xf32>
    %210 = vector.broadcast %209 : vector<1x64xf32> to vector<32x64xf32>
    %211 = arith.mulf %197, %210 : vector<32x64xf32>
    %212 = vector.extract_strided_slice %186 {offsets = [2, 0], sizes = [1, 64], strides = [1, 1]} : vector<3x64xf32> to vector<1x64xf32>
    %213 = vector.broadcast %212 : vector<1x64xf32> to vector<32x64xf32>
    %214 = arith.addf %211, %213 : vector<32x64xf32>
    %cst_125 = arith.constant 5.000000e-01 : f32
    %215 = vector.broadcast %cst_125 : f32 to vector<32x64xf32>
    %216 = arith.mulf %215, %214 : vector<32x64xf32>
    %cst_126 = arith.constant 4.471500e-02 : f32
    %217 = vector.broadcast %cst_126 : f32 to vector<32x64xf32>
    %218 = arith.mulf %217, %214 : vector<32x64xf32>
    %219 = arith.mulf %218, %214 : vector<32x64xf32>
    %220 = arith.mulf %219, %214 : vector<32x64xf32>
    %221 = arith.addf %214, %220 : vector<32x64xf32>
    %cst_127 = arith.constant 0.797884583 : f32
    %222 = vector.broadcast %cst_127 : f32 to vector<32x64xf32>
    %223 = arith.mulf %222, %221 : vector<32x64xf32>
    %224 = math.tanh %223 : vector<32x64xf32>
    %cst_128 = arith.constant 1.000000e+00 : f32
    %225 = vector.broadcast %cst_128 : f32 to vector<32x64xf32>
    %226 = arith.addf %225, %224 : vector<32x64xf32>
    %227 = arith.mulf %216, %226 : vector<32x64xf32>
    %228 = tpu.iota {dimensions = array<i32: 0>} : vector<32x64xi32>
    %c0_i32_129 = arith.constant 0 : i32
    %229 = vector.broadcast %c0_i32_129 : i32 to vector<32x64xi32>
    %230 = arith.cmpi eq, %228, %229 : vector<32x64xi32>
    %c1_i32_130 = arith.constant 1 : i32
    %231 = tpu.dynamic_rotate %227 by %c1_i32_130 dim 0 : vector<32x64xf32>, i32 -> vector<32x64xf32>
    %cst_131 = arith.constant 0.000000e+00 : f32
    %232 = vector.broadcast %cst_131 : f32 to vector<32x64xf32>
    %233 = arith.select %230, %232, %231 : vector<32x64xi1>, vector<32x64xf32>
    %c31_i32_132 = arith.constant 31 : i32
    %234 = vector.broadcast %c31_i32_132 : i32 to vector<32x64xi32>
    %235 = arith.cmpi eq, %228, %234 : vector<32x64xi32>
    %c31_i32_133 = arith.constant 31 : i32
    %236 = tpu.dynamic_rotate %227 by %c31_i32_133 dim 0 : vector<32x64xf32>, i32 -> vector<32x64xf32>
    %cst_134 = arith.constant 0.000000e+00 : f32
    %237 = vector.broadcast %cst_134 : f32 to vector<32x64xf32>
    %238 = arith.select %235, %237, %236 : vector<32x64xi1>, vector<32x64xf32>
    %239 = tpu.concatenate %233, %227, %238 in 1 : vector<32x64xf32>, vector<32x64xf32>, vector<32x64xf32> -> vector<32x192xf32>
    %c0_135 = arith.constant 0 : index
    %c0_136 = arith.constant 0 : index
    %240 = vector.load %arg17[%c0_135, %c0_136] : memref<192x64xbf16, #tpu.memory_space<vmem>>, vector<192x64xbf16>
    %241 = arith.truncf %239 : vector<32x192xf32> to vector<32x192xbf16>
    %cst_137 = arith.constant dense<0.000000e+00> : vector<32x64xf32>
    %242 = tpu.matmul %241, %240, %cst_137 {dimension_numbers = #tpu.dot_dimension_numbers<[1], [0], [0], [1], [0, 0, 1, 1], [], []>} : vector<32x192xbf16>, vector<192x64xbf16>, vector<32x64xf32> -> vector<32x64xf32>
    %c0_138 = arith.constant 0 : index
    %c0_139 = arith.constant 0 : index
    %243 = vector.load %arg18[%c0_138, %c0_139] : memref<3x64xf32, #tpu.memory_space<vmem>>, vector<3x64xf32>
    %244 = vector.extract_strided_slice %243 {offsets = [0, 0], sizes = [1, 64], strides = [1, 1]} : vector<3x64xf32> to vector<1x64xf32>
    %245 = vector.broadcast %244 : vector<1x64xf32> to vector<32x64xf32>
    %246 = arith.addf %242, %245 : vector<32x64xf32>
    %cst_140 = arith.constant dense<0.000000e+00> : vector<64xf32>
    %247 = vector.multi_reduction <add>, %246, %cst_140 [0] : vector<32x64xf32> to vector<64xf32>
    %248 = vector.shape_cast %247 : vector<64xf32> to vector<1x64xf32>
    %cst_141 = arith.constant dense<0.000000e+00> : vector<1x8xf32>
    %249 = tpu.matmul %248, %2, %cst_141 {dimension_numbers = #tpu.dot_dimension_numbers<[1], [0], [0], [1], [0, 0, 1, 1], [], []>} : vector<1x64xf32>, vector<64x8xf32>, vector<1x8xf32> -> vector<1x8xf32>
    %cst_142 = arith.constant 3.906250e-03 : f32
    %250 = vector.broadcast %cst_142 : f32 to vector<1x8xf32>
    %251 = arith.mulf %249, %250 : vector<1x8xf32>
    %cst_143 = arith.constant dense<0.000000e+00> : vector<1x64xf32>
    %252 = tpu.matmul %251, %3, %cst_143 {dimension_numbers = #tpu.dot_dimension_numbers<[1], [0], [0], [1], [0, 0, 1, 1], [], []>} : vector<1x8xf32>, vector<8x64xf32>, vector<1x64xf32> -> vector<1x64xf32>
    %253 = vector.broadcast %252 : vector<1x64xf32> to vector<32x64xf32>
    %254 = arith.subf %246, %253 : vector<32x64xf32>
    %255 = arith.mulf %254, %254 : vector<32x64xf32>
    %cst_144 = arith.constant dense<0.000000e+00> : vector<64xf32>
    %256 = vector.multi_reduction <add>, %255, %cst_144 [0] : vector<32x64xf32> to vector<64xf32>
    %257 = vector.shape_cast %256 : vector<64xf32> to vector<1x64xf32>
    %cst_145 = arith.constant dense<0.000000e+00> : vector<1x8xf32>
    %258 = tpu.matmul %257, %2, %cst_145 {dimension_numbers = #tpu.dot_dimension_numbers<[1], [0], [0], [1], [0, 0, 1, 1], [], []>} : vector<1x64xf32>, vector<64x8xf32>, vector<1x8xf32> -> vector<1x8xf32>
    %cst_146 = arith.constant 3.906250e-03 : f32
    %259 = vector.broadcast %cst_146 : f32 to vector<1x8xf32>
    %260 = arith.mulf %258, %259 : vector<1x8xf32>
    %cst_147 = arith.constant 9.99999974E-6 : f32
    %261 = vector.broadcast %cst_147 : f32 to vector<1x8xf32>
    %262 = arith.addf %260, %261 : vector<1x8xf32>
    %263 = math.rsqrt %262 : vector<1x8xf32>
    %cst_148 = arith.constant dense<0.000000e+00> : vector<1x64xf32>
    %264 = tpu.matmul %263, %3, %cst_148 {dimension_numbers = #tpu.dot_dimension_numbers<[1], [0], [0], [1], [0, 0, 1, 1], [], []>} : vector<1x8xf32>, vector<8x64xf32>, vector<1x64xf32> -> vector<1x64xf32>
    %265 = vector.extract_strided_slice %243 {offsets = [1, 0], sizes = [1, 64], strides = [1, 1]} : vector<3x64xf32> to vector<1x64xf32>
    %266 = arith.mulf %265, %264 : vector<1x64xf32>
    %267 = vector.broadcast %266 : vector<1x64xf32> to vector<32x64xf32>
    %268 = arith.mulf %254, %267 : vector<32x64xf32>
    %269 = vector.extract_strided_slice %243 {offsets = [2, 0], sizes = [1, 64], strides = [1, 1]} : vector<3x64xf32> to vector<1x64xf32>
    %270 = vector.broadcast %269 : vector<1x64xf32> to vector<32x64xf32>
    %271 = arith.addf %268, %270 : vector<32x64xf32>
    %cst_149 = arith.constant 5.000000e-01 : f32
    %272 = vector.broadcast %cst_149 : f32 to vector<32x64xf32>
    %273 = arith.mulf %272, %271 : vector<32x64xf32>
    %cst_150 = arith.constant 4.471500e-02 : f32
    %274 = vector.broadcast %cst_150 : f32 to vector<32x64xf32>
    %275 = arith.mulf %274, %271 : vector<32x64xf32>
    %276 = arith.mulf %275, %271 : vector<32x64xf32>
    %277 = arith.mulf %276, %271 : vector<32x64xf32>
    %278 = arith.addf %271, %277 : vector<32x64xf32>
    %cst_151 = arith.constant 0.797884583 : f32
    %279 = vector.broadcast %cst_151 : f32 to vector<32x64xf32>
    %280 = arith.mulf %279, %278 : vector<32x64xf32>
    %281 = math.tanh %280 : vector<32x64xf32>
    %cst_152 = arith.constant 1.000000e+00 : f32
    %282 = vector.broadcast %cst_152 : f32 to vector<32x64xf32>
    %283 = arith.addf %282, %281 : vector<32x64xf32>
    %284 = arith.mulf %273, %283 : vector<32x64xf32>
    %285 = vector.broadcast %36 : vector<1x64xf32> to vector<32x64xf32>
    %286 = arith.addf %284, %285 : vector<32x64xf32>
    %c0_153 = arith.constant 0 : index
    %c0_154 = arith.constant 0 : index
    %287 = vector.load %arg59[%c0_153, %c0_154] : memref<32x128xf32, #tpu.memory_space<vmem>>, vector<32x64xf32>
    tpu.vector_store %arg59[%c0_153, %c0_154], %286 {strides = array<i32>} : memref<32x128xf32, #tpu.memory_space<vmem>>, vector<32x64xf32>,
    %c0_155 = arith.constant 0 : index
    %c0_156 = arith.constant 0 : index
    %288 = tpu.strided_load %arg59[%c0_155, %c0_156] {strides = array<i32: 2, 1>} : memref<32x128xf32, #tpu.memory_space<vmem>>, vector<16x64xf32>
    %c1 = arith.constant 1 : index
    %c0_157 = arith.constant 0 : index
    %289 = tpu.strided_load %arg59[%c1, %c0_157] {strides = array<i32: 2, 1>} : memref<32x128xf32, #tpu.memory_space<vmem>>, vector<16x64xf32>
    %290 = arith.maximumf %288, %289 : vector<16x64xf32>
    %291 = tpu.iota {dimensions = array<i32: 0>} : vector<16x64xi32>
    %c0_i32_158 = arith.constant 0 : i32
    %292 = vector.broadcast %c0_i32_158 : i32 to vector<16x64xi32>
    %293 = arith.cmpi eq, %291, %292 : vector<16x64xi32>
    %c1_i32_159 = arith.constant 1 : i32
    %294 = tpu.dynamic_rotate %290 by %c1_i32_159 dim 0 : vector<16x64xf32>, i32 -> vector<16x64xf32>
    %cst_160 = arith.constant 0.000000e+00 : f32
    %295 = vector.broadcast %cst_160 : f32 to vector<16x64xf32>
    %296 = arith.select %293, %295, %294 : vector<16x64xi1>, vector<16x64xf32>
    %c15_i32 = arith.constant 15 : i32
    %297 = vector.broadcast %c15_i32 : i32 to vector<16x64xi32>
    %298 = arith.cmpi eq, %291, %297 : vector<16x64xi32>
    %c15_i32_161 = arith.constant 15 : i32
    %299 = tpu.dynamic_rotate %290 by %c15_i32_161 dim 0 : vector<16x64xf32>, i32 -> vector<16x64xf32>
    %cst_162 = arith.constant 0.000000e+00 : f32
    %300 = vector.broadcast %cst_162 : f32 to vector<16x64xf32>
    %301 = arith.select %298, %300, %299 : vector<16x64xi1>, vector<16x64xf32>
    %302 = tpu.concatenate %296, %290, %301 in 1 : vector<16x64xf32>, vector<16x64xf32>, vector<16x64xf32> -> vector<16x192xf32>
    %c0_163 = arith.constant 0 : index
    %c0_164 = arith.constant 0 : index
    %303 = vector.load %arg19[%c0_163, %c0_164] : memref<192x128xbf16, #tpu.memory_space<vmem>>, vector<192x128xbf16>
    %304 = arith.truncf %302 : vector<16x192xf32> to vector<16x192xbf16>
    %cst_165 = arith.constant dense<0.000000e+00> : vector<16x128xf32>
    %305 = tpu.matmul %304, %303, %cst_165 {dimension_numbers = #tpu.dot_dimension_numbers<[1], [0], [0], [1], [0, 0, 1, 1], [], []>} : vector<16x192xbf16>, vector<192x128xbf16>, vector<16x128xf32> -> vector<16x128xf32>
    %c0_166 = arith.constant 0 : index
    %c0_167 = arith.constant 0 : index
    %306 = vector.load %arg20[%c0_166, %c0_167] : memref<3x128xf32, #tpu.memory_space<vmem>>, vector<3x128xf32>
    %307 = vector.extract_strided_slice %306 {offsets = [0, 0], sizes = [1, 128], strides = [1, 1]} : vector<3x128xf32> to vector<1x128xf32>
    %308 = vector.broadcast %307 : vector<1x128xf32> to vector<16x128xf32>
    %309 = arith.addf %305, %308 : vector<16x128xf32>
    %cst_168 = arith.constant dense<0.000000e+00> : vector<128xf32>
    %310 = vector.multi_reduction <add>, %309, %cst_168 [0] : vector<16x128xf32> to vector<128xf32>
    %311 = vector.shape_cast %310 : vector<128xf32> to vector<1x128xf32>
    %cst_169 = arith.constant dense<0.000000e+00> : vector<1x8xf32>
    %312 = tpu.matmul %311, %4, %cst_169 {dimension_numbers = #tpu.dot_dimension_numbers<[1], [0], [0], [1], [0, 0, 1, 1], [], []>} : vector<1x128xf32>, vector<128x8xf32>, vector<1x8xf32> -> vector<1x8xf32>
    %cst_170 = arith.constant 3.906250e-03 : f32
    %313 = vector.broadcast %cst_170 : f32 to vector<1x8xf32>
    %314 = arith.mulf %312, %313 : vector<1x8xf32>
    %cst_171 = arith.constant dense<0.000000e+00> : vector<1x128xf32>
    %315 = tpu.matmul %314, %5, %cst_171 {dimension_numbers = #tpu.dot_dimension_numbers<[1], [0], [0], [1], [0, 0, 1, 1], [], []>} : vector<1x8xf32>, vector<8x128xf32>, vector<1x128xf32> -> vector<1x128xf32>
    %316 = vector.broadcast %315 : vector<1x128xf32> to vector<16x128xf32>
    %317 = arith.subf %309, %316 : vector<16x128xf32>
    %318 = arith.mulf %317, %317 : vector<16x128xf32>
    %cst_172 = arith.constant dense<0.000000e+00> : vector<128xf32>
    %319 = vector.multi_reduction <add>, %318, %cst_172 [0] : vector<16x128xf32> to vector<128xf32>
    %320 = vector.shape_cast %319 : vector<128xf32> to vector<1x128xf32>
    %cst_173 = arith.constant dense<0.000000e+00> : vector<1x8xf32>
    %321 = tpu.matmul %320, %4, %cst_173 {dimension_numbers = #tpu.dot_dimension_numbers<[1], [0], [0], [1], [0, 0, 1, 1], [], []>} : vector<1x128xf32>, vector<128x8xf32>, vector<1x8xf32> -> vector<1x8xf32>
    %cst_174 = arith.constant 3.906250e-03 : f32
    %322 = vector.broadcast %cst_174 : f32 to vector<1x8xf32>
    %323 = arith.mulf %321, %322 : vector<1x8xf32>
    %cst_175 = arith.constant 9.99999974E-6 : f32
    %324 = vector.broadcast %cst_175 : f32 to vector<1x8xf32>
    %325 = arith.addf %323, %324 : vector<1x8xf32>
    %326 = math.rsqrt %325 : vector<1x8xf32>
    %cst_176 = arith.constant dense<0.000000e+00> : vector<1x128xf32>
    %327 = tpu.matmul %326, %5, %cst_176 {dimension_numbers = #tpu.dot_dimension_numbers<[1], [0], [0], [1], [0, 0, 1, 1], [], []>} : vector<1x8xf32>, vector<8x128xf32>, vector<1x128xf32> -> vector<1x128xf32>
    %328 = vector.extract_strided_slice %306 {offsets = [1, 0], sizes = [1, 128], strides = [1, 1]} : vector<3x128xf32> to vector<1x128xf32>
    %329 = arith.mulf %328, %327 : vector<1x128xf32>
    %330 = vector.broadcast %329 : vector<1x128xf32> to vector<16x128xf32>
    %331 = arith.mulf %317, %330 : vector<16x128xf32>
    %332 = vector.extract_strided_slice %306 {offsets = [2, 0], sizes = [1, 128], strides = [1, 1]} : vector<3x128xf32> to vector<1x128xf32>
    %333 = vector.broadcast %332 : vector<1x128xf32> to vector<16x128xf32>
    %334 = arith.addf %331, %333 : vector<16x128xf32>
    %cst_177 = arith.constant 5.000000e-01 : f32
    %335 = vector.broadcast %cst_177 : f32 to vector<16x128xf32>
    %336 = arith.mulf %335, %334 : vector<16x128xf32>
    %cst_178 = arith.constant 4.471500e-02 : f32
    %337 = vector.broadcast %cst_178 : f32 to vector<16x128xf32>
    %338 = arith.mulf %337, %334 : vector<16x128xf32>
    %339 = arith.mulf %338, %334 : vector<16x128xf32>
    %340 = arith.mulf %339, %334 : vector<16x128xf32>
    %341 = arith.addf %334, %340 : vector<16x128xf32>
    %cst_179 = arith.constant 0.797884583 : f32
    %342 = vector.broadcast %cst_179 : f32 to vector<16x128xf32>
    %343 = arith.mulf %342, %341 : vector<16x128xf32>
    %344 = math.tanh %343 : vector<16x128xf32>
    %cst_180 = arith.constant 1.000000e+00 : f32
    %345 = vector.broadcast %cst_180 : f32 to vector<16x128xf32>
    %346 = arith.addf %345, %344 : vector<16x128xf32>
    %347 = arith.mulf %336, %346 : vector<16x128xf32>
    %348 = tpu.iota {dimensions = array<i32: 0>} : vector<16x128xi32>
    %c0_i32_181 = arith.constant 0 : i32
    %349 = vector.broadcast %c0_i32_181 : i32 to vector<16x128xi32>
    %350 = arith.cmpi eq, %348, %349 : vector<16x128xi32>
    %c1_i32_182 = arith.constant 1 : i32
    %351 = tpu.dynamic_rotate %347 by %c1_i32_182 dim 0 : vector<16x128xf32>, i32 -> vector<16x128xf32>
    %cst_183 = arith.constant 0.000000e+00 : f32
    %352 = vector.broadcast %cst_183 : f32 to vector<16x128xf32>
    %353 = arith.select %350, %352, %351 : vector<16x128xi1>, vector<16x128xf32>
    %c15_i32_184 = arith.constant 15 : i32
    %354 = vector.broadcast %c15_i32_184 : i32 to vector<16x128xi32>
    %355 = arith.cmpi eq, %348, %354 : vector<16x128xi32>
    %c15_i32_185 = arith.constant 15 : i32
    %356 = tpu.dynamic_rotate %347 by %c15_i32_185 dim 0 : vector<16x128xf32>, i32 -> vector<16x128xf32>
    %cst_186 = arith.constant 0.000000e+00 : f32
    %357 = vector.broadcast %cst_186 : f32 to vector<16x128xf32>
    %358 = arith.select %355, %357, %356 : vector<16x128xi1>, vector<16x128xf32>
    %359 = tpu.concatenate %353, %347, %358 in 1 : vector<16x128xf32>, vector<16x128xf32>, vector<16x128xf32> -> vector<16x384xf32>
    %c0_187 = arith.constant 0 : index
    %c0_188 = arith.constant 0 : index
    %360 = vector.load %arg21[%c0_187, %c0_188] : memref<384x128xbf16, #tpu.memory_space<vmem>>, vector<384x128xbf16>
    %361 = arith.truncf %359 : vector<16x384xf32> to vector<16x384xbf16>
    %cst_189 = arith.constant dense<0.000000e+00> : vector<16x128xf32>
    %362 = tpu.matmul %361, %360, %cst_189 {dimension_numbers = #tpu.dot_dimension_numbers<[1], [0], [0], [1], [0, 0, 1, 1], [], []>} : vector<16x384xbf16>, vector<384x128xbf16>, vector<16x128xf32> -> vector<16x128xf32>
    %c0_190 = arith.constant 0 : index
    %c0_191 = arith.constant 0 : index
    %363 = vector.load %arg22[%c0_190, %c0_191] : memref<3x128xf32, #tpu.memory_space<vmem>>, vector<3x128xf32>
    %364 = vector.extract_strided_slice %363 {offsets = [0, 0], sizes = [1, 128], strides = [1, 1]} : vector<3x128xf32> to vector<1x128xf32>
    %365 = vector.broadcast %364 : vector<1x128xf32> to vector<16x128xf32>
    %366 = arith.addf %362, %365 : vector<16x128xf32>
    %cst_192 = arith.constant dense<0.000000e+00> : vector<128xf32>
    %367 = vector.multi_reduction <add>, %366, %cst_192 [0] : vector<16x128xf32> to vector<128xf32>
    %368 = vector.shape_cast %367 : vector<128xf32> to vector<1x128xf32>
    %cst_193 = arith.constant dense<0.000000e+00> : vector<1x8xf32>
    %369 = tpu.matmul %368, %4, %cst_193 {dimension_numbers = #tpu.dot_dimension_numbers<[1], [0], [0], [1], [0, 0, 1, 1], [], []>} : vector<1x128xf32>, vector<128x8xf32>, vector<1x8xf32> -> vector<1x8xf32>
    %cst_194 = arith.constant 3.906250e-03 : f32
    %370 = vector.broadcast %cst_194 : f32 to vector<1x8xf32>
    %371 = arith.mulf %369, %370 : vector<1x8xf32>
    %cst_195 = arith.constant dense<0.000000e+00> : vector<1x128xf32>
    %372 = tpu.matmul %371, %5, %cst_195 {dimension_numbers = #tpu.dot_dimension_numbers<[1], [0], [0], [1], [0, 0, 1, 1], [], []>} : vector<1x8xf32>, vector<8x128xf32>, vector<1x128xf32> -> vector<1x128xf32>
    %373 = vector.broadcast %372 : vector<1x128xf32> to vector<16x128xf32>
    %374 = arith.subf %366, %373 : vector<16x128xf32>
    %375 = arith.mulf %374, %374 : vector<16x128xf32>
    %cst_196 = arith.constant dense<0.000000e+00> : vector<128xf32>
    %376 = vector.multi_reduction <add>, %375, %cst_196 [0] : vector<16x128xf32> to vector<128xf32>
    %377 = vector.shape_cast %376 : vector<128xf32> to vector<1x128xf32>
    %cst_197 = arith.constant dense<0.000000e+00> : vector<1x8xf32>
    %378 = tpu.matmul %377, %4, %cst_197 {dimension_numbers = #tpu.dot_dimension_numbers<[1], [0], [0], [1], [0, 0, 1, 1], [], []>} : vector<1x128xf32>, vector<128x8xf32>, vector<1x8xf32> -> vector<1x8xf32>
    %cst_198 = arith.constant 3.906250e-03 : f32
    %379 = vector.broadcast %cst_198 : f32 to vector<1x8xf32>
    %380 = arith.mulf %378, %379 : vector<1x8xf32>
    %cst_199 = arith.constant 9.99999974E-6 : f32
    %381 = vector.broadcast %cst_199 : f32 to vector<1x8xf32>
    %382 = arith.addf %380, %381 : vector<1x8xf32>
    %383 = math.rsqrt %382 : vector<1x8xf32>
    %cst_200 = arith.constant dense<0.000000e+00> : vector<1x128xf32>
    %384 = tpu.matmul %383, %5, %cst_200 {dimension_numbers = #tpu.dot_dimension_numbers<[1], [0], [0], [1], [0, 0, 1, 1], [], []>} : vector<1x8xf32>, vector<8x128xf32>, vector<1x128xf32> -> vector<1x128xf32>
    %385 = vector.extract_strided_slice %363 {offsets = [1, 0], sizes = [1, 128], strides = [1, 1]} : vector<3x128xf32> to vector<1x128xf32>
    %386 = arith.mulf %385, %384 : vector<1x128xf32>
    %387 = vector.broadcast %386 : vector<1x128xf32> to vector<16x128xf32>
    %388 = arith.mulf %374, %387 : vector<16x128xf32>
    %389 = vector.extract_strided_slice %363 {offsets = [2, 0], sizes = [1, 128], strides = [1, 1]} : vector<3x128xf32> to vector<1x128xf32>
    %390 = vector.broadcast %389 : vector<1x128xf32> to vector<16x128xf32>
    %391 = arith.addf %388, %390 : vector<16x128xf32>
    %cst_201 = arith.constant 5.000000e-01 : f32
    %392 = vector.broadcast %cst_201 : f32 to vector<16x128xf32>
    %393 = arith.mulf %392, %391 : vector<16x128xf32>
    %cst_202 = arith.constant 4.471500e-02 : f32
    %394 = vector.broadcast %cst_202 : f32 to vector<16x128xf32>
    %395 = arith.mulf %394, %391 : vector<16x128xf32>
    %396 = arith.mulf %395, %391 : vector<16x128xf32>
    %397 = arith.mulf %396, %391 : vector<16x128xf32>
    %398 = arith.addf %391, %397 : vector<16x128xf32>
    %cst_203 = arith.constant 0.797884583 : f32
    %399 = vector.broadcast %cst_203 : f32 to vector<16x128xf32>
    %400 = arith.mulf %399, %398 : vector<16x128xf32>
    %401 = math.tanh %400 : vector<16x128xf32>
    %cst_204 = arith.constant 1.000000e+00 : f32
    %402 = vector.broadcast %cst_204 : f32 to vector<16x128xf32>
    %403 = arith.addf %402, %401 : vector<16x128xf32>
    %404 = arith.mulf %393, %403 : vector<16x128xf32>
    %405 = vector.broadcast %40 : vector<1x128xf32> to vector<16x128xf32>
    %406 = arith.addf %404, %405 : vector<16x128xf32>
    %c0_205 = arith.constant 0 : index
    %c0_206 = arith.constant 0 : index
    %407 = vector.load %arg59[%c0_205, %c0_206] : memref<32x128xf32, #tpu.memory_space<vmem>>, vector<16x128xf32>
    tpu.vector_store %arg59[%c0_205, %c0_206], %406 {strides = array<i32>} : memref<32x128xf32, #tpu.memory_space<vmem>>, vector<16x128xf32>,
    %c0_207 = arith.constant 0 : index
    %c0_208 = arith.constant 0 : index
    %408 = tpu.strided_load %arg59[%c0_207, %c0_208] {strides = array<i32: 2, 1>} : memref<32x128xf32, #tpu.memory_space<vmem>>, vector<8x128xf32>
    %c1_209 = arith.constant 1 : index
    %c0_210 = arith.constant 0 : index
    %409 = tpu.strided_load %arg59[%c1_209, %c0_210] {strides = array<i32: 2, 1>} : memref<32x128xf32, #tpu.memory_space<vmem>>, vector<8x128xf32>
    %410 = arith.maximumf %408, %409 : vector<8x128xf32>
    %411 = tpu.iota {dimensions = array<i32: 0>} : vector<8x128xi32>
    %c0_i32_211 = arith.constant 0 : i32
    %412 = vector.broadcast %c0_i32_211 : i32 to vector<8x128xi32>
    %413 = arith.cmpi eq, %411, %412 : vector<8x128xi32>
    %c1_i32_212 = arith.constant 1 : i32
    %414 = tpu.dynamic_rotate %410 by %c1_i32_212 dim 0 : vector<8x128xf32>, i32 -> vector<8x128xf32>
    %cst_213 = arith.constant 0.000000e+00 : f32
    %415 = vector.broadcast %cst_213 : f32 to vector<8x128xf32>
    %416 = arith.select %413, %415, %414 : vector<8x128xi1>, vector<8x128xf32>
    %c7_i32 = arith.constant 7 : i32
    %417 = vector.broadcast %c7_i32 : i32 to vector<8x128xi32>
    %418 = arith.cmpi eq, %411, %417 : vector<8x128xi32>
    %c7_i32_214 = arith.constant 7 : i32
    %419 = tpu.dynamic_rotate %410 by %c7_i32_214 dim 0 : vector<8x128xf32>, i32 -> vector<8x128xf32>
    %cst_215 = arith.constant 0.000000e+00 : f32
    %420 = vector.broadcast %cst_215 : f32 to vector<8x128xf32>
    %421 = arith.select %418, %420, %419 : vector<8x128xi1>, vector<8x128xf32>
    %422 = tpu.concatenate %416, %410, %421 in 1 : vector<8x128xf32>, vector<8x128xf32>, vector<8x128xf32> -> vector<8x384xf32>
    %c0_216 = arith.constant 0 : index
    %c0_217 = arith.constant 0 : index
    %423 = vector.load %arg23[%c0_216, %c0_217] : memref<384x256xbf16, #tpu.memory_space<vmem>>, vector<384x256xbf16>
    %424 = arith.truncf %422 : vector<8x384xf32> to vector<8x384xbf16>
    %cst_218 = arith.constant dense<0.000000e+00> : vector<8x256xf32>
    %425 = tpu.matmul %424, %423, %cst_218 {dimension_numbers = #tpu.dot_dimension_numbers<[1], [0], [0], [1], [0, 0, 1, 1], [], []>} : vector<8x384xbf16>, vector<384x256xbf16>, vector<8x256xf32> -> vector<8x256xf32>
    %c0_219 = arith.constant 0 : index
    %c0_220 = arith.constant 0 : index
    %426 = vector.load %arg24[%c0_219, %c0_220] : memref<3x256xf32, #tpu.memory_space<vmem>>, vector<3x256xf32>
    %427 = vector.extract_strided_slice %426 {offsets = [0, 0], sizes = [1, 256], strides = [1, 1]} : vector<3x256xf32> to vector<1x256xf32>
    %428 = vector.broadcast %427 : vector<1x256xf32> to vector<8x256xf32>
    %429 = arith.addf %425, %428 : vector<8x256xf32>
    %cst_221 = arith.constant dense<0.000000e+00> : vector<256xf32>
    %430 = vector.multi_reduction <add>, %429, %cst_221 [0] : vector<8x256xf32> to vector<256xf32>
    %431 = vector.shape_cast %430 : vector<256xf32> to vector<1x256xf32>
    %cst_222 = arith.constant dense<0.000000e+00> : vector<1xf32>
    %432 = vector.multi_reduction <add>, %431, %cst_222 [1] : vector<1x256xf32> to vector<1xf32>
    %433 = vector.shape_cast %432 : vector<1xf32> to vector<1x1xf32>
    %cst_223 = arith.constant 4.8828125E-4 : f32
    %434 = vector.broadcast %cst_223 : f32 to vector<1x1xf32>
    %435 = arith.mulf %433, %434 : vector<1x1xf32>
    %436 = vector.broadcast %435 : vector<1x1xf32> to vector<8x256xf32>
    %437 = arith.subf %429, %436 : vector<8x256xf32>
    %438 = arith.mulf %437, %437 : vector<8x256xf32>
    %cst_224 = arith.constant dense<0.000000e+00> : vector<256xf32>
    %439 = vector.multi_reduction <add>, %438, %cst_224 [0] : vector<8x256xf32> to vector<256xf32>
    %440 = vector.shape_cast %439 : vector<256xf32> to vector<1x256xf32>
    %cst_225 = arith.constant dense<0.000000e+00> : vector<1xf32>
    %441 = vector.multi_reduction <add>, %440, %cst_225 [1] : vector<1x256xf32> to vector<1xf32>
    %442 = vector.shape_cast %441 : vector<1xf32> to vector<1x1xf32>
    %cst_226 = arith.constant 4.8828125E-4 : f32
    %443 = vector.broadcast %cst_226 : f32 to vector<1x1xf32>
    %444 = arith.mulf %442, %443 : vector<1x1xf32>
    %cst_227 = arith.constant 9.99999974E-6 : f32
    %445 = vector.broadcast %cst_227 : f32 to vector<1x1xf32>
    %446 = arith.addf %444, %445 : vector<1x1xf32>
    %447 = math.rsqrt %446 : vector<1x1xf32>
    %448 = vector.extract_strided_slice %426 {offsets = [1, 0], sizes = [1, 256], strides = [1, 1]} : vector<3x256xf32> to vector<1x256xf32>
    %449 = vector.broadcast %447 : vector<1x1xf32> to vector<1x256xf32>
    %450 = arith.mulf %448, %449 : vector<1x256xf32>
    %451 = vector.broadcast %450 : vector<1x256xf32> to vector<8x256xf32>
    %452 = arith.mulf %437, %451 : vector<8x256xf32>
    %453 = vector.extract_strided_slice %426 {offsets = [2, 0], sizes = [1, 256], strides = [1, 1]} : vector<3x256xf32> to vector<1x256xf32>
    %454 = vector.broadcast %453 : vector<1x256xf32> to vector<8x256xf32>
    %455 = arith.addf %452, %454 : vector<8x256xf32>
    %cst_228 = arith.constant 5.000000e-01 : f32
    %456 = vector.broadcast %cst_228 : f32 to vector<8x256xf32>
    %457 = arith.mulf %456, %455 : vector<8x256xf32>
    %cst_229 = arith.constant 4.471500e-02 : f32
    %458 = vector.broadcast %cst_229 : f32 to vector<8x256xf32>
    %459 = arith.mulf %458, %455 : vector<8x256xf32>
    %460 = arith.mulf %459, %455 : vector<8x256xf32>
    %461 = arith.mulf %460, %455 : vector<8x256xf32>
    %462 = arith.addf %455, %461 : vector<8x256xf32>
    %cst_230 = arith.constant 0.797884583 : f32
    %463 = vector.broadcast %cst_230 : f32 to vector<8x256xf32>
    %464 = arith.mulf %463, %462 : vector<8x256xf32>
    %465 = math.tanh %464 : vector<8x256xf32>
    %cst_231 = arith.constant 1.000000e+00 : f32
    %466 = vector.broadcast %cst_231 : f32 to vector<8x256xf32>
    %467 = arith.addf %466, %465 : vector<8x256xf32>
    %468 = arith.mulf %457, %467 : vector<8x256xf32>
    %469 = tpu.iota {dimensions = array<i32: 0>} : vector<8x256xi32>
    %c0_i32_232 = arith.constant 0 : i32
    %470 = vector.broadcast %c0_i32_232 : i32 to vector<8x256xi32>
    %471 = arith.cmpi eq, %469, %470 : vector<8x256xi32>
    %c1_i32_233 = arith.constant 1 : i32
    %472 = tpu.dynamic_rotate %468 by %c1_i32_233 dim 0 : vector<8x256xf32>, i32 -> vector<8x256xf32>
    %cst_234 = arith.constant 0.000000e+00 : f32
    %473 = vector.broadcast %cst_234 : f32 to vector<8x256xf32>
    %474 = arith.select %471, %473, %472 : vector<8x256xi1>, vector<8x256xf32>
    %c7_i32_235 = arith.constant 7 : i32
    %475 = vector.broadcast %c7_i32_235 : i32 to vector<8x256xi32>
    %476 = arith.cmpi eq, %469, %475 : vector<8x256xi32>
    %c7_i32_236 = arith.constant 7 : i32
    %477 = tpu.dynamic_rotate %468 by %c7_i32_236 dim 0 : vector<8x256xf32>, i32 -> vector<8x256xf32>
    %cst_237 = arith.constant 0.000000e+00 : f32
    %478 = vector.broadcast %cst_237 : f32 to vector<8x256xf32>
    %479 = arith.select %476, %478, %477 : vector<8x256xi1>, vector<8x256xf32>
    %480 = tpu.concatenate %474, %468, %479 in 1 : vector<8x256xf32>, vector<8x256xf32>, vector<8x256xf32> -> vector<8x768xf32>
    %c0_238 = arith.constant 0 : index
    %c0_239 = arith.constant 0 : index
    %481 = vector.load %arg25[%c0_238, %c0_239] : memref<768x256xbf16, #tpu.memory_space<vmem>>, vector<768x256xbf16>
    %482 = arith.truncf %480 : vector<8x768xf32> to vector<8x768xbf16>
    %cst_240 = arith.constant dense<0.000000e+00> : vector<8x256xf32>
    %483 = tpu.matmul %482, %481, %cst_240 {dimension_numbers = #tpu.dot_dimension_numbers<[1], [0], [0], [1], [0, 0, 1, 1], [], []>} : vector<8x768xbf16>, vector<768x256xbf16>, vector<8x256xf32> -> vector<8x256xf32>
    %c0_241 = arith.constant 0 : index
    %c0_242 = arith.constant 0 : index
    %484 = vector.load %arg26[%c0_241, %c0_242] : memref<3x256xf32, #tpu.memory_space<vmem>>, vector<3x256xf32>
    %485 = vector.extract_strided_slice %484 {offsets = [0, 0], sizes = [1, 256], strides = [1, 1]} : vector<3x256xf32> to vector<1x256xf32>
    %486 = vector.broadcast %485 : vector<1x256xf32> to vector<8x256xf32>
    %487 = arith.addf %483, %486 : vector<8x256xf32>
    %cst_243 = arith.constant dense<0.000000e+00> : vector<256xf32>
    %488 = vector.multi_reduction <add>, %487, %cst_243 [0] : vector<8x256xf32> to vector<256xf32>
    %489 = vector.shape_cast %488 : vector<256xf32> to vector<1x256xf32>
    %cst_244 = arith.constant dense<0.000000e+00> : vector<1xf32>
    %490 = vector.multi_reduction <add>, %489, %cst_244 [1] : vector<1x256xf32> to vector<1xf32>
    %491 = vector.shape_cast %490 : vector<1xf32> to vector<1x1xf32>
    %cst_245 = arith.constant 4.8828125E-4 : f32
    %492 = vector.broadcast %cst_245 : f32 to vector<1x1xf32>
    %493 = arith.mulf %491, %492 : vector<1x1xf32>
    %494 = vector.broadcast %493 : vector<1x1xf32> to vector<8x256xf32>
    %495 = arith.subf %487, %494 : vector<8x256xf32>
    %496 = arith.mulf %495, %495 : vector<8x256xf32>
    %cst_246 = arith.constant dense<0.000000e+00> : vector<256xf32>
    %497 = vector.multi_reduction <add>, %496, %cst_246 [0] : vector<8x256xf32> to vector<256xf32>
    %498 = vector.shape_cast %497 : vector<256xf32> to vector<1x256xf32>
    %cst_247 = arith.constant dense<0.000000e+00> : vector<1xf32>
    %499 = vector.multi_reduction <add>, %498, %cst_247 [1] : vector<1x256xf32> to vector<1xf32>
    %500 = vector.shape_cast %499 : vector<1xf32> to vector<1x1xf32>
    %cst_248 = arith.constant 4.8828125E-4 : f32
    %501 = vector.broadcast %cst_248 : f32 to vector<1x1xf32>
    %502 = arith.mulf %500, %501 : vector<1x1xf32>
    %cst_249 = arith.constant 9.99999974E-6 : f32
    %503 = vector.broadcast %cst_249 : f32 to vector<1x1xf32>
    %504 = arith.addf %502, %503 : vector<1x1xf32>
    %505 = math.rsqrt %504 : vector<1x1xf32>
    %506 = vector.extract_strided_slice %484 {offsets = [1, 0], sizes = [1, 256], strides = [1, 1]} : vector<3x256xf32> to vector<1x256xf32>
    %507 = vector.broadcast %505 : vector<1x1xf32> to vector<1x256xf32>
    %508 = arith.mulf %506, %507 : vector<1x256xf32>
    %509 = vector.broadcast %508 : vector<1x256xf32> to vector<8x256xf32>
    %510 = arith.mulf %495, %509 : vector<8x256xf32>
    %511 = vector.extract_strided_slice %484 {offsets = [2, 0], sizes = [1, 256], strides = [1, 1]} : vector<3x256xf32> to vector<1x256xf32>
    %512 = vector.broadcast %511 : vector<1x256xf32> to vector<8x256xf32>
    %513 = arith.addf %510, %512 : vector<8x256xf32>
    %cst_250 = arith.constant 5.000000e-01 : f32
    %514 = vector.broadcast %cst_250 : f32 to vector<8x256xf32>
    %515 = arith.mulf %514, %513 : vector<8x256xf32>
    %cst_251 = arith.constant 4.471500e-02 : f32
    %516 = vector.broadcast %cst_251 : f32 to vector<8x256xf32>
    %517 = arith.mulf %516, %513 : vector<8x256xf32>
    %518 = arith.mulf %517, %513 : vector<8x256xf32>
    %519 = arith.mulf %518, %513 : vector<8x256xf32>
    %520 = arith.addf %513, %519 : vector<8x256xf32>
    %cst_252 = arith.constant 0.797884583 : f32
    %521 = vector.broadcast %cst_252 : f32 to vector<8x256xf32>
    %522 = arith.mulf %521, %520 : vector<8x256xf32>
    %523 = math.tanh %522 : vector<8x256xf32>
    %cst_253 = arith.constant 1.000000e+00 : f32
    %524 = vector.broadcast %cst_253 : f32 to vector<8x256xf32>
    %525 = arith.addf %524, %523 : vector<8x256xf32>
    %526 = arith.mulf %515, %525 : vector<8x256xf32>
    %527 = vector.broadcast %44 : vector<1x256xf32> to vector<8x256xf32>
    %528 = arith.addf %526, %527 : vector<8x256xf32>
    %c0_254 = arith.constant 0 : index
    %c0_255 = arith.constant 0 : index
    %529 = vector.load %arg3[%c0_254, %c0_255] : memref<16x8xbf16, #tpu.memory_space<vmem>>, vector<16x8xbf16>
    %530 = arith.truncf %528 : vector<8x256xf32> to vector<8x256xbf16>
    %cst_256 = arith.constant dense<0.000000e+00> : vector<16x256xf32>
    %531 = tpu.matmul %529, %530, %cst_256 {dimension_numbers = #tpu.dot_dimension_numbers<[1], [0], [0], [1], [0, 0, 1, 1], [], []>} : vector<16x8xbf16>, vector<8x256xbf16>, vector<16x256xf32> -> vector<16x256xf32>
    %532 = tpu.iota {dimensions = array<i32: 0>} : vector<16x256xi32>
    %c0_i32_257 = arith.constant 0 : i32
    %533 = vector.broadcast %c0_i32_257 : i32 to vector<16x256xi32>
    %534 = arith.cmpi eq, %532, %533 : vector<16x256xi32>
    %c1_i32_258 = arith.constant 1 : i32
    %535 = tpu.dynamic_rotate %531 by %c1_i32_258 dim 0 : vector<16x256xf32>, i32 -> vector<16x256xf32>
    %cst_259 = arith.constant 0.000000e+00 : f32
    %536 = vector.broadcast %cst_259 : f32 to vector<16x256xf32>
    %537 = arith.select %534, %536, %535 : vector<16x256xi1>, vector<16x256xf32>
    %c15_i32_260 = arith.constant 15 : i32
    %538 = vector.broadcast %c15_i32_260 : i32 to vector<16x256xi32>
    %539 = arith.cmpi eq, %532, %538 : vector<16x256xi32>
    %c15_i32_261 = arith.constant 15 : i32
    %540 = tpu.dynamic_rotate %531 by %c15_i32_261 dim 0 : vector<16x256xf32>, i32 -> vector<16x256xf32>
    %cst_262 = arith.constant 0.000000e+00 : f32
    %541 = vector.broadcast %cst_262 : f32 to vector<16x256xf32>
    %542 = arith.select %539, %541, %540 : vector<16x256xi1>, vector<16x256xf32>
    %543 = tpu.concatenate %537, %531, %542 in 1 : vector<16x256xf32>, vector<16x256xf32>, vector<16x256xf32> -> vector<16x768xf32>
    %c0_263 = arith.constant 0 : index
    %c0_264 = arith.constant 0 : index
    %544 = vector.load %arg27[%c0_263, %c0_264] : memref<768x128xbf16, #tpu.memory_space<vmem>>, vector<768x128xbf16>
    %545 = arith.truncf %543 : vector<16x768xf32> to vector<16x768xbf16>
    %cst_265 = arith.constant dense<0.000000e+00> : vector<16x128xf32>
    %546 = tpu.matmul %545, %544, %cst_265 {dimension_numbers = #tpu.dot_dimension_numbers<[1], [0], [0], [1], [0, 0, 1, 1], [], []>} : vector<16x768xbf16>, vector<768x128xbf16>, vector<16x128xf32> -> vector<16x128xf32>
    %547 = tpu.iota {dimensions = array<i32: 0>} : vector<16x128xi32>
    %c0_i32_266 = arith.constant 0 : i32
    %548 = vector.broadcast %c0_i32_266 : i32 to vector<16x128xi32>
    %549 = arith.cmpi eq, %547, %548 : vector<16x128xi32>
    %c1_i32_267 = arith.constant 1 : i32
    %550 = tpu.dynamic_rotate %406 by %c1_i32_267 dim 0 : vector<16x128xf32>, i32 -> vector<16x128xf32>
    %cst_268 = arith.constant 0.000000e+00 : f32
    %551 = vector.broadcast %cst_268 : f32 to vector<16x128xf32>
    %552 = arith.select %549, %551, %550 : vector<16x128xi1>, vector<16x128xf32>
    %c15_i32_269 = arith.constant 15 : i32
    %553 = vector.broadcast %c15_i32_269 : i32 to vector<16x128xi32>
    %554 = arith.cmpi eq, %547, %553 : vector<16x128xi32>
    %c15_i32_270 = arith.constant 15 : i32
    %555 = tpu.dynamic_rotate %406 by %c15_i32_270 dim 0 : vector<16x128xf32>, i32 -> vector<16x128xf32>
    %cst_271 = arith.constant 0.000000e+00 : f32
    %556 = vector.broadcast %cst_271 : f32 to vector<16x128xf32>
    %557 = arith.select %554, %556, %555 : vector<16x128xi1>, vector<16x128xf32>
    %558 = tpu.concatenate %552, %406, %557 in 1 : vector<16x128xf32>, vector<16x128xf32>, vector<16x128xf32> -> vector<16x384xf32>
    %c0_272 = arith.constant 0 : index
    %c0_273 = arith.constant 0 : index
    %559 = vector.load %arg28[%c0_272, %c0_273] : memref<384x128xbf16, #tpu.memory_space<vmem>>, vector<384x128xbf16>
    %560 = arith.truncf %558 : vector<16x384xf32> to vector<16x384xbf16>
    %cst_274 = arith.constant dense<0.000000e+00> : vector<16x128xf32>
    %561 = tpu.matmul %560, %559, %cst_274 {dimension_numbers = #tpu.dot_dimension_numbers<[1], [0], [0], [1], [0, 0, 1, 1], [], []>} : vector<16x384xbf16>, vector<384x128xbf16>, vector<16x128xf32> -> vector<16x128xf32>
    %562 = arith.addf %546, %561 : vector<16x128xf32>
    %c0_275 = arith.constant 0 : index
    %c0_276 = arith.constant 0 : index
    %563 = vector.load %arg29[%c0_275, %c0_276] : memref<3x128xf32, #tpu.memory_space<vmem>>, vector<3x128xf32>
    %564 = vector.extract_strided_slice %563 {offsets = [0, 0], sizes = [1, 128], strides = [1, 1]} : vector<3x128xf32> to vector<1x128xf32>
    %565 = vector.broadcast %564 : vector<1x128xf32> to vector<16x128xf32>
    %566 = arith.addf %562, %565 : vector<16x128xf32>
    %cst_277 = arith.constant dense<0.000000e+00> : vector<128xf32>
    %567 = vector.multi_reduction <add>, %566, %cst_277 [0] : vector<16x128xf32> to vector<128xf32>
    %568 = vector.shape_cast %567 : vector<128xf32> to vector<1x128xf32>
    %cst_278 = arith.constant dense<0.000000e+00> : vector<1x8xf32>
    %569 = tpu.matmul %568, %4, %cst_278 {dimension_numbers = #tpu.dot_dimension_numbers<[1], [0], [0], [1], [0, 0, 1, 1], [], []>} : vector<1x128xf32>, vector<128x8xf32>, vector<1x8xf32> -> vector<1x8xf32>
    %cst_279 = arith.constant 3.906250e-03 : f32
    %570 = vector.broadcast %cst_279 : f32 to vector<1x8xf32>
    %571 = arith.mulf %569, %570 : vector<1x8xf32>
    %cst_280 = arith.constant dense<0.000000e+00> : vector<1x128xf32>
    %572 = tpu.matmul %571, %5, %cst_280 {dimension_numbers = #tpu.dot_dimension_numbers<[1], [0], [0], [1], [0, 0, 1, 1], [], []>} : vector<1x8xf32>, vector<8x128xf32>, vector<1x128xf32> -> vector<1x128xf32>
    %573 = vector.broadcast %572 : vector<1x128xf32> to vector<16x128xf32>
    %574 = arith.subf %566, %573 : vector<16x128xf32>
    %575 = arith.mulf %574, %574 : vector<16x128xf32>
    %cst_281 = arith.constant dense<0.000000e+00> : vector<128xf32>
    %576 = vector.multi_reduction <add>, %575, %cst_281 [0] : vector<16x128xf32> to vector<128xf32>
    %577 = vector.shape_cast %576 : vector<128xf32> to vector<1x128xf32>
    %cst_282 = arith.constant dense<0.000000e+00> : vector<1x8xf32>
    %578 = tpu.matmul %577, %4, %cst_282 {dimension_numbers = #tpu.dot_dimension_numbers<[1], [0], [0], [1], [0, 0, 1, 1], [], []>} : vector<1x128xf32>, vector<128x8xf32>, vector<1x8xf32> -> vector<1x8xf32>
    %cst_283 = arith.constant 3.906250e-03 : f32
    %579 = vector.broadcast %cst_283 : f32 to vector<1x8xf32>
    %580 = arith.mulf %578, %579 : vector<1x8xf32>
    %cst_284 = arith.constant 9.99999974E-6 : f32
    %581 = vector.broadcast %cst_284 : f32 to vector<1x8xf32>
    %582 = arith.addf %580, %581 : vector<1x8xf32>
    %583 = math.rsqrt %582 : vector<1x8xf32>
    %cst_285 = arith.constant dense<0.000000e+00> : vector<1x128xf32>
    %584 = tpu.matmul %583, %5, %cst_285 {dimension_numbers = #tpu.dot_dimension_numbers<[1], [0], [0], [1], [0, 0, 1, 1], [], []>} : vector<1x8xf32>, vector<8x128xf32>, vector<1x128xf32> -> vector<1x128xf32>
    %585 = vector.extract_strided_slice %563 {offsets = [1, 0], sizes = [1, 128], strides = [1, 1]} : vector<3x128xf32> to vector<1x128xf32>
    %586 = arith.mulf %585, %584 : vector<1x128xf32>
    %587 = vector.broadcast %586 : vector<1x128xf32> to vector<16x128xf32>
    %588 = arith.mulf %574, %587 : vector<16x128xf32>
    %589 = vector.extract_strided_slice %563 {offsets = [2, 0], sizes = [1, 128], strides = [1, 1]} : vector<3x128xf32> to vector<1x128xf32>
    %590 = vector.broadcast %589 : vector<1x128xf32> to vector<16x128xf32>
    %591 = arith.addf %588, %590 : vector<16x128xf32>
    %cst_286 = arith.constant 5.000000e-01 : f32
    %592 = vector.broadcast %cst_286 : f32 to vector<16x128xf32>
    %593 = arith.mulf %592, %591 : vector<16x128xf32>
    %cst_287 = arith.constant 4.471500e-02 : f32
    %594 = vector.broadcast %cst_287 : f32 to vector<16x128xf32>
    %595 = arith.mulf %594, %591 : vector<16x128xf32>
    %596 = arith.mulf %595, %591 : vector<16x128xf32>
    %597 = arith.mulf %596, %591 : vector<16x128xf32>
    %598 = arith.addf %591, %597 : vector<16x128xf32>
    %cst_288 = arith.constant 0.797884583 : f32
    %599 = vector.broadcast %cst_288 : f32 to vector<16x128xf32>
    %600 = arith.mulf %599, %598 : vector<16x128xf32>
    %601 = math.tanh %600 : vector<16x128xf32>
    %cst_289 = arith.constant 1.000000e+00 : f32
    %602 = vector.broadcast %cst_289 : f32 to vector<16x128xf32>
    %603 = arith.addf %602, %601 : vector<16x128xf32>
    %604 = arith.mulf %593, %603 : vector<16x128xf32>
    %605 = tpu.iota {dimensions = array<i32: 0>} : vector<16x128xi32>
    %c0_i32_290 = arith.constant 0 : i32
    %606 = vector.broadcast %c0_i32_290 : i32 to vector<16x128xi32>
    %607 = arith.cmpi eq, %605, %606 : vector<16x128xi32>
    %c1_i32_291 = arith.constant 1 : i32
    %608 = tpu.dynamic_rotate %604 by %c1_i32_291 dim 0 : vector<16x128xf32>, i32 -> vector<16x128xf32>
    %cst_292 = arith.constant 0.000000e+00 : f32
    %609 = vector.broadcast %cst_292 : f32 to vector<16x128xf32>
    %610 = arith.select %607, %609, %608 : vector<16x128xi1>, vector<16x128xf32>
    %c15_i32_293 = arith.constant 15 : i32
    %611 = vector.broadcast %c15_i32_293 : i32 to vector<16x128xi32>
    %612 = arith.cmpi eq, %605, %611 : vector<16x128xi32>
    %c15_i32_294 = arith.constant 15 : i32
    %613 = tpu.dynamic_rotate %604 by %c15_i32_294 dim 0 : vector<16x128xf32>, i32 -> vector<16x128xf32>
    %cst_295 = arith.constant 0.000000e+00 : f32
    %614 = vector.broadcast %cst_295 : f32 to vector<16x128xf32>
    %615 = arith.select %612, %614, %613 : vector<16x128xi1>, vector<16x128xf32>
    %616 = tpu.concatenate %610, %604, %615 in 1 : vector<16x128xf32>, vector<16x128xf32>, vector<16x128xf32> -> vector<16x384xf32>
    %c0_296 = arith.constant 0 : index
    %c0_297 = arith.constant 0 : index
    %617 = vector.load %arg30[%c0_296, %c0_297] : memref<384x128xbf16, #tpu.memory_space<vmem>>, vector<384x128xbf16>
    %618 = arith.truncf %616 : vector<16x384xf32> to vector<16x384xbf16>
    %cst_298 = arith.constant dense<0.000000e+00> : vector<16x128xf32>
    %619 = tpu.matmul %618, %617, %cst_298 {dimension_numbers = #tpu.dot_dimension_numbers<[1], [0], [0], [1], [0, 0, 1, 1], [], []>} : vector<16x384xbf16>, vector<384x128xbf16>, vector<16x128xf32> -> vector<16x128xf32>
    %c0_299 = arith.constant 0 : index
    %c0_300 = arith.constant 0 : index
    %620 = vector.load %arg31[%c0_299, %c0_300] : memref<3x128xf32, #tpu.memory_space<vmem>>, vector<3x128xf32>
    %621 = vector.extract_strided_slice %620 {offsets = [0, 0], sizes = [1, 128], strides = [1, 1]} : vector<3x128xf32> to vector<1x128xf32>
    %622 = vector.broadcast %621 : vector<1x128xf32> to vector<16x128xf32>
    %623 = arith.addf %619, %622 : vector<16x128xf32>
    %cst_301 = arith.constant dense<0.000000e+00> : vector<128xf32>
    %624 = vector.multi_reduction <add>, %623, %cst_301 [0] : vector<16x128xf32> to vector<128xf32>
    %625 = vector.shape_cast %624 : vector<128xf32> to vector<1x128xf32>
    %cst_302 = arith.constant dense<0.000000e+00> : vector<1x8xf32>
    %626 = tpu.matmul %625, %4, %cst_302 {dimension_numbers = #tpu.dot_dimension_numbers<[1], [0], [0], [1], [0, 0, 1, 1], [], []>} : vector<1x128xf32>, vector<128x8xf32>, vector<1x8xf32> -> vector<1x8xf32>
    %cst_303 = arith.constant 3.906250e-03 : f32
    %627 = vector.broadcast %cst_303 : f32 to vector<1x8xf32>
    %628 = arith.mulf %626, %627 : vector<1x8xf32>
    %cst_304 = arith.constant dense<0.000000e+00> : vector<1x128xf32>
    %629 = tpu.matmul %628, %5, %cst_304 {dimension_numbers = #tpu.dot_dimension_numbers<[1], [0], [0], [1], [0, 0, 1, 1], [], []>} : vector<1x8xf32>, vector<8x128xf32>, vector<1x128xf32> -> vector<1x128xf32>
    %630 = vector.broadcast %629 : vector<1x128xf32> to vector<16x128xf32>
    %631 = arith.subf %623, %630 : vector<16x128xf32>
    %632 = arith.mulf %631, %631 : vector<16x128xf32>
    %cst_305 = arith.constant dense<0.000000e+00> : vector<128xf32>
    %633 = vector.multi_reduction <add>, %632, %cst_305 [0] : vector<16x128xf32> to vector<128xf32>
    %634 = vector.shape_cast %633 : vector<128xf32> to vector<1x128xf32>
    %cst_306 = arith.constant dense<0.000000e+00> : vector<1x8xf32>
    %635 = tpu.matmul %634, %4, %cst_306 {dimension_numbers = #tpu.dot_dimension_numbers<[1], [0], [0], [1], [0, 0, 1, 1], [], []>} : vector<1x128xf32>, vector<128x8xf32>, vector<1x8xf32> -> vector<1x8xf32>
    %cst_307 = arith.constant 3.906250e-03 : f32
    %636 = vector.broadcast %cst_307 : f32 to vector<1x8xf32>
    %637 = arith.mulf %635, %636 : vector<1x8xf32>
    %cst_308 = arith.constant 9.99999974E-6 : f32
    %638 = vector.broadcast %cst_308 : f32 to vector<1x8xf32>
    %639 = arith.addf %637, %638 : vector<1x8xf32>
    %640 = math.rsqrt %639 : vector<1x8xf32>
    %cst_309 = arith.constant dense<0.000000e+00> : vector<1x128xf32>
    %641 = tpu.matmul %640, %5, %cst_309 {dimension_numbers = #tpu.dot_dimension_numbers<[1], [0], [0], [1], [0, 0, 1, 1], [], []>} : vector<1x8xf32>, vector<8x128xf32>, vector<1x128xf32> -> vector<1x128xf32>
    %642 = vector.extract_strided_slice %620 {offsets = [1, 0], sizes = [1, 128], strides = [1, 1]} : vector<3x128xf32> to vector<1x128xf32>
    %643 = arith.mulf %642, %641 : vector<1x128xf32>
    %644 = vector.broadcast %643 : vector<1x128xf32> to vector<16x128xf32>
    %645 = arith.mulf %631, %644 : vector<16x128xf32>
    %646 = vector.extract_strided_slice %620 {offsets = [2, 0], sizes = [1, 128], strides = [1, 1]} : vector<3x128xf32> to vector<1x128xf32>
    %647 = vector.broadcast %646 : vector<1x128xf32> to vector<16x128xf32>
    %648 = arith.addf %645, %647 : vector<16x128xf32>
    %cst_310 = arith.constant 5.000000e-01 : f32
    %649 = vector.broadcast %cst_310 : f32 to vector<16x128xf32>
    %650 = arith.mulf %649, %648 : vector<16x128xf32>
    %cst_311 = arith.constant 4.471500e-02 : f32
    %651 = vector.broadcast %cst_311 : f32 to vector<16x128xf32>
    %652 = arith.mulf %651, %648 : vector<16x128xf32>
    %653 = arith.mulf %652, %648 : vector<16x128xf32>
    %654 = arith.mulf %653, %648 : vector<16x128xf32>
    %655 = arith.addf %648, %654 : vector<16x128xf32>
    %cst_312 = arith.constant 0.797884583 : f32
    %656 = vector.broadcast %cst_312 : f32 to vector<16x128xf32>
    %657 = arith.mulf %656, %655 : vector<16x128xf32>
    %658 = math.tanh %657 : vector<16x128xf32>
    %cst_313 = arith.constant 1.000000e+00 : f32
    %659 = vector.broadcast %cst_313 : f32 to vector<16x128xf32>
    %660 = arith.addf %659, %658 : vector<16x128xf32>
    %661 = arith.mulf %650, %660 : vector<16x128xf32>
    %662 = vector.broadcast %48 : vector<1x128xf32> to vector<16x128xf32>
    %663 = arith.addf %661, %662 : vector<16x128xf32>
    %c0_314 = arith.constant 0 : index
    %c0_315 = arith.constant 0 : index
    %664 = vector.load %arg4[%c0_314, %c0_315] : memref<32x16xbf16, #tpu.memory_space<vmem>>, vector<32x16xbf16>
    %665 = arith.truncf %663 : vector<16x128xf32> to vector<16x128xbf16>
    %cst_316 = arith.constant dense<0.000000e+00> : vector<32x128xf32>
    %666 = tpu.matmul %664, %665, %cst_316 {dimension_numbers = #tpu.dot_dimension_numbers<[1], [0], [0], [1], [0, 0, 1, 1], [], []>} : vector<32x16xbf16>, vector<16x128xbf16>, vector<32x128xf32> -> vector<32x128xf32>
    %667 = tpu.iota {dimensions = array<i32: 0>} : vector<32x128xi32>
    %c0_i32_317 = arith.constant 0 : i32
    %668 = vector.broadcast %c0_i32_317 : i32 to vector<32x128xi32>
    %669 = arith.cmpi eq, %667, %668 : vector<32x128xi32>
    %c1_i32_318 = arith.constant 1 : i32
    %670 = tpu.dynamic_rotate %666 by %c1_i32_318 dim 0 : vector<32x128xf32>, i32 -> vector<32x128xf32>
    %cst_319 = arith.constant 0.000000e+00 : f32
    %671 = vector.broadcast %cst_319 : f32 to vector<32x128xf32>
    %672 = arith.select %669, %671, %670 : vector<32x128xi1>, vector<32x128xf32>
    %c31_i32_320 = arith.constant 31 : i32
    %673 = vector.broadcast %c31_i32_320 : i32 to vector<32x128xi32>
    %674 = arith.cmpi eq, %667, %673 : vector<32x128xi32>
    %c31_i32_321 = arith.constant 31 : i32
    %675 = tpu.dynamic_rotate %666 by %c31_i32_321 dim 0 : vector<32x128xf32>, i32 -> vector<32x128xf32>
    %cst_322 = arith.constant 0.000000e+00 : f32
    %676 = vector.broadcast %cst_322 : f32 to vector<32x128xf32>
    %677 = arith.select %674, %676, %675 : vector<32x128xi1>, vector<32x128xf32>
    %678 = tpu.concatenate %672, %666, %677 in 1 : vector<32x128xf32>, vector<32x128xf32>, vector<32x128xf32> -> vector<32x384xf32>
    %c0_323 = arith.constant 0 : index
    %c0_324 = arith.constant 0 : index
    %679 = vector.load %arg32[%c0_323, %c0_324] : memref<384x64xbf16, #tpu.memory_space<vmem>>, vector<384x64xbf16>
    %680 = arith.truncf %678 : vector<32x384xf32> to vector<32x384xbf16>
    %cst_325 = arith.constant dense<0.000000e+00> : vector<32x64xf32>
    %681 = tpu.matmul %680, %679, %cst_325 {dimension_numbers = #tpu.dot_dimension_numbers<[1], [0], [0], [1], [0, 0, 1, 1], [], []>} : vector<32x384xbf16>, vector<384x64xbf16>, vector<32x64xf32> -> vector<32x64xf32>
    %682 = tpu.iota {dimensions = array<i32: 0>} : vector<32x64xi32>
    %c0_i32_326 = arith.constant 0 : i32
    %683 = vector.broadcast %c0_i32_326 : i32 to vector<32x64xi32>
    %684 = arith.cmpi eq, %682, %683 : vector<32x64xi32>
    %c1_i32_327 = arith.constant 1 : i32
    %685 = tpu.dynamic_rotate %286 by %c1_i32_327 dim 0 : vector<32x64xf32>, i32 -> vector<32x64xf32>
    %cst_328 = arith.constant 0.000000e+00 : f32
    %686 = vector.broadcast %cst_328 : f32 to vector<32x64xf32>
    %687 = arith.select %684, %686, %685 : vector<32x64xi1>, vector<32x64xf32>
    %c31_i32_329 = arith.constant 31 : i32
    %688 = vector.broadcast %c31_i32_329 : i32 to vector<32x64xi32>
    %689 = arith.cmpi eq, %682, %688 : vector<32x64xi32>
    %c31_i32_330 = arith.constant 31 : i32
    %690 = tpu.dynamic_rotate %286 by %c31_i32_330 dim 0 : vector<32x64xf32>, i32 -> vector<32x64xf32>
    %cst_331 = arith.constant 0.000000e+00 : f32
    %691 = vector.broadcast %cst_331 : f32 to vector<32x64xf32>
    %692 = arith.select %689, %691, %690 : vector<32x64xi1>, vector<32x64xf32>
    %693 = tpu.concatenate %687, %286, %692 in 1 : vector<32x64xf32>, vector<32x64xf32>, vector<32x64xf32> -> vector<32x192xf32>
    %c0_332 = arith.constant 0 : index
    %c0_333 = arith.constant 0 : index
    %694 = vector.load %arg33[%c0_332, %c0_333] : memref<192x64xbf16, #tpu.memory_space<vmem>>, vector<192x64xbf16>
    %695 = arith.truncf %693 : vector<32x192xf32> to vector<32x192xbf16>
    %cst_334 = arith.constant dense<0.000000e+00> : vector<32x64xf32>
    %696 = tpu.matmul %695, %694, %cst_334 {dimension_numbers = #tpu.dot_dimension_numbers<[1], [0], [0], [1], [0, 0, 1, 1], [], []>} : vector<32x192xbf16>, vector<192x64xbf16>, vector<32x64xf32> -> vector<32x64xf32>
    %697 = arith.addf %681, %696 : vector<32x64xf32>
    %c0_335 = arith.constant 0 : index
    %c0_336 = arith.constant 0 : index
    %698 = vector.load %arg34[%c0_335, %c0_336] : memref<3x64xf32, #tpu.memory_space<vmem>>, vector<3x64xf32>
    %699 = vector.extract_strided_slice %698 {offsets = [0, 0], sizes = [1, 64], strides = [1, 1]} : vector<3x64xf32> to vector<1x64xf32>
    %700 = vector.broadcast %699 : vector<1x64xf32> to vector<32x64xf32>
    %701 = arith.addf %697, %700 : vector<32x64xf32>
    %cst_337 = arith.constant dense<0.000000e+00> : vector<64xf32>
    %702 = vector.multi_reduction <add>, %701, %cst_337 [0] : vector<32x64xf32> to vector<64xf32>
    %703 = vector.shape_cast %702 : vector<64xf32> to vector<1x64xf32>
    %cst_338 = arith.constant dense<0.000000e+00> : vector<1x8xf32>
    %704 = tpu.matmul %703, %2, %cst_338 {dimension_numbers = #tpu.dot_dimension_numbers<[1], [0], [0], [1], [0, 0, 1, 1], [], []>} : vector<1x64xf32>, vector<64x8xf32>, vector<1x8xf32> -> vector<1x8xf32>
    %cst_339 = arith.constant 3.906250e-03 : f32
    %705 = vector.broadcast %cst_339 : f32 to vector<1x8xf32>
    %706 = arith.mulf %704, %705 : vector<1x8xf32>
    %cst_340 = arith.constant dense<0.000000e+00> : vector<1x64xf32>
    %707 = tpu.matmul %706, %3, %cst_340 {dimension_numbers = #tpu.dot_dimension_numbers<[1], [0], [0], [1], [0, 0, 1, 1], [], []>} : vector<1x8xf32>, vector<8x64xf32>, vector<1x64xf32> -> vector<1x64xf32>
    %708 = vector.broadcast %707 : vector<1x64xf32> to vector<32x64xf32>
    %709 = arith.subf %701, %708 : vector<32x64xf32>
    %710 = arith.mulf %709, %709 : vector<32x64xf32>
    %cst_341 = arith.constant dense<0.000000e+00> : vector<64xf32>
    %711 = vector.multi_reduction <add>, %710, %cst_341 [0] : vector<32x64xf32> to vector<64xf32>
    %712 = vector.shape_cast %711 : vector<64xf32> to vector<1x64xf32>
    %cst_342 = arith.constant dense<0.000000e+00> : vector<1x8xf32>
    %713 = tpu.matmul %712, %2, %cst_342 {dimension_numbers = #tpu.dot_dimension_numbers<[1], [0], [0], [1], [0, 0, 1, 1], [], []>} : vector<1x64xf32>, vector<64x8xf32>, vector<1x8xf32> -> vector<1x8xf32>
    %cst_343 = arith.constant 3.906250e-03 : f32
    %714 = vector.broadcast %cst_343 : f32 to vector<1x8xf32>
    %715 = arith.mulf %713, %714 : vector<1x8xf32>
    %cst_344 = arith.constant 9.99999974E-6 : f32
    %716 = vector.broadcast %cst_344 : f32 to vector<1x8xf32>
    %717 = arith.addf %715, %716 : vector<1x8xf32>
    %718 = math.rsqrt %717 : vector<1x8xf32>
    %cst_345 = arith.constant dense<0.000000e+00> : vector<1x64xf32>
    %719 = tpu.matmul %718, %3, %cst_345 {dimension_numbers = #tpu.dot_dimension_numbers<[1], [0], [0], [1], [0, 0, 1, 1], [], []>} : vector<1x8xf32>, vector<8x64xf32>, vector<1x64xf32> -> vector<1x64xf32>
    %720 = vector.extract_strided_slice %698 {offsets = [1, 0], sizes = [1, 64], strides = [1, 1]} : vector<3x64xf32> to vector<1x64xf32>
    %721 = arith.mulf %720, %719 : vector<1x64xf32>
    %722 = vector.broadcast %721 : vector<1x64xf32> to vector<32x64xf32>
    %723 = arith.mulf %709, %722 : vector<32x64xf32>
    %724 = vector.extract_strided_slice %698 {offsets = [2, 0], sizes = [1, 64], strides = [1, 1]} : vector<3x64xf32> to vector<1x64xf32>
    %725 = vector.broadcast %724 : vector<1x64xf32> to vector<32x64xf32>
    %726 = arith.addf %723, %725 : vector<32x64xf32>
    %cst_346 = arith.constant 5.000000e-01 : f32
    %727 = vector.broadcast %cst_346 : f32 to vector<32x64xf32>
    %728 = arith.mulf %727, %726 : vector<32x64xf32>
    %cst_347 = arith.constant 4.471500e-02 : f32
    %729 = vector.broadcast %cst_347 : f32 to vector<32x64xf32>
    %730 = arith.mulf %729, %726 : vector<32x64xf32>
    %731 = arith.mulf %730, %726 : vector<32x64xf32>
    %732 = arith.mulf %731, %726 : vector<32x64xf32>
    %733 = arith.addf %726, %732 : vector<32x64xf32>
    %cst_348 = arith.constant 0.797884583 : f32
    %734 = vector.broadcast %cst_348 : f32 to vector<32x64xf32>
    %735 = arith.mulf %734, %733 : vector<32x64xf32>
    %736 = math.tanh %735 : vector<32x64xf32>
    %cst_349 = arith.constant 1.000000e+00 : f32
    %737 = vector.broadcast %cst_349 : f32 to vector<32x64xf32>
    %738 = arith.addf %737, %736 : vector<32x64xf32>
    %739 = arith.mulf %728, %738 : vector<32x64xf32>
    %740 = tpu.iota {dimensions = array<i32: 0>} : vector<32x64xi32>
    %c0_i32_350 = arith.constant 0 : i32
    %741 = vector.broadcast %c0_i32_350 : i32 to vector<32x64xi32>
    %742 = arith.cmpi eq, %740, %741 : vector<32x64xi32>
    %c1_i32_351 = arith.constant 1 : i32
    %743 = tpu.dynamic_rotate %739 by %c1_i32_351 dim 0 : vector<32x64xf32>, i32 -> vector<32x64xf32>
    %cst_352 = arith.constant 0.000000e+00 : f32
    %744 = vector.broadcast %cst_352 : f32 to vector<32x64xf32>
    %745 = arith.select %742, %744, %743 : vector<32x64xi1>, vector<32x64xf32>
    %c31_i32_353 = arith.constant 31 : i32
    %746 = vector.broadcast %c31_i32_353 : i32 to vector<32x64xi32>
    %747 = arith.cmpi eq, %740, %746 : vector<32x64xi32>
    %c31_i32_354 = arith.constant 31 : i32
    %748 = tpu.dynamic_rotate %739 by %c31_i32_354 dim 0 : vector<32x64xf32>, i32 -> vector<32x64xf32>
    %cst_355 = arith.constant 0.000000e+00 : f32
    %749 = vector.broadcast %cst_355 : f32 to vector<32x64xf32>
    %750 = arith.select %747, %749, %748 : vector<32x64xi1>, vector<32x64xf32>
    %751 = tpu.concatenate %745, %739, %750 in 1 : vector<32x64xf32>, vector<32x64xf32>, vector<32x64xf32> -> vector<32x192xf32>
    %c0_356 = arith.constant 0 : index
    %c0_357 = arith.constant 0 : index
    %752 = vector.load %arg35[%c0_356, %c0_357] : memref<192x64xbf16, #tpu.memory_space<vmem>>, vector<192x64xbf16>
    %753 = arith.truncf %751 : vector<32x192xf32> to vector<32x192xbf16>
    %cst_358 = arith.constant dense<0.000000e+00> : vector<32x64xf32>
    %754 = tpu.matmul %753, %752, %cst_358 {dimension_numbers = #tpu.dot_dimension_numbers<[1], [0], [0], [1], [0, 0, 1, 1], [], []>} : vector<32x192xbf16>, vector<192x64xbf16>, vector<32x64xf32> -> vector<32x64xf32>
    %c0_359 = arith.constant 0 : index
    %c0_360 = arith.constant 0 : index
    %755 = vector.load %arg36[%c0_359, %c0_360] : memref<3x64xf32, #tpu.memory_space<vmem>>, vector<3x64xf32>
    %756 = vector.extract_strided_slice %755 {offsets = [0, 0], sizes = [1, 64], strides = [1, 1]} : vector<3x64xf32> to vector<1x64xf32>
    %757 = vector.broadcast %756 : vector<1x64xf32> to vector<32x64xf32>
    %758 = arith.addf %754, %757 : vector<32x64xf32>
    %cst_361 = arith.constant dense<0.000000e+00> : vector<64xf32>
    %759 = vector.multi_reduction <add>, %758, %cst_361 [0] : vector<32x64xf32> to vector<64xf32>
    %760 = vector.shape_cast %759 : vector<64xf32> to vector<1x64xf32>
    %cst_362 = arith.constant dense<0.000000e+00> : vector<1x8xf32>
    %761 = tpu.matmul %760, %2, %cst_362 {dimension_numbers = #tpu.dot_dimension_numbers<[1], [0], [0], [1], [0, 0, 1, 1], [], []>} : vector<1x64xf32>, vector<64x8xf32>, vector<1x8xf32> -> vector<1x8xf32>
    %cst_363 = arith.constant 3.906250e-03 : f32
    %762 = vector.broadcast %cst_363 : f32 to vector<1x8xf32>
    %763 = arith.mulf %761, %762 : vector<1x8xf32>
    %cst_364 = arith.constant dense<0.000000e+00> : vector<1x64xf32>
    %764 = tpu.matmul %763, %3, %cst_364 {dimension_numbers = #tpu.dot_dimension_numbers<[1], [0], [0], [1], [0, 0, 1, 1], [], []>} : vector<1x8xf32>, vector<8x64xf32>, vector<1x64xf32> -> vector<1x64xf32>
    %765 = vector.broadcast %764 : vector<1x64xf32> to vector<32x64xf32>
    %766 = arith.subf %758, %765 : vector<32x64xf32>
    %767 = arith.mulf %766, %766 : vector<32x64xf32>
    %cst_365 = arith.constant dense<0.000000e+00> : vector<64xf32>
    %768 = vector.multi_reduction <add>, %767, %cst_365 [0] : vector<32x64xf32> to vector<64xf32>
    %769 = vector.shape_cast %768 : vector<64xf32> to vector<1x64xf32>
    %cst_366 = arith.constant dense<0.000000e+00> : vector<1x8xf32>
    %770 = tpu.matmul %769, %2, %cst_366 {dimension_numbers = #tpu.dot_dimension_numbers<[1], [0], [0], [1], [0, 0, 1, 1], [], []>} : vector<1x64xf32>, vector<64x8xf32>, vector<1x8xf32> -> vector<1x8xf32>
    %cst_367 = arith.constant 3.906250e-03 : f32
    %771 = vector.broadcast %cst_367 : f32 to vector<1x8xf32>
    %772 = arith.mulf %770, %771 : vector<1x8xf32>
    %cst_368 = arith.constant 9.99999974E-6 : f32
    %773 = vector.broadcast %cst_368 : f32 to vector<1x8xf32>
    %774 = arith.addf %772, %773 : vector<1x8xf32>
    %775 = math.rsqrt %774 : vector<1x8xf32>
    %cst_369 = arith.constant dense<0.000000e+00> : vector<1x64xf32>
    %776 = tpu.matmul %775, %3, %cst_369 {dimension_numbers = #tpu.dot_dimension_numbers<[1], [0], [0], [1], [0, 0, 1, 1], [], []>} : vector<1x8xf32>, vector<8x64xf32>, vector<1x64xf32> -> vector<1x64xf32>
    %777 = vector.extract_strided_slice %755 {offsets = [1, 0], sizes = [1, 64], strides = [1, 1]} : vector<3x64xf32> to vector<1x64xf32>
    %778 = arith.mulf %777, %776 : vector<1x64xf32>
    %779 = vector.broadcast %778 : vector<1x64xf32> to vector<32x64xf32>
    %780 = arith.mulf %766, %779 : vector<32x64xf32>
    %781 = vector.extract_strided_slice %755 {offsets = [2, 0], sizes = [1, 64], strides = [1, 1]} : vector<3x64xf32> to vector<1x64xf32>
    %782 = vector.broadcast %781 : vector<1x64xf32> to vector<32x64xf32>
    %783 = arith.addf %780, %782 : vector<32x64xf32>
    %cst_370 = arith.constant 5.000000e-01 : f32
    %784 = vector.broadcast %cst_370 : f32 to vector<32x64xf32>
    %785 = arith.mulf %784, %783 : vector<32x64xf32>
    %cst_371 = arith.constant 4.471500e-02 : f32
    %786 = vector.broadcast %cst_371 : f32 to vector<32x64xf32>
    %787 = arith.mulf %786, %783 : vector<32x64xf32>
    %788 = arith.mulf %787, %783 : vector<32x64xf32>
    %789 = arith.mulf %788, %783 : vector<32x64xf32>
    %790 = arith.addf %783, %789 : vector<32x64xf32>
    %cst_372 = arith.constant 0.797884583 : f32
    %791 = vector.broadcast %cst_372 : f32 to vector<32x64xf32>
    %792 = arith.mulf %791, %790 : vector<32x64xf32>
    %793 = math.tanh %792 : vector<32x64xf32>
    %cst_373 = arith.constant 1.000000e+00 : f32
    %794 = vector.broadcast %cst_373 : f32 to vector<32x64xf32>
    %795 = arith.addf %794, %793 : vector<32x64xf32>
    %796 = arith.mulf %785, %795 : vector<32x64xf32>
    %797 = vector.broadcast %52 : vector<1x64xf32> to vector<32x64xf32>
    %798 = arith.addf %796, %797 : vector<32x64xf32>
    %799 = tpu.iota {dimensions = array<i32: 0>} : vector<32x64xi32>
    %c0_i32_374 = arith.constant 0 : i32
    %800 = vector.broadcast %c0_i32_374 : i32 to vector<32x64xi32>
    %801 = arith.cmpi eq, %799, %800 : vector<32x64xi32>
    %c1_i32_375 = arith.constant 1 : i32
    %802 = tpu.dynamic_rotate %798 by %c1_i32_375 dim 0 : vector<32x64xf32>, i32 -> vector<32x64xf32>
    %cst_376 = arith.constant 0.000000e+00 : f32
    %803 = vector.broadcast %cst_376 : f32 to vector<32x64xf32>
    %804 = arith.select %801, %803, %802 : vector<32x64xi1>, vector<32x64xf32>
    %c31_i32_377 = arith.constant 31 : i32
    %805 = vector.broadcast %c31_i32_377 : i32 to vector<32x64xi32>
    %806 = arith.cmpi eq, %799, %805 : vector<32x64xi32>
    %c31_i32_378 = arith.constant 31 : i32
    %807 = tpu.dynamic_rotate %798 by %c31_i32_378 dim 0 : vector<32x64xf32>, i32 -> vector<32x64xf32>
    %cst_379 = arith.constant 0.000000e+00 : f32
    %808 = vector.broadcast %cst_379 : f32 to vector<32x64xf32>
    %809 = arith.select %806, %808, %807 : vector<32x64xi1>, vector<32x64xf32>
    %810 = tpu.concatenate %804, %798, %809 in 1 : vector<32x64xf32>, vector<32x64xf32>, vector<32x64xf32> -> vector<32x192xf32>
    %c0_380 = arith.constant 0 : index
    %c0_381 = arith.constant 0 : index
    %811 = vector.load %arg37[%c0_380, %c0_381] : memref<192x32xbf16, #tpu.memory_space<vmem>>, vector<192x32xbf16>
    %812 = arith.truncf %810 : vector<32x192xf32> to vector<32x192xbf16>
    %cst_382 = arith.constant dense<0.000000e+00> : vector<32x32xf32>
    %813 = tpu.matmul %812, %811, %cst_382 {dimension_numbers = #tpu.dot_dimension_numbers<[1], [0], [0], [1], [0, 0, 1, 1], [], []>} : vector<32x192xbf16>, vector<192x32xbf16>, vector<32x32xf32> -> vector<32x32xf32>
    %814 = tpu.iota {dimensions = array<i32: 0>} : vector<32x32xi32>
    %c0_i32_383 = arith.constant 0 : i32
    %815 = vector.broadcast %c0_i32_383 : i32 to vector<32x32xi32>
    %816 = arith.cmpi eq, %814, %815 : vector<32x32xi32>
    %c1_i32_384 = arith.constant 1 : i32
    %817 = tpu.dynamic_rotate %170 by %c1_i32_384 dim 0 : vector<32x32xf32>, i32 -> vector<32x32xf32>
    %cst_385 = arith.constant 0.000000e+00 : f32
    %818 = vector.broadcast %cst_385 : f32 to vector<32x32xf32>
    %819 = arith.select %816, %818, %817 : vector<32x32xi1>, vector<32x32xf32>
    %c31_i32_386 = arith.constant 31 : i32
    %820 = vector.broadcast %c31_i32_386 : i32 to vector<32x32xi32>
    %821 = arith.cmpi eq, %814, %820 : vector<32x32xi32>
    %c31_i32_387 = arith.constant 31 : i32
    %822 = tpu.dynamic_rotate %170 by %c31_i32_387 dim 0 : vector<32x32xf32>, i32 -> vector<32x32xf32>
    %cst_388 = arith.constant 0.000000e+00 : f32
    %823 = vector.broadcast %cst_388 : f32 to vector<32x32xf32>
    %824 = arith.select %821, %823, %822 : vector<32x32xi1>, vector<32x32xf32>
    %825 = tpu.concatenate %819, %170, %824 in 1 : vector<32x32xf32>, vector<32x32xf32>, vector<32x32xf32> -> vector<32x96xf32>
    %c0_389 = arith.constant 0 : index
    %c0_390 = arith.constant 0 : index
    %826 = vector.load %arg38[%c0_389, %c0_390] : memref<96x32xbf16, #tpu.memory_space<vmem>>, vector<96x32xbf16>
    %827 = arith.truncf %825 : vector<32x96xf32> to vector<32x96xbf16>
    %cst_391 = arith.constant dense<0.000000e+00> : vector<32x32xf32>
    %828 = tpu.matmul %827, %826, %cst_391 {dimension_numbers = #tpu.dot_dimension_numbers<[1], [0], [0], [1], [0, 0, 1, 1], [], []>} : vector<32x96xbf16>, vector<96x32xbf16>, vector<32x32xf32> -> vector<32x32xf32>
    %829 = arith.addf %813, %828 : vector<32x32xf32>
    %c0_392 = arith.constant 0 : index
    %c0_393 = arith.constant 0 : index
    %830 = vector.load %arg39[%c0_392, %c0_393] : memref<3x32xf32, #tpu.memory_space<vmem>>, vector<3x32xf32>
    %831 = vector.extract_strided_slice %830 {offsets = [0, 0], sizes = [1, 32], strides = [1, 1]} : vector<3x32xf32> to vector<1x32xf32>
    %832 = vector.broadcast %831 : vector<1x32xf32> to vector<32x32xf32>
    %833 = arith.addf %829, %832 : vector<32x32xf32>
    %cst_394 = arith.constant dense<0.000000e+00> : vector<32xf32>
    %834 = vector.multi_reduction <add>, %833, %cst_394 [0] : vector<32x32xf32> to vector<32xf32>
    %835 = vector.shape_cast %834 : vector<32xf32> to vector<1x32xf32>
    %cst_395 = arith.constant dense<0.000000e+00> : vector<1x8xf32>
    %836 = tpu.matmul %835, %0, %cst_395 {dimension_numbers = #tpu.dot_dimension_numbers<[1], [0], [0], [1], [0, 0, 1, 1], [], []>} : vector<1x32xf32>, vector<32x8xf32>, vector<1x8xf32> -> vector<1x8xf32>
    %cst_396 = arith.constant 7.812500e-03 : f32
    %837 = vector.broadcast %cst_396 : f32 to vector<1x8xf32>
    %838 = arith.mulf %836, %837 : vector<1x8xf32>
    %cst_397 = arith.constant dense<0.000000e+00> : vector<1x32xf32>
    %839 = tpu.matmul %838, %1, %cst_397 {dimension_numbers = #tpu.dot_dimension_numbers<[1], [0], [0], [1], [0, 0, 1, 1], [], []>} : vector<1x8xf32>, vector<8x32xf32>, vector<1x32xf32> -> vector<1x32xf32>
    %840 = vector.broadcast %839 : vector<1x32xf32> to vector<32x32xf32>
    %841 = arith.subf %833, %840 : vector<32x32xf32>
    %842 = arith.mulf %841, %841 : vector<32x32xf32>
    %cst_398 = arith.constant dense<0.000000e+00> : vector<32xf32>
    %843 = vector.multi_reduction <add>, %842, %cst_398 [0] : vector<32x32xf32> to vector<32xf32>
    %844 = vector.shape_cast %843 : vector<32xf32> to vector<1x32xf32>
    %cst_399 = arith.constant dense<0.000000e+00> : vector<1x8xf32>
    %845 = tpu.matmul %844, %0, %cst_399 {dimension_numbers = #tpu.dot_dimension_numbers<[1], [0], [0], [1], [0, 0, 1, 1], [], []>} : vector<1x32xf32>, vector<32x8xf32>, vector<1x8xf32> -> vector<1x8xf32>
    %cst_400 = arith.constant 7.812500e-03 : f32
    %846 = vector.broadcast %cst_400 : f32 to vector<1x8xf32>
    %847 = arith.mulf %845, %846 : vector<1x8xf32>
    %cst_401 = arith.constant 9.99999974E-6 : f32
    %848 = vector.broadcast %cst_401 : f32 to vector<1x8xf32>
    %849 = arith.addf %847, %848 : vector<1x8xf32>
    %850 = math.rsqrt %849 : vector<1x8xf32>
    %cst_402 = arith.constant dense<0.000000e+00> : vector<1x32xf32>
    %851 = tpu.matmul %850, %1, %cst_402 {dimension_numbers = #tpu.dot_dimension_numbers<[1], [0], [0], [1], [0, 0, 1, 1], [], []>} : vector<1x8xf32>, vector<8x32xf32>, vector<1x32xf32> -> vector<1x32xf32>
    %852 = vector.extract_strided_slice %830 {offsets = [1, 0], sizes = [1, 32], strides = [1, 1]} : vector<3x32xf32> to vector<1x32xf32>
    %853 = arith.mulf %852, %851 : vector<1x32xf32>
    %854 = vector.broadcast %853 : vector<1x32xf32> to vector<32x32xf32>
    %855 = arith.mulf %841, %854 : vector<32x32xf32>
    %856 = vector.extract_strided_slice %830 {offsets = [2, 0], sizes = [1, 32], strides = [1, 1]} : vector<3x32xf32> to vector<1x32xf32>
    %857 = vector.broadcast %856 : vector<1x32xf32> to vector<32x32xf32>
    %858 = arith.addf %855, %857 : vector<32x32xf32>
    %cst_403 = arith.constant 5.000000e-01 : f32
    %859 = vector.broadcast %cst_403 : f32 to vector<32x32xf32>
    %860 = arith.mulf %859, %858 : vector<32x32xf32>
    %cst_404 = arith.constant 4.471500e-02 : f32
    %861 = vector.broadcast %cst_404 : f32 to vector<32x32xf32>
    %862 = arith.mulf %861, %858 : vector<32x32xf32>
    %863 = arith.mulf %862, %858 : vector<32x32xf32>
    %864 = arith.mulf %863, %858 : vector<32x32xf32>
    %865 = arith.addf %858, %864 : vector<32x32xf32>
    %cst_405 = arith.constant 0.797884583 : f32
    %866 = vector.broadcast %cst_405 : f32 to vector<32x32xf32>
    %867 = arith.mulf %866, %865 : vector<32x32xf32>
    %868 = math.tanh %867 : vector<32x32xf32>
    %cst_406 = arith.constant 1.000000e+00 : f32
    %869 = vector.broadcast %cst_406 : f32 to vector<32x32xf32>
    %870 = arith.addf %869, %868 : vector<32x32xf32>
    %871 = arith.mulf %860, %870 : vector<32x32xf32>
    %c0_407 = arith.constant 0 : index
    %c0_408 = arith.constant 0 : index
    %872 = vector.load %arg56[%c0_407, %c0_408] : memref<1x32xbf16, #tpu.memory_space<vmem>>, vector<1x32xbf16>
    %873 = arith.truncf %871 : vector<32x32xf32> to vector<32x32xbf16>
    %cst_409 = arith.constant dense<0.000000e+00> : vector<1x32xf32>
    %874 = tpu.matmul %872, %873, %cst_409 {dimension_numbers = #tpu.dot_dimension_numbers<[1], [1], [0], [0], [0, 0, 1, 0], [], []>} : vector<1x32xbf16>, vector<32x32xbf16>, vector<1x32xf32> -> vector<1x32xf32>
    %c0_410 = arith.constant 0 : index
    %c0_411 = arith.constant 0 : index
    %875 = vector.load %arg57[%c0_410, %c0_411] : memref<1x1xf32, #tpu.memory_space<vmem>>, vector<1x1xf32>
    %876 = vector.broadcast %875 : vector<1x1xf32> to vector<1x32xf32>
    %877 = arith.addf %874, %876 : vector<1x32xf32>
    %c0_412 = arith.constant 0 : index
    %c0_413 = arith.constant 0 : index
    %c0_414 = arith.constant 0 : index
    %878 = vector.load %arg58[%c0_412, %c0_413, %c0_414] : memref<1x1x32xf32, #tpu.memory_space<vmem>>, vector<1x1x32xf32>
    %879 = vector.shape_cast %878 : vector<1x1x32xf32> to vector<1x32xf32>
    %880 = vector.shape_cast %877 : vector<1x32xf32> to vector<1x1x32xf32>
    tpu.vector_store %arg58[%c0_412, %c0_413, %c0_414], %880 {strides = array<i32>} : memref<1x1x32xf32, #tpu.memory_space<vmem>>, vector<1x1x32xf32>,
    return
  }
  func.func @transform_0(%arg0: i32) -> (i32, i32, i32) {
    %c0_i32 = arith.constant 0 : i32
    %c0_i32_0 = arith.constant 0 : i32
    %c0_i32_1 = arith.constant 0 : i32
    return %arg0, %c0_i32, %c0_i32_0 : i32, i32, i32
  }
  func.func @transform_1(%arg0: i32) -> (i32, i32, i32) {
    %c0_i32 = arith.constant 0 : i32
    %c0_i32_0 = arith.constant 0 : i32
    %c0_i32_1 = arith.constant 0 : i32
    return %arg0, %c0_i32, %c0_i32_0 : i32, i32, i32
  }
  func.func @transform_2(%arg0: i32) -> (i32, i32) {
    %c0_i32 = arith.constant 0 : i32
    %c0_i32_0 = arith.constant 0 : i32
    %c0_i32_1 = arith.constant 0 : i32
    return %c0_i32, %c0_i32_0 : i32, i32
  }
  func.func @transform_3(%arg0: i32) -> (i32, i32) {
    %c0_i32 = arith.constant 0 : i32
    %c0_i32_0 = arith.constant 0 : i32
    %c0_i32_1 = arith.constant 0 : i32
    return %c0_i32, %c0_i32_0 : i32, i32
  }
  func.func @transform_4(%arg0: i32) -> (i32, i32) {
    %c0_i32 = arith.constant 0 : i32
    %c0_i32_0 = arith.constant 0 : i32
    %c0_i32_1 = arith.constant 0 : i32
    return %c0_i32, %c0_i32_0 : i32, i32
  }
  func.func @transform_5(%arg0: i32) -> (i32, i32) {
    %c0_i32 = arith.constant 0 : i32
    %c0_i32_0 = arith.constant 0 : i32
    %c0_i32_1 = arith.constant 0 : i32
    return %c0_i32, %c0_i32_0 : i32, i32
  }
  func.func @transform_6(%arg0: i32) -> (i32, i32) {
    %c0_i32 = arith.constant 0 : i32
    %c0_i32_0 = arith.constant 0 : i32
    %c0_i32_1 = arith.constant 0 : i32
    return %c0_i32, %c0_i32_0 : i32, i32
  }
  func.func @transform_7(%arg0: i32) -> (i32, i32) {
    %c0_i32 = arith.constant 0 : i32
    %c0_i32_0 = arith.constant 0 : i32
    %c0_i32_1 = arith.constant 0 : i32
    return %c0_i32, %c0_i32_0 : i32, i32
  }
  func.func @transform_8(%arg0: i32) -> (i32, i32) {
    %c0_i32 = arith.constant 0 : i32
    %c0_i32_0 = arith.constant 0 : i32
    %c0_i32_1 = arith.constant 0 : i32
    return %c0_i32, %c0_i32_0 : i32, i32
  }
  func.func @transform_9(%arg0: i32) -> (i32, i32) {
    %c0_i32 = arith.constant 0 : i32
    %c0_i32_0 = arith.constant 0 : i32
    %c0_i32_1 = arith.constant 0 : i32
    return %c0_i32, %c0_i32_0 : i32, i32
  }
  func.func @transform_10(%arg0: i32) -> (i32, i32) {
    %c0_i32 = arith.constant 0 : i32
    %c0_i32_0 = arith.constant 0 : i32
    %c0_i32_1 = arith.constant 0 : i32
    return %c0_i32, %c0_i32_0 : i32, i32
  }
  func.func @transform_11(%arg0: i32) -> (i32, i32) {
    %c0_i32 = arith.constant 0 : i32
    %c0_i32_0 = arith.constant 0 : i32
    %c0_i32_1 = arith.constant 0 : i32
    return %c0_i32, %c0_i32_0 : i32, i32
  }
  func.func @transform_12(%arg0: i32) -> (i32, i32) {
    %c0_i32 = arith.constant 0 : i32
    %c0_i32_0 = arith.constant 0 : i32
    %c0_i32_1 = arith.constant 0 : i32
    return %c0_i32, %c0_i32_0 : i32, i32
  }
  func.func @transform_13(%arg0: i32) -> (i32, i32) {
    %c0_i32 = arith.constant 0 : i32
    %c0_i32_0 = arith.constant 0 : i32
    %c0_i32_1 = arith.constant 0 : i32
    return %c0_i32, %c0_i32_0 : i32, i32
  }
  func.func @transform_14(%arg0: i32) -> (i32, i32) {
    %c0_i32 = arith.constant 0 : i32
    %c0_i32_0 = arith.constant 0 : i32
    %c0_i32_1 = arith.constant 0 : i32
    return %c0_i32, %c0_i32_0 : i32, i32
  }
  func.func @transform_15(%arg0: i32) -> (i32, i32) {
    %c0_i32 = arith.constant 0 : i32
    %c0_i32_0 = arith.constant 0 : i32
    %c0_i32_1 = arith.constant 0 : i32
    return %c0_i32, %c0_i32_0 : i32, i32
  }
  func.func @transform_16(%arg0: i32) -> (i32, i32) {
    %c0_i32 = arith.constant 0 : i32
    %c0_i32_0 = arith.constant 0 : i32
    %c0_i32_1 = arith.constant 0 : i32
    return %c0_i32, %c0_i32_0 : i32, i32
  }
  func.func @transform_17(%arg0: i32) -> (i32, i32) {
    %c0_i32 = arith.constant 0 : i32
    %c0_i32_0 = arith.constant 0 : i32
    %c0_i32_1 = arith.constant 0 : i32
    return %c0_i32, %c0_i32_0 : i32, i32
  }
  func.func @transform_18(%arg0: i32) -> (i32, i32) {
    %c0_i32 = arith.constant 0 : i32
    %c0_i32_0 = arith.constant 0 : i32
    %c0_i32_1 = arith.constant 0 : i32
    return %c0_i32, %c0_i32_0 : i32, i32
  }
  func.func @transform_19(%arg0: i32) -> (i32, i32) {
    %c0_i32 = arith.constant 0 : i32
    %c0_i32_0 = arith.constant 0 : i32
    %c0_i32_1 = arith.constant 0 : i32
    return %c0_i32, %c0_i32_0 : i32, i32
  }
  func.func @transform_20(%arg0: i32) -> (i32, i32) {
    %c0_i32 = arith.constant 0 : i32
    %c0_i32_0 = arith.constant 0 : i32
    %c0_i32_1 = arith.constant 0 : i32
    return %c0_i32, %c0_i32_0 : i32, i32
  }
  func.func @transform_21(%arg0: i32) -> (i32, i32) {
    %c0_i32 = arith.constant 0 : i32
    %c0_i32_0 = arith.constant 0 : i32
    %c0_i32_1 = arith.constant 0 : i32
    return %c0_i32, %c0_i32_0 : i32, i32
  }
  func.func @transform_22(%arg0: i32) -> (i32, i32) {
    %c0_i32 = arith.constant 0 : i32
    %c0_i32_0 = arith.constant 0 : i32
    %c0_i32_1 = arith.constant 0 : i32
    return %c0_i32, %c0_i32_0 : i32, i32
  }
  func.func @transform_23(%arg0: i32) -> (i32, i32) {
    %c0_i32 = arith.constant 0 : i32
    %c0_i32_0 = arith.constant 0 : i32
    %c0_i32_1 = arith.constant 0 : i32
    return %c0_i32, %c0_i32_0 : i32, i32
  }
  func.func @transform_24(%arg0: i32) -> (i32, i32) {
    %c0_i32 = arith.constant 0 : i32
    %c0_i32_0 = arith.constant 0 : i32
    %c0_i32_1 = arith.constant 0 : i32
    return %c0_i32, %c0_i32_0 : i32, i32
  }
  func.func @transform_25(%arg0: i32) -> (i32, i32) {
    %c0_i32 = arith.constant 0 : i32
    %c0_i32_0 = arith.constant 0 : i32
    %c0_i32_1 = arith.constant 0 : i32
    return %c0_i32, %c0_i32_0 : i32, i32
  }
  func.func @transform_26(%arg0: i32) -> (i32, i32) {
    %c0_i32 = arith.constant 0 : i32
    %c0_i32_0 = arith.constant 0 : i32
    %c0_i32_1 = arith.constant 0 : i32
    return %c0_i32, %c0_i32_0 : i32, i32
  }
  func.func @transform_27(%arg0: i32) -> (i32, i32) {
    %c0_i32 = arith.constant 0 : i32
    %c0_i32_0 = arith.constant 0 : i32
    %c0_i32_1 = arith.constant 0 : i32
    return %c0_i32, %c0_i32_0 : i32, i32
  }
  func.func @transform_28(%arg0: i32) -> (i32, i32) {
    %c0_i32 = arith.constant 0 : i32
    %c0_i32_0 = arith.constant 0 : i32
    %c0_i32_1 = arith.constant 0 : i32
    return %c0_i32, %c0_i32_0 : i32, i32
  }
  func.func @transform_29(%arg0: i32) -> (i32, i32) {
    %c0_i32 = arith.constant 0 : i32
    %c0_i32_0 = arith.constant 0 : i32
    %c0_i32_1 = arith.constant 0 : i32
    return %c0_i32, %c0_i32_0 : i32, i32
  }
  func.func @transform_30(%arg0: i32) -> (i32, i32) {
    %c0_i32 = arith.constant 0 : i32
    %c0_i32_0 = arith.constant 0 : i32
    %c0_i32_1 = arith.constant 0 : i32
    return %c0_i32, %c0_i32_0 : i32, i32
  }
  func.func @transform_31(%arg0: i32) -> (i32, i32) {
    %c0_i32 = arith.constant 0 : i32
    %c0_i32_0 = arith.constant 0 : i32
    %c0_i32_1 = arith.constant 0 : i32
    return %c0_i32, %c0_i32_0 : i32, i32
  }
  func.func @transform_32(%arg0: i32) -> (i32, i32) {
    %c0_i32 = arith.constant 0 : i32
    %c0_i32_0 = arith.constant 0 : i32
    %c0_i32_1 = arith.constant 0 : i32
    return %c0_i32, %c0_i32_0 : i32, i32
  }
  func.func @transform_33(%arg0: i32) -> (i32, i32) {
    %c0_i32 = arith.constant 0 : i32
    %c0_i32_0 = arith.constant 0 : i32
    %c0_i32_1 = arith.constant 0 : i32
    return %c0_i32, %c0_i32_0 : i32, i32
  }
  func.func @transform_34(%arg0: i32) -> (i32, i32) {
    %c0_i32 = arith.constant 0 : i32
    %c0_i32_0 = arith.constant 0 : i32
    %c0_i32_1 = arith.constant 0 : i32
    return %c0_i32, %c0_i32_0 : i32, i32
  }
  func.func @transform_35(%arg0: i32) -> (i32, i32) {
    %c0_i32 = arith.constant 0 : i32
    %c0_i32_0 = arith.constant 0 : i32
    %c0_i32_1 = arith.constant 0 : i32
    return %c0_i32, %c0_i32_0 : i32, i32
  }
  func.func @transform_36(%arg0: i32) -> (i32, i32) {
    %c0_i32 = arith.constant 0 : i32
    %c0_i32_0 = arith.constant 0 : i32
    %c0_i32_1 = arith.constant 0 : i32
    return %c0_i32, %c0_i32_0 : i32, i32
  }
  func.func @transform_37(%arg0: i32) -> (i32, i32) {
    %c0_i32 = arith.constant 0 : i32
    %c0_i32_0 = arith.constant 0 : i32
    %c0_i32_1 = arith.constant 0 : i32
    return %c0_i32, %c0_i32_0 : i32, i32
  }
  func.func @transform_38(%arg0: i32) -> (i32, i32) {
    %c0_i32 = arith.constant 0 : i32
    %c0_i32_0 = arith.constant 0 : i32
    %c0_i32_1 = arith.constant 0 : i32
    return %c0_i32, %c0_i32_0 : i32, i32
  }
  func.func @transform_39(%arg0: i32) -> (i32, i32) {
    %c0_i32 = arith.constant 0 : i32
    %c0_i32_0 = arith.constant 0 : i32
    %c0_i32_1 = arith.constant 0 : i32
    return %c0_i32, %c0_i32_0 : i32, i32
  }
  func.func @transform_40(%arg0: i32) -> (i32, i32) {
    %c0_i32 = arith.constant 0 : i32
    %c0_i32_0 = arith.constant 0 : i32
    %c0_i32_1 = arith.constant 0 : i32
    return %c0_i32, %c0_i32_0 : i32, i32
  }
  func.func @transform_41(%arg0: i32) -> (i32, i32) {
    %c0_i32 = arith.constant 0 : i32
    %c0_i32_0 = arith.constant 0 : i32
    %c0_i32_1 = arith.constant 0 : i32
    return %c0_i32, %c0_i32_0 : i32, i32
  }
  func.func @transform_42(%arg0: i32) -> (i32, i32) {
    %c0_i32 = arith.constant 0 : i32
    %c0_i32_0 = arith.constant 0 : i32
    %c0_i32_1 = arith.constant 0 : i32
    return %c0_i32, %c0_i32_0 : i32, i32
  }
  func.func @transform_43(%arg0: i32) -> (i32, i32) {
    %c0_i32 = arith.constant 0 : i32
    %c0_i32_0 = arith.constant 0 : i32
    %c0_i32_1 = arith.constant 0 : i32
    return %c0_i32, %c0_i32_0 : i32, i32
  }
  func.func @transform_44(%arg0: i32) -> (i32, i32) {
    %c0_i32 = arith.constant 0 : i32
    %c0_i32_0 = arith.constant 0 : i32
    %c0_i32_1 = arith.constant 0 : i32
    return %c0_i32, %c0_i32_0 : i32, i32
  }
  func.func @transform_45(%arg0: i32) -> (i32, i32) {
    %c0_i32 = arith.constant 0 : i32
    %c0_i32_0 = arith.constant 0 : i32
    %c0_i32_1 = arith.constant 0 : i32
    return %c0_i32, %c0_i32_0 : i32, i32
  }
  func.func @transform_46(%arg0: i32) -> (i32, i32) {
    %c0_i32 = arith.constant 0 : i32
    %c0_i32_0 = arith.constant 0 : i32
    %c0_i32_1 = arith.constant 0 : i32
    return %c0_i32, %c0_i32_0 : i32, i32
  }
  func.func @transform_47(%arg0: i32) -> (i32, i32) {
    %c0_i32 = arith.constant 0 : i32
    %c0_i32_0 = arith.constant 0 : i32
    %c0_i32_1 = arith.constant 0 : i32
    return %c0_i32, %c0_i32_0 : i32, i32
  }
  func.func @transform_48(%arg0: i32) -> (i32, i32) {
    %c0_i32 = arith.constant 0 : i32
    %c0_i32_0 = arith.constant 0 : i32
    %c0_i32_1 = arith.constant 0 : i32
    return %c0_i32, %c0_i32_0 : i32, i32
  }
  func.func @transform_49(%arg0: i32) -> (i32, i32) {
    %c0_i32 = arith.constant 0 : i32
    %c0_i32_0 = arith.constant 0 : i32
    %c0_i32_1 = arith.constant 0 : i32
    return %c0_i32, %c0_i32_0 : i32, i32
  }
  func.func @transform_50(%arg0: i32) -> (i32, i32) {
    %c0_i32 = arith.constant 0 : i32
    %c0_i32_0 = arith.constant 0 : i32
    %c0_i32_1 = arith.constant 0 : i32
    return %c0_i32, %c0_i32_0 : i32, i32
  }
  func.func @transform_51(%arg0: i32) -> (i32, i32) {
    %c0_i32 = arith.constant 0 : i32
    %c0_i32_0 = arith.constant 0 : i32
    %c0_i32_1 = arith.constant 0 : i32
    return %c0_i32, %c0_i32_0 : i32, i32
  }
  func.func @transform_52(%arg0: i32) -> (i32, i32) {
    %c0_i32 = arith.constant 0 : i32
    %c0_i32_0 = arith.constant 0 : i32
    %c0_i32_1 = arith.constant 0 : i32
    return %c0_i32, %c0_i32_0 : i32, i32
  }
  func.func @transform_53(%arg0: i32) -> (i32, i32) {
    %c0_i32 = arith.constant 0 : i32
    %c0_i32_0 = arith.constant 0 : i32
    %c0_i32_1 = arith.constant 0 : i32
    return %c0_i32, %c0_i32_0 : i32, i32
  }
  func.func @transform_54(%arg0: i32) -> (i32, i32) {
    %c0_i32 = arith.constant 0 : i32
    %c0_i32_0 = arith.constant 0 : i32
    %c0_i32_1 = arith.constant 0 : i32
    return %c0_i32, %c0_i32_0 : i32, i32
  }
  func.func @transform_55(%arg0: i32) -> (i32, i32) {
    %c0_i32 = arith.constant 0 : i32
    %c0_i32_0 = arith.constant 0 : i32
    %c0_i32_1 = arith.constant 0 : i32
    return %c0_i32, %c0_i32_0 : i32, i32
  }
  func.func @transform_56(%arg0: i32) -> (i32, i32) {
    %c0_i32 = arith.constant 0 : i32
    %c0_i32_0 = arith.constant 0 : i32
    %c0_i32_1 = arith.constant 0 : i32
    return %c0_i32, %c0_i32_0 : i32, i32
  }
  func.func @transform_57(%arg0: i32) -> (i32, i32, i32) {
    %c0_i32 = arith.constant 0 : i32
    %c0_i32_0 = arith.constant 0 : i32
    %c0_i32_1 = arith.constant 0 : i32
    return %arg0, %c0_i32, %c0_i32_0 : i32, i32, i32
  }
}

</mosaic_0001>

<llo_original>
// kernel: forward.1
$region0: #{forward.1}
  #allocation0 [shape = 'u32[]', space=smem, size = 0x4, offset = 0x4, fixed_abs, tag = 'smem constant byte address 0x4 - core index']
  #allocation1 [shape = 'u32[72,128]{1,0:T(1,128)}', space=vmem, size = 0x9000, scoped, tag = 'internal scratch']
  #allocation2 [shape = 'f32[32,128]{1,0:T(8,128)}', space=vmem, size = 0x4000, scoped, tag = 'scratch operand']
  #allocation3 [shape = 'f32[1,1]{1,0:T(1,128)S(1)}', space=vmem, size = 0x200, scoped, tag = 'scoped memory for forward.1']
  %s0 = inlined_call_operand.smem [shape: u32[58], index: -1, kind: input, shape index: {}]
  %s1 = sld [smem:[%s0]]
  %s2 = scalar_lea.smem %s0, 1
  %s3 = sld [smem:[%s2]]
  %s4 = scalar_lea.smem %s0, 2
  %s5 = sld [smem:[%s4]]
  %s6 = scalar_lea.smem %s0, 3
  %s7 = sld [smem:[%s6]]
  %s8 = scalar_lea.smem %s0, 4
  %s9 = sld [smem:[%s8]]
  %s10 = scalar_lea.smem %s0, 5
  %s11 = sld [smem:[%s10]]
  %s12 = scalar_lea.smem %s0, 6
  %s13 = sld [smem:[%s12]]
  %s14 = scalar_lea.smem %s0, 7
  %s15 = sld [smem:[%s14]]
  %s16 = scalar_lea.smem %s0, 8
  %s17 = sld [smem:[%s16]]
  %s18 = scalar_lea.smem %s0, 9
  %s19 = sld [smem:[%s18]]
  %s20 = scalar_lea.smem %s0, 10
  %s21 = sld [smem:[%s20]]
  %s22 = scalar_lea.smem %s0, 11
  %s23 = sld [smem:[%s22]]
  %s24 = scalar_lea.smem %s0, 12
  %s25 = sld [smem:[%s24]]
  %s26 = scalar_lea.smem %s0, 13
  %s27 = sld [smem:[%s26]]
  %s28 = scalar_lea.smem %s0, 14
  %s29 = sld [smem:[%s28]]
  %s30 = scalar_lea.smem %s0, 15
  %s31 = sld [smem:[%s30]]
  %s32 = scalar_lea.smem %s0, 16
  %s33 = sld [smem:[%s32]]
  %s34 = scalar_lea.smem %s0, 17
  %s35 = sld [smem:[%s34]]
  %s36 = scalar_lea.smem %s0, 18
  %s37 = sld [smem:[%s36]]
  %s38 = scalar_lea.smem %s0, 19
  %s39 = sld [smem:[%s38]]
  %s40 = scalar_lea.smem %s0, 20
  %s41 = sld [smem:[%s40]]
  %s42 = scalar_lea.smem %s0, 21
  %s43 = sld [smem:[%s42]]
  %s44 = scalar_lea.smem %s0, 22
  %s45 = sld [smem:[%s44]]
  %s46 = scalar_lea.smem %s0, 23
  %s47 = sld [smem:[%s46]]
  %s48 = scalar_lea.smem %s0, 24
  %s49 = sld [smem:[%s48]]
  %s50 = scalar_lea.smem %s0, 25
  %s51 = sld [smem:[%s50]]
  %s52 = scalar_lea.smem %s0, 26
  %s53 = sld [smem:[%s52]]
  %s54 = scalar_lea.smem %s0, 27
  %s55 = sld [smem:[%s54]]
  %s56 = scalar_lea.smem %s0, 28
  %s57 = sld [smem:[%s56]]
  %s58 = scalar_lea.smem %s0, 29
  %s59 = sld [smem:[%s58]]
  %s60 = scalar_lea.smem %s0, 30
  %s61 = sld [smem:[%s60]]
  %s62 = scalar_lea.smem %s0, 31
  %s63 = sld [smem:[%s62]]
  %s64 = scalar_lea.smem %s0, 32
  %s65 = sld [smem:[%s64]]
  %s66 = scalar_lea.smem %s0, 33
  %s67 = sld [smem:[%s66]]
  %s68 = scalar_lea.smem %s0, 34
  %s69 = sld [smem:[%s68]]
  %s70 = scalar_lea.smem %s0, 35
  %s71 = sld [smem:[%s70]]
  %s72 = scalar_lea.smem %s0, 36
  %s73 = sld [smem:[%s72]]
  %s74 = scalar_lea.smem %s0, 37
  %s75 = sld [smem:[%s74]]
  %s76 = scalar_lea.smem %s0, 38
  %s77 = sld [smem:[%s76]]
  %s78 = scalar_lea.smem %s0, 39
  %s79 = sld [smem:[%s78]]
  %s80 = scalar_lea.smem %s0, 40
  %s81 = sld [smem:[%s80]]
  %s82 = scalar_lea.smem %s0, 41
  %s83 = sld [smem:[%s82]]
  %s84 = scalar_lea.smem %s0, 42
  %s85 = sld [smem:[%s84]]
  %s86 = scalar_lea.smem %s0, 43
  %s87 = sld [smem:[%s86]]
  %s88 = scalar_lea.smem %s0, 44
  %s89 = sld [smem:[%s88]]
  %s90 = scalar_lea.smem %s0, 45
  %s91 = sld [smem:[%s90]]
  %s92 = scalar_lea.smem %s0, 46
  %s93 = sld [smem:[%s92]]
  %s94 = scalar_lea.smem %s0, 47
  %s95 = sld [smem:[%s94]]
  %s96 = scalar_lea.smem %s0, 48
  %s97 = sld [smem:[%s96]]
  %s98 = scalar_lea.smem %s0, 49
  %s99 = sld [smem:[%s98]]
  %s100 = scalar_lea.smem %s0, 50
  %s101 = sld [smem:[%s100]]
  %s102 = scalar_lea.smem %s0, 51
  %s103 = sld [smem:[%s102]]
  %s104 = scalar_lea.smem %s0, 52
  %s105 = sld [smem:[%s104]]
  %s106 = scalar_lea.smem %s0, 53
  %s107 = sld [smem:[%s106]]
  %s108 = scalar_lea.smem %s0, 54
  %s109 = sld [smem:[%s108]]
  %s110 = scalar_lea.smem %s0, 55
  %s111 = sld [smem:[%s110]]
  %s112 = scalar_lea.smem %s0, 56
  %s113 = sld [smem:[%s112]]
  %s114 = scalar_lea.smem %s0, 57
  %s115 = sld [smem:[%s114]]
  %s116 = sld [smem:[#allocation0]]
  $region261: #{forward.1} parent=0
    _
  %s118 = ssub.s32 1, %s116
  %s119 = scalar_select 0, %s118, %s116
  %v120 = vstv %s113
  %121 = vst [vmem:[#allocation3] sm:$0x1] %v120
  $region1: #{forward.1} parent=0
    #allocation4 [shape = 'u8[1024]{0}', space=vmem, size = 0x400, scoped, tag = 'output window, operand 0']
    #allocation5 [shape = 's32[2]{0}', space=sflag, size = 0x8, scoped, tag = 'scoped memory for forward.1']
    %122 = vsyncpa [#allocation5], 0
    %s123 = scalar_lea.sflag [#allocation5], 1
    %124 = vsyncpa %s123, 0
    loop: start=0, step=1, limit=4
    $region2: #{forward.1} parent=1 // loop_pre_header
      _
    $region3: #{forward.1} parent=1 // loop_header
      %s126 = sphi 0, %s130
      %p127 = scmp.ge.s32.totalorder %s126, 4
      %s136 = sphi 0, %s138
      %s139 = sphi 0, %s136
      %s140 = sphi 0, %s139
      %s156 = sphi 0, %s140
      %s162 = sphi 0, %s164
      %s165 = sphi 0, %s162
      %s166 = sphi 0, %s165
      %s182 = sphi 0, %s166
      %s186 = sphi 0, %s186
      %s188 = sphi 0, %s186
      %s189 = sphi 0, %s188
      %s203 = sphi 0, %s189
      %s207 = sphi 0, %s207
      %s209 = sphi 0, %s207
      %s210 = sphi 0, %s209
      %s224 = sphi 0, %s210
      %s228 = sphi 0, %s228
      %s230 = sphi 0, %s228
      %s231 = sphi 0, %s230
      %s245 = sphi 0, %s231
      %s249 = sphi 0, %s249
      %s251 = sphi 0, %s249
      %s252 = sphi 0, %s251
      %s266 = sphi 0, %s252
      %s270 = sphi 0, %s270
      %s272 = sphi 0, %s270
      %s273 = sphi 0, %s272
      %s287 = sphi 0, %s273
      %s291 = sphi 0, %s291
      %s293 = sphi 0, %s291
      %s294 = sphi 0, %s293
      %s308 = sphi 0, %s294
      %s312 = sphi 0, %s312
      %s314 = sphi 0, %s312
      %s315 = sphi 0, %s314
      %s329 = sphi 0, %s315
      %s333 = sphi 0, %s333
      %s335 = sphi 0, %s333
      %s336 = sphi 0, %s335
      %s350 = sphi 0, %s336
      %s354 = sphi 0, %s354
      %s356 = sphi 0, %s354
      %s357 = sphi 0, %s356
      %s371 = sphi 0, %s357
      %s375 = sphi 0, %s375
      %s377 = sphi 0, %s375
      %s378 = sphi 0, %s377
      %s392 = sphi 0, %s378
      %s396 = sphi 0, %s396
      %s398 = sphi 0, %s396
      %s399 = sphi 0, %s398
      %s413 = sphi 0, %s399
      %s417 = sphi 0, %s417
      %s419 = sphi 0, %s417
      %s420 = sphi 0, %s419
      %s434 = sphi 0, %s420
      %s438 = sphi 0, %s438
      %s440 = sphi 0, %s438
      %s441 = sphi 0, %s440
      %s455 = sphi 0, %s441
      %s459 = sphi 0, %s459
      %s461 = sphi 0, %s459
      %s462 = sphi 0, %s461
      %s476 = sphi 0, %s462
      %s480 = sphi 0, %s480
      %s482 = sphi 0, %s480
      %s483 = sphi 0, %s482
      %s497 = sphi 0, %s483
      %s501 = sphi 0, %s501
      %s503 = sphi 0, %s501
      %s504 = sphi 0, %s503
      %s518 = sphi 0, %s504
      %s522 = sphi 0, %s522
      %s524 = sphi 0, %s522
      %s525 = sphi 0, %s524
      %s539 = sphi 0, %s525
      %s543 = sphi 0, %s543
      %s545 = sphi 0, %s543
      %s546 = sphi 0, %s545
      %s560 = sphi 0, %s546
      %s564 = sphi 0, %s564
      %s566 = sphi 0, %s564
      %s567 = sphi 0, %s566
      %s581 = sphi 0, %s567
      %s585 = sphi 0, %s585
      %s587 = sphi 0, %s585
      %s588 = sphi 0, %s587
      %s602 = sphi 0, %s588
      %s606 = sphi 0, %s606
      %s608 = sphi 0, %s606
      %s609 = sphi 0, %s608
      %s623 = sphi 0, %s609
      %s627 = sphi 0, %s627
      %s629 = sphi 0, %s627
      %s630 = sphi 0, %s629
      %s644 = sphi 0, %s630
      %s648 = sphi 0, %s648
      %s650 = sphi 0, %s648
      %s651 = sphi 0, %s650
      %s665 = sphi 0, %s651
      %s669 = sphi 0, %s669
      %s671 = sphi 0, %s669
      %s672 = sphi 0, %s671
      %s686 = sphi 0, %s672
      %s690 = sphi 0, %s690
      %s692 = sphi 0, %s690
      %s693 = sphi 0, %s692
      %s707 = sphi 0, %s693
      %s711 = sphi 0, %s711
      %s713 = sphi 0, %s711
      %s714 = sphi 0, %s713
      %s728 = sphi 0, %s714
      %s732 = sphi 0, %s732
      %s734 = sphi 0, %s732
      %s735 = sphi 0, %s734
      %s749 = sphi 0, %s735
      %s753 = sphi 0, %s753
      %s755 = sphi 0, %s753
      %s756 = sphi 0, %s755
      %s770 = sphi 0, %s756
      %s774 = sphi 0, %s774
      %s776 = sphi 0, %s774
      %s777 = sphi 0, %s776
      %s791 = sphi 0, %s777
      %s795 = sphi 0, %s795
      %s797 = sphi 0, %s795
      %s798 = sphi 0, %s797
      %s812 = sphi 0, %s798
      %s816 = sphi 0, %s816
      %s818 = sphi 0, %s816
      %s819 = sphi 0, %s818
      %s833 = sphi 0, %s819
      %s837 = sphi 0, %s837
      %s839 = sphi 0, %s837
      %s840 = sphi 0, %s839
      %s854 = sphi 0, %s840
      %s858 = sphi 0, %s858
      %s860 = sphi 0, %s858
      %s861 = sphi 0, %s860
      %s875 = sphi 0, %s861
      %s879 = sphi 0, %s879
      %s881 = sphi 0, %s879
      %s882 = sphi 0, %s881
      %s896 = sphi 0, %s882
      %s900 = sphi 0, %s900
      %s902 = sphi 0, %s900
      %s903 = sphi 0, %s902
      %s917 = sphi 0, %s903
      %s921 = sphi 0, %s921
      %s923 = sphi 0, %s921
      %s924 = sphi 0, %s923
      %s938 = sphi 0, %s924
      %s942 = sphi 0, %s942
      %s944 = sphi 0, %s942
      %s945 = sphi 0, %s944
      %s959 = sphi 0, %s945
      %s963 = sphi 0, %s963
      %s965 = sphi 0, %s963
      %s966 = sphi 0, %s965
      %s980 = sphi 0, %s966
      %s984 = sphi 0, %s984
      %s986 = sphi 0, %s984
      %s987 = sphi 0, %s986
      %s1001 = sphi 0, %s987
      %s1005 = sphi 0, %s1005
      %s1007 = sphi 0, %s1005
      %s1008 = sphi 0, %s1007
      %s1022 = sphi 0, %s1008
      %s1026 = sphi 0, %s1026
      %s1028 = sphi 0, %s1026
      %s1029 = sphi 0, %s1028
      %s1043 = sphi 0, %s1029
      %s1047 = sphi 0, %s1047
      %s1049 = sphi 0, %s1047
      %s1050 = sphi 0, %s1049
      %s1064 = sphi 0, %s1050
      %s1068 = sphi 0, %s1068
      %s1070 = sphi 0, %s1068
      %s1071 = sphi 0, %s1070
      %s1085 = sphi 0, %s1071
      %s1089 = sphi 0, %s1089
      %s1091 = sphi 0, %s1089
      %s1092 = sphi 0, %s1091
      %s1106 = sphi 0, %s1092
      %s1110 = sphi 0, %s1110
      %s1112 = sphi 0, %s1110
      %s1113 = sphi 0, %s1112
      %s1127 = sphi 0, %s1113
      %s1131 = sphi 0, %s1131
      %s1133 = sphi 0, %s1131
      %s1134 = sphi 0, %s1133
      %s1148 = sphi 0, %s1134
      %s1152 = sphi 0, %s1152
      %s1154 = sphi 0, %s1152
      %s1155 = sphi 0, %s1154
      %s1169 = sphi 0, %s1155
      %s1173 = sphi 0, %s1173
      %s1175 = sphi 0, %s1173
      %s1176 = sphi 0, %s1175
      %s1190 = sphi 0, %s1176
      %s1194 = sphi 0, %s1194
      %s1196 = sphi 0, %s1194
      %s1197 = sphi 0, %s1196
      %s1211 = sphi 0, %s1197
      %s1215 = sphi 0, %s1215
      %s1217 = sphi 0, %s1215
      %s1218 = sphi 0, %s1217
      %s1232 = sphi 0, %s1218
      %s1236 = sphi 0, %s1236
      %s1238 = sphi 0, %s1236
      %s1239 = sphi 0, %s1238
      %s1253 = sphi 0, %s1239
      %s1257 = sphi 0, %s1257
      %s1259 = sphi 0, %s1257
      %s1260 = sphi 0, %s1259
      %s1274 = sphi 0, %s1260
      %s1278 = sphi 0, %s1278
      %s1280 = sphi 0, %s1278
      %s1281 = sphi 0, %s1280
      %s1295 = sphi 0, %s1281
      %s1299 = sphi 0, %s1299
      %s1301 = sphi 0, %s1299
      %s1302 = sphi 0, %s1301
      %s1316 = sphi 0, %s1302
      %s1320 = sphi 0, %s1320
      %s1322 = sphi 0, %s1320
      %s1323 = sphi 0, %s1322
      %s1337 = sphi 0, %s1323
      %s1343 = sphi 0, %s1345
      %s1346 = sphi 0, %s1343
      %s1347 = sphi 0, %s1346
      %s1363 = sphi 0, %s1347
    $region4: #{forward.1} parent=1 // loop_header_branch
      %129 = sbr.rel (%p127) target = $region8
    $region5: #{forward.1} parent=1 // loop_body
      %s131 = ssub.s32 %s126, 1
      %s132 = ssub.s32 %s126, 2
      %s133 = sadd.s32 %s126, 1
      %s134 = ssub.s32 %s126, %s133
      %p135 = scmp.eq.s32.totalorder %s134, 0
      %s137 = sadd.s32 %s136, 1
      %s138 = scalar_select %p135, %s136, %s137
      %p141 = pneg %p135
      %p142 = scmp.eq.s32.totalorder %s126, 1
      %p143 = por %p141, %p142
      %p144 = scmp.ne.s32.totalorder %s136, %s139
      %p145 = scmp.eq.s32.totalorder %s126, 0
      %p146 = por %p144, %p145
      %p147 = scmp.ne.s32.totalorder %s136, %s139
      %p148 = scmp.eq.s32.totalorder %s131, 1
      %p149 = por %p147, %p148
      %p150 = scmp.ne.s32.totalorder %s139, %s140
      %p151 = scmp.eq.s32.totalorder %s131, 0
      %p152 = por %p150, %p151
      %p153 = scmp.ne.s32.totalorder %s139, %s140
      %p154 = scmp.eq.s32.totalorder %s132, 1
      %p155 = por %p153, %p154
      %p157 = scmp.ne.s32.totalorder %s140, %s156
      %p158 = scmp.eq.s32.totalorder %s132, 0
      %p159 = por %p157, %p158
      %s160 = ssub.s32 %s126, %s133
      %p161 = scmp.eq.s32.totalorder %s160, 0
      %s163 = sadd.s32 %s162, 1
      %s164 = scalar_select %p161, %s162, %s163
      %p167 = pneg %p161
      %p168 = scmp.eq.s32.totalorder %s126, 1
      %p169 = por %p167, %p168
      %p170 = scmp.ne.s32.totalorder %s162, %s165
      %p171 = scmp.eq.s32.totalorder %s126, 0
      %p172 = por %p170, %p171
      %p173 = scmp.ne.s32.totalorder %s162, %s165
      %p174 = scmp.eq.s32.totalorder %s131, 1
      %p175 = por %p173, %p174
      %p176 = scmp.ne.s32.totalorder %s165, %s166
      %p177 = scmp.eq.s32.totalorder %s131, 0
      %p178 = por %p176, %p177
      %p179 = scmp.ne.s32.totalorder %s165, %s166
      %p180 = scmp.eq.s32.totalorder %s132, 1
      %p181 = por %p179, %p180
      %p183 = scmp.ne.s32.totalorder %s166, %s182
      %p184 = scmp.eq.s32.totalorder %s132, 0
      %p185 = por %p183, %p184
      %s187 = sadd.s32 %s186, 1
      %p190 = scmp.eq.s32.totalorder %s126, 1
      %p191 = scmp.ne.s32.totalorder %s186, %s188
      %p192 = scmp.eq.s32.totalorder %s126, 0
      %p193 = por %p191, %p192
      %p194 = scmp.ne.s32.totalorder %s186, %s188
      %p195 = scmp.eq.s32.totalorder %s131, 1
      %p196 = por %p194, %p195
      %p197 = scmp.ne.s32.totalorder %s188, %s189
      %p198 = scmp.eq.s32.totalorder %s131, 0
      %p199 = por %p197, %p198
      %p200 = scmp.ne.s32.totalorder %s188, %s189
      %p201 = scmp.eq.s32.totalorder %s132, 1
      %p202 = por %p200, %p201
      %p204 = scmp.ne.s32.totalorder %s189, %s203
      %p205 = scmp.eq.s32.totalorder %s132, 0
      %p206 = por %p204, %p205
      %s208 = sadd.s32 %s207, 1
      %p211 = scmp.eq.s32.totalorder %s126, 1
      %p212 = scmp.ne.s32.totalorder %s207, %s209
      %p213 = scmp.eq.s32.totalorder %s126, 0
      %p214 = por %p212, %p213
      %p215 = scmp.ne.s32.totalorder %s207, %s209
      %p216 = scmp.eq.s32.totalorder %s131, 1
      %p217 = por %p215, %p216
      %p218 = scmp.ne.s32.totalorder %s209, %s210
      %p219 = scmp.eq.s32.totalorder %s131, 0
      %p220 = por %p218, %p219
      %p221 = scmp.ne.s32.totalorder %s209, %s210
      %p222 = scmp.eq.s32.totalorder %s132, 1
      %p223 = por %p221, %p222
      %p225 = scmp.ne.s32.totalorder %s210, %s224
      %p226 = scmp.eq.s32.totalorder %s132, 0
      %p227 = por %p225, %p226
      %s229 = sadd.s32 %s228, 1
      %p232 = scmp.eq.s32.totalorder %s126, 1
      %p233 = scmp.ne.s32.totalorder %s228, %s230
      %p234 = scmp.eq.s32.totalorder %s126, 0
      %p235 = por %p233, %p234
      %p236 = scmp.ne.s32.totalorder %s228, %s230
      %p237 = scmp.eq.s32.totalorder %s131, 1
      %p238 = por %p236, %p237
      %p239 = scmp.ne.s32.totalorder %s230, %s231
      %p240 = scmp.eq.s32.totalorder %s131, 0
      %p241 = por %p239, %p240
      %p242 = scmp.ne.s32.totalorder %s230, %s231
      %p243 = scmp.eq.s32.totalorder %s132, 1
      %p244 = por %p242, %p243
      %p246 = scmp.ne.s32.totalorder %s231, %s245
      %p247 = scmp.eq.s32.totalorder %s132, 0
      %p248 = por %p246, %p247
      %s250 = sadd.s32 %s249, 1
      %p253 = scmp.eq.s32.totalorder %s126, 1
      %p254 = scmp.ne.s32.totalorder %s249, %s251
      %p255 = scmp.eq.s32.totalorder %s126, 0
      %p256 = por %p254, %p255
      %p257 = scmp.ne.s32.totalorder %s249, %s251
      %p258 = scmp.eq.s32.totalorder %s131, 1
      %p259 = por %p257, %p258
      %p260 = scmp.ne.s32.totalorder %s251, %s252
      %p261 = scmp.eq.s32.totalorder %s131, 0
      %p262 = por %p260, %p261
      %p263 = scmp.ne.s32.totalorder %s251, %s252
      %p264 = scmp.eq.s32.totalorder %s132, 1
      %p265 = por %p263, %p264
      %p267 = scmp.ne.s32.totalorder %s252, %s266
      %p268 = scmp.eq.s32.totalorder %s132, 0
      %p269 = por %p267, %p268
      %s271 = sadd.s32 %s270, 1
      %p274 = scmp.eq.s32.totalorder %s126, 1
      %p275 = scmp.ne.s32.totalorder %s270, %s272
      %p276 = scmp.eq.s32.totalorder %s126, 0
      %p277 = por %p275, %p276
      %p278 = scmp.ne.s32.totalorder %s270, %s272
      %p279 = scmp.eq.s32.totalorder %s131, 1
      %p280 = por %p278, %p279
      %p281 = scmp.ne.s32.totalorder %s272, %s273
      %p282 = scmp.eq.s32.totalorder %s131, 0
      %p283 = por %p281, %p282
      %p284 = scmp.ne.s32.totalorder %s272, %s273
      %p285 = scmp.eq.s32.totalorder %s132, 1
      %p286 = por %p284, %p285
      %p288 = scmp.ne.s32.totalorder %s273, %s287
      %p289 = scmp.eq.s32.totalorder %s132, 0
      %p290 = por %p288, %p289
      %s292 = sadd.s32 %s291, 1
      %p295 = scmp.eq.s32.totalorder %s126, 1
      %p296 = scmp.ne.s32.totalorder %s291, %s293
      %p297 = scmp.eq.s32.totalorder %s126, 0
      %p298 = por %p296, %p297
      %p299 = scmp.ne.s32.totalorder %s291, %s293
      %p300 = scmp.eq.s32.totalorder %s131, 1
      %p301 = por %p299, %p300
      %p302 = scmp.ne.s32.totalorder %s293, %s294
      %p303 = scmp.eq.s32.totalorder %s131, 0
      %p304 = por %p302, %p303
      %p305 = scmp.ne.s32.totalorder %s293, %s294
      %p306 = scmp.eq.s32.totalorder %s132, 1
      %p307 = por %p305, %p306
      %p309 = scmp.ne.s32.totalorder %s294, %s308
      %p310 = scmp.eq.s32.totalorder %s132, 0
      %p311 = por %p309, %p310
      %s313 = sadd.s32 %s312, 1
      %p316 = scmp.eq.s32.totalorder %s126, 1
      %p317 = scmp.ne.s32.totalorder %s312, %s314
      %p318 = scmp.eq.s32.totalorder %s126, 0
      %p319 = por %p317, %p318
      %p320 = scmp.ne.s32.totalorder %s312, %s314
      %p321 = scmp.eq.s32.totalorder %s131, 1
      %p322 = por %p320, %p321
      %p323 = scmp.ne.s32.totalorder %s314, %s315
      %p324 = scmp.eq.s32.totalorder %s131, 0
      %p325 = por %p323, %p324
      %p326 = scmp.ne.s32.totalorder %s314, %s315
      %p327 = scmp.eq.s32.totalorder %s132, 1
      %p328 = por %p326, %p327
      %p330 = scmp.ne.s32.totalorder %s315, %s329
      %p331 = scmp.eq.s32.totalorder %s132, 0
      %p332 = por %p330, %p331
      %s334 = sadd.s32 %s333, 1
      %p337 = scmp.eq.s32.totalorder %s126, 1
      %p338 = scmp.ne.s32.totalorder %s333, %s335
      %p339 = scmp.eq.s32.totalorder %s126, 0
      %p340 = por %p338, %p339
      %p341 = scmp.ne.s32.totalorder %s333, %s335
      %p342 = scmp.eq.s32.totalorder %s131, 1
      %p343 = por %p341, %p342
      %p344 = scmp.ne.s32.totalorder %s335, %s336
      %p345 = scmp.eq.s32.totalorder %s131, 0
      %p346 = por %p344, %p345
      %p347 = scmp.ne.s32.totalorder %s335, %s336
      %p348 = scmp.eq.s32.totalorder %s132, 1
      %p349 = por %p347, %p348
      %p351 = scmp.ne.s32.totalorder %s336, %s350
      %p352 = scmp.eq.s32.totalorder %s132, 0
      %p353 = por %p351, %p352
      %s355 = sadd.s32 %s354, 1
      %p358 = scmp.eq.s32.totalorder %s126, 1
      %p359 = scmp.ne.s32.totalorder %s354, %s356
      %p360 = scmp.eq.s32.totalorder %s126, 0
      %p361 = por %p359, %p360
      %p362 = scmp.ne.s32.totalorder %s354, %s356
      %p363 = scmp.eq.s32.totalorder %s131, 1
      %p364 = por %p362, %p363
      %p365 = scmp.ne.s32.totalorder %s356, %s357
      %p366 = scmp.eq.s32.totalorder %s131, 0
      %p367 = por %p365, %p366
      %p368 = scmp.ne.s32.totalorder %s356, %s357
      %p369 = scmp.eq.s32.totalorder %s132, 1
      %p370 = por %p368, %p369
      %p372 = scmp.ne.s32.totalorder %s357, %s371
      %p373 = scmp.eq.s32.totalorder %s132, 0
      %p374 = por %p372, %p373
      %s376 = sadd.s32 %s375, 1
      %p379 = scmp.eq.s32.totalorder %s126, 1
      %p380 = scmp.ne.s32.totalorder %s375, %s377
      %p381 = scmp.eq.s32.totalorder %s126, 0
      %p382 = por %p380, %p381
      %p383 = scmp.ne.s32.totalorder %s375, %s377
      %p384 = scmp.eq.s32.totalorder %s131, 1
      %p385 = por %p383, %p384
      %p386 = scmp.ne.s32.totalorder %s377, %s378
      %p387 = scmp.eq.s32.totalorder %s131, 0
      %p388 = por %p386, %p387
      %p389 = scmp.ne.s32.totalorder %s377, %s378
      %p390 = scmp.eq.s32.totalorder %s132, 1
      %p391 = por %p389, %p390
      %p393 = scmp.ne.s32.totalorder %s378, %s392
      %p394 = scmp.eq.s32.totalorder %s132, 0
      %p395 = por %p393, %p394
      %s397 = sadd.s32 %s396, 1
      %p400 = scmp.eq.s32.totalorder %s126, 1
      %p401 = scmp.ne.s32.totalorder %s396, %s398
      %p402 = scmp.eq.s32.totalorder %s126, 0
      %p403 = por %p401, %p402
      %p404 = scmp.ne.s32.totalorder %s396, %s398
      %p405 = scmp.eq.s32.totalorder %s131, 1
      %p406 = por %p404, %p405
      %p407 = scmp.ne.s32.totalorder %s398, %s399
      %p408 = scmp.eq.s32.totalorder %s131, 0
      %p409 = por %p407, %p408
      %p410 = scmp.ne.s32.totalorder %s398, %s399
      %p411 = scmp.eq.s32.totalorder %s132, 1
      %p412 = por %p410, %p411
      %p414 = scmp.ne.s32.totalorder %s399, %s413
      %p415 = scmp.eq.s32.totalorder %s132, 0
      %p416 = por %p414, %p415
      %s418 = sadd.s32 %s417, 1
      %p421 = scmp.eq.s32.totalorder %s126, 1
      %p422 = scmp.ne.s32.totalorder %s417, %s419
      %p423 = scmp.eq.s32.totalorder %s126, 0
      %p424 = por %p422, %p423
      %p425 = scmp.ne.s32.totalorder %s417, %s419
      %p426 = scmp.eq.s32.totalorder %s131, 1
      %p427 = por %p425, %p426
      %p428 = scmp.ne.s32.totalorder %s419, %s420
      %p429 = scmp.eq.s32.totalorder %s131, 0
      %p430 = por %p428, %p429
      %p431 = scmp.ne.s32.totalorder %s419, %s420
      %p432 = scmp.eq.s32.totalorder %s132, 1
      %p433 = por %p431, %p432
      %p435 = scmp.ne.s32.totalorder %s420, %s434
      %p436 = scmp.eq.s32.totalorder %s132, 0
      %p437 = por %p435, %p436
      %s439 = sadd.s32 %s438, 1
      %p442 = scmp.eq.s32.totalorder %s126, 1
      %p443 = scmp.ne.s32.totalorder %s438, %s440
      %p444 = scmp.eq.s32.totalorder %s126, 0
      %p445 = por %p443, %p444
      %p446 = scmp.ne.s32.totalorder %s438, %s440
      %p447 = scmp.eq.s32.totalorder %s131, 1
      %p448 = por %p446, %p447
      %p449 = scmp.ne.s32.totalorder %s440, %s441
      %p450 = scmp.eq.s32.totalorder %s131, 0
      %p451 = por %p449, %p450
      %p452 = scmp.ne.s32.totalorder %s440, %s441
      %p453 = scmp.eq.s32.totalorder %s132, 1
      %p454 = por %p452, %p453
      %p456 = scmp.ne.s32.totalorder %s441, %s455
      %p457 = scmp.eq.s32.totalorder %s132, 0
      %p458 = por %p456, %p457
      %s460 = sadd.s32 %s459, 1
      %p463 = scmp.eq.s32.totalorder %s126, 1
      %p464 = scmp.ne.s32.totalorder %s459, %s461
      %p465 = scmp.eq.s32.totalorder %s126, 0
      %p466 = por %p464, %p465
      %p467 = scmp.ne.s32.totalorder %s459, %s461
      %p468 = scmp.eq.s32.totalorder %s131, 1
      %p469 = por %p467, %p468
      %p470 = scmp.ne.s32.totalorder %s461, %s462
      %p471 = scmp.eq.s32.totalorder %s131, 0
      %p472 = por %p470, %p471
      %p473 = scmp.ne.s32.totalorder %s461, %s462
      %p474 = scmp.eq.s32.totalorder %s132, 1
      %p475 = por %p473, %p474
      %p477 = scmp.ne.s32.totalorder %s462, %s476
      %p478 = scmp.eq.s32.totalorder %s132, 0
      %p479 = por %p477, %p478
      %s481 = sadd.s32 %s480, 1
      %p484 = scmp.eq.s32.totalorder %s126, 1
      %p485 = scmp.ne.s32.totalorder %s480, %s482
      %p486 = scmp.eq.s32.totalorder %s126, 0
      %p487 = por %p485, %p486
      %p488 = scmp.ne.s32.totalorder %s480, %s482
      %p489 = scmp.eq.s32.totalorder %s131, 1
      %p490 = por %p488, %p489
      %p491 = scmp.ne.s32.totalorder %s482, %s483
      %p492 = scmp.eq.s32.totalorder %s131, 0
      %p493 = por %p491, %p492
      %p494 = scmp.ne.s32.totalorder %s482, %s483
      %p495 = scmp.eq.s32.totalorder %s132, 1
      %p496 = por %p494, %p495
      %p498 = scmp.ne.s32.totalorder %s483, %s497
      %p499 = scmp.eq.s32.totalorder %s132, 0
      %p500 = por %p498, %p499
      %s502 = sadd.s32 %s501, 1
      %p505 = scmp.eq.s32.totalorder %s126, 1
      %p506 = scmp.ne.s32.totalorder %s501, %s503
      %p507 = scmp.eq.s32.totalorder %s126, 0
      %p508 = por %p506, %p507
      %p509 = scmp.ne.s32.totalorder %s501, %s503
      %p510 = scmp.eq.s32.totalorder %s131, 1
      %p511 = por %p509, %p510
      %p512 = scmp.ne.s32.totalorder %s503, %s504
      %p513 = scmp.eq.s32.totalorder %s131, 0
      %p514 = por %p512, %p513
      %p515 = scmp.ne.s32.totalorder %s503, %s504
      %p516 = scmp.eq.s32.totalorder %s132, 1
      %p517 = por %p515, %p516
      %p519 = scmp.ne.s32.totalorder %s504, %s518
      %p520 = scmp.eq.s32.totalorder %s132, 0
      %p521 = por %p519, %p520
      %s523 = sadd.s32 %s522, 1
      %p526 = scmp.eq.s32.totalorder %s126, 1
      %p527 = scmp.ne.s32.totalorder %s522, %s524
      %p528 = scmp.eq.s32.totalorder %s126, 0
      %p529 = por %p527, %p528
      %p530 = scmp.ne.s32.totalorder %s522, %s524
      %p531 = scmp.eq.s32.totalorder %s131, 1
      %p532 = por %p530, %p531
      %p533 = scmp.ne.s32.totalorder %s524, %s525
      %p534 = scmp.eq.s32.totalorder %s131, 0
      %p535 = por %p533, %p534
      %p536 = scmp.ne.s32.totalorder %s524, %s525
      %p537 = scmp.eq.s32.totalorder %s132, 1
      %p538 = por %p536, %p537
      %p540 = scmp.ne.s32.totalorder %s525, %s539
      %p541 = scmp.eq.s32.totalorder %s132, 0
      %p542 = por %p540, %p541
      %s544 = sadd.s32 %s543, 1
      %p547 = scmp.eq.s32.totalorder %s126, 1
      %p548 = scmp.ne.s32.totalorder %s543, %s545
      %p549 = scmp.eq.s32.totalorder %s126, 0
      %p550 = por %p548, %p549
      %p551 = scmp.ne.s32.totalorder %s543, %s545
      %p552 = scmp.eq.s32.totalorder %s131, 1
      %p553 = por %p551, %p552
      %p554 = scmp.ne.s32.totalorder %s545, %s546
      %p555 = scmp.eq.s32.totalorder %s131, 0
      %p556 = por %p554, %p555
      %p557 = scmp.ne.s32.totalorder %s545, %s546
      %p558 = scmp.eq.s32.totalorder %s132, 1
      %p559 = por %p557, %p558
      %p561 = scmp.ne.s32.totalorder %s546, %s560
      %p562 = scmp.eq.s32.totalorder %s132, 0
      %p563 = por %p561, %p562
      %s565 = sadd.s32 %s564, 1
      %p568 = scmp.eq.s32.totalorder %s126, 1
      %p569 = scmp.ne.s32.totalorder %s564, %s566
      %p570 = scmp.eq.s32.totalorder %s126, 0
      %p571 = por %p569, %p570
      %p572 = scmp.ne.s32.totalorder %s564, %s566
      %p573 = scmp.eq.s32.totalorder %s131, 1
      %p574 = por %p572, %p573
      %p575 = scmp.ne.s32.totalorder %s566, %s567
      %p576 = scmp.eq.s32.totalorder %s131, 0
      %p577 = por %p575, %p576
      %p578 = scmp.ne.s32.totalorder %s566, %s567
      %p579 = scmp.eq.s32.totalorder %s132, 1
      %p580 = por %p578, %p579
      %p582 = scmp.ne.s32.totalorder %s567, %s581
      %p583 = scmp.eq.s32.totalorder %s132, 0
      %p584 = por %p582, %p583
      %s586 = sadd.s32 %s585, 1
      %p589 = scmp.eq.s32.totalorder %s126, 1
      %p590 = scmp.ne.s32.totalorder %s585, %s587
      %p591 = scmp.eq.s32.totalorder %s126, 0
      %p592 = por %p590, %p591
      %p593 = scmp.ne.s32.totalorder %s585, %s587
      %p594 = scmp.eq.s32.totalorder %s131, 1
      %p595 = por %p593, %p594
      %p596 = scmp.ne.s32.totalorder %s587, %s588
      %p597 = scmp.eq.s32.totalorder %s131, 0
      %p598 = por %p596, %p597
      %p599 = scmp.ne.s32.totalorder %s587, %s588
      %p600 = scmp.eq.s32.totalorder %s132, 1
      %p601 = por %p599, %p600
      %p603 = scmp.ne.s32.totalorder %s588, %s602
      %p604 = scmp.eq.s32.totalorder %s132, 0
      %p605 = por %p603, %p604
      %s607 = sadd.s32 %s606, 1
      %p610 = scmp.eq.s32.totalorder %s126, 1
      %p611 = scmp.ne.s32.totalorder %s606, %s608
      %p612 = scmp.eq.s32.totalorder %s126, 0
      %p613 = por %p611, %p612
      %p614 = scmp.ne.s32.totalorder %s606, %s608
      %p615 = scmp.eq.s32.totalorder %s131, 1
      %p616 = por %p614, %p615
      %p617 = scmp.ne.s32.totalorder %s608, %s609
      %p618 = scmp.eq.s32.totalorder %s131, 0
      %p619 = por %p617, %p618
      %p620 = scmp.ne.s32.totalorder %s608, %s609
      %p621 = scmp.eq.s32.totalorder %s132, 1
      %p622 = por %p620, %p621
      %p624 = scmp.ne.s32.totalorder %s609, %s623
      %p625 = scmp.eq.s32.totalorder %s132, 0
      %p626 = por %p624, %p625
      %s628 = sadd.s32 %s627, 1
      %p631 = scmp.eq.s32.totalorder %s126, 1
      %p632 = scmp.ne.s32.totalorder %s627, %s629
      %p633 = scmp.eq.s32.totalorder %s126, 0
      %p634 = por %p632, %p633
      %p635 = scmp.ne.s32.totalorder %s627, %s629
      %p636 = scmp.eq.s32.totalorder %s131, 1
      %p637 = por %p635, %p636
      %p638 = scmp.ne.s32.totalorder %s629, %s630
      %p639 = scmp.eq.s32.totalorder %s131, 0
      %p640 = por %p638, %p639
      %p641 = scmp.ne.s32.totalorder %s629, %s630
      %p642 = scmp.eq.s32.totalorder %s132, 1
      %p643 = por %p641, %p642
      %p645 = scmp.ne.s32.totalorder %s630, %s644
      %p646 = scmp.eq.s32.totalorder %s132, 0
      %p647 = por %p645, %p646
      %s649 = sadd.s32 %s648, 1
      %p652 = scmp.eq.s32.totalorder %s126, 1
      %p653 = scmp.ne.s32.totalorder %s648, %s650
      %p654 = scmp.eq.s32.totalorder %s126, 0
      %p655 = por %p653, %p654
      %p656 = scmp.ne.s32.totalorder %s648, %s650
      %p657 = scmp.eq.s32.totalorder %s131, 1
      %p658 = por %p656, %p657
      %p659 = scmp.ne.s32.totalorder %s650, %s651
      %p660 = scmp.eq.s32.totalorder %s131, 0
      %p661 = por %p659, %p660
      %p662 = scmp.ne.s32.totalorder %s650, %s651
      %p663 = scmp.eq.s32.totalorder %s132, 1
      %p664 = por %p662, %p663
      %p666 = scmp.ne.s32.totalorder %s651, %s665
      %p667 = scmp.eq.s32.totalorder %s132, 0
      %p668 = por %p666, %p667
      %s670 = sadd.s32 %s669, 1
      %p673 = scmp.eq.s32.totalorder %s126, 1
      %p674 = scmp.ne.s32.totalorder %s669, %s671
      %p675 = scmp.eq.s32.totalorder %s126, 0
      %p676 = por %p674, %p675
      %p677 = scmp.ne.s32.totalorder %s669, %s671
      %p678 = scmp.eq.s32.totalorder %s131, 1
      %p679 = por %p677, %p678
      %p680 = scmp.ne.s32.totalorder %s671, %s672
      %p681 = scmp.eq.s32.totalorder %s131, 0
      %p682 = por %p680, %p681
      %p683 = scmp.ne.s32.totalorder %s671, %s672
      %p684 = scmp.eq.s32.totalorder %s132, 1
      %p685 = por %p683, %p684
      %p687 = scmp.ne.s32.totalorder %s672, %s686
      %p688 = scmp.eq.s32.totalorder %s132, 0
      %p689 = por %p687, %p688
      %s691 = sadd.s32 %s690, 1
      %p694 = scmp.eq.s32.totalorder %s126, 1
      %p695 = scmp.ne.s32.totalorder %s690, %s692
      %p696 = scmp.eq.s32.totalorder %s126, 0
      %p697 = por %p695, %p696
      %p698 = scmp.ne.s32.totalorder %s690, %s692
      %p699 = scmp.eq.s32.totalorder %s131, 1
      %p700 = por %p698, %p699
      %p701 = scmp.ne.s32.totalorder %s692, %s693
      %p702 = scmp.eq.s32.totalorder %s131, 0
      %p703 = por %p701, %p702
      %p704 = scmp.ne.s32.totalorder %s692, %s693
      %p705 = scmp.eq.s32.totalorder %s132, 1
      %p706 = por %p704, %p705
      %p708 = scmp.ne.s32.totalorder %s693, %s707
      %p709 = scmp.eq.s32.totalorder %s132, 0
      %p710 = por %p708, %p709
      %s712 = sadd.s32 %s711, 1
      %p715 = scmp.eq.s32.totalorder %s126, 1
      %p716 = scmp.ne.s32.totalorder %s711, %s713
      %p717 = scmp.eq.s32.totalorder %s126, 0
      %p718 = por %p716, %p717
      %p719 = scmp.ne.s32.totalorder %s711, %s713
      %p720 = scmp.eq.s32.totalorder %s131, 1
      %p721 = por %p719, %p720
      %p722 = scmp.ne.s32.totalorder %s713, %s714
      %p723 = scmp.eq.s32.totalorder %s131, 0
      %p724 = por %p722, %p723
      %p725 = scmp.ne.s32.totalorder %s713, %s714
      %p726 = scmp.eq.s32.totalorder %s132, 1
      %p727 = por %p725, %p726
      %p729 = scmp.ne.s32.totalorder %s714, %s728
      %p730 = scmp.eq.s32.totalorder %s132, 0
      %p731 = por %p729, %p730
      %s733 = sadd.s32 %s732, 1
      %p736 = scmp.eq.s32.totalorder %s126, 1
      %p737 = scmp.ne.s32.totalorder %s732, %s734
      %p738 = scmp.eq.s32.totalorder %s126, 0
      %p739 = por %p737, %p738
      %p740 = scmp.ne.s32.totalorder %s732, %s734
      %p741 = scmp.eq.s32.totalorder %s131, 1
      %p742 = por %p740, %p741
      %p743 = scmp.ne.s32.totalorder %s734, %s735
      %p744 = scmp.eq.s32.totalorder %s131, 0
      %p745 = por %p743, %p744
      %p746 = scmp.ne.s32.totalorder %s734, %s735
      %p747 = scmp.eq.s32.totalorder %s132, 1
      %p748 = por %p746, %p747
      %p750 = scmp.ne.s32.totalorder %s735, %s749
      %p751 = scmp.eq.s32.totalorder %s132, 0
      %p752 = por %p750, %p751
      %s754 = sadd.s32 %s753, 1
      %p757 = scmp.eq.s32.totalorder %s126, 1
      %p758 = scmp.ne.s32.totalorder %s753, %s755
      %p759 = scmp.eq.s32.totalorder %s126, 0
      %p760 = por %p758, %p759
      %p761 = scmp.ne.s32.totalorder %s753, %s755
      %p762 = scmp.eq.s32.totalorder %s131, 1
      %p763 = por %p761, %p762
      %p764 = scmp.ne.s32.totalorder %s755, %s756
      %p765 = scmp.eq.s32.totalorder %s131, 0
      %p766 = por %p764, %p765
      %p767 = scmp.ne.s32.totalorder %s755, %s756
      %p768 = scmp.eq.s32.totalorder %s132, 1
      %p769 = por %p767, %p768
      %p771 = scmp.ne.s32.totalorder %s756, %s770
      %p772 = scmp.eq.s32.totalorder %s132, 0
      %p773 = por %p771, %p772
      %s775 = sadd.s32 %s774, 1
      %p778 = scmp.eq.s32.totalorder %s126, 1
      %p779 = scmp.ne.s32.totalorder %s774, %s776
      %p780 = scmp.eq.s32.totalorder %s126, 0
      %p781 = por %p779, %p780
      %p782 = scmp.ne.s32.totalorder %s774, %s776
      %p783 = scmp.eq.s32.totalorder %s131, 1
      %p784 = por %p782, %p783
      %p785 = scmp.ne.s32.totalorder %s776, %s777
      %p786 = scmp.eq.s32.totalorder %s131, 0
      %p787 = por %p785, %p786
      %p788 = scmp.ne.s32.totalorder %s776, %s777
      %p789 = scmp.eq.s32.totalorder %s132, 1
      %p790 = por %p788, %p789
      %p792 = scmp.ne.s32.totalorder %s777, %s791
      %p793 = scmp.eq.s32.totalorder %s132, 0
      %p794 = por %p792, %p793
      %s796 = sadd.s32 %s795, 1
      %p799 = scmp.eq.s32.totalorder %s126, 1
      %p800 = scmp.ne.s32.totalorder %s795, %s797
      %p801 = scmp.eq.s32.totalorder %s126, 0
      %p802 = por %p800, %p801
      %p803 = scmp.ne.s32.totalorder %s795, %s797
      %p804 = scmp.eq.s32.totalorder %s131, 1
      %p805 = por %p803, %p804
      %p806 = scmp.ne.s32.totalorder %s797, %s798
      %p807 = scmp.eq.s32.totalorder %s131, 0
      %p808 = por %p806, %p807
      %p809 = scmp.ne.s32.totalorder %s797, %s798
      %p810 = scmp.eq.s32.totalorder %s132, 1
      %p811 = por %p809, %p810
      %p813 = scmp.ne.s32.totalorder %s798, %s812
      %p814 = scmp.eq.s32.totalorder %s132, 0
      %p815 = por %p813, %p814
      %s817 = sadd.s32 %s816, 1
      %p820 = scmp.eq.s32.totalorder %s126, 1
      %p821 = scmp.ne.s32.totalorder %s816, %s818
      %p822 = scmp.eq.s32.totalorder %s126, 0
      %p823 = por %p821, %p822
      %p824 = scmp.ne.s32.totalorder %s816, %s818
      %p825 = scmp.eq.s32.totalorder %s131, 1
      %p826 = por %p824, %p825
      %p827 = scmp.ne.s32.totalorder %s818, %s819
      %p828 = scmp.eq.s32.totalorder %s131, 0
      %p829 = por %p827, %p828
      %p830 = scmp.ne.s32.totalorder %s818, %s819
      %p831 = scmp.eq.s32.totalorder %s132, 1
      %p832 = por %p830, %p831
      %p834 = scmp.ne.s32.totalorder %s819, %s833
      %p835 = scmp.eq.s32.totalorder %s132, 0
      %p836 = por %p834, %p835
      %s838 = sadd.s32 %s837, 1
      %p841 = scmp.eq.s32.totalorder %s126, 1
      %p842 = scmp.ne.s32.totalorder %s837, %s839
      %p843 = scmp.eq.s32.totalorder %s126, 0
      %p844 = por %p842, %p843
      %p845 = scmp.ne.s32.totalorder %s837, %s839
      %p846 = scmp.eq.s32.totalorder %s131, 1
      %p847 = por %p845, %p846
      %p848 = scmp.ne.s32.totalorder %s839, %s840
      %p849 = scmp.eq.s32.totalorder %s131, 0
      %p850 = por %p848, %p849
      %p851 = scmp.ne.s32.totalorder %s839, %s840
      %p852 = scmp.eq.s32.totalorder %s132, 1
      %p853 = por %p851, %p852
      %p855 = scmp.ne.s32.totalorder %s840, %s854
      %p856 = scmp.eq.s32.totalorder %s132, 0
      %p857 = por %p855, %p856
      %s859 = sadd.s32 %s858, 1
      %p862 = scmp.eq.s32.totalorder %s126, 1
      %p863 = scmp.ne.s32.totalorder %s858, %s860
      %p864 = scmp.eq.s32.totalorder %s126, 0
      %p865 = por %p863, %p864
      %p866 = scmp.ne.s32.totalorder %s858, %s860
      %p867 = scmp.eq.s32.totalorder %s131, 1
      %p868 = por %p866, %p867
      %p869 = scmp.ne.s32.totalorder %s860, %s861
      %p870 = scmp.eq.s32.totalorder %s131, 0
      %p871 = por %p869, %p870
      %p872 = scmp.ne.s32.totalorder %s860, %s861
      %p873 = scmp.eq.s32.totalorder %s132, 1
      %p874 = por %p872, %p873
      %p876 = scmp.ne.s32.totalorder %s861, %s875
      %p877 = scmp.eq.s32.totalorder %s132, 0
      %p878 = por %p876, %p877
      %s880 = sadd.s32 %s879, 1
      %p883 = scmp.eq.s32.totalorder %s126, 1
      %p884 = scmp.ne.s32.totalorder %s879, %s881
      %p885 = scmp.eq.s32.totalorder %s126, 0
      %p886 = por %p884, %p885
      %p887 = scmp.ne.s32.totalorder %s879, %s881
      %p888 = scmp.eq.s32.totalorder %s131, 1
      %p889 = por %p887, %p888
      %p890 = scmp.ne.s32.totalorder %s881, %s882
      %p891 = scmp.eq.s32.totalorder %s131, 0
      %p892 = por %p890, %p891
      %p893 = scmp.ne.s32.totalorder %s881, %s882
      %p894 = scmp.eq.s32.totalorder %s132, 1
      %p895 = por %p893, %p894
      %p897 = scmp.ne.s32.totalorder %s882, %s896
      %p898 = scmp.eq.s32.totalorder %s132, 0
      %p899 = por %p897, %p898
      %s901 = sadd.s32 %s900, 1
      %p904 = scmp.eq.s32.totalorder %s126, 1
      %p905 = scmp.ne.s32.totalorder %s900, %s902
      %p906 = scmp.eq.s32.totalorder %s126, 0
      %p907 = por %p905, %p906
      %p908 = scmp.ne.s32.totalorder %s900, %s902
      %p909 = scmp.eq.s32.totalorder %s131, 1
      %p910 = por %p908, %p909
      %p911 = scmp.ne.s32.totalorder %s902, %s903
      %p912 = scmp.eq.s32.totalorder %s131, 0
      %p913 = por %p911, %p912
      %p914 = scmp.ne.s32.totalorder %s902, %s903
      %p915 = scmp.eq.s32.totalorder %s132, 1
      %p916 = por %p914, %p915
      %p918 = scmp.ne.s32.totalorder %s903, %s917
      %p919 = scmp.eq.s32.totalorder %s132, 0
      %p920 = por %p918, %p919
      %s922 = sadd.s32 %s921, 1
      %p925 = scmp.eq.s32.totalorder %s126, 1
      %p926 = scmp.ne.s32.totalorder %s921, %s923
      %p927 = scmp.eq.s32.totalorder %s126, 0
      %p928 = por %p926, %p927
      %p929 = scmp.ne.s32.totalorder %s921, %s923
      %p930 = scmp.eq.s32.totalorder %s131, 1
      %p931 = por %p929, %p930
      %p932 = scmp.ne.s32.totalorder %s923, %s924
      %p933 = scmp.eq.s32.totalorder %s131, 0
      %p934 = por %p932, %p933
      %p935 = scmp.ne.s32.totalorder %s923, %s924
      %p936 = scmp.eq.s32.totalorder %s132, 1
      %p937 = por %p935, %p936
      %p939 = scmp.ne.s32.totalorder %s924, %s938
      %p940 = scmp.eq.s32.totalorder %s132, 0
      %p941 = por %p939, %p940
      %s943 = sadd.s32 %s942, 1
      %p946 = scmp.eq.s32.totalorder %s126, 1
      %p947 = scmp.ne.s32.totalorder %s942, %s944
      %p948 = scmp.eq.s32.totalorder %s126, 0
      %p949 = por %p947, %p948
      %p950 = scmp.ne.s32.totalorder %s942, %s944
      %p951 = scmp.eq.s32.totalorder %s131, 1
      %p952 = por %p950, %p951
      %p953 = scmp.ne.s32.totalorder %s944, %s945
      %p954 = scmp.eq.s32.totalorder %s131, 0
      %p955 = por %p953, %p954
      %p956 = scmp.ne.s32.totalorder %s944, %s945
      %p957 = scmp.eq.s32.totalorder %s132, 1
      %p958 = por %p956, %p957
      %p960 = scmp.ne.s32.totalorder %s945, %s959
      %p961 = scmp.eq.s32.totalorder %s132, 0
      %p962 = por %p960, %p961
      %s964 = sadd.s32 %s963, 1
      %p967 = scmp.eq.s32.totalorder %s126, 1
      %p968 = scmp.ne.s32.totalorder %s963, %s965
      %p969 = scmp.eq.s32.totalorder %s126, 0
      %p970 = por %p968, %p969
      %p971 = scmp.ne.s32.totalorder %s963, %s965
      %p972 = scmp.eq.s32.totalorder %s131, 1
      %p973 = por %p971, %p972
      %p974 = scmp.ne.s32.totalorder %s965, %s966
      %p975 = scmp.eq.s32.totalorder %s131, 0
      %p976 = por %p974, %p975
      %p977 = scmp.ne.s32.totalorder %s965, %s966
      %p978 = scmp.eq.s32.totalorder %s132, 1
      %p979 = por %p977, %p978
      %p981 = scmp.ne.s32.totalorder %s966, %s980
      %p982 = scmp.eq.s32.totalorder %s132, 0
      %p983 = por %p981, %p982
      %s985 = sadd.s32 %s984, 1
      %p988 = scmp.eq.s32.totalorder %s126, 1
      %p989 = scmp.ne.s32.totalorder %s984, %s986
      %p990 = scmp.eq.s32.totalorder %s126, 0
      %p991 = por %p989, %p990
      %p992 = scmp.ne.s32.totalorder %s984, %s986
      %p993 = scmp.eq.s32.totalorder %s131, 1
      %p994 = por %p992, %p993
      %p995 = scmp.ne.s32.totalorder %s986, %s987
      %p996 = scmp.eq.s32.totalorder %s131, 0
      %p997 = por %p995, %p996
      %p998 = scmp.ne.s32.totalorder %s986, %s987
      %p999 = scmp.eq.s32.totalorder %s132, 1
      %p1000 = por %p998, %p999
      %p1002 = scmp.ne.s32.totalorder %s987, %s1001
      %p1003 = scmp.eq.s32.totalorder %s132, 0
      %p1004 = por %p1002, %p1003
      %s1006 = sadd.s32 %s1005, 1
      %p1009 = scmp.eq.s32.totalorder %s126, 1
      %p1010 = scmp.ne.s32.totalorder %s1005, %s1007
      %p1011 = scmp.eq.s32.totalorder %s126, 0
      %p1012 = por %p1010, %p1011
      %p1013 = scmp.ne.s32.totalorder %s1005, %s1007
      %p1014 = scmp.eq.s32.totalorder %s131, 1
      %p1015 = por %p1013, %p1014
      %p1016 = scmp.ne.s32.totalorder %s1007, %s1008
      %p1017 = scmp.eq.s32.totalorder %s131, 0
      %p1018 = por %p1016, %p1017
      %p1019 = scmp.ne.s32.totalorder %s1007, %s1008
      %p1020 = scmp.eq.s32.totalorder %s132, 1
      %p1021 = por %p1019, %p1020
      %p1023 = scmp.ne.s32.totalorder %s1008, %s1022
      %p1024 = scmp.eq.s32.totalorder %s132, 0
      %p1025 = por %p1023, %p1024
      %s1027 = sadd.s32 %s1026, 1
      %p1030 = scmp.eq.s32.totalorder %s126, 1
      %p1031 = scmp.ne.s32.totalorder %s1026, %s1028
      %p1032 = scmp.eq.s32.totalorder %s126, 0
      %p1033 = por %p1031, %p1032
      %p1034 = scmp.ne.s32.totalorder %s1026, %s1028
      %p1035 = scmp.eq.s32.totalorder %s131, 1
      %p1036 = por %p1034, %p1035
      %p1037 = scmp.ne.s32.totalorder %s1028, %s1029
      %p1038 = scmp.eq.s32.totalorder %s131, 0
      %p1039 = por %p1037, %p1038
      %p1040 = scmp.ne.s32.totalorder %s1028, %s1029
      %p1041 = scmp.eq.s32.totalorder %s132, 1
      %p1042 = por %p1040, %p1041
      %p1044 = scmp.ne.s32.totalorder %s1029, %s1043
      %p1045 = scmp.eq.s32.totalorder %s132, 0
      %p1046 = por %p1044, %p1045
      %s1048 = sadd.s32 %s1047, 1
      %p1051 = scmp.eq.s32.totalorder %s126, 1
      %p1052 = scmp.ne.s32.totalorder %s1047, %s1049
      %p1053 = scmp.eq.s32.totalorder %s126, 0
      %p1054 = por %p1052, %p1053
      %p1055 = scmp.ne.s32.totalorder %s1047, %s1049
      %p1056 = scmp.eq.s32.totalorder %s131, 1
      %p1057 = por %p1055, %p1056
      %p1058 = scmp.ne.s32.totalorder %s1049, %s1050
      %p1059 = scmp.eq.s32.totalorder %s131, 0
      %p1060 = por %p1058, %p1059
      %p1061 = scmp.ne.s32.totalorder %s1049, %s1050
      %p1062 = scmp.eq.s32.totalorder %s132, 1
      %p1063 = por %p1061, %p1062
      %p1065 = scmp.ne.s32.totalorder %s1050, %s1064
      %p1066 = scmp.eq.s32.totalorder %s132, 0
      %p1067 = por %p1065, %p1066
      %s1069 = sadd.s32 %s1068, 1
      %p1072 = scmp.eq.s32.totalorder %s126, 1
      %p1073 = scmp.ne.s32.totalorder %s1068, %s1070
      %p1074 = scmp.eq.s32.totalorder %s126, 0
      %p1075 = por %p1073, %p1074
      %p1076 = scmp.ne.s32.totalorder %s1068, %s1070
      %p1077 = scmp.eq.s32.totalorder %s131, 1
      %p1078 = por %p1076, %p1077
      %p1079 = scmp.ne.s32.totalorder %s1070, %s1071
      %p1080 = scmp.eq.s32.totalorder %s131, 0
      %p1081 = por %p1079, %p1080
      %p1082 = scmp.ne.s32.totalorder %s1070, %s1071
      %p1083 = scmp.eq.s32.totalorder %s132, 1
      %p1084 = por %p1082, %p1083
      %p1086 = scmp.ne.s32.totalorder %s1071, %s1085
      %p1087 = scmp.eq.s32.totalorder %s132, 0
      %p1088 = por %p1086, %p1087
      %s1090 = sadd.s32 %s1089, 1
      %p1093 = scmp.eq.s32.totalorder %s126, 1
      %p1094 = scmp.ne.s32.totalorder %s1089, %s1091
      %p1095 = scmp.eq.s32.totalorder %s126, 0
      %p1096 = por %p1094, %p1095
      %p1097 = scmp.ne.s32.totalorder %s1089, %s1091
      %p1098 = scmp.eq.s32.totalorder %s131, 1
      %p1099 = por %p1097, %p1098
      %p1100 = scmp.ne.s32.totalorder %s1091, %s1092
      %p1101 = scmp.eq.s32.totalorder %s131, 0
      %p1102 = por %p1100, %p1101
      %p1103 = scmp.ne.s32.totalorder %s1091, %s1092
      %p1104 = scmp.eq.s32.totalorder %s132, 1
      %p1105 = por %p1103, %p1104
      %p1107 = scmp.ne.s32.totalorder %s1092, %s1106
      %p1108 = scmp.eq.s32.totalorder %s132, 0
      %p1109 = por %p1107, %p1108
      %s1111 = sadd.s32 %s1110, 1
      %p1114 = scmp.eq.s32.totalorder %s126, 1
      %p1115 = scmp.ne.s32.totalorder %s1110, %s1112
      %p1116 = scmp.eq.s32.totalorder %s126, 0
      %p1117 = por %p1115, %p1116
      %p1118 = scmp.ne.s32.totalorder %s1110, %s1112
      %p1119 = scmp.eq.s32.totalorder %s131, 1
      %p1120 = por %p1118, %p1119
      %p1121 = scmp.ne.s32.totalorder %s1112, %s1113
      %p1122 = scmp.eq.s32.totalorder %s131, 0
      %p1123 = por %p1121, %p1122
      %p1124 = scmp.ne.s32.totalorder %s1112, %s1113
      %p1125 = scmp.eq.s32.totalorder %s132, 1
      %p1126 = por %p1124, %p1125
      %p1128 = scmp.ne.s32.totalorder %s1113, %s1127
      %p1129 = scmp.eq.s32.totalorder %s132, 0
      %p1130 = por %p1128, %p1129
      %s1132 = sadd.s32 %s1131, 1
      %p1135 = scmp.eq.s32.totalorder %s126, 1
      %p1136 = scmp.ne.s32.totalorder %s1131, %s1133
      %p1137 = scmp.eq.s32.totalorder %s126, 0
      %p1138 = por %p1136, %p1137
      %p1139 = scmp.ne.s32.totalorder %s1131, %s1133
      %p1140 = scmp.eq.s32.totalorder %s131, 1
      %p1141 = por %p1139, %p1140
      %p1142 = scmp.ne.s32.totalorder %s1133, %s1134
      %p1143 = scmp.eq.s32.totalorder %s131, 0
      %p1144 = por %p1142, %p1143
      %p1145 = scmp.ne.s32.totalorder %s1133, %s1134
      %p1146 = scmp.eq.s32.totalorder %s132, 1
      %p1147 = por %p1145, %p1146
      %p1149 = scmp.ne.s32.totalorder %s1134, %s1148
      %p1150 = scmp.eq.s32.totalorder %s132, 0
      %p1151 = por %p1149, %p1150
      %s1153 = sadd.s32 %s1152, 1
      %p1156 = scmp.eq.s32.totalorder %s126, 1
      %p1157 = scmp.ne.s32.totalorder %s1152, %s1154
      %p1158 = scmp.eq.s32.totalorder %s126, 0
      %p1159 = por %p1157, %p1158
      %p1160 = scmp.ne.s32.totalorder %s1152, %s1154
      %p1161 = scmp.eq.s32.totalorder %s131, 1
      %p1162 = por %p1160, %p1161
      %p1163 = scmp.ne.s32.totalorder %s1154, %s1155
      %p1164 = scmp.eq.s32.totalorder %s131, 0
      %p1165 = por %p1163, %p1164
      %p1166 = scmp.ne.s32.totalorder %s1154, %s1155
      %p1167 = scmp.eq.s32.totalorder %s132, 1
      %p1168 = por %p1166, %p1167
      %p1170 = scmp.ne.s32.totalorder %s1155, %s1169
      %p1171 = scmp.eq.s32.totalorder %s132, 0
      %p1172 = por %p1170, %p1171
      %s1174 = sadd.s32 %s1173, 1
      %p1177 = scmp.eq.s32.totalorder %s126, 1
      %p1178 = scmp.ne.s32.totalorder %s1173, %s1175
      %p1179 = scmp.eq.s32.totalorder %s126, 0
      %p1180 = por %p1178, %p1179
      %p1181 = scmp.ne.s32.totalorder %s1173, %s1175
      %p1182 = scmp.eq.s32.totalorder %s131, 1
      %p1183 = por %p1181, %p1182
      %p1184 = scmp.ne.s32.totalorder %s1175, %s1176
      %p1185 = scmp.eq.s32.totalorder %s131, 0
      %p1186 = por %p1184, %p1185
      %p1187 = scmp.ne.s32.totalorder %s1175, %s1176
      %p1188 = scmp.eq.s32.totalorder %s132, 1
      %p1189 = por %p1187, %p1188
      %p1191 = scmp.ne.s32.totalorder %s1176, %s1190
      %p1192 = scmp.eq.s32.totalorder %s132, 0
      %p1193 = por %p1191, %p1192
      %s1195 = sadd.s32 %s1194, 1
      %p1198 = scmp.eq.s32.totalorder %s126, 1
      %p1199 = scmp.ne.s32.totalorder %s1194, %s1196
      %p1200 = scmp.eq.s32.totalorder %s126, 0
      %p1201 = por %p1199, %p1200
      %p1202 = scmp.ne.s32.totalorder %s1194, %s1196
      %p1203 = scmp.eq.s32.totalorder %s131, 1
      %p1204 = por %p1202, %p1203
      %p1205 = scmp.ne.s32.totalorder %s1196, %s1197
      %p1206 = scmp.eq.s32.totalorder %s131, 0
      %p1207 = por %p1205, %p1206
      %p1208 = scmp.ne.s32.totalorder %s1196, %s1197
      %p1209 = scmp.eq.s32.totalorder %s132, 1
      %p1210 = por %p1208, %p1209
      %p1212 = scmp.ne.s32.totalorder %s1197, %s1211
      %p1213 = scmp.eq.s32.totalorder %s132, 0
      %p1214 = por %p1212, %p1213
      %s1216 = sadd.s32 %s1215, 1
      %p1219 = scmp.eq.s32.totalorder %s126, 1
      %p1220 = scmp.ne.s32.totalorder %s1215, %s1217
      %p1221 = scmp.eq.s32.totalorder %s126, 0
      %p1222 = por %p1220, %p1221
      %p1223 = scmp.ne.s32.totalorder %s1215, %s1217
      %p1224 = scmp.eq.s32.totalorder %s131, 1
      %p1225 = por %p1223, %p1224
      %p1226 = scmp.ne.s32.totalorder %s1217, %s1218
      %p1227 = scmp.eq.s32.totalorder %s131, 0
      %p1228 = por %p1226, %p1227
      %p1229 = scmp.ne.s32.totalorder %s1217, %s1218
      %p1230 = scmp.eq.s32.totalorder %s132, 1
      %p1231 = por %p1229, %p1230
      %p1233 = scmp.ne.s32.totalorder %s1218, %s1232
      %p1234 = scmp.eq.s32.totalorder %s132, 0
      %p1235 = por %p1233, %p1234
      %s1237 = sadd.s32 %s1236, 1
      %p1240 = scmp.eq.s32.totalorder %s126, 1
      %p1241 = scmp.ne.s32.totalorder %s1236, %s1238
      %p1242 = scmp.eq.s32.totalorder %s126, 0
      %p1243 = por %p1241, %p1242
      %p1244 = scmp.ne.s32.totalorder %s1236, %s1238
      %p1245 = scmp.eq.s32.totalorder %s131, 1
      %p1246 = por %p1244, %p1245
      %p1247 = scmp.ne.s32.totalorder %s1238, %s1239
      %p1248 = scmp.eq.s32.totalorder %s131, 0
      %p1249 = por %p1247, %p1248
      %p1250 = scmp.ne.s32.totalorder %s1238, %s1239
      %p1251 = scmp.eq.s32.totalorder %s132, 1
      %p1252 = por %p1250, %p1251
      %p1254 = scmp.ne.s32.totalorder %s1239, %s1253
      %p1255 = scmp.eq.s32.totalorder %s132, 0
      %p1256 = por %p1254, %p1255
      %s1258 = sadd.s32 %s1257, 1
      %p1261 = scmp.eq.s32.totalorder %s126, 1
      %p1262 = scmp.ne.s32.totalorder %s1257, %s1259
      %p1263 = scmp.eq.s32.totalorder %s126, 0
      %p1264 = por %p1262, %p1263
      %p1265 = scmp.ne.s32.totalorder %s1257, %s1259
      %p1266 = scmp.eq.s32.totalorder %s131, 1
      %p1267 = por %p1265, %p1266
      %p1268 = scmp.ne.s32.totalorder %s1259, %s1260
      %p1269 = scmp.eq.s32.totalorder %s131, 0
      %p1270 = por %p1268, %p1269
      %p1271 = scmp.ne.s32.totalorder %s1259, %s1260
      %p1272 = scmp.eq.s32.totalorder %s132, 1
      %p1273 = por %p1271, %p1272
      %p1275 = scmp.ne.s32.totalorder %s1260, %s1274
      %p1276 = scmp.eq.s32.totalorder %s132, 0
      %p1277 = por %p1275, %p1276
      %s1279 = sadd.s32 %s1278, 1
      %p1282 = scmp.eq.s32.totalorder %s126, 1
      %p1283 = scmp.ne.s32.totalorder %s1278, %s1280
      %p1284 = scmp.eq.s32.totalorder %s126, 0
      %p1285 = por %p1283, %p1284
      %p1286 = scmp.ne.s32.totalorder %s1278, %s1280
      %p1287 = scmp.eq.s32.totalorder %s131, 1
      %p1288 = por %p1286, %p1287
      %p1289 = scmp.ne.s32.totalorder %s1280, %s1281
      %p1290 = scmp.eq.s32.totalorder %s131, 0
      %p1291 = por %p1289, %p1290
      %p1292 = scmp.ne.s32.totalorder %s1280, %s1281
      %p1293 = scmp.eq.s32.totalorder %s132, 1
      %p1294 = por %p1292, %p1293
      %p1296 = scmp.ne.s32.totalorder %s1281, %s1295
      %p1297 = scmp.eq.s32.totalorder %s132, 0
      %p1298 = por %p1296, %p1297
      %s1300 = sadd.s32 %s1299, 1
      %p1303 = scmp.eq.s32.totalorder %s126, 1
      %p1304 = scmp.ne.s32.totalorder %s1299, %s1301
      %p1305 = scmp.eq.s32.totalorder %s126, 0
      %p1306 = por %p1304, %p1305
      %p1307 = scmp.ne.s32.totalorder %s1299, %s1301
      %p1308 = scmp.eq.s32.totalorder %s131, 1
      %p1309 = por %p1307, %p1308
      %p1310 = scmp.ne.s32.totalorder %s1301, %s1302
      %p1311 = scmp.eq.s32.totalorder %s131, 0
      %p1312 = por %p1310, %p1311
      %p1313 = scmp.ne.s32.totalorder %s1301, %s1302
      %p1314 = scmp.eq.s32.totalorder %s132, 1
      %p1315 = por %p1313, %p1314
      %p1317 = scmp.ne.s32.totalorder %s1302, %s1316
      %p1318 = scmp.eq.s32.totalorder %s132, 0
      %p1319 = por %p1317, %p1318
      %s1321 = sadd.s32 %s1320, 1
      %p1324 = scmp.eq.s32.totalorder %s126, 1
      %p1325 = scmp.ne.s32.totalorder %s1320, %s1322
      %p1326 = scmp.eq.s32.totalorder %s126, 0
      %p1327 = por %p1325, %p1326
      %p1328 = scmp.ne.s32.totalorder %s1320, %s1322
      %p1329 = scmp.eq.s32.totalorder %s131, 1
      %p1330 = por %p1328, %p1329
      %p1331 = scmp.ne.s32.totalorder %s1322, %s1323
      %p1332 = scmp.eq.s32.totalorder %s131, 0
      %p1333 = por %p1331, %p1332
      %p1334 = scmp.ne.s32.totalorder %s1322, %s1323
      %p1335 = scmp.eq.s32.totalorder %s132, 1
      %p1336 = por %p1334, %p1335
      %p1338 = scmp.ne.s32.totalorder %s1323, %s1337
      %p1339 = scmp.eq.s32.totalorder %s132, 0
      %p1340 = por %p1338, %p1339
      %s1341 = ssub.s32 %s126, %s133
      %p1342 = scmp.eq.s32.totalorder %s1341, 0
      %s1344 = sadd.s32 %s1343, 1
      %s1345 = scalar_select %p1342, %s1343, %s1344
      %p1348 = pneg %p1342
      %p1349 = scmp.eq.s32.totalorder %s126, 1
      %p1350 = por %p1348, %p1349
      %p1351 = scmp.ne.s32.totalorder %s1343, %s1346
      %p1352 = scmp.eq.s32.totalorder %s126, 0
      %p1353 = por %p1351, %p1352
      %p1354 = scmp.ne.s32.totalorder %s1343, %s1346
      %p1355 = scmp.eq.s32.totalorder %s131, 1
      %p1356 = por %p1354, %p1355
      %p1357 = scmp.ne.s32.totalorder %s1346, %s1347
      %p1358 = scmp.eq.s32.totalorder %s131, 0
      %p1359 = por %p1357, %p1358
      %p1360 = scmp.ne.s32.totalorder %s1346, %s1347
      %p1361 = scmp.eq.s32.totalorder %s132, 1
      %p1362 = por %p1360, %p1361
      %p1364 = scmp.ne.s32.totalorder %s1347, %s1363
      %p1365 = scmp.eq.s32.totalorder %s132, 0
      %p1366 = por %p1364, %p1365
      %p1367 = scmp.le.s32.totalorder 1, %s126
      %p1368 = scmp.lt.s32.totalorder %s126, 3
      %p1369 = pnand %p1367, %p1368
      %p1370 = pneg %p1369
      // Predicated region
      $region9: #{forward.1} parent=5 // pred_check
        _
      $region10: #{forward.1} parent=5 // pred_check_branch
        %1372 = sbr.rel (%p1369) target = $region12
      $region11: #{forward.1} parent=5 // pred_region
        %s1373 = ssub.s32 %s126, 1
        // Predicated region
        $region13: #{forward.1} parent=11 // pred_check
          %p1374 = pneg %p199
        $region14: #{forward.1} parent=11 // pred_check_branch
          %1376 = sbr.rel (%p1374) target = $region16
        $region15: #{forward.1} parent=11 // pred_region
          _
        $region16: #{forward.1} parent=11 // pred_fallthru
          _
        // Predicated region
        $region17: #{forward.1} parent=11 // pred_check
          %p1377 = pneg %p220
        $region18: #{forward.1} parent=11 // pred_check_branch
          %1379 = sbr.rel (%p1377) target = $region20
        $region19: #{forward.1} parent=11 // pred_region
          _
        $region20: #{forward.1} parent=11 // pred_fallthru
          _
        // Predicated region
        $region21: #{forward.1} parent=11 // pred_check
          %p1380 = pneg %p241
        $region22: #{forward.1} parent=11 // pred_check_branch
          %1382 = sbr.rel (%p1380) target = $region24
        $region23: #{forward.1} parent=11 // pred_region
          _
        $region24: #{forward.1} parent=11 // pred_fallthru
          _
        // Predicated region
        $region25: #{forward.1} parent=11 // pred_check
          %p1383 = pneg %p262
        $region26: #{forward.1} parent=11 // pred_check_branch
          %1385 = sbr.rel (%p1383) target = $region28
        $region27: #{forward.1} parent=11 // pred_region
          _
        $region28: #{forward.1} parent=11 // pred_fallthru
          _
        // Predicated region
        $region29: #{forward.1} parent=11 // pred_check
          %p1386 = pneg %p283
        $region30: #{forward.1} parent=11 // pred_check_branch
          %1388 = sbr.rel (%p1386) target = $region32
        $region31: #{forward.1} parent=11 // pred_region
          _
        $region32: #{forward.1} parent=11 // pred_fallthru
          _
        // Predicated region
        $region33: #{forward.1} parent=11 // pred_check
          %p1389 = pneg %p304
        $region34: #{forward.1} parent=11 // pred_check_branch
          %1391 = sbr.rel (%p1389) target = $region36
        $region35: #{forward.1} parent=11 // pred_region
          _
        $region36: #{forward.1} parent=11 // pred_fallthru
          _
        // Predicated region
        $region37: #{forward.1} parent=11 // pred_check
          %p1392 = pneg %p325
        $region38: #{forward.1} parent=11 // pred_check_branch
          %1394 = sbr.rel (%p1392) target = $region40
        $region39: #{forward.1} parent=11 // pred_region
          _
        $region40: #{forward.1} parent=11 // pred_fallthru
          _
        // Predicated region
        $region41: #{forward.1} parent=11 // pred_check
          %p1395 = pneg %p346
        $region42: #{forward.1} parent=11 // pred_check_branch
          %1397 = sbr.rel (%p1395) target = $region44
        $region43: #{forward.1} parent=11 // pred_region
          _
        $region44: #{forward.1} parent=11 // pred_fallthru
          _
        // Predicated region
        $region45: #{forward.1} parent=11 // pred_check
          %p1398 = pneg %p367
        $region46: #{forward.1} parent=11 // pred_check_branch
          %1400 = sbr.rel (%p1398) target = $region48
        $region47: #{forward.1} parent=11 // pred_region
          _
        $region48: #{forward.1} parent=11 // pred_fallthru
          _
        // Predicated region
        $region49: #{forward.1} parent=11 // pred_check
          %p1401 = pneg %p388
        $region50: #{forward.1} parent=11 // pred_check_branch
          %1403 = sbr.rel (%p1401) target = $region52
        $region51: #{forward.1} parent=11 // pred_region
          _
        $region52: #{forward.1} parent=11 // pred_fallthru
          _
        // Predicated region
        $region53: #{forward.1} parent=11 // pred_check
          %p1404 = pneg %p409
        $region54: #{forward.1} parent=11 // pred_check_branch
          %1406 = sbr.rel (%p1404) target = $region56
        $region55: #{forward.1} parent=11 // pred_region
          _
        $region56: #{forward.1} parent=11 // pred_fallthru
          _
        // Predicated region
        $region57: #{forward.1} parent=11 // pred_check
          %p1407 = pneg %p430
        $region58: #{forward.1} parent=11 // pred_check_branch
          %1409 = sbr.rel (%p1407) target = $region60
        $region59: #{forward.1} parent=11 // pred_region
          _
        $region60: #{forward.1} parent=11 // pred_fallthru
          _
        // Predicated region
        $region61: #{forward.1} parent=11 // pred_check
          %p1410 = pneg %p451
        $region62: #{forward.1} parent=11 // pred_check_branch
          %1412 = sbr.rel (%p1410) target = $region64
        $region63: #{forward.1} parent=11 // pred_region
          _
        $region64: #{forward.1} parent=11 // pred_fallthru
          _
        // Predicated region
        $region65: #{forward.1} parent=11 // pred_check
          %p1413 = pneg %p472
        $region66: #{forward.1} parent=11 // pred_check_branch
          %1415 = sbr.rel (%p1413) target = $region68
        $region67: #{forward.1} parent=11 // pred_region
          _
        $region68: #{forward.1} parent=11 // pred_fallthru
          _
        // Predicated region
        $region69: #{forward.1} parent=11 // pred_check
          %p1416 = pneg %p493
        $region70: #{forward.1} parent=11 // pred_check_branch
          %1418 = sbr.rel (%p1416) target = $region72
        $region71: #{forward.1} parent=11 // pred_region
          _
        $region72: #{forward.1} parent=11 // pred_fallthru
          _
        // Predicated region
        $region73: #{forward.1} parent=11 // pred_check
          %p1419 = pneg %p514
        $region74: #{forward.1} parent=11 // pred_check_branch
          %1421 = sbr.rel (%p1419) target = $region76
        $region75: #{forward.1} parent=11 // pred_region
          _
        $region76: #{forward.1} parent=11 // pred_fallthru
          _
        // Predicated region
        $region77: #{forward.1} parent=11 // pred_check
          %p1422 = pneg %p535
        $region78: #{forward.1} parent=11 // pred_check_branch
          %1424 = sbr.rel (%p1422) target = $region80
        $region79: #{forward.1} parent=11 // pred_region
          _
        $region80: #{forward.1} parent=11 // pred_fallthru
          _
        // Predicated region
        $region81: #{forward.1} parent=11 // pred_check
          %p1425 = pneg %p556
        $region82: #{forward.1} parent=11 // pred_check_branch
          %1427 = sbr.rel (%p1425) target = $region84
        $region83: #{forward.1} parent=11 // pred_region
          _
        $region84: #{forward.1} parent=11 // pred_fallthru
          _
        // Predicated region
        $region85: #{forward.1} parent=11 // pred_check
          %p1428 = pneg %p577
        $region86: #{forward.1} parent=11 // pred_check_branch
          %1430 = sbr.rel (%p1428) target = $region88
        $region87: #{forward.1} parent=11 // pred_region
          _
        $region88: #{forward.1} parent=11 // pred_fallthru
          _
        // Predicated region
        $region89: #{forward.1} parent=11 // pred_check
          %p1431 = pneg %p598
        $region90: #{forward.1} parent=11 // pred_check_branch
          %1433 = sbr.rel (%p1431) target = $region92
        $region91: #{forward.1} parent=11 // pred_region
          _
        $region92: #{forward.1} parent=11 // pred_fallthru
          _
        // Predicated region
        $region93: #{forward.1} parent=11 // pred_check
          %p1434 = pneg %p619
        $region94: #{forward.1} parent=11 // pred_check_branch
          %1436 = sbr.rel (%p1434) target = $region96
        $region95: #{forward.1} parent=11 // pred_region
          _
        $region96: #{forward.1} parent=11 // pred_fallthru
          _
        // Predicated region
        $region97: #{forward.1} parent=11 // pred_check
          %p1437 = pneg %p640
        $region98: #{forward.1} parent=11 // pred_check_branch
          %1439 = sbr.rel (%p1437) target = $region100
        $region99: #{forward.1} parent=11 // pred_region
          _
        $region100: #{forward.1} parent=11 // pred_fallthru
          _
        // Predicated region
        $region101: #{forward.1} parent=11 // pred_check
          %p1440 = pneg %p661
        $region102: #{forward.1} parent=11 // pred_check_branch
          %1442 = sbr.rel (%p1440) target = $region104
        $region103: #{forward.1} parent=11 // pred_region
          _
        $region104: #{forward.1} parent=11 // pred_fallthru
          _
        // Predicated region
        $region105: #{forward.1} parent=11 // pred_check
          %p1443 = pneg %p682
        $region106: #{forward.1} parent=11 // pred_check_branch
          %1445 = sbr.rel (%p1443) target = $region108
        $region107: #{forward.1} parent=11 // pred_region
          _
        $region108: #{forward.1} parent=11 // pred_fallthru
          _
        // Predicated region
        $region109: #{forward.1} parent=11 // pred_check
          %p1446 = pneg %p703
        $region110: #{forward.1} parent=11 // pred_check_branch
          %1448 = sbr.rel (%p1446) target = $region112
        $region111: #{forward.1} parent=11 // pred_region
          _
        $region112: #{forward.1} parent=11 // pred_fallthru
          _
        // Predicated region
        $region113: #{forward.1} parent=11 // pred_check
          %p1449 = pneg %p724
        $region114: #{forward.1} parent=11 // pred_check_branch
          %1451 = sbr.rel (%p1449) target = $region116
        $region115: #{forward.1} parent=11 // pred_region
          _
        $region116: #{forward.1} parent=11 // pred_fallthru
          _
        // Predicated region
        $region117: #{forward.1} parent=11 // pred_check
          %p1452 = pneg %p745
        $region118: #{forward.1} parent=11 // pred_check_branch
          %1454 = sbr.rel (%p1452) target = $region120
        $region119: #{forward.1} parent=11 // pred_region
          _
        $region120: #{forward.1} parent=11 // pred_fallthru
          _
        // Predicated region
        $region121: #{forward.1} parent=11 // pred_check
          %p1455 = pneg %p766
        $region122: #{forward.1} parent=11 // pred_check_branch
          %1457 = sbr.rel (%p1455) target = $region124
        $region123: #{forward.1} parent=11 // pred_region
          _
        $region124: #{forward.1} parent=11 // pred_fallthru
          _
        // Predicated region
        $region125: #{forward.1} parent=11 // pred_check
          %p1458 = pneg %p787
        $region126: #{forward.1} parent=11 // pred_check_branch
          %1460 = sbr.rel (%p1458) target = $region128
        $region127: #{forward.1} parent=11 // pred_region
          _
        $region128: #{forward.1} parent=11 // pred_fallthru
          _
        // Predicated region
        $region129: #{forward.1} parent=11 // pred_check
          %p1461 = pneg %p808
        $region130: #{forward.1} parent=11 // pred_check_branch
          %1463 = sbr.rel (%p1461) target = $region132
        $region131: #{forward.1} parent=11 // pred_region
          _
        $region132: #{forward.1} parent=11 // pred_fallthru
          _
        // Predicated region
        $region133: #{forward.1} parent=11 // pred_check
          %p1464 = pneg %p829
        $region134: #{forward.1} parent=11 // pred_check_branch
          %1466 = sbr.rel (%p1464) target = $region136
        $region135: #{forward.1} parent=11 // pred_region
          _
        $region136: #{forward.1} parent=11 // pred_fallthru
          _
        // Predicated region
        $region137: #{forward.1} parent=11 // pred_check
          %p1467 = pneg %p850
        $region138: #{forward.1} parent=11 // pred_check_branch
          %1469 = sbr.rel (%p1467) target = $region140
        $region139: #{forward.1} parent=11 // pred_region
          _
        $region140: #{forward.1} parent=11 // pred_fallthru
          _
        // Predicated region
        $region141: #{forward.1} parent=11 // pred_check
          %p1470 = pneg %p871
        $region142: #{forward.1} parent=11 // pred_check_branch
          %1472 = sbr.rel (%p1470) target = $region144
        $region143: #{forward.1} parent=11 // pred_region
          _
        $region144: #{forward.1} parent=11 // pred_fallthru
          _
        // Predicated region
        $region145: #{forward.1} parent=11 // pred_check
          %p1473 = pneg %p892
        $region146: #{forward.1} parent=11 // pred_check_branch
          %1475 = sbr.rel (%p1473) target = $region148
        $region147: #{forward.1} parent=11 // pred_region
          _
        $region148: #{forward.1} parent=11 // pred_fallthru
          _
        // Predicated region
        $region149: #{forward.1} parent=11 // pred_check
          %p1476 = pneg %p913
        $region150: #{forward.1} parent=11 // pred_check_branch
          %1478 = sbr.rel (%p1476) target = $region152
        $region151: #{forward.1} parent=11 // pred_region
          _
        $region152: #{forward.1} parent=11 // pred_fallthru
          _
        // Predicated region
        $region153: #{forward.1} parent=11 // pred_check
          %p1479 = pneg %p934
        $region154: #{forward.1} parent=11 // pred_check_branch
          %1481 = sbr.rel (%p1479) target = $region156
        $region155: #{forward.1} parent=11 // pred_region
          _
        $region156: #{forward.1} parent=11 // pred_fallthru
          _
        // Predicated region
        $region157: #{forward.1} parent=11 // pred_check
          %p1482 = pneg %p955
        $region158: #{forward.1} parent=11 // pred_check_branch
          %1484 = sbr.rel (%p1482) target = $region160
        $region159: #{forward.1} parent=11 // pred_region
          _
        $region160: #{forward.1} parent=11 // pred_fallthru
          _
        // Predicated region
        $region161: #{forward.1} parent=11 // pred_check
          %p1485 = pneg %p976
        $region162: #{forward.1} parent=11 // pred_check_branch
          %1487 = sbr.rel (%p1485) target = $region164
        $region163: #{forward.1} parent=11 // pred_region
          _
        $region164: #{forward.1} parent=11 // pred_fallthru
          _
        // Predicated region
        $region165: #{forward.1} parent=11 // pred_check
          %p1488 = pneg %p997
        $region166: #{forward.1} parent=11 // pred_check_branch
          %1490 = sbr.rel (%p1488) target = $region168
        $region167: #{forward.1} parent=11 // pred_region
          _
        $region168: #{forward.1} parent=11 // pred_fallthru
          _
        // Predicated region
        $region169: #{forward.1} parent=11 // pred_check
          %p1491 = pneg %p1018
        $region170: #{forward.1} parent=11 // pred_check_branch
          %1493 = sbr.rel (%p1491) target = $region172
        $region171: #{forward.1} parent=11 // pred_region
          _
        $region172: #{forward.1} parent=11 // pred_fallthru
          _
        // Predicated region
        $region173: #{forward.1} parent=11 // pred_check
          %p1494 = pneg %p1039
        $region174: #{forward.1} parent=11 // pred_check_branch
          %1496 = sbr.rel (%p1494) target = $region176
        $region175: #{forward.1} parent=11 // pred_region
          _
        $region176: #{forward.1} parent=11 // pred_fallthru
          _
        // Predicated region
        $region177: #{forward.1} parent=11 // pred_check
          %p1497 = pneg %p1060
        $region178: #{forward.1} parent=11 // pred_check_branch
          %1499 = sbr.rel (%p1497) target = $region180
        $region179: #{forward.1} parent=11 // pred_region
          _
        $region180: #{forward.1} parent=11 // pred_fallthru
          _
        // Predicated region
        $region181: #{forward.1} parent=11 // pred_check
          %p1500 = pneg %p1081
        $region182: #{forward.1} parent=11 // pred_check_branch
          %1502 = sbr.rel (%p1500) target = $region184
        $region183: #{forward.1} parent=11 // pred_region
          _
        $region184: #{forward.1} parent=11 // pred_fallthru
          _
        // Predicated region
        $region185: #{forward.1} parent=11 // pred_check
          %p1503 = pneg %p1102
        $region186: #{forward.1} parent=11 // pred_check_branch
          %1505 = sbr.rel (%p1503) target = $region188
        $region187: #{forward.1} parent=11 // pred_region
          _
        $region188: #{forward.1} parent=11 // pred_fallthru
          _
        // Predicated region
        $region189: #{forward.1} parent=11 // pred_check
          %p1506 = pneg %p1123
        $region190: #{forward.1} parent=11 // pred_check_branch
          %1508 = sbr.rel (%p1506) target = $region192
        $region191: #{forward.1} parent=11 // pred_region
          _
        $region192: #{forward.1} parent=11 // pred_fallthru
          _
        // Predicated region
        $region193: #{forward.1} parent=11 // pred_check
          %p1509 = pneg %p1144
        $region194: #{forward.1} parent=11 // pred_check_branch
          %1511 = sbr.rel (%p1509) target = $region196
        $region195: #{forward.1} parent=11 // pred_region
          _
        $region196: #{forward.1} parent=11 // pred_fallthru
          _
        // Predicated region
        $region197: #{forward.1} parent=11 // pred_check
          %p1512 = pneg %p1165
        $region198: #{forward.1} parent=11 // pred_check_branch
          %1514 = sbr.rel (%p1512) target = $region200
        $region199: #{forward.1} parent=11 // pred_region
          _
        $region200: #{forward.1} parent=11 // pred_fallthru
          _
        // Predicated region
        $region201: #{forward.1} parent=11 // pred_check
          %p1515 = pneg %p1186
        $region202: #{forward.1} parent=11 // pred_check_branch
          %1517 = sbr.rel (%p1515) target = $region204
        $region203: #{forward.1} parent=11 // pred_region
          _
        $region204: #{forward.1} parent=11 // pred_fallthru
          _
        // Predicated region
        $region205: #{forward.1} parent=11 // pred_check
          %p1518 = pneg %p1207
        $region206: #{forward.1} parent=11 // pred_check_branch
          %1520 = sbr.rel (%p1518) target = $region208
        $region207: #{forward.1} parent=11 // pred_region
          _
        $region208: #{forward.1} parent=11 // pred_fallthru
          _
        // Predicated region
        $region209: #{forward.1} parent=11 // pred_check
          %p1521 = pneg %p1228
        $region210: #{forward.1} parent=11 // pred_check_branch
          %1523 = sbr.rel (%p1521) target = $region212
        $region211: #{forward.1} parent=11 // pred_region
          _
        $region212: #{forward.1} parent=11 // pred_fallthru
          _
        // Predicated region
        $region213: #{forward.1} parent=11 // pred_check
          %p1524 = pneg %p1249
        $region214: #{forward.1} parent=11 // pred_check_branch
          %1526 = sbr.rel (%p1524) target = $region216
        $region215: #{forward.1} parent=11 // pred_region
          _
        $region216: #{forward.1} parent=11 // pred_fallthru
          _
        // Predicated region
        $region217: #{forward.1} parent=11 // pred_check
          %p1527 = pneg %p1270
        $region218: #{forward.1} parent=11 // pred_check_branch
          %1529 = sbr.rel (%p1527) target = $region220
        $region219: #{forward.1} parent=11 // pred_region
          _
        $region220: #{forward.1} parent=11 // pred_fallthru
          _
        // Predicated region
        $region221: #{forward.1} parent=11 // pred_check
          %p1530 = pneg %p1291
        $region222: #{forward.1} parent=11 // pred_check_branch
          %1532 = sbr.rel (%p1530) target = $region224
        $region223: #{forward.1} parent=11 // pred_region
          _
        $region224: #{forward.1} parent=11 // pred_fallthru
          _
        // Predicated region
        $region225: #{forward.1} parent=11 // pred_check
          %p1533 = pneg %p1312
        $region226: #{forward.1} parent=11 // pred_check_branch
          %1535 = sbr.rel (%p1533) target = $region228
        $region227: #{forward.1} parent=11 // pred_region
          _
        $region228: #{forward.1} parent=11 // pred_fallthru
          _
        // Predicated region
        $region229: #{forward.1} parent=11 // pred_check
          %p1536 = pneg %p1333
        $region230: #{forward.1} parent=11 // pred_check_branch
          %1538 = sbr.rel (%p1536) target = $region232
        $region231: #{forward.1} parent=11 // pred_region
          _
        $region232: #{forward.1} parent=11 // pred_fallthru
          _
      $region12: #{forward.1} parent=5 // pred_fallthru
        _
      %p1539 = scmp.lt.s32.totalorder %s126, 2
      // Predicated region
      $region233: #{forward.1} parent=5 // pred_check
        %p1540 = pneg %p1539
      $region234: #{forward.1} parent=5 // pred_check_branch
        %1542 = sbr.rel (%p1540) target = $region236
      $region235: #{forward.1} parent=5 // pred_region
        // Predicated region
        $region237: #{forward.1} parent=235 // pred_check
          %p1543 = pneg %p146
        $region238: #{forward.1} parent=235 // pred_check_branch
          %1545 = sbr.rel (%p1543) target = $region240
        $region239: #{forward.1} parent=235 // pred_region
          %p1546 = scmp.lt.s32.totalorder %s126, 1
          %s1547 = scalar_select %p1546, %s126, 1
          %s1548 = scalar_lea.vmem %s1, %s1547
        $region240: #{forward.1} parent=235 // pred_fallthru
          _
        // Predicated region
        $region241: #{forward.1} parent=235 // pred_check
          %p1549 = pneg %p172
        $region242: #{forward.1} parent=235 // pred_check_branch
          %1551 = sbr.rel (%p1549) target = $region244
        $region243: #{forward.1} parent=235 // pred_region
          %p1552 = scmp.lt.s32.totalorder %s126, 1
          %s1553 = scalar_select %p1552, %s126, 1
          %s1554 = smul.addr %s1553, 4
          %s1555 = smul.addr %s1554, 8
          %s1556 = scalar_lea.vmem %s3, %s1555
        $region244: #{forward.1} parent=235 // pred_fallthru
          _
      $region236: #{forward.1} parent=5 // pred_fallthru
        _
      %p1557 = scmp.le.s32.totalorder 1, %s126
      %p1558 = scmp.lt.s32.totalorder %s126, 3
      %p1559 = pnand %p1557, %p1558
      %p1560 = pneg %p1559
      // Predicated region
      $region245: #{forward.1} parent=5 // pred_check
        _
      $region246: #{forward.1} parent=5 // pred_check_branch
        %1562 = sbr.rel (%p1559) target = $region248
      $region247: #{forward.1} parent=5 // pred_region
        %s1563 = ssub.s32 %s126, 1
        %p1564 = scmp.lt.s32.totalorder %s131, 1
        %s1565 = scalar_select %p1564, %s131, 1
        %s1566 = scalar_lea.vmem %s1, %s1565
        %p1567 = pneg %p152
        %p1568 = pneg %p149
        %p1569 = scmp.lt.s32.totalorder %s131, 1
        %s1570 = scalar_select %p1569, %s131, 1
        %s1571 = smul.addr %s1570, 4
        %s1572 = smul.addr %s1571, 8
        %s1573 = scalar_lea.vmem %s3, %s1572
        %p1574 = pneg %p178
        %p1575 = pneg %p175
        %p1576 = pneg %p199
        %p1577 = pneg %p196
        %p1578 = pneg %p220
        %p1579 = pneg %p217
        %p1580 = pneg %p241
        %p1581 = pneg %p238
        %p1582 = pneg %p262
        %p1583 = pneg %p259
        %p1584 = pneg %p283
        %p1585 = pneg %p280
        %p1586 = pneg %p304
        %p1587 = pneg %p301
        %p1588 = pneg %p325
        %p1589 = pneg %p322
        %p1590 = pneg %p346
        %p1591 = pneg %p343
        %p1592 = pneg %p367
        %p1593 = pneg %p364
        %p1594 = pneg %p388
        %p1595 = pneg %p385
        %p1596 = pneg %p409
        %p1597 = pneg %p406
        %p1598 = pneg %p430
        %p1599 = pneg %p427
        %p1600 = pneg %p451
        %p1601 = pneg %p448
        %p1602 = pneg %p472
        %p1603 = pneg %p469
        %p1604 = pneg %p493
        %p1605 = pneg %p490
        %p1606 = pneg %p514
        %p1607 = pneg %p511
        %p1608 = pneg %p535
        %p1609 = pneg %p532
        %p1610 = pneg %p556
        %p1611 = pneg %p553
        %p1612 = pneg %p577
        %p1613 = pneg %p574
        %p1614 = pneg %p598
        %p1615 = pneg %p595
        %p1616 = pneg %p619
        %p1617 = pneg %p616
        %p1618 = pneg %p640
        %p1619 = pneg %p637
        %p1620 = pneg %p661
        %p1621 = pneg %p658
        %p1622 = pneg %p682
        %p1623 = pneg %p679
        %p1624 = pneg %p703
        %p1625 = pneg %p700
        %p1626 = pneg %p724
        %p1627 = pneg %p721
        %p1628 = pneg %p745
        %p1629 = pneg %p742
        %p1630 = pneg %p766
        %p1631 = pneg %p763
        %p1632 = pneg %p787
        %p1633 = pneg %p784
        %p1634 = pneg %p808
        %p1635 = pneg %p805
        %p1636 = pneg %p829
        %p1637 = pneg %p826
        %p1638 = pneg %p850
        %p1639 = pneg %p847
        %p1640 = pneg %p871
        %p1641 = pneg %p868
        %p1642 = pneg %p892
        %p1643 = pneg %p889
        %p1644 = pneg %p913
        %p1645 = pneg %p910
        %p1646 = pneg %p934
        %p1647 = pneg %p931
        %p1648 = pneg %p955
        %p1649 = pneg %p952
        %p1650 = pneg %p976
        %p1651 = pneg %p973
        %p1652 = pneg %p997
        %p1653 = pneg %p994
        %p1654 = pneg %p1018
        %p1655 = pneg %p1015
        %p1656 = pneg %p1039
        %p1657 = pneg %p1036
        %p1658 = pneg %p1060
        %p1659 = pneg %p1057
        %p1660 = pneg %p1081
        %p1661 = pneg %p1078
        %p1662 = pneg %p1102
        %p1663 = pneg %p1099
        %p1664 = pneg %p1123
        %p1665 = pneg %p1120
        %p1666 = pneg %p1144
        %p1667 = pneg %p1141
        %p1668 = pneg %p1165
        %p1669 = pneg %p1162
        %p1670 = pneg %p1186
        %p1671 = pneg %p1183
        %p1672 = pneg %p1207
        %p1673 = pneg %p1204
        %p1674 = pneg %p1228
        %p1675 = pneg %p1225
        %p1676 = pneg %p1249
        %p1677 = pneg %p1246
        %p1678 = pneg %p1270
        %p1679 = pneg %p1267
        %p1680 = pneg %p1291
        %p1681 = pneg %p1288
        %p1682 = pneg %p1312
        %p1683 = pneg %p1309
        %p1684 = pneg %p1333
        %p1685 = pneg %p1330
        %p1686 = pneg %p1359
        %p1687 = pneg %p1356
        %s1688 = sand.u32 %s1346, 1
        %s1689 = scalar_lea.sflag [#allocation5], %s1688
        %s1690 = sand.u32 %s1346, 1
        %s1691 = scalar_lea.vmem [#allocation4], %s1690
        %p1692 = scmp.lt.s32.totalorder %s131, 1
        %s1693 = scalar_select %p1692, %s131, 1
        %s1694 = scalar_lea.vmem %s1, %s1693
        %p1695 = scmp.lt.s32.totalorder %s131, 1
        %s1696 = scalar_select %p1695, %s131, 1
        %s1697 = smul.addr %s1696, 4
        %s1698 = smul.addr %s1697, 8
        %s1699 = scalar_lea.vmem %s3, %s1698
        %v1701 = vld [vmem:[%s9] sm:$0xff]
        %v1702 = vld [vmem:[%s9 + $0x8] sm:$0xff]
        %v1703 = vld [vmem:[%s9 + $0x10] sm:$0xff]
        %v1704 = vld [vmem:[%s9 + $0x18] sm:$0xff]
        %v1705 = vld [vmem:[%s11] sm:$0xff]
        %v1706 = vld [vmem:[%s13] sm:$0xff]
        %v1707 = vld [vmem:[%s13 + $0x8] sm:$0xff]
        %v1708 = vld [vmem:[%s13 + $0x10] sm:$0xff]
        %v1709 = vld [vmem:[%s13 + $0x18] sm:$0xff]
        %v1710 = vld [vmem:[%s13 + $0x20] sm:$0xff]
        %v1711 = vld [vmem:[%s13 + $0x28] sm:$0xff]
        %v1712 = vld [vmem:[%s13 + $0x30] sm:$0xff]
        %v1713 = vld [vmem:[%s13 + $0x38] sm:$0xff]
        %v1714 = vld [vmem:[%s15] sm:$0xff]
        %v1715 = vld [vmem:[%s17] sm:$0xff]
        %v1716 = vld [vmem:[%s17 + $0x8] sm:$0xff]
        %v1717 = vld [vmem:[%s17 + $0x10] sm:$0xff]
        %v1718 = vld [vmem:[%s17 + $0x18] sm:$0xff]
        %v1719 = vld [vmem:[%s17 + $0x20] sm:$0xff]
        %v1720 = vld [vmem:[%s17 + $0x28] sm:$0xff]
        %v1721 = vld [vmem:[%s17 + $0x30] sm:$0xff]
        %v1722 = vld [vmem:[%s17 + $0x38] sm:$0xff]
        %v1723 = vld [vmem:[%s17 + $0x40] sm:$0xff]
        %v1724 = vld [vmem:[%s17 + $0x48] sm:$0xff]
        %v1725 = vld [vmem:[%s17 + $0x50] sm:$0xff]
        %v1726 = vld [vmem:[%s17 + $0x58] sm:$0xff]
        %v1727 = vld [vmem:[%s17 + $0x60] sm:$0xff]
        %v1728 = vld [vmem:[%s17 + $0x68] sm:$0xff]
        %v1729 = vld [vmem:[%s17 + $0x70] sm:$0xff]
        %v1730 = vld [vmem:[%s17 + $0x78] sm:$0xff]
        %v1731 = vld [vmem:[%s19] sm:$0xff]
        %v1732 = vld [vmem:[%s1694] sm:$0x1]
        %v1733 = vld [vmem:[%s79] sm:$0xff]
        %v1734 = vld [vmem:[%s79 + $0x8] sm:$0xff]
        %v1735 = vld [vmem:[%s79 + $0x10] sm:$0xff]
        %v1736 = vld [vmem:[%s79 + $0x18] sm:$0xff]
        %v1737 = vld [vmem:[%s79 + $0x20] sm:$0xff]
        %v1738 = vld [vmem:[%s79 + $0x28] sm:$0xff]
        %v1739 = vld [vmem:[%s79 + $0x30] sm:$0xff]
        %v1740 = vld [vmem:[%s79 + $0x38] sm:$0xff]
        %v1741 = vld [vmem:[%s79 + $0x40] sm:$0xff]
        %v1742 = vld [vmem:[%s79 + $0x48] sm:$0xff]
        %v1743 = vld [vmem:[%s79 + $0x50] sm:$0xff]
        %v1744 = vld [vmem:[%s79 + $0x58] sm:$0xff]
        %v1745 = vld [vmem:[%s79 + $0x60] sm:$0xff]
        %v1746 = vld [vmem:[%s79 + $0x68] sm:$0xff]
        %v1747 = vld [vmem:[%s79 + $0x70] sm:$0xff]
        %v1748 = vld [vmem:[%s79 + $0x78] sm:$0xff]
        %v1749 = vld [vmem:[%s79 + $0x80] sm:$0xff]
        %v1750 = vld [vmem:[%s79 + $0x88] sm:$0xff]
        %v1751 = vld [vmem:[%s79 + $0x90] sm:$0xff]
        %v1752 = vld [vmem:[%s79 + $0x98] sm:$0xff]
        %v1753 = vld [vmem:[%s79 + $0xa0] sm:$0xff]
        %v1754 = vld [vmem:[%s79 + $0xa8] sm:$0xff]
        %v1755 = vld [vmem:[%s79 + $0xb0] sm:$0xff]
        %v1756 = vld [vmem:[%s79 + $0xb8] sm:$0xff]
        %v1757 = vld [vmem:[%s79 + $0xc0] sm:$0xff]
        %v1758 = vld [vmem:[%s79 + $0xc8] sm:$0xff]
        %v1759 = vld [vmem:[%s79 + $0xd0] sm:$0xff]
        %v1760 = vld [vmem:[%s79 + $0xd8] sm:$0xff]
        %v1761 = vld [vmem:[%s79 + $0xe0] sm:$0xff]
        %v1762 = vld [vmem:[%s79 + $0xe8] sm:$0xff]
        %v1763 = vld [vmem:[%s79 + $0xf0] sm:$0xff]
        %v1764 = vld [vmem:[%s79 + $0xf8] sm:$0xff]
        %v1765 = vld [vmem:[%s81] sm:$0x3]
        %v1767 = vperm.slane %v1765, 0
        %v1768 = vperm.slane %v1765, 1
        %1771 = vmatpush.msra.mxu0 %v1763
        %1772 = vmatpush.msra.mxu0 %v1761
        %1773 = vmatpush.msra.mxu0 %v1759
        %1774 = vmatpush.msra.mxu0 %v1757
        %1775 = vmatpush.msra.mxu0 %v1755
        %1776 = vmatpush.msra.mxu0 %v1753
        %1777 = vmatpush.msra.mxu0 %v1751
        %1778 = vmatpush.msra.mxu0 %v1749
        %1779 = vmatpush.msra.mxu0 %v1747
        %1780 = vmatpush.msra.mxu0 %v1745
        %1781 = vmatpush.msra.mxu0 %v1743
        %1782 = vmatpush.msra.mxu0 %v1741
        %1783 = vmatpush.msra.mxu0 %v1739
        %1784 = vmatpush.msra.mxu0 %v1737
        %1785 = vmatpush.msra.mxu0 %v1735
        %1786 = vmatpush.msra.mxu0 %v1733
        %1787 = vmatmul.f32.gmra.mxu0 %v1732
        %v1788 = vpop.f32.mrf.mxu0
        %v1789 = vadd.f32 %v1767, %v1788
        %1790 = vdwg.mxu0
        %1791 = vmatpush.msra.mxu0 %v1764
        %1792 = vmatpush.msra.mxu0 %v1762
        %1793 = vmatpush.msra.mxu0 %v1760
        %1794 = vmatpush.msra.mxu0 %v1758
        %1795 = vmatpush.msra.mxu0 %v1756
        %1796 = vmatpush.msra.mxu0 %v1754
        %1797 = vmatpush.msra.mxu0 %v1752
        %1798 = vmatpush.msra.mxu0 %v1750
        %1799 = vmatpush.msra.mxu0 %v1748
        %1800 = vmatpush.msra.mxu0 %v1746
        %1801 = vmatpush.msra.mxu0 %v1744
        %1802 = vmatpush.msra.mxu0 %v1742
        %1803 = vmatpush.msra.mxu0 %v1740
        %1804 = vmatpush.msra.mxu0 %v1738
        %1805 = vmatpush.msra.mxu0 %v1736
        %1806 = vmatpush.msra.mxu0 %v1734
        %1807 = vmatmul.f32.gmra.mxu0 %v1732
        %v1808 = vpop.f32.mrf.mxu0
        %v1809 = vadd.f32 %v1768, %v1808
        %1810 = vdwg.mxu0
        %v1811 = vmul.f32 %v1789, 0.5
        %v1812 = vmul.f32 %v1809, 0.5
        %v1813 = vmul.f32 %v1789, 0.044715
        %v1814 = vmul.f32 %v1809, 0.044715
        %v1815 = vmul.f32 %v1813, %v1789
        %v1816 = vmul.f32 %v1814, %v1809
        %v1817 = vmul.f32 %v1815, %v1789
        %v1818 = vmul.f32 %v1816, %v1809
        %v1819 = vadd.f32 %v1789, %v1817
        %v1820 = vadd.f32 %v1809, %v1818
        %v1821 = vmul.f32 %v1819, 0.7978846
        %v1822 = vmul.f32 %v1820, 0.7978846
        %v1823 = vtanh.pop %v1821
        %v1824 = vtanh.pop %v1822
        %v1825 = vadd.f32 %v1823, 1.0
        %v1826 = vadd.f32 %v1824, 1.0
        %v1827 = vmul.f32 %v1811, %v1825
        %v1828 = vmul.f32 %v1812, %v1826
        %v1829 = vld [vmem:[%s83] sm:$0xff]
        %v1830 = vld [vmem:[%s83 + $0x8] sm:$0xff]
        %v1831 = vld [vmem:[%s83 + $0x10] sm:$0xff]
        %v1832 = vld [vmem:[%s83 + $0x18] sm:$0xff]
        %v1833 = vld [vmem:[%s83 + $0x20] sm:$0xff]
        %v1834 = vld [vmem:[%s83 + $0x28] sm:$0xff]
        %v1835 = vld [vmem:[%s83 + $0x30] sm:$0xff]
        %v1836 = vld [vmem:[%s83 + $0x38] sm:$0xff]
        %v1837 = vld [vmem:[%s83 + $0x40] sm:$0xff]
        %v1838 = vld [vmem:[%s83 + $0x48] sm:$0xff]
        %v1839 = vld [vmem:[%s83 + $0x50] sm:$0xff]
        %v1840 = vld [vmem:[%s83 + $0x58] sm:$0xff]
        %v1841 = vld [vmem:[%s83 + $0x60] sm:$0xff]
        %v1842 = vld [vmem:[%s83 + $0x68] sm:$0xff]
        %v1843 = vld [vmem:[%s83 + $0x70] sm:$0xff]
        %v1844 = vld [vmem:[%s83 + $0x78] sm:$0xff]
        %v1845 = vld [vmem:[%s83 + $0x80] sm:$0xff]
        %v1846 = vld [vmem:[%s83 + $0x88] sm:$0xff]
        %v1847 = vld [vmem:[%s83 + $0x90] sm:$0xff]
        %v1848 = vld [vmem:[%s83 + $0x98] sm:$0xff]
        %v1849 = vld [vmem:[%s83 + $0xa0] sm:$0xff]
        %v1850 = vld [vmem:[%s83 + $0xa8] sm:$0xff]
        %v1851 = vld [vmem:[%s83 + $0xb0] sm:$0xff]
        %v1852 = vld [vmem:[%s83 + $0xb8] sm:$0xff]
        %v1853 = vld [vmem:[%s83 + $0xc0] sm:$0xff]
        %v1854 = vld [vmem:[%s83 + $0xc8] sm:$0xff]
        %v1855 = vld [vmem:[%s83 + $0xd0] sm:$0xff]
        %v1856 = vld [vmem:[%s83 + $0xd8] sm:$0xff]
        %v1857 = vld [vmem:[%s83 + $0xe0] sm:$0xff]
        %v1858 = vld [vmem:[%s83 + $0xe8] sm:$0xff]
        %v1859 = vld [vmem:[%s83 + $0xf0] sm:$0xff]
        %v1860 = vld [vmem:[%s83 + $0xf8] sm:$0xff]
        %v1861 = vld [vmem:[%s85] sm:$0x1]
        %1862 = vmatpush.msra.mxu0 %v1844
        %1863 = vmatpush.msra.mxu0 %v1843
        %1864 = vmatpush.msra.mxu0 %v1842
        %1865 = vmatpush.msra.mxu0 %v1841
        %1866 = vmatpush.msra.mxu0 %v1840
        %1867 = vmatpush.msra.mxu0 %v1839
        %1868 = vmatpush.msra.mxu0 %v1838
        %1869 = vmatpush.msra.mxu0 %v1837
        %1870 = vmatpush.msra.mxu0 %v1836
        %1871 = vmatpush.msra.mxu0 %v1835
        %1872 = vmatpush.msra.mxu0 %v1834
        %1873 = vmatpush.msra.mxu0 %v1833
        %1874 = vmatpush.msra.mxu0 %v1832
        %1875 = vmatpush.msra.mxu0 %v1831
        %1876 = vmatpush.msra.mxu0 %v1830
        %1877 = vmatpush.msra.mxu0 %v1829
        %1878 = vmatmul.f32.gmra.mxu0 %v1827
        %v1879 = vpop.f32.mrf.mxu0
        %v1880 = vadd.f32 %v1861, %v1879
        %1881 = vdwg.mxu0
        %1882 = vmatpush.msra.mxu0 %v1860
        %1883 = vmatpush.msra.mxu0 %v1859
        %1884 = vmatpush.msra.mxu0 %v1858
        %1885 = vmatpush.msra.mxu0 %v1857
        %1886 = vmatpush.msra.mxu0 %v1856
        %1887 = vmatpush.msra.mxu0 %v1855
        %1888 = vmatpush.msra.mxu0 %v1854
        %1889 = vmatpush.msra.mxu0 %v1853
        %1890 = vmatpush.msra.mxu0 %v1852
        %1891 = vmatpush.msra.mxu0 %v1851
        %1892 = vmatpush.msra.mxu0 %v1850
        %1893 = vmatpush.msra.mxu0 %v1849
        %1894 = vmatpush.msra.mxu0 %v1848
        %1895 = vmatpush.msra.mxu0 %v1847
        %1896 = vmatpush.msra.mxu0 %v1846
        %1897 = vmatpush.msra.mxu0 %v1845
        %1898 = vmatmul.f32.gmra.mxu0 %v1828
        %v1899 = vpop.f32.mrf.mxu0
        %v1900 = vadd.f32 %v1880, %v1899
        %1901 = vdwg.mxu0
        %v1902 = vld [vmem:[%s87] sm:$0xff]
        %v1903 = vld [vmem:[%s87 + $0x8] sm:$0xff]
        %v1904 = vld [vmem:[%s87 + $0x10] sm:$0xff]
        %v1905 = vld [vmem:[%s87 + $0x18] sm:$0xff]
        %v1906 = vld [vmem:[%s87 + $0x20] sm:$0xff]
        %v1907 = vld [vmem:[%s87 + $0x28] sm:$0xff]
        %v1908 = vld [vmem:[%s87 + $0x30] sm:$0xff]
        %v1909 = vld [vmem:[%s87 + $0x38] sm:$0xff]
        %v1910 = vld [vmem:[%s87 + $0x40] sm:$0xff]
        %v1911 = vld [vmem:[%s87 + $0x48] sm:$0xff]
        %v1912 = vld [vmem:[%s87 + $0x50] sm:$0xff]
        %v1913 = vld [vmem:[%s87 + $0x58] sm:$0xff]
        %v1914 = vld [vmem:[%s87 + $0x60] sm:$0xff]
        %v1915 = vld [vmem:[%s87 + $0x68] sm:$0xff]
        %v1916 = vld [vmem:[%s87 + $0x70] sm:$0xff]
        %v1917 = vld [vmem:[%s87 + $0x78] sm:$0xff]
        %v1918 = vld [vmem:[%s89] sm:$0x1]
        %1919 = vmatpush.msra.mxu0 %v1917
        %1920 = vmatpush.msra.mxu0 %v1916
        %1921 = vmatpush.msra.mxu0 %v1915
        %1922 = vmatpush.msra.mxu0 %v1914
        %1923 = vmatpush.msra.mxu0 %v1913
        %1924 = vmatpush.msra.mxu0 %v1912
        %1925 = vmatpush.msra.mxu0 %v1911
        %1926 = vmatpush.msra.mxu0 %v1910
        %1927 = vmatpush.msra.mxu0 %v1909
        %1928 = vmatpush.msra.mxu0 %v1908
        %1929 = vmatpush.msra.mxu0 %v1907
        %1930 = vmatpush.msra.mxu0 %v1906
        %1931 = vmatpush.msra.mxu0 %v1905
        %1932 = vmatpush.msra.mxu0 %v1904
        %1933 = vmatpush.msra.mxu0 %v1903
        %1934 = vmatpush.msra.mxu0 %v1902
        %1935 = vmatmul.f32.gmra.mxu0 %v1900
        %v1936 = vpop.f32.mrf.mxu0
        %v1937 = vadd.f32 %v1918, %v1936
        %1938 = vdwg.mxu0
        %v1939 = vld [vmem:[%s91] sm:$0xff]
        %v1940 = vld [vmem:[%s91 + $0x8] sm:$0xff]
        %v1941 = vld [vmem:[%s91 + $0x10] sm:$0xff]
        %v1942 = vld [vmem:[%s91 + $0x18] sm:$0xff]
        %v1943 = vld [vmem:[%s91 + $0x20] sm:$0xff]
        %v1944 = vld [vmem:[%s91 + $0x28] sm:$0xff]
        %v1945 = vld [vmem:[%s91 + $0x30] sm:$0xff]
        %v1946 = vld [vmem:[%s91 + $0x38] sm:$0xff]
        %v1947 = vld [vmem:[%s91 + $0x40] sm:$0xff]
        %v1948 = vld [vmem:[%s91 + $0x48] sm:$0xff]
        %v1949 = vld [vmem:[%s91 + $0x50] sm:$0xff]
        %v1950 = vld [vmem:[%s91 + $0x58] sm:$0xff]
        %v1951 = vld [vmem:[%s91 + $0x60] sm:$0xff]
        %v1952 = vld [vmem:[%s91 + $0x68] sm:$0xff]
        %v1953 = vld [vmem:[%s91 + $0x70] sm:$0xff]
        %v1954 = vld [vmem:[%s91 + $0x78] sm:$0xff]
        %v1955 = vld [vmem:[%s93] sm:$0x1]
        %1956 = vmatpush.msra.mxu0 %v1954
        %1957 = vmatpush.msra.mxu0 %v1953
        %1958 = vmatpush.msra.mxu0 %v1952
        %1959 = vmatpush.msra.mxu0 %v1951
        %1960 = vmatpush.msra.mxu0 %v1950
        %1961 = vmatpush.msra.mxu0 %v1949
        %1962 = vmatpush.msra.mxu0 %v1948
        %1963 = vmatpush.msra.mxu0 %v1947
        %1964 = vmatpush.msra.mxu0 %v1946
        %1965 = vmatpush.msra.mxu0 %v1945
        %1966 = vmatpush.msra.mxu0 %v1944
        %1967 = vmatpush.msra.mxu0 %v1943
        %1968 = vmatpush.msra.mxu0 %v1942
        %1969 = vmatpush.msra.mxu0 %v1941
        %1970 = vmatpush.msra.mxu0 %v1940
        %1971 = vmatpush.msra.mxu0 %v1939
        %1972 = vmatmul.f32.gmra.mxu0 %v1900
        %v1973 = vpop.f32.mrf.mxu0
        %v1974 = vadd.f32 %v1955, %v1973
        %1975 = vdwg.mxu0
        %v1976 = vld [vmem:[%s95] sm:$0xff]
        %v1977 = vld [vmem:[%s95 + $0x8] sm:$0xff]
        %v1978 = vld [vmem:[%s95 + $0x10] sm:$0xff]
        %v1979 = vld [vmem:[%s95 + $0x18] sm:$0xff]
        %v1980 = vld [vmem:[%s95 + $0x20] sm:$0xff]
        %v1981 = vld [vmem:[%s95 + $0x28] sm:$0xff]
        %v1982 = vld [vmem:[%s95 + $0x30] sm:$0xff]
        %v1983 = vld [vmem:[%s95 + $0x38] sm:$0xff]
        %v1984 = vld [vmem:[%s95 + $0x40] sm:$0xff]
        %v1985 = vld [vmem:[%s95 + $0x48] sm:$0xff]
        %v1986 = vld [vmem:[%s95 + $0x50] sm:$0xff]
        %v1987 = vld [vmem:[%s95 + $0x58] sm:$0xff]
        %v1988 = vld [vmem:[%s95 + $0x60] sm:$0xff]
        %v1989 = vld [vmem:[%s95 + $0x68] sm:$0xff]
        %v1990 = vld [vmem:[%s95 + $0x70] sm:$0xff]
        %v1991 = vld [vmem:[%s95 + $0x78] sm:$0xff]
        %v1992 = vld [vmem:[%s97] sm:$0x1]
        %1993 = vmatpush.msra.mxu0 %v1991
        %1994 = vmatpush.msra.mxu0 %v1990
        %1995 = vmatpush.msra.mxu0 %v1989
        %1996 = vmatpush.msra.mxu0 %v1988
        %1997 = vmatpush.msra.mxu0 %v1987
        %1998 = vmatpush.msra.mxu0 %v1986
        %1999 = vmatpush.msra.mxu0 %v1985
        %2000 = vmatpush.msra.mxu0 %v1984
        %2001 = vmatpush.msra.mxu0 %v1983
        %2002 = vmatpush.msra.mxu0 %v1982
        %2003 = vmatpush.msra.mxu0 %v1981
        %2004 = vmatpush.msra.mxu0 %v1980
        %2005 = vmatpush.msra.mxu0 %v1979
        %2006 = vmatpush.msra.mxu0 %v1978
        %2007 = vmatpush.msra.mxu0 %v1977
        %2008 = vmatpush.msra.mxu0 %v1976
        %2009 = vmatmul.f32.gmra.mxu0 %v1900
        %v2010 = vpop.f32.mrf.mxu0
        %v2011 = vadd.f32 %v1992, %v2010
        %2012 = vdwg.mxu0
        %v2013 = vld [vmem:[%s99] sm:$0xff]
        %v2014 = vld [vmem:[%s99 + $0x8] sm:$0xff]
        %v2015 = vld [vmem:[%s99 + $0x10] sm:$0xff]
        %v2016 = vld [vmem:[%s99 + $0x18] sm:$0xff]
        %v2017 = vld [vmem:[%s99 + $0x20] sm:$0xff]
        %v2018 = vld [vmem:[%s99 + $0x28] sm:$0xff]
        %v2019 = vld [vmem:[%s99 + $0x30] sm:$0xff]
        %v2020 = vld [vmem:[%s99 + $0x38] sm:$0xff]
        %v2021 = vld [vmem:[%s99 + $0x40] sm:$0xff]
        %v2022 = vld [vmem:[%s99 + $0x48] sm:$0xff]
        %v2023 = vld [vmem:[%s99 + $0x50] sm:$0xff]
        %v2024 = vld [vmem:[%s99 + $0x58] sm:$0xff]
        %v2025 = vld [vmem:[%s99 + $0x60] sm:$0xff]
        %v2026 = vld [vmem:[%s99 + $0x68] sm:$0xff]
        %v2027 = vld [vmem:[%s99 + $0x70] sm:$0xff]
        %v2028 = vld [vmem:[%s99 + $0x78] sm:$0xff]
        %v2029 = vld [vmem:[%s99 + $0x80] sm:$0xff]
        %v2030 = vld [vmem:[%s99 + $0x88] sm:$0xff]
        %v2031 = vld [vmem:[%s99 + $0x90] sm:$0xff]
        %v2032 = vld [vmem:[%s99 + $0x98] sm:$0xff]
        %v2033 = vld [vmem:[%s99 + $0xa0] sm:$0xff]
        %v2034 = vld [vmem:[%s99 + $0xa8] sm:$0xff]
        %v2035 = vld [vmem:[%s99 + $0xb0] sm:$0xff]
        %v2036 = vld [vmem:[%s99 + $0xb8] sm:$0xff]
        %v2037 = vld [vmem:[%s99 + $0xc0] sm:$0xff]
        %v2038 = vld [vmem:[%s99 + $0xc8] sm:$0xff]
        %v2039 = vld [vmem:[%s99 + $0xd0] sm:$0xff]
        %v2040 = vld [vmem:[%s99 + $0xd8] sm:$0xff]
        %v2041 = vld [vmem:[%s99 + $0xe0] sm:$0xff]
        %v2042 = vld [vmem:[%s99 + $0xe8] sm:$0xff]
        %v2043 = vld [vmem:[%s99 + $0xf0] sm:$0xff]
        %v2044 = vld [vmem:[%s99 + $0xf8] sm:$0xff]
        %v2045 = vld [vmem:[%s101] sm:$0x3]
        %v2047 = vperm.slane %v2045, 0
        %v2048 = vperm.slane %v2045, 1
        %2051 = vmatpush.msra.mxu0 %v2043
        %2052 = vmatpush.msra.mxu0 %v2041
        %2053 = vmatpush.msra.mxu0 %v2039
        %2054 = vmatpush.msra.mxu0 %v2037
        %2055 = vmatpush.msra.mxu0 %v2035
        %2056 = vmatpush.msra.mxu0 %v2033
        %2057 = vmatpush.msra.mxu0 %v2031
        %2058 = vmatpush.msra.mxu0 %v2029
        %2059 = vmatpush.msra.mxu0 %v2027
        %2060 = vmatpush.msra.mxu0 %v2025
        %2061 = vmatpush.msra.mxu0 %v2023
        %2062 = vmatpush.msra.mxu0 %v2021
        %2063 = vmatpush.msra.mxu0 %v2019
        %2064 = vmatpush.msra.mxu0 %v2017
        %2065 = vmatpush.msra.mxu0 %v2015
        %2066 = vmatpush.msra.mxu0 %v2013
        %2067 = vmatmul.f32.gmra.mxu0 %v1900
        %v2068 = vpop.f32.mrf.mxu0
        %v2069 = vadd.f32 %v2047, %v2068
        %2070 = vdwg.mxu0
        %2071 = vmatpush.msra.mxu0 %v2044
        %2072 = vmatpush.msra.mxu0 %v2042
        %2073 = vmatpush.msra.mxu0 %v2040
        %2074 = vmatpush.msra.mxu0 %v2038
        %2075 = vmatpush.msra.mxu0 %v2036
        %2076 = vmatpush.msra.mxu0 %v2034
        %2077 = vmatpush.msra.mxu0 %v2032
        %2078 = vmatpush.msra.mxu0 %v2030
        %2079 = vmatpush.msra.mxu0 %v2028
        %2080 = vmatpush.msra.mxu0 %v2026
        %2081 = vmatpush.msra.mxu0 %v2024
        %2082 = vmatpush.msra.mxu0 %v2022
        %2083 = vmatpush.msra.mxu0 %v2020
        %2084 = vmatpush.msra.mxu0 %v2018
        %2085 = vmatpush.msra.mxu0 %v2016
        %2086 = vmatpush.msra.mxu0 %v2014
        %2087 = vmatmul.f32.gmra.mxu0 %v1900
        %v2088 = vpop.f32.mrf.mxu0
        %v2089 = vadd.f32 %v2048, %v2088
        %2090 = vdwg.mxu0
        %v2091 = vld [vmem:[%s103] sm:$0xff]
        %v2092 = vld [vmem:[%s103 + $0x8] sm:$0xff]
        %v2093 = vld [vmem:[%s103 + $0x10] sm:$0xff]
        %v2094 = vld [vmem:[%s103 + $0x18] sm:$0xff]
        %v2095 = vld [vmem:[%s103 + $0x20] sm:$0xff]
        %v2096 = vld [vmem:[%s103 + $0x28] sm:$0xff]
        %v2097 = vld [vmem:[%s103 + $0x30] sm:$0xff]
        %v2098 = vld [vmem:[%s103 + $0x38] sm:$0xff]
        %v2099 = vld [vmem:[%s103 + $0x40] sm:$0xff]
        %v2100 = vld [vmem:[%s103 + $0x48] sm:$0xff]
        %v2101 = vld [vmem:[%s103 + $0x50] sm:$0xff]
        %v2102 = vld [vmem:[%s103 + $0x58] sm:$0xff]
        %v2103 = vld [vmem:[%s103 + $0x60] sm:$0xff]
        %v2104 = vld [vmem:[%s103 + $0x68] sm:$0xff]
        %v2105 = vld [vmem:[%s103 + $0x70] sm:$0xff]
        %v2106 = vld [vmem:[%s103 + $0x78] sm:$0xff]
        %v2107 = vld [vmem:[%s105] sm:$0x1]
        %2108 = vmatpush.msra.mxu0 %v2106
        %2109 = vmatpush.msra.mxu0 %v2105
        %2110 = vmatpush.msra.mxu0 %v2104
        %2111 = vmatpush.msra.mxu0 %v2103
        %2112 = vmatpush.msra.mxu0 %v2102
        %2113 = vmatpush.msra.mxu0 %v2101
        %2114 = vmatpush.msra.mxu0 %v2100
        %2115 = vmatpush.msra.mxu0 %v2099
        %2116 = vmatpush.msra.mxu0 %v2098
        %2117 = vmatpush.msra.mxu0 %v2097
        %2118 = vmatpush.msra.mxu0 %v2096
        %2119 = vmatpush.msra.mxu0 %v2095
        %2120 = vmatpush.msra.mxu0 %v2094
        %2121 = vmatpush.msra.mxu0 %v2093
        %2122 = vmatpush.msra.mxu0 %v2092
        %2123 = vmatpush.msra.mxu0 %v2091
        %2124 = vmatmul.f32.gmra.mxu0 %v1900
        %v2125 = vpop.f32.mrf.mxu0
        %v2126 = vadd.f32 %v2107, %v2125
        %2127 = vdwg.mxu0
        %v2128 = vld [vmem:[%s107] sm:$0xff]
        %v2129 = vld [vmem:[%s107 + $0x8] sm:$0xff]
        %v2130 = vld [vmem:[%s107 + $0x10] sm:$0xff]
        %v2131 = vld [vmem:[%s107 + $0x18] sm:$0xff]
        %v2132 = vld [vmem:[%s107 + $0x20] sm:$0xff]
        %v2133 = vld [vmem:[%s107 + $0x28] sm:$0xff]
        %v2134 = vld [vmem:[%s107 + $0x30] sm:$0xff]
        %v2135 = vld [vmem:[%s107 + $0x38] sm:$0xff]
        %v2136 = vld [vmem:[%s107 + $0x40] sm:$0xff]
        %v2137 = vld [vmem:[%s107 + $0x48] sm:$0xff]
        %v2138 = vld [vmem:[%s107 + $0x50] sm:$0xff]
        %v2139 = vld [vmem:[%s107 + $0x58] sm:$0xff]
        %v2140 = vld [vmem:[%s107 + $0x60] sm:$0xff]
        %v2141 = vld [vmem:[%s107 + $0x68] sm:$0xff]
        %v2142 = vld [vmem:[%s107 + $0x70] sm:$0xff]
        %v2143 = vld [vmem:[%s107 + $0x78] sm:$0xff]
        %v2144 = vld [vmem:[%s109] sm:$0x1]
        %2145 = vmatpush.msra.mxu0 %v2143
        %2146 = vmatpush.msra.mxu0 %v2142
        %2147 = vmatpush.msra.mxu0 %v2141
        %2148 = vmatpush.msra.mxu0 %v2140
        %2149 = vmatpush.msra.mxu0 %v2139
        %2150 = vmatpush.msra.mxu0 %v2138
        %2151 = vmatpush.msra.mxu0 %v2137
        %2152 = vmatpush.msra.mxu0 %v2136
        %2153 = vmatpush.msra.mxu0 %v2135
        %2154 = vmatpush.msra.mxu0 %v2134
        %2155 = vmatpush.msra.mxu0 %v2133
        %2156 = vmatpush.msra.mxu0 %v2132
        %2157 = vmatpush.msra.mxu0 %v2131
        %2158 = vmatpush.msra.mxu0 %v2130
        %2159 = vmatpush.msra.mxu0 %v2129
        %2160 = vmatpush.msra.mxu0 %v2128
        %2161 = vmatmul.f32.gmra.mxu0 %v1900
        %v2162 = vpop.f32.mrf.mxu0
        %v2163 = vadd.f32 %v2144, %v2162
        %2164 = vdwg.mxu0
        %v2165 = vld [vmem:[%s1699] sm:$0xff]
        %v2166 = vld [vmem:[%s1699 + $0x8] sm:$0xff]
        %v2167 = vld [vmem:[%s1699 + $0x10] sm:$0xff]
        %v2168 = vld [vmem:[%s1699 + $0x18] sm:$0xff]
        %v2169 = vlaneseq
        %v2170 = vshrl.u32 %v2169, 7
        %v2171 = vadd.s32 %v2170, 8
        %v2172 = vadd.s32 %v2170, 16
        %v2173 = vadd.s32 %v2170, 24
        %vm2174 = vcmp.eq.s32.totalorder %v2170, 0
        %vm2175 = vcmp.eq.s32.totalorder %v2171, 0
        %vm2176 = vcmp.eq.s32.totalorder %v2172, 0
        %vm2177 = vcmp.eq.s32.totalorder %v2173, 0
        %v2178 = vrot.slane %v2165, 7
        %v2179 = vrot.slane %v2166, 7
        %v2180 = vrot.slane %v2167, 7
        %v2181 = vrot.slane %v2168, 7
        %vm2182 = vcmp.lt.s32.totalorder %v2170, 1
        %v2183 = vsel %vm2182, %v2180, %v2181
        %v2184 = vsel %vm2182, %v2179, %v2180
        %v2185 = vsel %vm2182, %v2178, %v2179
        %v2186 = vsel %vm2182, %v2181, %v2178
        %v2187 = vsel %vm2174, 0.0, %v2186
        %v2188 = vsel %vm2175, 0.0, %v2185
        %v2189 = vsel %vm2176, 0.0, %v2184
        %v2190 = vsel %vm2177, 0.0, %v2183
        %vm2191 = vcmp.eq.s32.totalorder %v2170, 31
        %vm2192 = vcmp.eq.s32.totalorder %v2171, 31
        %vm2193 = vcmp.eq.s32.totalorder %v2172, 31
        %vm2194 = vcmp.eq.s32.totalorder %v2173, 31
        %v2195 = vrot.slane %v2165, 1
        %v2196 = vrot.slane %v2166, 1
        %v2197 = vrot.slane %v2167, 1
        %v2198 = vrot.slane %v2168, 1
        %vm2199 = vcmp.lt.s32.totalorder %v2170, 7
        %v2200 = vsel %vm2199, %v2197, %v2198
        %v2201 = vsel %vm2199, %v2196, %v2197
        %v2202 = vsel %vm2199, %v2195, %v2196
        %v2203 = vsel %vm2199, %v2198, %v2195
        %v2204 = vsel %vm2191, 0.0, %v2202
        %v2205 = vsel %vm2192, 0.0, %v2201
        %v2206 = vsel %vm2193, 0.0, %v2200
        %v2207 = vsel %vm2194, 0.0, %v2203
        %2212 = vrot.lane.b32.xlu0 %v2165, 2
        %v2213 = vpop.permute.xlu0 %2212
        %2214 = vrot.lane.b32.xlu0 %v2166, 2
        %v2215 = vpop.permute.xlu0 %2214
        %2216 = vrot.lane.b32.xlu0 %v2167, 2
        %v2217 = vpop.permute.xlu0 %2216
        %2218 = vrot.lane.b32.xlu0 %v2168, 2
        %v2219 = vpop.permute.xlu0 %2218
        %2228 = vrot.lane.b32.xlu0 %v2204, 4
        %v2229 = vpop.permute.xlu0 %2228
        %2230 = vrot.lane.b32.xlu0 %v2205, 4
        %v2231 = vpop.permute.xlu0 %2230
        %2232 = vrot.lane.b32.xlu0 %v2206, 4
        %v2233 = vpop.permute.xlu0 %2232
        %2234 = vrot.lane.b32.xlu0 %v2207, 4
        %v2235 = vpop.permute.xlu0 %2234
        %vm2240 = vcmask 15360
        %v2241 = vsel %vm2240, %v2187, %v2213
        %v2242 = vsel %vm2240, %v2188, %v2215
        %v2243 = vsel %vm2240, %v2189, %v2217
        %v2244 = vsel %vm2240, %v2190, %v2219
        %vm2245 = vcmask 31744
        %v2246 = vsel %vm2245, %v2241, %v2229
        %v2247 = vsel %vm2245, %v2242, %v2231
        %v2248 = vsel %vm2245, %v2243, %v2233
        %v2249 = vsel %vm2245, %v2244, %v2235
        %v2250 = vld [vmem:[%s21] sm:$0x7]
        %v2251 = vpack.c.bf16 %v2247, %v2246
        %v2252 = vpack.c.bf16 %v2249, %v2248
        %v2253 = vld [vmem:[%s23] sm:$0x7]
        %v2254 = vperm.slane %v2253, 0
        %vm2255 = vcmask 48128
        %v2257 = vsel %vm2255, %v2251, 0
        %v2260 = vsel %vm2255, %v2252, 0
        %vm2262 = vcmask 1042432
        %v2264 = vsel %vm2262, %v2250, 0
        %2266 = vmatpush.bf16.msra.mxu0 0
        %2267 = vmatpush.bf16.msra.mxu0 0
        %2268 = vmatpush.bf16.msra.mxu0 0
        %2269 = vmatpush.bf16.msra.mxu0 0
        %2270 = vmatpush.bf16.msra.mxu0 0
        %2271 = vmatpush.bf16.msra.mxu0 0
        %2272 = vmatpush.bf16.msra.mxu0 0
        %2273 = vmatpush.bf16.msra.mxu0 %v2264
        %2274 = vmatmul.bf16.gmra.mxu0 %v2257
        %v2275 = vpop.f32.mrf.mxu0
        %v2276 = vadd.f32 %v2254, %v2275
        %v2277 = vpop.f32.mrf.mxu0
        %v2278 = vadd.f32 %v2254, %v2277
        %2279 = vmatmul.bf16.gmra.mxu0 %v2260
        %v2280 = vpop.f32.mrf.mxu0
        %v2281 = vadd.f32 %v2254, %v2280
        %v2282 = vpop.f32.mrf.mxu0
        %v2283 = vadd.f32 %v2254, %v2282
        %2284 = vdwg.mxu0
        %vm2285 = vcmask 261120
        %v2286 = vsel %vm2285, %v2276, 0.0
        %v2287 = vsel %vm2285, %v2278, 0.0
        %v2288 = vadd.f32 %v2286, %v2287
        %v2289 = vsel %vm2285, %v2281, 0.0
        %v2290 = vadd.f32 %v2288, %v2289
        %v2291 = vsel %vm2285, %v2283, 0.0
        %v2292 = vadd.f32 %v2290, %v2291
        %v2293 = vrot.slane %v2292, 4
        %v2294 = vadd.f32 %v2292, %v2293
        %v2295 = vrot.slane %v2294, 2
        %v2296 = vadd.f32 %v2294, %v2295
        %v2297 = vrot.slane %v2296, 1
        %v2298 = vadd.f32 %v2296, %v2297
        %v2300 = vsel %vm2285, %v2298, 0
        %2302 = vmatpush.msra.mxu0 0.0
        %2303 = vmatpush.msra.mxu0 0.0
        %2304 = vmatpush.msra.mxu0 0.0
        %2305 = vmatpush.msra.mxu0 0.0
        %2306 = vmatpush.msra.mxu0 0.0
        %2307 = vmatpush.msra.mxu0 0.0
        %2308 = vmatpush.msra.mxu0 0.0
        %2309 = vmatpush.msra.mxu0 0.0
        %2310 = vmatpush.msra.mxu0 0.0
        %2311 = vmatpush.msra.mxu0 0.0
        %2312 = vmatpush.msra.mxu0 0.0
        %2313 = vmatpush.msra.mxu0 0.0
        %2314 = vmatpush.msra.mxu0 %v1704
        %2315 = vmatpush.msra.mxu0 %v1703
        %2316 = vmatpush.msra.mxu0 %v1702
        %2317 = vmatpush.msra.mxu0 %v1701
        %2318 = vmatmul.f32.gmra.mxu0 %v2300
        %v2319 = vpop.f32.mrf.mxu0
        %v2320 = vadd.f32 0.0, %v2319
        %2321 = vdwg.mxu0
        %v2322 = vmul.f32 %v2320, 0.0078125
        %vm2323 = vcmask 64512
        %v2325 = vsel %vm2323, %v2322, 0
        %2327 = vmatpush.msra.mxu0 0.0
        %2328 = vmatpush.msra.mxu0 0.0
        %2329 = vmatpush.msra.mxu0 0.0
        %2330 = vmatpush.msra.mxu0 0.0
        %2331 = vmatpush.msra.mxu0 0.0
        %2332 = vmatpush.msra.mxu0 0.0
        %2333 = vmatpush.msra.mxu0 0.0
        %2334 = vmatpush.msra.mxu0 0.0
        %2335 = vmatpush.msra.mxu0 0.0
        %2336 = vmatpush.msra.mxu0 0.0
        %2337 = vmatpush.msra.mxu0 0.0
        %2338 = vmatpush.msra.mxu0 0.0
        %2339 = vmatpush.msra.mxu0 0.0
        %2340 = vmatpush.msra.mxu0 0.0
        %2341 = vmatpush.msra.mxu0 0.0
        %2342 = vmatpush.msra.mxu0 %v1705
        %2343 = vmatmul.f32.gmra.mxu0 %v2325
        %v2344 = vpop.f32.mrf.mxu0
        %v2345 = vadd.f32 0.0, %v2344
        %2346 = vdwg.mxu0
        %v2347 = vperm.slane %v2345, 0
        %v2348 = vsub.f32 %v2276, %v2347
        %v2349 = vsub.f32 %v2278, %v2347
        %v2350 = vsub.f32 %v2281, %v2347
        %v2351 = vsub.f32 %v2283, %v2347
        %v2352 = vmul.f32 %v2348, %v2348
        %v2353 = vmul.f32 %v2349, %v2349
        %v2354 = vmul.f32 %v2350, %v2350
        %v2355 = vmul.f32 %v2351, %v2351
        %v2356 = vsel %vm2285, %v2352, 0.0
        %v2357 = vsel %vm2285, %v2353, 0.0
        %v2358 = vadd.f32 %v2356, %v2357
        %v2359 = vsel %vm2285, %v2354, 0.0
        %v2360 = vadd.f32 %v2358, %v2359
        %v2361 = vsel %vm2285, %v2355, 0.0
        %v2362 = vadd.f32 %v2360, %v2361
        %v2363 = vrot.slane %v2362, 4
        %v2364 = vadd.f32 %v2362, %v2363
        %v2365 = vrot.slane %v2364, 2
        %v2366 = vadd.f32 %v2364, %v2365
        %v2367 = vrot.slane %v2366, 1
        %v2368 = vadd.f32 %v2366, %v2367
        %v2370 = vsel %vm2285, %v2368, 0
        %2372 = vmatpush.msra.mxu0 0.0
        %2373 = vmatpush.msra.mxu0 0.0
        %2374 = vmatpush.msra.mxu0 0.0
        %2375 = vmatpush.msra.mxu0 0.0
        %2376 = vmatpush.msra.mxu0 0.0
        %2377 = vmatpush.msra.mxu0 0.0
        %2378 = vmatpush.msra.mxu0 0.0
        %2379 = vmatpush.msra.mxu0 0.0
        %2380 = vmatpush.msra.mxu0 0.0
        %2381 = vmatpush.msra.mxu0 0.0
        %2382 = vmatpush.msra.mxu0 0.0
        %2383 = vmatpush.msra.mxu0 0.0
        %2384 = vmatpush.msra.mxu0 %v1704
        %2385 = vmatpush.msra.mxu0 %v1703
        %2386 = vmatpush.msra.mxu0 %v1702
        %2387 = vmatpush.msra.mxu0 %v1701
        %2388 = vmatmul.f32.gmra.mxu0 %v2370
        %v2389 = vpop.f32.mrf.mxu0
        %v2390 = vadd.f32 0.0, %v2389
        %2391 = vdwg.mxu0
        %v2392 = vmul.f32 %v2390, 0.0078125
        %v2393 = vadd.f32 %v2392, 1e-05
        %v2394 = vrsqrt.pop %v2393
        %v2395 = vmul.f32 %v2394, %v2393
        %v2396 = vmul.f32 %v2395, %v2394
        %v2397 = vmul.f32 0.5, %v2396
        %v2398 = vsub.f32 1.5, %v2397
        %v2399 = vmul.f32 %v2394, %v2398
        %vm2400 = vweird.f32 %v2393
        %vm2401 = vweird.f32 %v2394
        %vm2402 = vmor %vm2400, %vm2401
        %v2403 = vsel %vm2402, %v2394, %v2399
        %v2405 = vsel %vm2323, %v2403, 0
        %2407 = vmatpush.msra.mxu0 0.0
        %2408 = vmatpush.msra.mxu0 0.0
        %2409 = vmatpush.msra.mxu0 0.0
        %2410 = vmatpush.msra.mxu0 0.0
        %2411 = vmatpush.msra.mxu0 0.0
        %2412 = vmatpush.msra.mxu0 0.0
        %2413 = vmatpush.msra.mxu0 0.0
        %2414 = vmatpush.msra.mxu0 0.0
        %2415 = vmatpush.msra.mxu0 0.0
        %2416 = vmatpush.msra.mxu0 0.0
        %2417 = vmatpush.msra.mxu0 0.0
        %2418 = vmatpush.msra.mxu0 0.0
        %2419 = vmatpush.msra.mxu0 0.0
        %2420 = vmatpush.msra.mxu0 0.0
        %2421 = vmatpush.msra.mxu0 0.0
        %2422 = vmatpush.msra.mxu0 %v1705
        %2423 = vmatmul.f32.gmra.mxu0 %v2405
        %v2424 = vpop.f32.mrf.mxu0
        %v2425 = vadd.f32 0.0, %v2424
        %2426 = vdwg.mxu0
        %v2428 = vrot.slane %v2425, 7
        %v2430 = vmul.f32 %v2253, %v2428
        %v2431 = vperm.slane %v2430, 1
        %v2432 = vmul.f32 %v2348, %v2431
        %v2433 = vmul.f32 %v2349, %v2431
        %v2434 = vmul.f32 %v2350, %v2431
        %v2435 = vmul.f32 %v2351, %v2431
        %v2436 = vperm.slane %v2253, 2
        %v2437 = vadd.f32 %v2432, %v2436
        %v2438 = vadd.f32 %v2433, %v2436
        %v2439 = vadd.f32 %v2434, %v2436
        %v2440 = vadd.f32 %v2435, %v2436
        %v2441 = vmul.f32 %v2437, 0.5
        %v2442 = vmul.f32 %v2438, 0.5
        %v2443 = vmul.f32 %v2439, 0.5
        %v2444 = vmul.f32 %v2440, 0.5
        %v2445 = vmul.f32 %v2437, 0.044715
        %v2446 = vmul.f32 %v2438, 0.044715
        %v2447 = vmul.f32 %v2439, 0.044715
        %v2448 = vmul.f32 %v2440, 0.044715
        %v2449 = vmul.f32 %v2445, %v2437
        %v2450 = vmul.f32 %v2446, %v2438
        %v2451 = vmul.f32 %v2447, %v2439
        %v2452 = vmul.f32 %v2448, %v2440
        %v2453 = vmul.f32 %v2449, %v2437
        %v2454 = vmul.f32 %v2450, %v2438
        %v2455 = vmul.f32 %v2451, %v2439
        %v2456 = vmul.f32 %v2452, %v2440
        %v2457 = vadd.f32 %v2437, %v2453
        %v2458 = vadd.f32 %v2438, %v2454
        %v2459 = vadd.f32 %v2439, %v2455
        %v2460 = vadd.f32 %v2440, %v2456
        %v2461 = vmul.f32 %v2457, 0.7978846
        %v2462 = vmul.f32 %v2458, 0.7978846
        %v2463 = vmul.f32 %v2459, 0.7978846
        %v2464 = vmul.f32 %v2460, 0.7978846
        %v2465 = vtanh.pop %v2461
        %v2466 = vtanh.pop %v2462
        %v2467 = vtanh.pop %v2463
        %v2468 = vtanh.pop %v2464
        %v2469 = vadd.f32 %v2465, 1.0
        %v2470 = vadd.f32 %v2466, 1.0
        %v2471 = vadd.f32 %v2467, 1.0
        %v2472 = vadd.f32 %v2468, 1.0
        %v2473 = vmul.f32 %v2441, %v2469
        %v2474 = vmul.f32 %v2442, %v2470
        %v2475 = vmul.f32 %v2443, %v2471
        %v2476 = vmul.f32 %v2444, %v2472
        %v2477 = vrot.slane %v2473, 7
        %v2478 = vrot.slane %v2474, 7
        %v2479 = vrot.slane %v2475, 7
        %v2480 = vrot.slane %v2476, 7
        %v2481 = vsel %vm2182, %v2479, %v2480
        %v2482 = vsel %vm2182, %v2478, %v2479
        %v2483 = vsel %vm2182, %v2477, %v2478
        %v2484 = vsel %vm2182, %v2480, %v2477
        %v2485 = vsel %vm2174, 0.0, %v2484
        %v2486 = vsel %vm2175, 0.0, %v2483
        %v2487 = vsel %vm2176, 0.0, %v2482
        %v2488 = vsel %vm2177, 0.0, %v2481
        %v2489 = vrot.slane %v2473, 1
        %v2490 = vrot.slane %v2474, 1
        %v2491 = vrot.slane %v2475, 1
        %v2492 = vrot.slane %v2476, 1
        %v2493 = vsel %vm2199, %v2491, %v2492
        %v2494 = vsel %vm2199, %v2490, %v2491
        %v2495 = vsel %vm2199, %v2489, %v2490
        %v2496 = vsel %vm2199, %v2492, %v2489
        %v2497 = vsel %vm2191, 0.0, %v2495
        %v2498 = vsel %vm2192, 0.0, %v2494
        %v2499 = vsel %vm2193, 0.0, %v2493
        %v2500 = vsel %vm2194, 0.0, %v2496
        %2505 = vrot.lane.b32.xlu0 %v2473, 32
        %v2506 = vpop.permute.xlu0 %2505
        %2507 = vrot.lane.b32.xlu0 %v2474, 32
        %v2508 = vpop.permute.xlu0 %2507
        %2509 = vrot.lane.b32.xlu0 %v2475, 32
        %v2510 = vpop.permute.xlu0 %2509
        %2511 = vrot.lane.b32.xlu0 %v2476, 32
        %v2512 = vpop.permute.xlu0 %2511
        %2521 = vrot.lane.b32.xlu0 %v2497, 64
        %v2522 = vpop.permute.xlu0 %2521
        %2523 = vrot.lane.b32.xlu0 %v2498, 64
        %v2524 = vpop.permute.xlu0 %2523
        %2525 = vrot.lane.b32.xlu0 %v2499, 64
        %v2526 = vpop.permute.xlu0 %2525
        %2527 = vrot.lane.b32.xlu0 %v2500, 64
        %v2528 = vpop.permute.xlu0 %2527
        %v2533 = vsel %vm2285, %v2485, %v2506
        %v2534 = vsel %vm2285, %v2486, %v2508
        %v2535 = vsel %vm2285, %v2487, %v2510
        %v2536 = vsel %vm2285, %v2488, %v2512
        %vm2537 = vcmask 523264
        %v2538 = vsel %vm2537, %v2533, %v2522
        %v2539 = vsel %vm2537, %v2534, %v2524
        %v2540 = vsel %vm2537, %v2535, %v2526
        %v2541 = vsel %vm2537, %v2536, %v2528
        %v2542 = vld [vmem:[%s25] sm:$0xf]
        %v2543 = vld [vmem:[%s25 + $0x4] sm:$0xf]
        %v2544 = vld [vmem:[%s25 + $0x8] sm:$0xf]
        %v2545 = vld [vmem:[%s25 + $0xc] sm:$0xf]
        %v2546 = vld [vmem:[%s25 + $0x10] sm:$0xf]
        %v2547 = vld [vmem:[%s25 + $0x14] sm:$0xf]
        %v2548 = vld [vmem:[%s25 + $0x18] sm:$0xf]
        %v2549 = vld [vmem:[%s25 + $0x1c] sm:$0xf]
        %v2550 = vld [vmem:[%s25 + $0x20] sm:$0xf]
        %v2551 = vld [vmem:[%s25 + $0x24] sm:$0xf]
        %v2552 = vld [vmem:[%s25 + $0x28] sm:$0xf]
        %v2553 = vld [vmem:[%s25 + $0x2c] sm:$0xf]
        %v2554 = vpack.c.bf16 %v2539, %v2538
        %v2555 = vpack.c.bf16 %v2541, %v2540
        %v2556 = vld [vmem:[%s27] sm:$0x7]
        %v2557 = vperm.slane %v2556, 0
        %v2570 = vunpack.c.l.b16 %v2542
        %v2571 = vunpack.c.l.b16 %v2543
        %v2572 = vunpack.c.l.b16 %v2544
        %v2573 = vunpack.c.l.b16 %v2545
        %v2574 = vunpack.c.l.b16 %v2546
        %v2575 = vunpack.c.l.b16 %v2547
        %v2576 = vunpack.c.l.b16 %v2548
        %v2577 = vunpack.c.l.b16 %v2549
        %v2578 = vunpack.c.l.b16 %v2550
        %v2579 = vunpack.c.l.b16 %v2551
        %v2580 = vunpack.c.l.b16 %v2552
        %v2581 = vunpack.c.l.b16 %v2553
        %v2582 = vpack.c.b16 %v2571, %v2570
        %v2583 = vpack.c.b16 %v2573, %v2572
        %v2584 = vpack.c.b16 %v2575, %v2574
        %v2585 = vpack.c.b16 %v2577, %v2576
        %v2586 = vpack.c.b16 %v2579, %v2578
        %v2587 = vpack.c.b16 %v2581, %v2580
        %vm2594 = vcmask 785408
        %v2596 = vsel %vm2594, %v2554, 0
        %v2599 = vsel %vm2594, %v2555, 0
        %2601 = vmatpush.bf16.msra.mxu0 0
        %2602 = vmatpush.bf16.msra.mxu0 0
        %2603 = vmatpush.bf16.msra.mxu0 %v2587
        %2604 = vmatpush.bf16.msra.mxu0 %v2586
        %2605 = vmatpush.bf16.msra.mxu0 %v2585
        %2606 = vmatpush.bf16.msra.mxu0 %v2584
        %2607 = vmatpush.bf16.msra.mxu0 %v2583
        %2608 = vmatpush.bf16.msra.mxu0 %v2582
        %2609 = vmatmul.bf16.gmra.mxu0 %v2596
        %v2610 = vpop.f32.mrf.mxu0
        %v2611 = vadd.f32 %v2557, %v2610
        %v2612 = vpop.f32.mrf.mxu0
        %v2613 = vadd.f32 %v2557, %v2612
        %2614 = vmatmul.bf16.gmra.mxu0 %v2599
        %v2615 = vpop.f32.mrf.mxu0
        %v2616 = vadd.f32 %v2557, %v2615
        %v2617 = vpop.f32.mrf.mxu0
        %v2618 = vadd.f32 %v2557, %v2617
        %2619 = vdwg.mxu0
        %v2620 = vsel %vm2285, %v2611, 0.0
        %v2621 = vsel %vm2285, %v2613, 0.0
        %v2622 = vadd.f32 %v2620, %v2621
        %v2623 = vsel %vm2285, %v2616, 0.0
        %v2624 = vadd.f32 %v2622, %v2623
        %v2625 = vsel %vm2285, %v2618, 0.0
        %v2626 = vadd.f32 %v2624, %v2625
        %v2627 = vrot.slane %v2626, 4
        %v2628 = vadd.f32 %v2626, %v2627
        %v2629 = vrot.slane %v2628, 2
        %v2630 = vadd.f32 %v2628, %v2629
        %v2631 = vrot.slane %v2630, 1
        %v2632 = vadd.f32 %v2630, %v2631
        %v2634 = vsel %vm2285, %v2632, 0
        %2636 = vmatpush.msra.mxu0 0.0
        %2637 = vmatpush.msra.mxu0 0.0
        %2638 = vmatpush.msra.mxu0 0.0
        %2639 = vmatpush.msra.mxu0 0.0
        %2640 = vmatpush.msra.mxu0 0.0
        %2641 = vmatpush.msra.mxu0 0.0
        %2642 = vmatpush.msra.mxu0 0.0
        %2643 = vmatpush.msra.mxu0 0.0
        %2644 = vmatpush.msra.mxu0 0.0
        %2645 = vmatpush.msra.mxu0 0.0
        %2646 = vmatpush.msra.mxu0 0.0
        %2647 = vmatpush.msra.mxu0 0.0
        %2648 = vmatpush.msra.mxu0 %v1704
        %2649 = vmatpush.msra.mxu0 %v1703
        %2650 = vmatpush.msra.mxu0 %v1702
        %2651 = vmatpush.msra.mxu0 %v1701
        %2652 = vmatmul.f32.gmra.mxu0 %v2634
        %v2653 = vpop.f32.mrf.mxu0
        %v2654 = vadd.f32 0.0, %v2653
        %2655 = vdwg.mxu0
        %v2656 = vmul.f32 %v2654, 0.0078125
        %v2658 = vsel %vm2323, %v2656, 0
        %2660 = vmatpush.msra.mxu0 0.0
        %2661 = vmatpush.msra.mxu0 0.0
        %2662 = vmatpush.msra.mxu0 0.0
        %2663 = vmatpush.msra.mxu0 0.0
        %2664 = vmatpush.msra.mxu0 0.0
        %2665 = vmatpush.msra.mxu0 0.0
        %2666 = vmatpush.msra.mxu0 0.0
        %2667 = vmatpush.msra.mxu0 0.0
        %2668 = vmatpush.msra.mxu0 0.0
        %2669 = vmatpush.msra.mxu0 0.0
        %2670 = vmatpush.msra.mxu0 0.0
        %2671 = vmatpush.msra.mxu0 0.0
        %2672 = vmatpush.msra.mxu0 0.0
        %2673 = vmatpush.msra.mxu0 0.0
        %2674 = vmatpush.msra.mxu0 0.0
        %2675 = vmatpush.msra.mxu0 %v1705
        %2676 = vmatmul.f32.gmra.mxu0 %v2658
        %v2677 = vpop.f32.mrf.mxu0
        %v2678 = vadd.f32 0.0, %v2677
        %2679 = vdwg.mxu0
        %v2680 = vperm.slane %v2678, 0
        %v2681 = vsub.f32 %v2611, %v2680
        %v2682 = vsub.f32 %v2613, %v2680
        %v2683 = vsub.f32 %v2616, %v2680
        %v2684 = vsub.f32 %v2618, %v2680
        %v2685 = vmul.f32 %v2681, %v2681
        %v2686 = vmul.f32 %v2682, %v2682
        %v2687 = vmul.f32 %v2683, %v2683
        %v2688 = vmul.f32 %v2684, %v2684
        %v2689 = vsel %vm2285, %v2685, 0.0
        %v2690 = vsel %vm2285, %v2686, 0.0
        %v2691 = vadd.f32 %v2689, %v2690
        %v2692 = vsel %vm2285, %v2687, 0.0
        %v2693 = vadd.f32 %v2691, %v2692
        %v2694 = vsel %vm2285, %v2688, 0.0
        %v2695 = vadd.f32 %v2693, %v2694
        %v2696 = vrot.slane %v2695, 4
        %v2697 = vadd.f32 %v2695, %v2696
        %v2698 = vrot.slane %v2697, 2
        %v2699 = vadd.f32 %v2697, %v2698
        %v2700 = vrot.slane %v2699, 1
        %v2701 = vadd.f32 %v2699, %v2700
        %v2703 = vsel %vm2285, %v2701, 0
        %2705 = vmatpush.msra.mxu0 0.0
        %2706 = vmatpush.msra.mxu0 0.0
        %2707 = vmatpush.msra.mxu0 0.0
        %2708 = vmatpush.msra.mxu0 0.0
        %2709 = vmatpush.msra.mxu0 0.0
        %2710 = vmatpush.msra.mxu0 0.0
        %2711 = vmatpush.msra.mxu0 0.0
        %2712 = vmatpush.msra.mxu0 0.0
        %2713 = vmatpush.msra.mxu0 0.0
        %2714 = vmatpush.msra.mxu0 0.0
        %2715 = vmatpush.msra.mxu0 0.0
        %2716 = vmatpush.msra.mxu0 0.0
        %2717 = vmatpush.msra.mxu0 %v1704
        %2718 = vmatpush.msra.mxu0 %v1703
        %2719 = vmatpush.msra.mxu0 %v1702
        %2720 = vmatpush.msra.mxu0 %v1701
        %2721 = vmatmul.f32.gmra.mxu0 %v2703
        %v2722 = vpop.f32.mrf.mxu0
        %v2723 = vadd.f32 0.0, %v2722
        %2724 = vdwg.mxu0
        %v2725 = vmul.f32 %v2723, 0.0078125
        %v2726 = vadd.f32 %v2725, 1e-05
        %v2727 = vrsqrt.pop %v2726
        %v2728 = vmul.f32 %v2727, %v2726
        %v2729 = vmul.f32 %v2728, %v2727
        %v2730 = vmul.f32 0.5, %v2729
        %v2731 = vsub.f32 1.5, %v2730
        %v2732 = vmul.f32 %v2727, %v2731
        %vm2733 = vweird.f32 %v2726
        %vm2734 = vweird.f32 %v2727
        %vm2735 = vmor %vm2733, %vm2734
        %v2736 = vsel %vm2735, %v2727, %v2732
        %v2738 = vsel %vm2323, %v2736, 0
        %2740 = vmatpush.msra.mxu0 0.0
        %2741 = vmatpush.msra.mxu0 0.0
        %2742 = vmatpush.msra.mxu0 0.0
        %2743 = vmatpush.msra.mxu0 0.0
        %2744 = vmatpush.msra.mxu0 0.0
        %2745 = vmatpush.msra.mxu0 0.0
        %2746 = vmatpush.msra.mxu0 0.0
        %2747 = vmatpush.msra.mxu0 0.0
        %2748 = vmatpush.msra.mxu0 0.0
        %2749 = vmatpush.msra.mxu0 0.0
        %2750 = vmatpush.msra.mxu0 0.0
        %2751 = vmatpush.msra.mxu0 0.0
        %2752 = vmatpush.msra.mxu0 0.0
        %2753 = vmatpush.msra.mxu0 0.0
        %2754 = vmatpush.msra.mxu0 0.0
        %2755 = vmatpush.msra.mxu0 %v1705
        %2756 = vmatmul.f32.gmra.mxu0 %v2738
        %v2757 = vpop.f32.mrf.mxu0
        %v2758 = vadd.f32 0.0, %v2757
        %2759 = vdwg.mxu0
        %v2761 = vrot.slane %v2758, 7
        %v2763 = vmul.f32 %v2556, %v2761
        %v2764 = vperm.slane %v2763, 1
        %v2765 = vmul.f32 %v2681, %v2764
        %v2766 = vmul.f32 %v2682, %v2764
        %v2767 = vmul.f32 %v2683, %v2764
        %v2768 = vmul.f32 %v2684, %v2764
        %v2769 = vperm.slane %v2556, 2
        %v2770 = vadd.f32 %v2765, %v2769
        %v2771 = vadd.f32 %v2766, %v2769
        %v2772 = vadd.f32 %v2767, %v2769
        %v2773 = vadd.f32 %v2768, %v2769
        %v2774 = vmul.f32 %v2770, 0.5
        %v2775 = vmul.f32 %v2771, 0.5
        %v2776 = vmul.f32 %v2772, 0.5
        %v2777 = vmul.f32 %v2773, 0.5
        %v2778 = vmul.f32 %v2770, 0.044715
        %v2779 = vmul.f32 %v2771, 0.044715
        %v2780 = vmul.f32 %v2772, 0.044715
        %v2781 = vmul.f32 %v2773, 0.044715
        %v2782 = vmul.f32 %v2778, %v2770
        %v2783 = vmul.f32 %v2779, %v2771
        %v2784 = vmul.f32 %v2780, %v2772
        %v2785 = vmul.f32 %v2781, %v2773
        %v2786 = vmul.f32 %v2782, %v2770
        %v2787 = vmul.f32 %v2783, %v2771
        %v2788 = vmul.f32 %v2784, %v2772
        %v2789 = vmul.f32 %v2785, %v2773
        %v2790 = vadd.f32 %v2770, %v2786
        %v2791 = vadd.f32 %v2771, %v2787
        %v2792 = vadd.f32 %v2772, %v2788
        %v2793 = vadd.f32 %v2773, %v2789
        %v2794 = vmul.f32 %v2790, 0.7978846
        %v2795 = vmul.f32 %v2791, 0.7978846
        %v2796 = vmul.f32 %v2792, 0.7978846
        %v2797 = vmul.f32 %v2793, 0.7978846
        %v2798 = vtanh.pop %v2794
        %v2799 = vtanh.pop %v2795
        %v2800 = vtanh.pop %v2796
        %v2801 = vtanh.pop %v2797
        %v2802 = vadd.f32 %v2798, 1.0
        %v2803 = vadd.f32 %v2799, 1.0
        %v2804 = vadd.f32 %v2800, 1.0
        %v2805 = vadd.f32 %v2801, 1.0
        %v2806 = vmul.f32 %v2774, %v2802
        %v2807 = vmul.f32 %v2775, %v2803
        %v2808 = vmul.f32 %v2776, %v2804
        %v2809 = vmul.f32 %v2777, %v2805
        %v2810 = vperm.slane %v1937, 0
        %v2811 = vadd.f32 %v2806, %v2810
        %v2812 = vadd.f32 %v2807, %v2810
        %v2813 = vadd.f32 %v2808, %v2810
        %v2814 = vadd.f32 %v2809, %v2810
        %v2815 = vrot.slane %v2811, 7
        %v2816 = vrot.slane %v2812, 7
        %v2817 = vrot.slane %v2813, 7
        %v2818 = vrot.slane %v2814, 7
        %v2819 = vsel %vm2182, %v2817, %v2818
        %v2820 = vsel %vm2182, %v2816, %v2817
        %v2821 = vsel %vm2182, %v2815, %v2816
        %v2822 = vsel %vm2182, %v2818, %v2815
        %v2823 = vsel %vm2174, 0.0, %v2822
        %v2824 = vsel %vm2175, 0.0, %v2821
        %v2825 = vsel %vm2176, 0.0, %v2820
        %v2826 = vsel %vm2177, 0.0, %v2819
        %v2827 = vrot.slane %v2811, 1
        %v2828 = vrot.slane %v2812, 1
        %v2829 = vrot.slane %v2813, 1
        %v2830 = vrot.slane %v2814, 1
        %v2831 = vsel %vm2199, %v2829, %v2830
        %v2832 = vsel %vm2199, %v2828, %v2829
        %v2833 = vsel %vm2199, %v2827, %v2828
        %v2834 = vsel %vm2199, %v2830, %v2827
        %v2835 = vsel %vm2191, 0.0, %v2833
        %v2836 = vsel %vm2192, 0.0, %v2832
        %v2837 = vsel %vm2193, 0.0, %v2831
        %v2838 = vsel %vm2194, 0.0, %v2834
        %2843 = vrot.lane.b32.xlu0 %v2811, 32
        %v2844 = vpop.permute.xlu0 %2843
        %2845 = vrot.lane.b32.xlu0 %v2812, 32
        %v2846 = vpop.permute.xlu0 %2845
        %2847 = vrot.lane.b32.xlu0 %v2813, 32
        %v2848 = vpop.permute.xlu0 %2847
        %2849 = vrot.lane.b32.xlu0 %v2814, 32
        %v2850 = vpop.permute.xlu0 %2849
        %2859 = vrot.lane.b32.xlu0 %v2835, 64
        %v2860 = vpop.permute.xlu0 %2859
        %2861 = vrot.lane.b32.xlu0 %v2836, 64
        %v2862 = vpop.permute.xlu0 %2861
        %2863 = vrot.lane.b32.xlu0 %v2837, 64
        %v2864 = vpop.permute.xlu0 %2863
        %2865 = vrot.lane.b32.xlu0 %v2838, 64
        %v2866 = vpop.permute.xlu0 %2865
        %v2871 = vsel %vm2285, %v2823, %v2844
        %v2872 = vsel %vm2285, %v2824, %v2846
        %v2873 = vsel %vm2285, %v2825, %v2848
        %v2874 = vsel %vm2285, %v2826, %v2850
        %v2875 = vsel %vm2537, %v2871, %v2860
        %v2876 = vsel %vm2537, %v2872, %v2862
        %v2877 = vsel %vm2537, %v2873, %v2864
        %v2878 = vsel %vm2537, %v2874, %v2866
        %v2879 = vld [vmem:[%s29] sm:$0xf]
        %v2880 = vld [vmem:[%s29 + $0x4] sm:$0xf]
        %v2881 = vld [vmem:[%s29 + $0x8] sm:$0xf]
        %v2882 = vld [vmem:[%s29 + $0xc] sm:$0xf]
        %v2883 = vld [vmem:[%s29 + $0x10] sm:$0xf]
        %v2884 = vld [vmem:[%s29 + $0x14] sm:$0xf]
        %v2885 = vld [vmem:[%s29 + $0x18] sm:$0xf]
        %v2886 = vld [vmem:[%s29 + $0x1c] sm:$0xf]
        %v2887 = vld [vmem:[%s29 + $0x20] sm:$0xf]
        %v2888 = vld [vmem:[%s29 + $0x24] sm:$0xf]
        %v2889 = vld [vmem:[%s29 + $0x28] sm:$0xf]
        %v2890 = vld [vmem:[%s29 + $0x2c] sm:$0xf]
        %v2891 = vpack.c.bf16 %v2876, %v2875
        %v2892 = vpack.c.bf16 %v2878, %v2877
        %v2893 = vld [vmem:[%s31] sm:$0x7]
        %v2894 = vperm.slane %v2893, 0
        %v2907 = vunpack.c.l.b16 %v2879
        %v2908 = vunpack.c.l.b16 %v2880
        %v2909 = vunpack.c.l.b16 %v2881
        %v2910 = vunpack.c.l.b16 %v2882
        %v2911 = vunpack.c.l.b16 %v2883
        %v2912 = vunpack.c.l.b16 %v2884
        %v2913 = vunpack.c.l.b16 %v2885
        %v2914 = vunpack.c.l.b16 %v2886
        %v2915 = vunpack.c.l.b16 %v2887
        %v2916 = vunpack.c.l.b16 %v2888
        %v2917 = vunpack.c.l.b16 %v2889
        %v2918 = vunpack.c.l.b16 %v2890
        %v2919 = vpack.c.b16 %v2908, %v2907
        %v2920 = vpack.c.b16 %v2910, %v2909
        %v2921 = vpack.c.b16 %v2912, %v2911
        %v2922 = vpack.c.b16 %v2914, %v2913
        %v2923 = vpack.c.b16 %v2916, %v2915
        %v2924 = vpack.c.b16 %v2918, %v2917
        %v2932 = vsel %vm2594, %v2891, 0
        %v2935 = vsel %vm2594, %v2892, 0
        %2937 = vmatpush.bf16.msra.mxu0 0
        %2938 = vmatpush.bf16.msra.mxu0 0
        %2939 = vmatpush.bf16.msra.mxu0 %v2924
        %2940 = vmatpush.bf16.msra.mxu0 %v2923
        %2941 = vmatpush.bf16.msra.mxu0 %v2922
        %2942 = vmatpush.bf16.msra.mxu0 %v2921
        %2943 = vmatpush.bf16.msra.mxu0 %v2920
        %2944 = vmatpush.bf16.msra.mxu0 %v2919
        %2945 = vmatmul.bf16.gmra.mxu0 %v2932
        %v2946 = vpop.f32.mrf.mxu0
        %v2947 = vadd.f32 %v2894, %v2946
        %v2948 = vpop.f32.mrf.mxu0
        %v2949 = vadd.f32 %v2894, %v2948
        %2950 = vmatmul.bf16.gmra.mxu0 %v2935
        %v2951 = vpop.f32.mrf.mxu0
        %v2952 = vadd.f32 %v2894, %v2951
        %v2953 = vpop.f32.mrf.mxu0
        %v2954 = vadd.f32 %v2894, %v2953
        %2955 = vdwg.mxu0
        %v2956 = vsel %vm2537, %v2947, 0.0
        %v2957 = vsel %vm2537, %v2949, 0.0
        %v2958 = vadd.f32 %v2956, %v2957
        %v2959 = vsel %vm2537, %v2952, 0.0
        %v2960 = vadd.f32 %v2958, %v2959
        %v2961 = vsel %vm2537, %v2954, 0.0
        %v2962 = vadd.f32 %v2960, %v2961
        %v2963 = vrot.slane %v2962, 4
        %v2964 = vadd.f32 %v2962, %v2963
        %v2965 = vrot.slane %v2964, 2
        %v2966 = vadd.f32 %v2964, %v2965
        %v2967 = vrot.slane %v2966, 1
        %v2968 = vadd.f32 %v2966, %v2967
        %v2970 = vsel %vm2537, %v2968, 0
        %2972 = vmatpush.msra.mxu0 0.0
        %2973 = vmatpush.msra.mxu0 0.0
        %2974 = vmatpush.msra.mxu0 0.0
        %2975 = vmatpush.msra.mxu0 0.0
        %2976 = vmatpush.msra.mxu0 0.0
        %2977 = vmatpush.msra.mxu0 0.0
        %2978 = vmatpush.msra.mxu0 0.0
        %2979 = vmatpush.msra.mxu0 0.0
        %2980 = vmatpush.msra.mxu0 %v1713
        %2981 = vmatpush.msra.mxu0 %v1712
        %2982 = vmatpush.msra.mxu0 %v1711
        %2983 = vmatpush.msra.mxu0 %v1710
        %2984 = vmatpush.msra.mxu0 %v1709
        %2985 = vmatpush.msra.mxu0 %v1708
        %2986 = vmatpush.msra.mxu0 %v1707
        %2987 = vmatpush.msra.mxu0 %v1706
        %2988 = vmatmul.f32.gmra.mxu0 %v2970
        %v2989 = vpop.f32.mrf.mxu0
        %v2990 = vadd.f32 0.0, %v2989
        %2991 = vdwg.mxu0
        %v2992 = vmul.f32 %v2990, 0.00390625
        %v2994 = vsel %vm2323, %v2992, 0
        %2996 = vmatpush.msra.mxu0 0.0
        %2997 = vmatpush.msra.mxu0 0.0
        %2998 = vmatpush.msra.mxu0 0.0
        %2999 = vmatpush.msra.mxu0 0.0
        %3000 = vmatpush.msra.mxu0 0.0
        %3001 = vmatpush.msra.mxu0 0.0
        %3002 = vmatpush.msra.mxu0 0.0
        %3003 = vmatpush.msra.mxu0 0.0
        %3004 = vmatpush.msra.mxu0 0.0
        %3005 = vmatpush.msra.mxu0 0.0
        %3006 = vmatpush.msra.mxu0 0.0
        %3007 = vmatpush.msra.mxu0 0.0
        %3008 = vmatpush.msra.mxu0 0.0
        %3009 = vmatpush.msra.mxu0 0.0
        %3010 = vmatpush.msra.mxu0 0.0
        %3011 = vmatpush.msra.mxu0 %v1714
        %3012 = vmatmul.f32.gmra.mxu0 %v2994
        %v3013 = vpop.f32.mrf.mxu0
        %v3014 = vadd.f32 0.0, %v3013
        %3015 = vdwg.mxu0
        %v3016 = vperm.slane %v3014, 0
        %v3017 = vsub.f32 %v2947, %v3016
        %v3018 = vsub.f32 %v2949, %v3016
        %v3019 = vsub.f32 %v2952, %v3016
        %v3020 = vsub.f32 %v2954, %v3016
        %v3021 = vmul.f32 %v3017, %v3017
        %v3022 = vmul.f32 %v3018, %v3018
        %v3023 = vmul.f32 %v3019, %v3019
        %v3024 = vmul.f32 %v3020, %v3020
        %v3025 = vsel %vm2537, %v3021, 0.0
        %v3026 = vsel %vm2537, %v3022, 0.0
        %v3027 = vadd.f32 %v3025, %v3026
        %v3028 = vsel %vm2537, %v3023, 0.0
        %v3029 = vadd.f32 %v3027, %v3028
        %v3030 = vsel %vm2537, %v3024, 0.0
        %v3031 = vadd.f32 %v3029, %v3030
        %v3032 = vrot.slane %v3031, 4
        %v3033 = vadd.f32 %v3031, %v3032
        %v3034 = vrot.slane %v3033, 2
        %v3035 = vadd.f32 %v3033, %v3034
        %v3036 = vrot.slane %v3035, 1
        %v3037 = vadd.f32 %v3035, %v3036
        %v3039 = vsel %vm2537, %v3037, 0
        %3041 = vmatpush.msra.mxu0 0.0
        %3042 = vmatpush.msra.mxu0 0.0
        %3043 = vmatpush.msra.mxu0 0.0
        %3044 = vmatpush.msra.mxu0 0.0
        %3045 = vmatpush.msra.mxu0 0.0
        %3046 = vmatpush.msra.mxu0 0.0
        %3047 = vmatpush.msra.mxu0 0.0
        %3048 = vmatpush.msra.mxu0 0.0
        %3049 = vmatpush.msra.mxu0 %v1713
        %3050 = vmatpush.msra.mxu0 %v1712
        %3051 = vmatpush.msra.mxu0 %v1711
        %3052 = vmatpush.msra.mxu0 %v1710
        %3053 = vmatpush.msra.mxu0 %v1709
        %3054 = vmatpush.msra.mxu0 %v1708
        %3055 = vmatpush.msra.mxu0 %v1707
        %3056 = vmatpush.msra.mxu0 %v1706
        %3057 = vmatmul.f32.gmra.mxu0 %v3039
        %v3058 = vpop.f32.mrf.mxu0
        %v3059 = vadd.f32 0.0, %v3058
        %3060 = vdwg.mxu0
        %v3061 = vmul.f32 %v3059, 0.00390625
        %v3062 = vadd.f32 %v3061, 1e-05
        %v3063 = vrsqrt.pop %v3062
        %v3064 = vmul.f32 %v3063, %v3062
        %v3065 = vmul.f32 %v3064, %v3063
        %v3066 = vmul.f32 0.5, %v3065
        %v3067 = vsub.f32 1.5, %v3066
        %v3068 = vmul.f32 %v3063, %v3067
        %vm3069 = vweird.f32 %v3062
        %vm3070 = vweird.f32 %v3063
        %vm3071 = vmor %vm3069, %vm3070
        %v3072 = vsel %vm3071, %v3063, %v3068
        %v3074 = vsel %vm2323, %v3072, 0
        %3076 = vmatpush.msra.mxu0 0.0
        %3077 = vmatpush.msra.mxu0 0.0
        %3078 = vmatpush.msra.mxu0 0.0
        %3079 = vmatpush.msra.mxu0 0.0
        %3080 = vmatpush.msra.mxu0 0.0
        %3081 = vmatpush.msra.mxu0 0.0
        %3082 = vmatpush.msra.mxu0 0.0
        %3083 = vmatpush.msra.mxu0 0.0
        %3084 = vmatpush.msra.mxu0 0.0
        %3085 = vmatpush.msra.mxu0 0.0
        %3086 = vmatpush.msra.mxu0 0.0
        %3087 = vmatpush.msra.mxu0 0.0
        %3088 = vmatpush.msra.mxu0 0.0
        %3089 = vmatpush.msra.mxu0 0.0
        %3090 = vmatpush.msra.mxu0 0.0
        %3091 = vmatpush.msra.mxu0 %v1714
        %3092 = vmatmul.f32.gmra.mxu0 %v3074
        %v3093 = vpop.f32.mrf.mxu0
        %v3094 = vadd.f32 0.0, %v3093
        %3095 = vdwg.mxu0
        %v3097 = vrot.slane %v3094, 7
        %v3099 = vmul.f32 %v2893, %v3097
        %v3100 = vperm.slane %v3099, 1
        %v3101 = vmul.f32 %v3017, %v3100
        %v3102 = vmul.f32 %v3018, %v3100
        %v3103 = vmul.f32 %v3019, %v3100
        %v3104 = vmul.f32 %v3020, %v3100
        %v3105 = vperm.slane %v2893, 2
        %v3106 = vadd.f32 %v3101, %v3105
        %v3107 = vadd.f32 %v3102, %v3105
        %v3108 = vadd.f32 %v3103, %v3105
        %v3109 = vadd.f32 %v3104, %v3105
        %v3110 = vmul.f32 %v3106, 0.5
        %v3111 = vmul.f32 %v3107, 0.5
        %v3112 = vmul.f32 %v3108, 0.5
        %v3113 = vmul.f32 %v3109, 0.5
        %v3114 = vmul.f32 %v3106, 0.044715
        %v3115 = vmul.f32 %v3107, 0.044715
        %v3116 = vmul.f32 %v3108, 0.044715
        %v3117 = vmul.f32 %v3109, 0.044715
        %v3118 = vmul.f32 %v3114, %v3106
        %v3119 = vmul.f32 %v3115, %v3107
        %v3120 = vmul.f32 %v3116, %v3108
        %v3121 = vmul.f32 %v3117, %v3109
        %v3122 = vmul.f32 %v3118, %v3106
        %v3123 = vmul.f32 %v3119, %v3107
        %v3124 = vmul.f32 %v3120, %v3108
        %v3125 = vmul.f32 %v3121, %v3109
        %v3126 = vadd.f32 %v3106, %v3122
        %v3127 = vadd.f32 %v3107, %v3123
        %v3128 = vadd.f32 %v3108, %v3124
        %v3129 = vadd.f32 %v3109, %v3125
        %v3130 = vmul.f32 %v3126, 0.7978846
        %v3131 = vmul.f32 %v3127, 0.7978846
        %v3132 = vmul.f32 %v3128, 0.7978846
        %v3133 = vmul.f32 %v3129, 0.7978846
        %v3134 = vtanh.pop %v3130
        %v3135 = vtanh.pop %v3131
        %v3136 = vtanh.pop %v3132
        %v3137 = vtanh.pop %v3133
        %v3138 = vadd.f32 %v3134, 1.0
        %v3139 = vadd.f32 %v3135, 1.0
        %v3140 = vadd.f32 %v3136, 1.0
        %v3141 = vadd.f32 %v3137, 1.0
        %v3142 = vmul.f32 %v3110, %v3138
        %v3143 = vmul.f32 %v3111, %v3139
        %v3144 = vmul.f32 %v3112, %v3140
        %v3145 = vmul.f32 %v3113, %v3141
        %v3146 = vrot.slane %v3142, 7
        %v3147 = vrot.slane %v3143, 7
        %v3148 = vrot.slane %v3144, 7
        %v3149 = vrot.slane %v3145, 7
        %v3150 = vsel %vm2182, %v3148, %v3149
        %v3151 = vsel %vm2182, %v3147, %v3148
        %v3152 = vsel %vm2182, %v3146, %v3147
        %v3153 = vsel %vm2182, %v3149, %v3146
        %v3154 = vsel %vm2174, 0.0, %v3153
        %v3155 = vsel %vm2175, 0.0, %v3152
        %v3156 = vsel %vm2176, 0.0, %v3151
        %v3157 = vsel %vm2177, 0.0, %v3150
        %v3158 = vrot.slane %v3142, 1
        %v3159 = vrot.slane %v3143, 1
        %v3160 = vrot.slane %v3144, 1
        %v3161 = vrot.slane %v3145, 1
        %v3162 = vsel %vm2199, %v3160, %v3161
        %v3163 = vsel %vm2199, %v3159, %v3160
        %v3164 = vsel %vm2199, %v3158, %v3159
        %v3165 = vsel %vm2199, %v3161, %v3158
        %v3166 = vsel %vm2191, 0.0, %v3164
        %v3167 = vsel %vm2192, 0.0, %v3163
        %v3168 = vsel %vm2193, 0.0, %v3162
        %v3169 = vsel %vm2194, 0.0, %v3165
        %3174 = vrot.lane.b32.xlu0 %v3142, 64
        %v3175 = vpop.permute.xlu0 %3174
        %3176 = vrot.lane.b32.xlu0 %v3143, 64
        %v3177 = vpop.permute.xlu0 %3176
        %3178 = vrot.lane.b32.xlu0 %v3144, 64
        %v3179 = vpop.permute.xlu0 %3178
        %3180 = vrot.lane.b32.xlu0 %v3145, 64
        %v3181 = vpop.permute.xlu0 %3180
        %v3186 = vsel %vm2537, %v3154, %v3175
        %v3187 = vsel %vm2537, %v3155, %v3177
        %v3188 = vsel %vm2537, %v3156, %v3179
        %v3189 = vsel %vm2537, %v3157, %v3181
        %v3190 = vld [vmem:[%s33] sm:$0xf]
        %v3191 = vld [vmem:[%s33 + $0x4] sm:$0xf]
        %v3192 = vld [vmem:[%s33 + $0x8] sm:$0xf]
        %v3193 = vld [vmem:[%s33 + $0xc] sm:$0xf]
        %v3194 = vld [vmem:[%s33 + $0x10] sm:$0xf]
        %v3195 = vld [vmem:[%s33 + $0x14] sm:$0xf]
        %v3196 = vld [vmem:[%s33 + $0x18] sm:$0xf]
        %v3197 = vld [vmem:[%s33 + $0x1c] sm:$0xf]
        %v3198 = vld [vmem:[%s33 + $0x20] sm:$0xf]
        %v3199 = vld [vmem:[%s33 + $0x24] sm:$0xf]
        %v3200 = vld [vmem:[%s33 + $0x28] sm:$0xf]
        %v3201 = vld [vmem:[%s33 + $0x2c] sm:$0xf]
        %v3202 = vld [vmem:[%s33 + $0x30] sm:$0xf]
        %v3203 = vld [vmem:[%s33 + $0x34] sm:$0xf]
        %v3204 = vld [vmem:[%s33 + $0x38] sm:$0xf]
        %v3205 = vld [vmem:[%s33 + $0x3c] sm:$0xf]
        %v3206 = vld [vmem:[%s33 + $0x40] sm:$0xf]
        %v3207 = vld [vmem:[%s33 + $0x44] sm:$0xf]
        %v3208 = vld [vmem:[%s33 + $0x48] sm:$0xf]
        %v3209 = vld [vmem:[%s33 + $0x4c] sm:$0xf]
        %v3210 = vld [vmem:[%s33 + $0x50] sm:$0xf]
        %v3211 = vld [vmem:[%s33 + $0x54] sm:$0xf]
        %v3212 = vld [vmem:[%s33 + $0x58] sm:$0xf]
        %v3213 = vld [vmem:[%s33 + $0x5c] sm:$0xf]
        %v3214 = vpack.c.bf16 %v3187, %v3186
        %v3215 = vpack.c.bf16 %v3167, %v3166
        %v3216 = vpack.c.bf16 %v3189, %v3188
        %v3217 = vpack.c.bf16 %v3169, %v3168
        %v3218 = vld [vmem:[%s35] sm:$0x7]
        %v3219 = vperm.slane %v3218, 0
        %v3244 = vunpack.c.l.b16 %v3190
        %v3245 = vunpack.c.l.b16 %v3191
        %v3246 = vunpack.c.l.b16 %v3192
        %v3247 = vunpack.c.l.b16 %v3193
        %v3248 = vunpack.c.l.b16 %v3194
        %v3249 = vunpack.c.l.b16 %v3195
        %v3250 = vunpack.c.l.b16 %v3196
        %v3251 = vunpack.c.l.b16 %v3197
        %v3252 = vunpack.c.l.b16 %v3198
        %v3253 = vunpack.c.l.b16 %v3199
        %v3254 = vunpack.c.l.b16 %v3200
        %v3255 = vunpack.c.l.b16 %v3201
        %v3256 = vunpack.c.l.b16 %v3202
        %v3257 = vunpack.c.l.b16 %v3203
        %v3258 = vunpack.c.l.b16 %v3204
        %v3259 = vunpack.c.l.b16 %v3205
        %v3260 = vunpack.c.l.b16 %v3206
        %v3261 = vunpack.c.l.b16 %v3207
        %v3262 = vunpack.c.l.b16 %v3208
        %v3263 = vunpack.c.l.b16 %v3209
        %v3264 = vunpack.c.l.b16 %v3210
        %v3265 = vunpack.c.l.b16 %v3211
        %v3266 = vunpack.c.l.b16 %v3212
        %v3267 = vunpack.c.l.b16 %v3213
        %v3268 = vpack.c.b16 %v3245, %v3244
        %v3269 = vpack.c.b16 %v3247, %v3246
        %v3270 = vpack.c.b16 %v3249, %v3248
        %v3271 = vpack.c.b16 %v3251, %v3250
        %v3272 = vpack.c.b16 %v3253, %v3252
        %v3273 = vpack.c.b16 %v3255, %v3254
        %v3274 = vpack.c.b16 %v3257, %v3256
        %v3275 = vpack.c.b16 %v3259, %v3258
        %v3276 = vpack.c.b16 %v3261, %v3260
        %v3277 = vpack.c.b16 %v3263, %v3262
        %v3278 = vpack.c.b16 %v3265, %v3264
        %v3279 = vpack.c.b16 %v3267, %v3266
        %v3293 = vsel %vm2537, %v3215, 0
        %v3296 = vsel %vm2537, %v3217, 0
        %3298 = vmatpush.bf16.msra.mxu0 %v3275
        %3299 = vmatpush.bf16.msra.mxu0 %v3274
        %3300 = vmatpush.bf16.msra.mxu0 %v3273
        %3301 = vmatpush.bf16.msra.mxu0 %v3272
        %3302 = vmatpush.bf16.msra.mxu0 %v3271
        %3303 = vmatpush.bf16.msra.mxu0 %v3270
        %3304 = vmatpush.bf16.msra.mxu0 %v3269
        %3305 = vmatpush.bf16.msra.mxu0 %v3268
        %3306 = vmatmul.bf16.gmra.mxu0 %v3214
        %v3307 = vpop.f32.mrf.mxu0
        %v3308 = vadd.f32 %v3219, %v3307
        %v3309 = vpop.f32.mrf.mxu0
        %v3310 = vadd.f32 %v3219, %v3309
        %3311 = vmatmul.bf16.gmra.mxu0 %v3216
        %v3312 = vpop.f32.mrf.mxu0
        %v3313 = vadd.f32 %v3219, %v3312
        %v3314 = vpop.f32.mrf.mxu0
        %v3315 = vadd.f32 %v3219, %v3314
        %3316 = vdwg.mxu0
        %3317 = vmatpush.bf16.msra.mxu0 0
        %3318 = vmatpush.bf16.msra.mxu0 0
        %3319 = vmatpush.bf16.msra.mxu0 0
        %3320 = vmatpush.bf16.msra.mxu0 0
        %3321 = vmatpush.bf16.msra.mxu0 %v3279
        %3322 = vmatpush.bf16.msra.mxu0 %v3278
        %3323 = vmatpush.bf16.msra.mxu0 %v3277
        %3324 = vmatpush.bf16.msra.mxu0 %v3276
        %3325 = vmatmul.bf16.gmra.mxu0 %v3293
        %v3326 = vpop.f32.mrf.mxu0
        %v3327 = vadd.f32 %v3308, %v3326
        %v3328 = vpop.f32.mrf.mxu0
        %v3329 = vadd.f32 %v3310, %v3328
        %3330 = vmatmul.bf16.gmra.mxu0 %v3296
        %v3331 = vpop.f32.mrf.mxu0
        %v3332 = vadd.f32 %v3313, %v3331
        %v3333 = vpop.f32.mrf.mxu0
        %v3334 = vadd.f32 %v3315, %v3333
        %3335 = vdwg.mxu0
        %v3336 = vsel %vm2537, %v3327, 0.0
        %v3337 = vsel %vm2537, %v3329, 0.0
        %v3338 = vadd.f32 %v3336, %v3337
        %v3339 = vsel %vm2537, %v3332, 0.0
        %v3340 = vadd.f32 %v3338, %v3339
        %v3341 = vsel %vm2537, %v3334, 0.0
        %v3342 = vadd.f32 %v3340, %v3341
        %v3343 = vrot.slane %v3342, 4
        %v3344 = vadd.f32 %v3342, %v3343
        %v3345 = vrot.slane %v3344, 2
        %v3346 = vadd.f32 %v3344, %v3345
        %v3347 = vrot.slane %v3346, 1
        %v3348 = vadd.f32 %v3346, %v3347
        %v3350 = vsel %vm2537, %v3348, 0
        %3352 = vmatpush.msra.mxu0 0.0
        %3353 = vmatpush.msra.mxu0 0.0
        %3354 = vmatpush.msra.mxu0 0.0
        %3355 = vmatpush.msra.mxu0 0.0
        %3356 = vmatpush.msra.mxu0 0.0
        %3357 = vmatpush.msra.mxu0 0.0
        %3358 = vmatpush.msra.mxu0 0.0
        %3359 = vmatpush.msra.mxu0 0.0
        %3360 = vmatpush.msra.mxu0 %v1713
        %3361 = vmatpush.msra.mxu0 %v1712
        %3362 = vmatpush.msra.mxu0 %v1711
        %3363 = vmatpush.msra.mxu0 %v1710
        %3364 = vmatpush.msra.mxu0 %v1709
        %3365 = vmatpush.msra.mxu0 %v1708
        %3366 = vmatpush.msra.mxu0 %v1707
        %3367 = vmatpush.msra.mxu0 %v1706
        %3368 = vmatmul.f32.gmra.mxu0 %v3350
        %v3369 = vpop.f32.mrf.mxu0
        %v3370 = vadd.f32 0.0, %v3369
        %3371 = vdwg.mxu0
        %v3372 = vmul.f32 %v3370, 0.00390625
        %v3374 = vsel %vm2323, %v3372, 0
        %3376 = vmatpush.msra.mxu0 0.0
        %3377 = vmatpush.msra.mxu0 0.0
        %3378 = vmatpush.msra.mxu0 0.0
        %3379 = vmatpush.msra.mxu0 0.0
        %3380 = vmatpush.msra.mxu0 0.0
        %3381 = vmatpush.msra.mxu0 0.0
        %3382 = vmatpush.msra.mxu0 0.0
        %3383 = vmatpush.msra.mxu0 0.0
        %3384 = vmatpush.msra.mxu0 0.0
        %3385 = vmatpush.msra.mxu0 0.0
        %3386 = vmatpush.msra.mxu0 0.0
        %3387 = vmatpush.msra.mxu0 0.0
        %3388 = vmatpush.msra.mxu0 0.0
        %3389 = vmatpush.msra.mxu0 0.0
        %3390 = vmatpush.msra.mxu0 0.0
        %3391 = vmatpush.msra.mxu0 %v1714
        %3392 = vmatmul.f32.gmra.mxu0 %v3374
        %v3393 = vpop.f32.mrf.mxu0
        %v3394 = vadd.f32 0.0, %v3393
        %3395 = vdwg.mxu0
        %v3396 = vperm.slane %v3394, 0
        %v3397 = vsub.f32 %v3327, %v3396
        %v3398 = vsub.f32 %v3329, %v3396
        %v3399 = vsub.f32 %v3332, %v3396
        %v3400 = vsub.f32 %v3334, %v3396
        %v3401 = vmul.f32 %v3397, %v3397
        %v3402 = vmul.f32 %v3398, %v3398
        %v3403 = vmul.f32 %v3399, %v3399
        %v3404 = vmul.f32 %v3400, %v3400
        %v3405 = vsel %vm2537, %v3401, 0.0
        %v3406 = vsel %vm2537, %v3402, 0.0
        %v3407 = vadd.f32 %v3405, %v3406
        %v3408 = vsel %vm2537, %v3403, 0.0
        %v3409 = vadd.f32 %v3407, %v3408
        %v3410 = vsel %vm2537, %v3404, 0.0
        %v3411 = vadd.f32 %v3409, %v3410
        %v3412 = vrot.slane %v3411, 4
        %v3413 = vadd.f32 %v3411, %v3412
        %v3414 = vrot.slane %v3413, 2
        %v3415 = vadd.f32 %v3413, %v3414
        %v3416 = vrot.slane %v3415, 1
        %v3417 = vadd.f32 %v3415, %v3416
        %v3419 = vsel %vm2537, %v3417, 0
        %3421 = vmatpush.msra.mxu0 0.0
        %3422 = vmatpush.msra.mxu0 0.0
        %3423 = vmatpush.msra.mxu0 0.0
        %3424 = vmatpush.msra.mxu0 0.0
        %3425 = vmatpush.msra.mxu0 0.0
        %3426 = vmatpush.msra.mxu0 0.0
        %3427 = vmatpush.msra.mxu0 0.0
        %3428 = vmatpush.msra.mxu0 0.0
        %3429 = vmatpush.msra.mxu0 %v1713
        %3430 = vmatpush.msra.mxu0 %v1712
        %3431 = vmatpush.msra.mxu0 %v1711
        %3432 = vmatpush.msra.mxu0 %v1710
        %3433 = vmatpush.msra.mxu0 %v1709
        %3434 = vmatpush.msra.mxu0 %v1708
        %3435 = vmatpush.msra.mxu0 %v1707
        %3436 = vmatpush.msra.mxu0 %v1706
        %3437 = vmatmul.f32.gmra.mxu0 %v3419
        %v3438 = vpop.f32.mrf.mxu0
        %v3439 = vadd.f32 0.0, %v3438
        %3440 = vdwg.mxu0
        %v3441 = vmul.f32 %v3439, 0.00390625
        %v3442 = vadd.f32 %v3441, 1e-05
        %v3443 = vrsqrt.pop %v3442
        %v3444 = vmul.f32 %v3443, %v3442
        %v3445 = vmul.f32 %v3444, %v3443
        %v3446 = vmul.f32 0.5, %v3445
        %v3447 = vsub.f32 1.5, %v3446
        %v3448 = vmul.f32 %v3443, %v3447
        %vm3449 = vweird.f32 %v3442
        %vm3450 = vweird.f32 %v3443
        %vm3451 = vmor %vm3449, %vm3450
        %v3452 = vsel %vm3451, %v3443, %v3448
        %v3454 = vsel %vm2323, %v3452, 0
        %3456 = vmatpush.msra.mxu0 0.0
        %3457 = vmatpush.msra.mxu0 0.0
        %3458 = vmatpush.msra.mxu0 0.0
        %3459 = vmatpush.msra.mxu0 0.0
        %3460 = vmatpush.msra.mxu0 0.0
        %3461 = vmatpush.msra.mxu0 0.0
        %3462 = vmatpush.msra.mxu0 0.0
        %3463 = vmatpush.msra.mxu0 0.0
        %3464 = vmatpush.msra.mxu0 0.0
        %3465 = vmatpush.msra.mxu0 0.0
        %3466 = vmatpush.msra.mxu0 0.0
        %3467 = vmatpush.msra.mxu0 0.0
        %3468 = vmatpush.msra.mxu0 0.0
        %3469 = vmatpush.msra.mxu0 0.0
        %3470 = vmatpush.msra.mxu0 0.0
        %3471 = vmatpush.msra.mxu0 %v1714
        %3472 = vmatmul.f32.gmra.mxu0 %v3454
        %v3473 = vpop.f32.mrf.mxu0
        %v3474 = vadd.f32 0.0, %v3473
        %3475 = vdwg.mxu0
        %v3477 = vrot.slane %v3474, 7
        %v3479 = vmul.f32 %v3218, %v3477
        %v3480 = vperm.slane %v3479, 1
        %v3481 = vmul.f32 %v3397, %v3480
        %v3482 = vmul.f32 %v3398, %v3480
        %v3483 = vmul.f32 %v3399, %v3480
        %v3484 = vmul.f32 %v3400, %v3480
        %v3485 = vperm.slane %v3218, 2
        %v3486 = vadd.f32 %v3481, %v3485
        %v3487 = vadd.f32 %v3482, %v3485
        %v3488 = vadd.f32 %v3483, %v3485
        %v3489 = vadd.f32 %v3484, %v3485
        %v3490 = vmul.f32 %v3486, 0.5
        %v3491 = vmul.f32 %v3487, 0.5
        %v3492 = vmul.f32 %v3488, 0.5
        %v3493 = vmul.f32 %v3489, 0.5
        %v3494 = vmul.f32 %v3486, 0.044715
        %v3495 = vmul.f32 %v3487, 0.044715
        %v3496 = vmul.f32 %v3488, 0.044715
        %v3497 = vmul.f32 %v3489, 0.044715
        %v3498 = vmul.f32 %v3494, %v3486
        %v3499 = vmul.f32 %v3495, %v3487
        %v3500 = vmul.f32 %v3496, %v3488
        %v3501 = vmul.f32 %v3497, %v3489
        %v3502 = vmul.f32 %v3498, %v3486
        %v3503 = vmul.f32 %v3499, %v3487
        %v3504 = vmul.f32 %v3500, %v3488
        %v3505 = vmul.f32 %v3501, %v3489
        %v3506 = vadd.f32 %v3486, %v3502
        %v3507 = vadd.f32 %v3487, %v3503
        %v3508 = vadd.f32 %v3488, %v3504
        %v3509 = vadd.f32 %v3489, %v3505
        %v3510 = vmul.f32 %v3506, 0.7978846
        %v3511 = vmul.f32 %v3507, 0.7978846
        %v3512 = vmul.f32 %v3508, 0.7978846
        %v3513 = vmul.f32 %v3509, 0.7978846
        %v3514 = vtanh.pop %v3510
        %v3515 = vtanh.pop %v3511
        %v3516 = vtanh.pop %v3512
        %v3517 = vtanh.pop %v3513
        %v3518 = vadd.f32 %v3514, 1.0
        %v3519 = vadd.f32 %v3515, 1.0
        %v3520 = vadd.f32 %v3516, 1.0
        %v3521 = vadd.f32 %v3517, 1.0
        %v3522 = vmul.f32 %v3490, %v3518
        %v3523 = vmul.f32 %v3491, %v3519
        %v3524 = vmul.f32 %v3492, %v3520
        %v3525 = vmul.f32 %v3493, %v3521
        %v3526 = vperm.slane %v1974, 0
        %v3527 = vadd.f32 %v3522, %v3526
        %v3528 = vadd.f32 %v3523, %v3526
        %v3529 = vadd.f32 %v3524, %v3526
        %v3530 = vadd.f32 %v3525, %v3526
        %3531 = vst.msk [vmem:[#allocation2] sm:$0xff] %vm2537, %v3527
        %3532 = vst.msk [vmem:[#allocation2 + $0x8] sm:$0xff] %vm2537, %v3528
        %3533 = vst.msk [vmem:[#allocation2 + $0x10] sm:$0xff] %vm2537, %v3529
        %3534 = vst.msk [vmem:[#allocation2 + $0x18] sm:$0xff] %vm2537, %v3530
        %v3535 = vld [vmem:[#allocation2] ss:$2 sm:$0xff]
        %s3536 = scalar_lea.vmem [#allocation2], 16
        %v3537 = vld [vmem:[%s3536] ss:$2 sm:$0xff]
        %s3538 = scalar_lea.vmem [#allocation2], 1
        %v3539 = vld [vmem:[%s3538] ss:$2 sm:$0xff]
        %s3540 = scalar_lea.vmem [#allocation2], 17
        %v3541 = vld [vmem:[%s3540] ss:$2 sm:$0xff]
        %v3542 = vmax.f32 %v3535, %v3539
        %v3543 = vmax.f32 %v3537, %v3541
        %v3544 = vrot.slane %v3542, 7
        %v3545 = vrot.slane %v3543, 7
        %v3546 = vsel %vm2182, %v3544, %v3545
        %v3547 = vsel %vm2182, %v3545, %v3544
        %v3548 = vsel %vm2174, 0.0, %v3547
        %v3549 = vsel %vm2175, 0.0, %v3546
        %vm3550 = vcmp.eq.s32.totalorder %v2170, 15
        %vm3551 = vcmp.eq.s32.totalorder %v2171, 15
        %v3552 = vrot.slane %v3542, 1
        %v3553 = vrot.slane %v3543, 1
        %v3554 = vsel %vm2199, %v3552, %v3553
        %v3555 = vsel %vm2199, %v3553, %v3552
        %v3556 = vsel %vm3550, 0.0, %v3554
        %v3557 = vsel %vm3551, 0.0, %v3555
        %3560 = vrot.lane.b32.xlu0 %v3542, 64
        %v3561 = vpop.permute.xlu0 %3560
        %3562 = vrot.lane.b32.xlu0 %v3543, 64
        %v3563 = vpop.permute.xlu0 %3562
        %v3566 = vsel %vm2537, %v3548, %v3561
        %v3567 = vsel %vm2537, %v3549, %v3563
        %v3568 = vld [vmem:[%s37] sm:$0xf]
        %v3569 = vld [vmem:[%s37 + $0x4] sm:$0xf]
        %v3570 = vld [vmem:[%s37 + $0x8] sm:$0xf]
        %v3571 = vld [vmem:[%s37 + $0xc] sm:$0xf]
        %v3572 = vld [vmem:[%s37 + $0x10] sm:$0xf]
        %v3573 = vld [vmem:[%s37 + $0x14] sm:$0xf]
        %v3574 = vld [vmem:[%s37 + $0x18] sm:$0xf]
        %v3575 = vld [vmem:[%s37 + $0x1c] sm:$0xf]
        %v3576 = vld [vmem:[%s37 + $0x20] sm:$0xf]
        %v3577 = vld [vmem:[%s37 + $0x24] sm:$0xf]
        %v3578 = vld [vmem:[%s37 + $0x28] sm:$0xf]
        %v3579 = vld [vmem:[%s37 + $0x2c] sm:$0xf]
        %v3580 = vld [vmem:[%s37 + $0x30] sm:$0xf]
        %v3581 = vld [vmem:[%s37 + $0x34] sm:$0xf]
        %v3582 = vld [vmem:[%s37 + $0x38] sm:$0xf]
        %v3583 = vld [vmem:[%s37 + $0x3c] sm:$0xf]
        %v3584 = vld [vmem:[%s37 + $0x40] sm:$0xf]
        %v3585 = vld [vmem:[%s37 + $0x44] sm:$0xf]
        %v3586 = vld [vmem:[%s37 + $0x48] sm:$0xf]
        %v3587 = vld [vmem:[%s37 + $0x4c] sm:$0xf]
        %v3588 = vld [vmem:[%s37 + $0x50] sm:$0xf]
        %v3589 = vld [vmem:[%s37 + $0x54] sm:$0xf]
        %v3590 = vld [vmem:[%s37 + $0x58] sm:$0xf]
        %v3591 = vld [vmem:[%s37 + $0x5c] sm:$0xf]
        %v3592 = vpack.c.bf16 %v3567, %v3566
        %v3593 = vpack.c.bf16 %v3557, %v3556
        %v3594 = vld [vmem:[%s39] sm:$0x7]
        %v3595 = vperm.slane %v3594, 0
        %v3620 = vunpack.c.l.b16 %v3568
        %v3621 = vunpack.c.l.b16 %v3569
        %v3622 = vunpack.c.l.b16 %v3570
        %v3623 = vunpack.c.l.b16 %v3571
        %v3624 = vunpack.c.l.b16 %v3572
        %v3625 = vunpack.c.l.b16 %v3573
        %v3626 = vunpack.c.l.b16 %v3574
        %v3627 = vunpack.c.l.b16 %v3575
        %v3628 = vunpack.c.l.b16 %v3576
        %v3629 = vunpack.c.l.b16 %v3577
        %v3630 = vunpack.c.l.b16 %v3578
        %v3631 = vunpack.c.l.b16 %v3579
        %v3632 = vunpack.c.l.b16 %v3580
        %v3633 = vunpack.c.l.b16 %v3581
        %v3634 = vunpack.c.l.b16 %v3582
        %v3635 = vunpack.c.l.b16 %v3583
        %v3636 = vunpack.c.l.b16 %v3584
        %v3637 = vunpack.c.l.b16 %v3585
        %v3638 = vunpack.c.l.b16 %v3586
        %v3639 = vunpack.c.l.b16 %v3587
        %v3640 = vunpack.c.l.b16 %v3588
        %v3641 = vunpack.c.l.b16 %v3589
        %v3642 = vunpack.c.l.b16 %v3590
        %v3643 = vunpack.c.l.b16 %v3591
        %v3644 = vpack.c.b16 %v3621, %v3620
        %v3645 = vpack.c.b16 %v3623, %v3622
        %v3646 = vpack.c.b16 %v3625, %v3624
        %v3647 = vpack.c.b16 %v3627, %v3626
        %v3648 = vpack.c.b16 %v3629, %v3628
        %v3649 = vpack.c.b16 %v3631, %v3630
        %v3650 = vpack.c.b16 %v3633, %v3632
        %v3651 = vpack.c.b16 %v3635, %v3634
        %v3652 = vpack.c.b16 %v3637, %v3636
        %v3653 = vpack.c.b16 %v3639, %v3638
        %v3654 = vpack.c.b16 %v3641, %v3640
        %v3655 = vpack.c.b16 %v3643, %v3642
        %v3669 = vsel %vm2537, %v3593, 0
        %3671 = vmatpush.bf16.msra.mxu0 %v3651
        %3672 = vmatpush.bf16.msra.mxu0 %v3650
        %3673 = vmatpush.bf16.msra.mxu0 %v3649
        %3674 = vmatpush.bf16.msra.mxu0 %v3648
        %3675 = vmatpush.bf16.msra.mxu0 %v3647
        %3676 = vmatpush.bf16.msra.mxu0 %v3646
        %3677 = vmatpush.bf16.msra.mxu0 %v3645
        %3678 = vmatpush.bf16.msra.mxu0 %v3644
        %3679 = vmatmul.bf16.gmra.mxu0 %v3592
        %v3680 = vpop.f32.mrf.mxu0
        %v3681 = vadd.f32 %v3595, %v3680
        %v3682 = vpop.f32.mrf.mxu0
        %v3683 = vadd.f32 %v3595, %v3682
        %3684 = vdwg.mxu0
        %3685 = vmatpush.bf16.msra.mxu0 0
        %3686 = vmatpush.bf16.msra.mxu0 0
        %3687 = vmatpush.bf16.msra.mxu0 0
        %3688 = vmatpush.bf16.msra.mxu0 0
        %3689 = vmatpush.bf16.msra.mxu0 %v3655
        %3690 = vmatpush.bf16.msra.mxu0 %v3654
        %3691 = vmatpush.bf16.msra.mxu0 %v3653
        %3692 = vmatpush.bf16.msra.mxu0 %v3652
        %3693 = vmatmul.bf16.gmra.mxu0 %v3669
        %v3694 = vpop.f32.mrf.mxu0
        %v3695 = vadd.f32 %v3681, %v3694
        %v3696 = vpop.f32.mrf.mxu0
        %v3697 = vadd.f32 %v3683, %v3696
        %3698 = vdwg.mxu0
        %v3699 = vadd.f32 %v3695, %v3697
        %v3700 = vrot.slane %v3699, 4
        %v3701 = vadd.f32 %v3699, %v3700
        %v3702 = vrot.slane %v3701, 2
        %v3703 = vadd.f32 %v3701, %v3702
        %v3704 = vrot.slane %v3703, 1
        %v3705 = vadd.f32 %v3703, %v3704
        %3706 = vmatpush.msra.mxu0 %v1730
        %3707 = vmatpush.msra.mxu0 %v1729
        %3708 = vmatpush.msra.mxu0 %v1728
        %3709 = vmatpush.msra.mxu0 %v1727
        %3710 = vmatpush.msra.mxu0 %v1726
        %3711 = vmatpush.msra.mxu0 %v1725
        %3712 = vmatpush.msra.mxu0 %v1724
        %3713 = vmatpush.msra.mxu0 %v1723
        %3714 = vmatpush.msra.mxu0 %v1722
        %3715 = vmatpush.msra.mxu0 %v1721
        %3716 = vmatpush.msra.mxu0 %v1720
        %3717 = vmatpush.msra.mxu0 %v1719
        %3718 = vmatpush.msra.mxu0 %v1718
        %3719 = vmatpush.msra.mxu0 %v1717
        %3720 = vmatpush.msra.mxu0 %v1716
        %3721 = vmatpush.msra.mxu0 %v1715
        %3722 = vmatmul.f32.gmra.mxu0 %v3705
        %v3723 = vpop.f32.mrf.mxu0
        %v3724 = vadd.f32 0.0, %v3723
        %3725 = vdwg.mxu0
        %v3726 = vmul.f32 %v3724, 0.00390625
        %v3728 = vsel %vm2323, %v3726, 0
        %3730 = vmatpush.msra.mxu0 0.0
        %3731 = vmatpush.msra.mxu0 0.0
        %3732 = vmatpush.msra.mxu0 0.0
        %3733 = vmatpush.msra.mxu0 0.0
        %3734 = vmatpush.msra.mxu0 0.0
        %3735 = vmatpush.msra.mxu0 0.0
        %3736 = vmatpush.msra.mxu0 0.0
        %3737 = vmatpush.msra.mxu0 0.0
        %3738 = vmatpush.msra.mxu0 0.0
        %3739 = vmatpush.msra.mxu0 0.0
        %3740 = vmatpush.msra.mxu0 0.0
        %3741 = vmatpush.msra.mxu0 0.0
        %3742 = vmatpush.msra.mxu0 0.0
        %3743 = vmatpush.msra.mxu0 0.0
        %3744 = vmatpush.msra.mxu0 0.0
        %3745 = vmatpush.msra.mxu0 %v1731
        %3746 = vmatmul.f32.gmra.mxu0 %v3728
        %v3747 = vpop.f32.mrf.mxu0
        %v3748 = vadd.f32 0.0, %v3747
        %3749 = vdwg.mxu0
        %v3750 = vperm.slane %v3748, 0
        %v3751 = vsub.f32 %v3695, %v3750
        %v3752 = vsub.f32 %v3697, %v3750
        %v3753 = vmul.f32 %v3751, %v3751
        %v3754 = vmul.f32 %v3752, %v3752
        %v3755 = vadd.f32 %v3753, %v3754
        %v3756 = vrot.slane %v3755, 4
        %v3757 = vadd.f32 %v3755, %v3756
        %v3758 = vrot.slane %v3757, 2
        %v3759 = vadd.f32 %v3757, %v3758
        %v3760 = vrot.slane %v3759, 1
        %v3761 = vadd.f32 %v3759, %v3760
        %3762 = vmatpush.msra.mxu0 %v1730
        %3763 = vmatpush.msra.mxu0 %v1729
        %3764 = vmatpush.msra.mxu0 %v1728
        %3765 = vmatpush.msra.mxu0 %v1727
        %3766 = vmatpush.msra.mxu0 %v1726
        %3767 = vmatpush.msra.mxu0 %v1725
        %3768 = vmatpush.msra.mxu0 %v1724
        %3769 = vmatpush.msra.mxu0 %v1723
        %3770 = vmatpush.msra.mxu0 %v1722
        %3771 = vmatpush.msra.mxu0 %v1721
        %3772 = vmatpush.msra.mxu0 %v1720
        %3773 = vmatpush.msra.mxu0 %v1719
        %3774 = vmatpush.msra.mxu0 %v1718
        %3775 = vmatpush.msra.mxu0 %v1717
        %3776 = vmatpush.msra.mxu0 %v1716
        %3777 = vmatpush.msra.mxu0 %v1715
        %3778 = vmatmul.f32.gmra.mxu0 %v3761
        %v3779 = vpop.f32.mrf.mxu0
        %v3780 = vadd.f32 0.0, %v3779
        %3781 = vdwg.mxu0
        %v3782 = vmul.f32 %v3780, 0.00390625
        %v3783 = vadd.f32 %v3782, 1e-05
        %v3784 = vrsqrt.pop %v3783
        %v3785 = vmul.f32 %v3784, %v3783
        %v3786 = vmul.f32 %v3785, %v3784
        %v3787 = vmul.f32 0.5, %v3786
        %v3788 = vsub.f32 1.5, %v3787
        %v3789 = vmul.f32 %v3784, %v3788
        %vm3790 = vweird.f32 %v3783
        %vm3791 = vweird.f32 %v3784
        %vm3792 = vmor %vm3790, %vm3791
        %v3793 = vsel %vm3792, %v3784, %v3789
        %v3795 = vsel %vm2323, %v3793, 0
        %3797 = vmatpush.msra.mxu0 0.0
        %3798 = vmatpush.msra.mxu0 0.0
        %3799 = vmatpush.msra.mxu0 0.0
        %3800 = vmatpush.msra.mxu0 0.0
        %3801 = vmatpush.msra.mxu0 0.0
        %3802 = vmatpush.msra.mxu0 0.0
        %3803 = vmatpush.msra.mxu0 0.0
        %3804 = vmatpush.msra.mxu0 0.0
        %3805 = vmatpush.msra.mxu0 0.0
        %3806 = vmatpush.msra.mxu0 0.0
        %3807 = vmatpush.msra.mxu0 0.0
        %3808 = vmatpush.msra.mxu0 0.0
        %3809 = vmatpush.msra.mxu0 0.0
        %3810 = vmatpush.msra.mxu0 0.0
        %3811 = vmatpush.msra.mxu0 0.0
        %3812 = vmatpush.msra.mxu0 %v1731
        %3813 = vmatmul.f32.gmra.mxu0 %v3795
        %v3814 = vpop.f32.mrf.mxu0
        %v3815 = vadd.f32 0.0, %v3814
        %3816 = vdwg.mxu0
        %v3818 = vrot.slane %v3815, 7
        %v3820 = vmul.f32 %v3594, %v3818
        %v3821 = vperm.slane %v3820, 1
        %v3822 = vmul.f32 %v3751, %v3821
        %v3823 = vmul.f32 %v3752, %v3821
        %v3824 = vperm.slane %v3594, 2
        %v3825 = vadd.f32 %v3822, %v3824
        %v3826 = vadd.f32 %v3823, %v3824
        %v3827 = vmul.f32 %v3825, 0.5
        %v3828 = vmul.f32 %v3826, 0.5
        %v3829 = vmul.f32 %v3825, 0.044715
        %v3830 = vmul.f32 %v3826, 0.044715
        %v3831 = vmul.f32 %v3829, %v3825
        %v3832 = vmul.f32 %v3830, %v3826
        %v3833 = vmul.f32 %v3831, %v3825
        %v3834 = vmul.f32 %v3832, %v3826
        %v3835 = vadd.f32 %v3825, %v3833
        %v3836 = vadd.f32 %v3826, %v3834
        %v3837 = vmul.f32 %v3835, 0.7978846
        %v3838 = vmul.f32 %v3836, 0.7978846
        %v3839 = vtanh.pop %v3837
        %v3840 = vtanh.pop %v3838
        %v3841 = vadd.f32 %v3839, 1.0
        %v3842 = vadd.f32 %v3840, 1.0
        %v3843 = vmul.f32 %v3827, %v3841
        %v3844 = vmul.f32 %v3828, %v3842
        %v3845 = vrot.slane %v3843, 7
        %v3846 = vrot.slane %v3844, 7
        %v3847 = vsel %vm2182, %v3845, %v3846
        %v3848 = vsel %vm2182, %v3846, %v3845
        %v3849 = vsel %vm2174, 0.0, %v3848
        %v3850 = vsel %vm2175, 0.0, %v3847
        %v3851 = vrot.slane %v3843, 1
        %v3852 = vrot.slane %v3844, 1
        %v3853 = vsel %vm2199, %v3851, %v3852
        %v3854 = vsel %vm2199, %v3852, %v3851
        %v3855 = vsel %vm3550, 0.0, %v3853
        %v3856 = vsel %vm3551, 0.0, %v3854
        %v3857 = vld [vmem:[%s41] sm:$0xf]
        %v3858 = vld [vmem:[%s41 + $0x4] sm:$0xf]
        %v3859 = vld [vmem:[%s41 + $0x8] sm:$0xf]
        %v3860 = vld [vmem:[%s41 + $0xc] sm:$0xf]
        %v3861 = vld [vmem:[%s41 + $0x10] sm:$0xf]
        %v3862 = vld [vmem:[%s41 + $0x14] sm:$0xf]
        %v3863 = vld [vmem:[%s41 + $0x18] sm:$0xf]
        %v3864 = vld [vmem:[%s41 + $0x1c] sm:$0xf]
        %v3865 = vld [vmem:[%s41 + $0x20] sm:$0xf]
        %v3866 = vld [vmem:[%s41 + $0x24] sm:$0xf]
        %v3867 = vld [vmem:[%s41 + $0x28] sm:$0xf]
        %v3868 = vld [vmem:[%s41 + $0x2c] sm:$0xf]
        %v3869 = vld [vmem:[%s41 + $0x30] sm:$0xf]
        %v3870 = vld [vmem:[%s41 + $0x34] sm:$0xf]
        %v3871 = vld [vmem:[%s41 + $0x38] sm:$0xf]
        %v3872 = vld [vmem:[%s41 + $0x3c] sm:$0xf]
        %v3873 = vld [vmem:[%s41 + $0x40] sm:$0xf]
        %v3874 = vld [vmem:[%s41 + $0x44] sm:$0xf]
        %v3875 = vld [vmem:[%s41 + $0x48] sm:$0xf]
        %v3876 = vld [vmem:[%s41 + $0x4c] sm:$0xf]
        %v3877 = vld [vmem:[%s41 + $0x50] sm:$0xf]
        %v3878 = vld [vmem:[%s41 + $0x54] sm:$0xf]
        %v3879 = vld [vmem:[%s41 + $0x58] sm:$0xf]
        %v3880 = vld [vmem:[%s41 + $0x5c] sm:$0xf]
        %v3881 = vld [vmem:[%s41 + $0x60] sm:$0xf]
        %v3882 = vld [vmem:[%s41 + $0x64] sm:$0xf]
        %v3883 = vld [vmem:[%s41 + $0x68] sm:$0xf]
        %v3884 = vld [vmem:[%s41 + $0x6c] sm:$0xf]
        %v3885 = vld [vmem:[%s41 + $0x70] sm:$0xf]
        %v3886 = vld [vmem:[%s41 + $0x74] sm:$0xf]
        %v3887 = vld [vmem:[%s41 + $0x78] sm:$0xf]
        %v3888 = vld [vmem:[%s41 + $0x7c] sm:$0xf]
        %v3889 = vld [vmem:[%s41 + $0x80] sm:$0xf]
        %v3890 = vld [vmem:[%s41 + $0x84] sm:$0xf]
        %v3891 = vld [vmem:[%s41 + $0x88] sm:$0xf]
        %v3892 = vld [vmem:[%s41 + $0x8c] sm:$0xf]
        %v3893 = vld [vmem:[%s41 + $0x90] sm:$0xf]
        %v3894 = vld [vmem:[%s41 + $0x94] sm:$0xf]
        %v3895 = vld [vmem:[%s41 + $0x98] sm:$0xf]
        %v3896 = vld [vmem:[%s41 + $0x9c] sm:$0xf]
        %v3897 = vld [vmem:[%s41 + $0xa0] sm:$0xf]
        %v3898 = vld [vmem:[%s41 + $0xa4] sm:$0xf]
        %v3899 = vld [vmem:[%s41 + $0xa8] sm:$0xf]
        %v3900 = vld [vmem:[%s41 + $0xac] sm:$0xf]
        %v3901 = vld [vmem:[%s41 + $0xb0] sm:$0xf]
        %v3902 = vld [vmem:[%s41 + $0xb4] sm:$0xf]
        %v3903 = vld [vmem:[%s41 + $0xb8] sm:$0xf]
        %v3904 = vld [vmem:[%s41 + $0xbc] sm:$0xf]
        %v3905 = vpack.c.bf16 %v3850, %v3849
        %v3906 = vpack.c.bf16 %v3844, %v3843
        %v3907 = vpack.c.bf16 %v3856, %v3855
        %v3908 = vld [vmem:[%s43] sm:$0x7]
        %v3909 = vperm.slane %v3908, 0
        %v3958 = vunpack.c.l.b16 %v3857
        %v3959 = vunpack.c.l.b16 %v3858
        %v3960 = vunpack.c.l.b16 %v3859
        %v3961 = vunpack.c.l.b16 %v3860
        %v3962 = vunpack.c.l.b16 %v3861
        %v3963 = vunpack.c.l.b16 %v3862
        %v3964 = vunpack.c.l.b16 %v3863
        %v3965 = vunpack.c.l.b16 %v3864
        %v3966 = vunpack.c.l.b16 %v3865
        %v3967 = vunpack.c.l.b16 %v3866
        %v3968 = vunpack.c.l.b16 %v3867
        %v3969 = vunpack.c.l.b16 %v3868
        %v3970 = vunpack.c.l.b16 %v3869
        %v3971 = vunpack.c.l.b16 %v3870
        %v3972 = vunpack.c.l.b16 %v3871
        %v3973 = vunpack.c.l.b16 %v3872
        %v3974 = vunpack.c.l.b16 %v3873
        %v3975 = vunpack.c.l.b16 %v3874
        %v3976 = vunpack.c.l.b16 %v3875
        %v3977 = vunpack.c.l.b16 %v3876
        %v3978 = vunpack.c.l.b16 %v3877
        %v3979 = vunpack.c.l.b16 %v3878
        %v3980 = vunpack.c.l.b16 %v3879
        %v3981 = vunpack.c.l.b16 %v3880
        %v3982 = vunpack.c.l.b16 %v3881
        %v3983 = vunpack.c.l.b16 %v3882
        %v3984 = vunpack.c.l.b16 %v3883
        %v3985 = vunpack.c.l.b16 %v3884
        %v3986 = vunpack.c.l.b16 %v3885
        %v3987 = vunpack.c.l.b16 %v3886
        %v3988 = vunpack.c.l.b16 %v3887
        %v3989 = vunpack.c.l.b16 %v3888
        %v3990 = vunpack.c.l.b16 %v3889
        %v3991 = vunpack.c.l.b16 %v3890
        %v3992 = vunpack.c.l.b16 %v3891
        %v3993 = vunpack.c.l.b16 %v3892
        %v3994 = vunpack.c.l.b16 %v3893
        %v3995 = vunpack.c.l.b16 %v3894
        %v3996 = vunpack.c.l.b16 %v3895
        %v3997 = vunpack.c.l.b16 %v3896
        %v3998 = vunpack.c.l.b16 %v3897
        %v3999 = vunpack.c.l.b16 %v3898
        %v4000 = vunpack.c.l.b16 %v3899
        %v4001 = vunpack.c.l.b16 %v3900
        %v4002 = vunpack.c.l.b16 %v3901
        %v4003 = vunpack.c.l.b16 %v3902
        %v4004 = vunpack.c.l.b16 %v3903
        %v4005 = vunpack.c.l.b16 %v3904
        %v4006 = vpack.c.b16 %v3959, %v3958
        %v4007 = vpack.c.b16 %v3961, %v3960
        %v4008 = vpack.c.b16 %v3963, %v3962
        %v4009 = vpack.c.b16 %v3965, %v3964
        %v4010 = vpack.c.b16 %v3967, %v3966
        %v4011 = vpack.c.b16 %v3969, %v3968
        %v4012 = vpack.c.b16 %v3971, %v3970
        %v4013 = vpack.c.b16 %v3973, %v3972
        %v4014 = vpack.c.b16 %v3975, %v3974
        %v4015 = vpack.c.b16 %v3977, %v3976
        %v4016 = vpack.c.b16 %v3979, %v3978
        %v4017 = vpack.c.b16 %v3981, %v3980
        %v4018 = vpack.c.b16 %v3983, %v3982
        %v4019 = vpack.c.b16 %v3985, %v3984
        %v4020 = vpack.c.b16 %v3987, %v3986
        %v4021 = vpack.c.b16 %v3989, %v3988
        %v4022 = vpack.c.b16 %v3991, %v3990
        %v4023 = vpack.c.b16 %v3993, %v3992
        %v4024 = vpack.c.b16 %v3995, %v3994
        %v4025 = vpack.c.b16 %v3997, %v3996
        %v4026 = vpack.c.b16 %v3999, %v3998
        %v4027 = vpack.c.b16 %v4001, %v4000
        %v4028 = vpack.c.b16 %v4003, %v4002
        %v4029 = vpack.c.b16 %v4005, %v4004
        %4054 = vmatpush.bf16.msra.mxu0 %v4013
        %4055 = vmatpush.bf16.msra.mxu0 %v4012
        %4056 = vmatpush.bf16.msra.mxu0 %v4011
        %4057 = vmatpush.bf16.msra.mxu0 %v4010
        %4058 = vmatpush.bf16.msra.mxu0 %v4009
        %4059 = vmatpush.bf16.msra.mxu0 %v4008
        %4060 = vmatpush.bf16.msra.mxu0 %v4007
        %4061 = vmatpush.bf16.msra.mxu0 %v4006
        %4062 = vmatmul.bf16.gmra.mxu0 %v3905
        %v4063 = vpop.f32.mrf.mxu0
        %v4064 = vadd.f32 %v3909, %v4063
        %v4065 = vpop.f32.mrf.mxu0
        %v4066 = vadd.f32 %v3909, %v4065
        %4067 = vdwg.mxu0
        %4068 = vmatpush.bf16.msra.mxu0 %v4021
        %4069 = vmatpush.bf16.msra.mxu0 %v4020
        %4070 = vmatpush.bf16.msra.mxu0 %v4019
        %4071 = vmatpush.bf16.msra.mxu0 %v4018
        %4072 = vmatpush.bf16.msra.mxu0 %v4017
        %4073 = vmatpush.bf16.msra.mxu0 %v4016
        %4074 = vmatpush.bf16.msra.mxu0 %v4015
        %4075 = vmatpush.bf16.msra.mxu0 %v4014
        %4076 = vmatmul.bf16.gmra.mxu0 %v3906
        %v4077 = vpop.f32.mrf.mxu0
        %v4078 = vadd.f32 %v4064, %v4077
        %v4079 = vpop.f32.mrf.mxu0
        %v4080 = vadd.f32 %v4066, %v4079
        %4081 = vdwg.mxu0
        %4082 = vmatpush.bf16.msra.mxu0 %v4029
        %4083 = vmatpush.bf16.msra.mxu0 %v4028
        %4084 = vmatpush.bf16.msra.mxu0 %v4027
        %4085 = vmatpush.bf16.msra.mxu0 %v4026
        %4086 = vmatpush.bf16.msra.mxu0 %v4025
        %4087 = vmatpush.bf16.msra.mxu0 %v4024
        %4088 = vmatpush.bf16.msra.mxu0 %v4023
        %4089 = vmatpush.bf16.msra.mxu0 %v4022
        %4090 = vmatmul.bf16.gmra.mxu0 %v3907
        %v4091 = vpop.f32.mrf.mxu0
        %v4092 = vadd.f32 %v4078, %v4091
        %v4093 = vpop.f32.mrf.mxu0
        %v4094 = vadd.f32 %v4080, %v4093
        %4095 = vdwg.mxu0
        %v4096 = vadd.f32 %v4092, %v4094
        %v4097 = vrot.slane %v4096, 4
        %v4098 = vadd.f32 %v4096, %v4097
        %v4099 = vrot.slane %v4098, 2
        %v4100 = vadd.f32 %v4098, %v4099
        %v4101 = vrot.slane %v4100, 1
        %v4102 = vadd.f32 %v4100, %v4101
        %4103 = vmatpush.msra.mxu0 %v1730
        %4104 = vmatpush.msra.mxu0 %v1729
        %4105 = vmatpush.msra.mxu0 %v1728
        %4106 = vmatpush.msra.mxu0 %v1727
        %4107 = vmatpush.msra.mxu0 %v1726
        %4108 = vmatpush.msra.mxu0 %v1725
        %4109 = vmatpush.msra.mxu0 %v1724
        %4110 = vmatpush.msra.mxu0 %v1723
        %4111 = vmatpush.msra.mxu0 %v1722
        %4112 = vmatpush.msra.mxu0 %v1721
        %4113 = vmatpush.msra.mxu0 %v1720
        %4114 = vmatpush.msra.mxu0 %v1719
        %4115 = vmatpush.msra.mxu0 %v1718
        %4116 = vmatpush.msra.mxu0 %v1717
        %4117 = vmatpush.msra.mxu0 %v1716
        %4118 = vmatpush.msra.mxu0 %v1715
        %4119 = vmatmul.f32.gmra.mxu0 %v4102
        %v4120 = vpop.f32.mrf.mxu0
        %v4121 = vadd.f32 0.0, %v4120
        %4122 = vdwg.mxu0
        %v4123 = vmul.f32 %v4121, 0.00390625
        %v4125 = vsel %vm2323, %v4123, 0
        %4127 = vmatpush.msra.mxu0 0.0
        %4128 = vmatpush.msra.mxu0 0.0
        %4129 = vmatpush.msra.mxu0 0.0
        %4130 = vmatpush.msra.mxu0 0.0
        %4131 = vmatpush.msra.mxu0 0.0
        %4132 = vmatpush.msra.mxu0 0.0
        %4133 = vmatpush.msra.mxu0 0.0
        %4134 = vmatpush.msra.mxu0 0.0
        %4135 = vmatpush.msra.mxu0 0.0
        %4136 = vmatpush.msra.mxu0 0.0
        %4137 = vmatpush.msra.mxu0 0.0
        %4138 = vmatpush.msra.mxu0 0.0
        %4139 = vmatpush.msra.mxu0 0.0
        %4140 = vmatpush.msra.mxu0 0.0
        %4141 = vmatpush.msra.mxu0 0.0
        %4142 = vmatpush.msra.mxu0 %v1731
        %4143 = vmatmul.f32.gmra.mxu0 %v4125
        %v4144 = vpop.f32.mrf.mxu0
        %v4145 = vadd.f32 0.0, %v4144
        %4146 = vdwg.mxu0
        %v4147 = vperm.slane %v4145, 0
        %v4148 = vsub.f32 %v4092, %v4147
        %v4149 = vsub.f32 %v4094, %v4147
        %v4150 = vmul.f32 %v4148, %v4148
        %v4151 = vmul.f32 %v4149, %v4149
        %v4152 = vadd.f32 %v4150, %v4151
        %v4153 = vrot.slane %v4152, 4
        %v4154 = vadd.f32 %v4152, %v4153
        %v4155 = vrot.slane %v4154, 2
        %v4156 = vadd.f32 %v4154, %v4155
        %v4157 = vrot.slane %v4156, 1
        %v4158 = vadd.f32 %v4156, %v4157
        %4159 = vmatpush.msra.mxu0 %v1730
        %4160 = vmatpush.msra.mxu0 %v1729
        %4161 = vmatpush.msra.mxu0 %v1728
        %4162 = vmatpush.msra.mxu0 %v1727
        %4163 = vmatpush.msra.mxu0 %v1726
        %4164 = vmatpush.msra.mxu0 %v1725
        %4165 = vmatpush.msra.mxu0 %v1724
        %4166 = vmatpush.msra.mxu0 %v1723
        %4167 = vmatpush.msra.mxu0 %v1722
        %4168 = vmatpush.msra.mxu0 %v1721
        %4169 = vmatpush.msra.mxu0 %v1720
        %4170 = vmatpush.msra.mxu0 %v1719
        %4171 = vmatpush.msra.mxu0 %v1718
        %4172 = vmatpush.msra.mxu0 %v1717
        %4173 = vmatpush.msra.mxu0 %v1716
        %4174 = vmatpush.msra.mxu0 %v1715
        %4175 = vmatmul.f32.gmra.mxu0 %v4158
        %v4176 = vpop.f32.mrf.mxu0
        %v4177 = vadd.f32 0.0, %v4176
        %4178 = vdwg.mxu0
        %v4179 = vmul.f32 %v4177, 0.00390625
        %v4180 = vadd.f32 %v4179, 1e-05
        %v4181 = vrsqrt.pop %v4180
        %v4182 = vmul.f32 %v4181, %v4180
        %v4183 = vmul.f32 %v4182, %v4181
        %v4184 = vmul.f32 0.5, %v4183
        %v4185 = vsub.f32 1.5, %v4184
        %v4186 = vmul.f32 %v4181, %v4185
        %vm4187 = vweird.f32 %v4180
        %vm4188 = vweird.f32 %v4181
        %vm4189 = vmor %vm4187, %vm4188
        %v4190 = vsel %vm4189, %v4181, %v4186
        %v4192 = vsel %vm2323, %v4190, 0
        %4194 = vmatpush.msra.mxu0 0.0
        %4195 = vmatpush.msra.mxu0 0.0
        %4196 = vmatpush.msra.mxu0 0.0
        %4197 = vmatpush.msra.mxu0 0.0
        %4198 = vmatpush.msra.mxu0 0.0
        %4199 = vmatpush.msra.mxu0 0.0
        %4200 = vmatpush.msra.mxu0 0.0
        %4201 = vmatpush.msra.mxu0 0.0
        %4202 = vmatpush.msra.mxu0 0.0
        %4203 = vmatpush.msra.mxu0 0.0
        %4204 = vmatpush.msra.mxu0 0.0
        %4205 = vmatpush.msra.mxu0 0.0
        %4206 = vmatpush.msra.mxu0 0.0
        %4207 = vmatpush.msra.mxu0 0.0
        %4208 = vmatpush.msra.mxu0 0.0
        %4209 = vmatpush.msra.mxu0 %v1731
        %4210 = vmatmul.f32.gmra.mxu0 %v4192
        %v4211 = vpop.f32.mrf.mxu0
        %v4212 = vadd.f32 0.0, %v4211
        %4213 = vdwg.mxu0
        %v4215 = vrot.slane %v4212, 7
        %v4217 = vmul.f32 %v3908, %v4215
        %v4218 = vperm.slane %v4217, 1
        %v4219 = vmul.f32 %v4148, %v4218
        %v4220 = vmul.f32 %v4149, %v4218
        %v4221 = vperm.slane %v3908, 2
        %v4222 = vadd.f32 %v4219, %v4221
        %v4223 = vadd.f32 %v4220, %v4221
        %v4224 = vmul.f32 %v4222, 0.5
        %v4225 = vmul.f32 %v4223, 0.5
        %v4226 = vmul.f32 %v4222, 0.044715
        %v4227 = vmul.f32 %v4223, 0.044715
        %v4228 = vmul.f32 %v4226, %v4222
        %v4229 = vmul.f32 %v4227, %v4223
        %v4230 = vmul.f32 %v4228, %v4222
        %v4231 = vmul.f32 %v4229, %v4223
        %v4232 = vadd.f32 %v4222, %v4230
        %v4233 = vadd.f32 %v4223, %v4231
        %v4234 = vmul.f32 %v4232, 0.7978846
        %v4235 = vmul.f32 %v4233, 0.7978846
        %v4236 = vtanh.pop %v4234
        %v4237 = vtanh.pop %v4235
        %v4238 = vadd.f32 %v4236, 1.0
        %v4239 = vadd.f32 %v4237, 1.0
        %v4240 = vmul.f32 %v4224, %v4238
        %v4241 = vmul.f32 %v4225, %v4239
        %v4242 = vperm.slane %v2011, 0
        %v4243 = vadd.f32 %v4240, %v4242
        %v4244 = vadd.f32 %v4241, %v4242
        %4245 = vst [vmem:[#allocation2] sm:$0xff] %v4243
        %4246 = vst [vmem:[#allocation2 + $0x8] sm:$0xff] %v4244
        %v4247 = vld [vmem:[#allocation2] ss:$2 sm:$0xff]
        %v4248 = vld [vmem:[%s3538] ss:$2 sm:$0xff]
        %v4249 = vmax.f32 %v4247, %v4248
        %v4250 = vrot.slane %v4249, 7
        %v4251 = vsel %vm2174, 0.0, %v4250
        %vm4252 = vcmp.eq.s32.totalorder %v2170, 7
        %v4253 = vrot.slane %v4249, 1
        %v4254 = vsel %vm4252, 0.0, %v4253
        %v4255 = vld [vmem:[%s45] sm:$0xff]
        %v4256 = vld [vmem:[%s45 + $0x8] sm:$0xff]
        %v4257 = vld [vmem:[%s45 + $0x10] sm:$0xff]
        %v4258 = vld [vmem:[%s45 + $0x18] sm:$0xff]
        %v4259 = vld [vmem:[%s45 + $0x20] sm:$0xff]
        %v4260 = vld [vmem:[%s45 + $0x28] sm:$0xff]
        %v4261 = vld [vmem:[%s45 + $0x30] sm:$0xff]
        %v4262 = vld [vmem:[%s45 + $0x38] sm:$0xff]
        %v4263 = vld [vmem:[%s45 + $0x40] sm:$0xff]
        %v4264 = vld [vmem:[%s45 + $0x48] sm:$0xff]
        %v4265 = vld [vmem:[%s45 + $0x50] sm:$0xff]
        %v4266 = vld [vmem:[%s45 + $0x58] sm:$0xff]
        %v4267 = vld [vmem:[%s45 + $0x60] sm:$0xff]
        %v4268 = vld [vmem:[%s45 + $0x68] sm:$0xff]
        %v4269 = vld [vmem:[%s45 + $0x70] sm:$0xff]
        %v4270 = vld [vmem:[%s45 + $0x78] sm:$0xff]
        %v4271 = vld [vmem:[%s45 + $0x80] sm:$0xff]
        %v4272 = vld [vmem:[%s45 + $0x88] sm:$0xff]
        %v4273 = vld [vmem:[%s45 + $0x90] sm:$0xff]
        %v4274 = vld [vmem:[%s45 + $0x98] sm:$0xff]
        %v4275 = vld [vmem:[%s45 + $0xa0] sm:$0xff]
        %v4276 = vld [vmem:[%s45 + $0xa8] sm:$0xff]
        %v4277 = vld [vmem:[%s45 + $0xb0] sm:$0xff]
        %v4278 = vld [vmem:[%s45 + $0xb8] sm:$0xff]
        %v4279 = vld [vmem:[%s45 + $0xc0] sm:$0xff]
        %v4280 = vld [vmem:[%s45 + $0xc8] sm:$0xff]
        %v4281 = vld [vmem:[%s45 + $0xd0] sm:$0xff]
        %v4282 = vld [vmem:[%s45 + $0xd8] sm:$0xff]
        %v4283 = vld [vmem:[%s45 + $0xe0] sm:$0xff]
        %v4284 = vld [vmem:[%s45 + $0xe8] sm:$0xff]
        %v4285 = vld [vmem:[%s45 + $0xf0] sm:$0xff]
        %v4286 = vld [vmem:[%s45 + $0xf8] sm:$0xff]
        %v4287 = vld [vmem:[%s45 + $0x100] sm:$0xff]
        %v4288 = vld [vmem:[%s45 + $0x108] sm:$0xff]
        %v4289 = vld [vmem:[%s45 + $0x110] sm:$0xff]
        %v4290 = vld [vmem:[%s45 + $0x118] sm:$0xff]
        %v4291 = vld [vmem:[%s45 + $0x120] sm:$0xff]
        %v4292 = vld [vmem:[%s45 + $0x128] sm:$0xff]
        %v4293 = vld [vmem:[%s45 + $0x130] sm:$0xff]
        %v4294 = vld [vmem:[%s45 + $0x138] sm:$0xff]
        %v4295 = vld [vmem:[%s45 + $0x140] sm:$0xff]
        %v4296 = vld [vmem:[%s45 + $0x148] sm:$0xff]
        %v4297 = vld [vmem:[%s45 + $0x150] sm:$0xff]
        %v4298 = vld [vmem:[%s45 + $0x158] sm:$0xff]
        %v4299 = vld [vmem:[%s45 + $0x160] sm:$0xff]
        %v4300 = vld [vmem:[%s45 + $0x168] sm:$0xff]
        %v4301 = vld [vmem:[%s45 + $0x170] sm:$0xff]
        %v4302 = vld [vmem:[%s45 + $0x178] sm:$0xff]
        %v4303 = vpack.c.bf16 %v4251, %v4251
        %v4304 = vpack.c.bf16 %v4249, %v4249
        %v4305 = vpack.c.bf16 %v4254, %v4254
        %v4306 = vld [vmem:[%s47] sm:$0x77]
        %v4308 = vperm.slane %v4306, 0
        %v4309 = vperm.slane %v4306, 4
        %v4312 = vperm.slane %v4308, 0
        %v4313 = vperm.slane %v4309, 0
        %v4362 = vunpack.c.l.b16 %v4255
        %v4363 = vunpack.c.h.b16 %v4255
        %v4364 = vunpack.c.l.b16 %v4256
        %v4365 = vunpack.c.h.b16 %v4256
        %v4366 = vunpack.c.l.b16 %v4257
        %v4367 = vunpack.c.h.b16 %v4257
        %v4368 = vunpack.c.l.b16 %v4258
        %v4369 = vunpack.c.h.b16 %v4258
        %v4370 = vunpack.c.l.b16 %v4259
        %v4371 = vunpack.c.h.b16 %v4259
        %v4372 = vunpack.c.l.b16 %v4260
        %v4373 = vunpack.c.h.b16 %v4260
        %v4374 = vunpack.c.l.b16 %v4261
        %v4375 = vunpack.c.h.b16 %v4261
        %v4376 = vunpack.c.l.b16 %v4262
        %v4377 = vunpack.c.h.b16 %v4262
        %v4378 = vunpack.c.l.b16 %v4263
        %v4379 = vunpack.c.h.b16 %v4263
        %v4380 = vunpack.c.l.b16 %v4264
        %v4381 = vunpack.c.h.b16 %v4264
        %v4382 = vunpack.c.l.b16 %v4265
        %v4383 = vunpack.c.h.b16 %v4265
        %v4384 = vunpack.c.l.b16 %v4266
        %v4385 = vunpack.c.h.b16 %v4266
        %v4386 = vunpack.c.l.b16 %v4267
        %v4387 = vunpack.c.h.b16 %v4267
        %v4388 = vunpack.c.l.b16 %v4268
        %v4389 = vunpack.c.h.b16 %v4268
        %v4390 = vunpack.c.l.b16 %v4269
        %v4391 = vunpack.c.h.b16 %v4269
        %v4392 = vunpack.c.l.b16 %v4270
        %v4393 = vunpack.c.h.b16 %v4270
        %v4394 = vunpack.c.l.b16 %v4271
        %v4395 = vunpack.c.h.b16 %v4271
        %v4396 = vunpack.c.l.b16 %v4272
        %v4397 = vunpack.c.h.b16 %v4272
        %v4398 = vunpack.c.l.b16 %v4273
        %v4399 = vunpack.c.h.b16 %v4273
        %v4400 = vunpack.c.l.b16 %v4274
        %v4401 = vunpack.c.h.b16 %v4274
        %v4402 = vunpack.c.l.b16 %v4275
        %v4403 = vunpack.c.h.b16 %v4275
        %v4404 = vunpack.c.l.b16 %v4276
        %v4405 = vunpack.c.h.b16 %v4276
        %v4406 = vunpack.c.l.b16 %v4277
        %v4407 = vunpack.c.h.b16 %v4277
        %v4408 = vunpack.c.l.b16 %v4278
        %v4409 = vunpack.c.h.b16 %v4278
        %v4410 = vunpack.c.l.b16 %v4279
        %v4411 = vunpack.c.h.b16 %v4279
        %v4412 = vunpack.c.l.b16 %v4280
        %v4413 = vunpack.c.h.b16 %v4280
        %v4414 = vunpack.c.l.b16 %v4281
        %v4415 = vunpack.c.h.b16 %v4281
        %v4416 = vunpack.c.l.b16 %v4282
        %v4417 = vunpack.c.h.b16 %v4282
        %v4418 = vunpack.c.l.b16 %v4283
        %v4419 = vunpack.c.h.b16 %v4283
        %v4420 = vunpack.c.l.b16 %v4284
        %v4421 = vunpack.c.h.b16 %v4284
        %v4422 = vunpack.c.l.b16 %v4285
        %v4423 = vunpack.c.h.b16 %v4285
        %v4424 = vunpack.c.l.b16 %v4286
        %v4425 = vunpack.c.h.b16 %v4286
        %v4426 = vunpack.c.l.b16 %v4287
        %v4427 = vunpack.c.h.b16 %v4287
        %v4428 = vunpack.c.l.b16 %v4288
        %v4429 = vunpack.c.h.b16 %v4288
        %v4430 = vunpack.c.l.b16 %v4289
        %v4431 = vunpack.c.h.b16 %v4289
        %v4432 = vunpack.c.l.b16 %v4290
        %v4433 = vunpack.c.h.b16 %v4290
        %v4434 = vunpack.c.l.b16 %v4291
        %v4435 = vunpack.c.h.b16 %v4291
        %v4436 = vunpack.c.l.b16 %v4292
        %v4437 = vunpack.c.h.b16 %v4292
        %v4438 = vunpack.c.l.b16 %v4293
        %v4439 = vunpack.c.h.b16 %v4293
        %v4440 = vunpack.c.l.b16 %v4294
        %v4441 = vunpack.c.h.b16 %v4294
        %v4442 = vunpack.c.l.b16 %v4295
        %v4443 = vunpack.c.h.b16 %v4295
        %v4444 = vunpack.c.l.b16 %v4296
        %v4445 = vunpack.c.h.b16 %v4296
        %v4446 = vunpack.c.l.b16 %v4297
        %v4447 = vunpack.c.h.b16 %v4297
        %v4448 = vunpack.c.l.b16 %v4298
        %v4449 = vunpack.c.h.b16 %v4298
        %v4450 = vunpack.c.l.b16 %v4299
        %v4451 = vunpack.c.h.b16 %v4299
        %v4452 = vunpack.c.l.b16 %v4300
        %v4453 = vunpack.c.h.b16 %v4300
        %v4454 = vunpack.c.l.b16 %v4301
        %v4455 = vunpack.c.h.b16 %v4301
        %v4456 = vunpack.c.l.b16 %v4302
        %v4457 = vunpack.c.h.b16 %v4302
        %v4458 = vpack.c.b16 %v4364, %v4362
        %v4459 = vpack.c.b16 %v4365, %v4363
        %v4460 = vpack.c.b16 %v4368, %v4366
        %v4461 = vpack.c.b16 %v4369, %v4367
        %v4462 = vpack.c.b16 %v4372, %v4370
        %v4463 = vpack.c.b16 %v4373, %v4371
        %v4464 = vpack.c.b16 %v4376, %v4374
        %v4465 = vpack.c.b16 %v4377, %v4375
        %v4466 = vpack.c.b16 %v4380, %v4378
        %v4467 = vpack.c.b16 %v4381, %v4379
        %v4468 = vpack.c.b16 %v4384, %v4382
        %v4469 = vpack.c.b16 %v4385, %v4383
        %v4470 = vpack.c.b16 %v4388, %v4386
        %v4471 = vpack.c.b16 %v4389, %v4387
        %v4472 = vpack.c.b16 %v4392, %v4390
        %v4473 = vpack.c.b16 %v4393, %v4391
        %v4474 = vpack.c.b16 %v4396, %v4394
        %v4475 = vpack.c.b16 %v4397, %v4395
        %v4476 = vpack.c.b16 %v4400, %v4398
        %v4477 = vpack.c.b16 %v4401, %v4399
        %v4478 = vpack.c.b16 %v4404, %v4402
        %v4479 = vpack.c.b16 %v4405, %v4403
        %v4480 = vpack.c.b16 %v4408, %v4406
        %v4481 = vpack.c.b16 %v4409, %v4407
        %v4482 = vpack.c.b16 %v4412, %v4410
        %v4483 = vpack.c.b16 %v4413, %v4411
        %v4484 = vpack.c.b16 %v4416, %v4414
        %v4485 = vpack.c.b16 %v4417, %v4415
        %v4486 = vpack.c.b16 %v4420, %v4418
        %v4487 = vpack.c.b16 %v4421, %v4419
        %v4488 = vpack.c.b16 %v4424, %v4422
        %v4489 = vpack.c.b16 %v4425, %v4423
        %v4490 = vpack.c.b16 %v4428, %v4426
        %v4491 = vpack.c.b16 %v4429, %v4427
        %v4492 = vpack.c.b16 %v4432, %v4430
        %v4493 = vpack.c.b16 %v4433, %v4431
        %v4494 = vpack.c.b16 %v4436, %v4434
        %v4495 = vpack.c.b16 %v4437, %v4435
        %v4496 = vpack.c.b16 %v4440, %v4438
        %v4497 = vpack.c.b16 %v4441, %v4439
        %v4498 = vpack.c.b16 %v4444, %v4442
        %v4499 = vpack.c.b16 %v4445, %v4443
        %v4500 = vpack.c.b16 %v4448, %v4446
        %v4501 = vpack.c.b16 %v4449, %v4447
        %v4502 = vpack.c.b16 %v4452, %v4450
        %v4503 = vpack.c.b16 %v4453, %v4451
        %v4504 = vpack.c.b16 %v4456, %v4454
        %v4505 = vpack.c.b16 %v4457, %v4455
        %4554 = vmatpush.bf16.msra.mxu0 %v4472
        %4555 = vmatpush.bf16.msra.mxu0 %v4470
        %4556 = vmatpush.bf16.msra.mxu0 %v4468
        %4557 = vmatpush.bf16.msra.mxu0 %v4466
        %4558 = vmatpush.bf16.msra.mxu0 %v4464
        %4559 = vmatpush.bf16.msra.mxu0 %v4462
        %4560 = vmatpush.bf16.msra.mxu0 %v4460
        %4561 = vmatpush.bf16.msra.mxu0 %v4458
        %4562 = vmatmul.bf16.gmra.mxu0 %v4303
        %v4563 = vpop.f32.mrf.mxu0
        %v4564 = vadd.f32 %v4312, %v4563
        %v4565 = vpop.f32.mrf.mxu0
        %4566 = vdwg.mxu0
        %4567 = vmatpush.bf16.msra.mxu0 %v4488
        %4568 = vmatpush.bf16.msra.mxu0 %v4486
        %4569 = vmatpush.bf16.msra.mxu0 %v4484
        %4570 = vmatpush.bf16.msra.mxu0 %v4482
        %4571 = vmatpush.bf16.msra.mxu0 %v4480
        %4572 = vmatpush.bf16.msra.mxu0 %v4478
        %4573 = vmatpush.bf16.msra.mxu0 %v4476
        %4574 = vmatpush.bf16.msra.mxu0 %v4474
        %4575 = vmatmul.bf16.gmra.mxu0 %v4304
        %v4576 = vpop.f32.mrf.mxu0
        %v4577 = vadd.f32 %v4564, %v4576
        %v4578 = vpop.f32.mrf.mxu0
        %4579 = vdwg.mxu0
        %4580 = vmatpush.bf16.msra.mxu0 %v4504
        %4581 = vmatpush.bf16.msra.mxu0 %v4502
        %4582 = vmatpush.bf16.msra.mxu0 %v4500
        %4583 = vmatpush.bf16.msra.mxu0 %v4498
        %4584 = vmatpush.bf16.msra.mxu0 %v4496
        %4585 = vmatpush.bf16.msra.mxu0 %v4494
        %4586 = vmatpush.bf16.msra.mxu0 %v4492
        %4587 = vmatpush.bf16.msra.mxu0 %v4490
        %4588 = vmatmul.bf16.gmra.mxu0 %v4305
        %v4589 = vpop.f32.mrf.mxu0
        %v4590 = vadd.f32 %v4577, %v4589
        %v4591 = vpop.f32.mrf.mxu0
        %4592 = vdwg.mxu0
        %4593 = vmatpush.bf16.msra.mxu0 %v4473
        %4594 = vmatpush.bf16.msra.mxu0 %v4471
        %4595 = vmatpush.bf16.msra.mxu0 %v4469
        %4596 = vmatpush.bf16.msra.mxu0 %v4467
        %4597 = vmatpush.bf16.msra.mxu0 %v4465
        %4598 = vmatpush.bf16.msra.mxu0 %v4463
        %4599 = vmatpush.bf16.msra.mxu0 %v4461
        %4600 = vmatpush.bf16.msra.mxu0 %v4459
        %4601 = vmatmul.bf16.gmra.mxu0 %v4303
        %v4602 = vpop.f32.mrf.mxu0
        %v4603 = vadd.f32 %v4313, %v4602
        %v4604 = vpop.f32.mrf.mxu0
        %4605 = vdwg.mxu0
        %4606 = vmatpush.bf16.msra.mxu0 %v4489
        %4607 = vmatpush.bf16.msra.mxu0 %v4487
        %4608 = vmatpush.bf16.msra.mxu0 %v4485
        %4609 = vmatpush.bf16.msra.mxu0 %v4483
        %4610 = vmatpush.bf16.msra.mxu0 %v4481
        %4611 = vmatpush.bf16.msra.mxu0 %v4479
        %4612 = vmatpush.bf16.msra.mxu0 %v4477
        %4613 = vmatpush.bf16.msra.mxu0 %v4475
        %4614 = vmatmul.bf16.gmra.mxu0 %v4304
        %v4615 = vpop.f32.mrf.mxu0
        %v4616 = vadd.f32 %v4603, %v4615
        %v4617 = vpop.f32.mrf.mxu0
        %4618 = vdwg.mxu0
        %4619 = vmatpush.bf16.msra.mxu0 %v4505
        %4620 = vmatpush.bf16.msra.mxu0 %v4503
        %4621 = vmatpush.bf16.msra.mxu0 %v4501
        %4622 = vmatpush.bf16.msra.mxu0 %v4499
        %4623 = vmatpush.bf16.msra.mxu0 %v4497
        %4624 = vmatpush.bf16.msra.mxu0 %v4495
        %4625 = vmatpush.bf16.msra.mxu0 %v4493
        %4626 = vmatpush.bf16.msra.mxu0 %v4491
        %4627 = vmatmul.bf16.gmra.mxu0 %v4305
        %v4628 = vpop.f32.mrf.mxu0
        %v4629 = vadd.f32 %v4616, %v4628
        %v4630 = vpop.f32.mrf.mxu0
        %4631 = vdwg.mxu0
        %v4632 = vrot.slane %v4590, 4
        %v4633 = vadd.f32 %v4590, %v4632
        %v4634 = vrot.slane %v4633, 2
        %v4635 = vadd.f32 %v4633, %v4634
        %v4636 = vrot.slane %v4635, 1
        %v4637 = vadd.f32 %v4635, %v4636
        %v4638 = vrot.slane %v4629, 4
        %v4639 = vadd.f32 %v4629, %v4638
        %v4640 = vrot.slane %v4639, 2
        %v4641 = vadd.f32 %v4639, %v4640
        %v4642 = vrot.slane %v4641, 1
        %v4643 = vadd.f32 %v4641, %v4642
        %v4644 = vadd.f32 %v4637, %v4643
        %4645 = vadd.xlane.f32.xlu0 %v4644
        %v4646 = vpop.xlane.xlu0 %4645
        %v4647 = vmul.f32 %v4646, 0.00048828125
        %v4648 = vsub.f32 %v4590, %v4647
        %v4649 = vsub.f32 %v4629, %v4647
        %v4650 = vmul.f32 %v4648, %v4648
        %v4651 = vmul.f32 %v4649, %v4649
        %v4652 = vrot.slane %v4650, 4
        %v4653 = vadd.f32 %v4650, %v4652
        %v4654 = vrot.slane %v4653, 2
        %v4655 = vadd.f32 %v4653, %v4654
        %v4656 = vrot.slane %v4655, 1
        %v4657 = vadd.f32 %v4655, %v4656
        %v4658 = vrot.slane %v4651, 4
        %v4659 = vadd.f32 %v4651, %v4658
        %v4660 = vrot.slane %v4659, 2
        %v4661 = vadd.f32 %v4659, %v4660
        %v4662 = vrot.slane %v4661, 1
        %v4663 = vadd.f32 %v4661, %v4662
        %v4664 = vadd.f32 %v4657, %v4663
        %4665 = vadd.xlane.f32.xlu0 %v4664
        %v4666 = vpop.xlane.xlu0 %4665
        %v4667 = vmul.f32 %v4666, 0.00048828125
        %v4668 = vadd.f32 %v4667, 1e-05
        %v4669 = vrsqrt.pop %v4668
        %v4670 = vmul.f32 %v4669, %v4668
        %v4671 = vmul.f32 %v4670, %v4669
        %v4672 = vmul.f32 0.5, %v4671
        %v4673 = vsub.f32 1.5, %v4672
        %v4674 = vmul.f32 %v4669, %v4673
        %vm4675 = vweird.f32 %v4668
        %vm4676 = vweird.f32 %v4669
        %vm4677 = vmor %vm4675, %vm4676
        %v4678 = vsel %vm4677, %v4669, %v4674
        %v4679 = vmul.f32 %v4306, %v4678
        %v4681 = vperm.slane %v4679, 1
        %v4682 = vperm.slane %v4679, 5
        %v4685 = vperm.slane %v4681, 1
        %v4686 = vperm.slane %v4682, 1
        %v4687 = vmul.f32 %v4648, %v4685
        %v4688 = vmul.f32 %v4649, %v4686
        %v4689 = vperm.slane %v4306, 2
        %v4690 = vperm.slane %v4306, 6
        %v4693 = vperm.slane %v4689, 2
        %v4694 = vperm.slane %v4690, 2
        %v4695 = vadd.f32 %v4687, %v4693
        %v4696 = vadd.f32 %v4688, %v4694
        %v4697 = vmul.f32 %v4695, 0.5
        %v4698 = vmul.f32 %v4696, 0.5
        %v4699 = vmul.f32 %v4695, 0.044715
        %v4700 = vmul.f32 %v4696, 0.044715
        %v4701 = vmul.f32 %v4699, %v4695
        %v4702 = vmul.f32 %v4700, %v4696
        %v4703 = vmul.f32 %v4701, %v4695
        %v4704 = vmul.f32 %v4702, %v4696
        %v4705 = vadd.f32 %v4695, %v4703
        %v4706 = vadd.f32 %v4696, %v4704
        %v4707 = vmul.f32 %v4705, 0.7978846
        %v4708 = vmul.f32 %v4706, 0.7978846
        %v4709 = vtanh.pop %v4707
        %v4710 = vtanh.pop %v4708
        %v4711 = vadd.f32 %v4709, 1.0
        %v4712 = vadd.f32 %v4710, 1.0
        %v4713 = vmul.f32 %v4697, %v4711
        %v4714 = vmul.f32 %v4698, %v4712
        %v4715 = vrot.slane %v4713, 7
        %v4716 = vrot.slane %v4714, 7
        %v4717 = vsel %vm2174, 0.0, %v4715
        %v4718 = vsel %vm2174, 0.0, %v4716
        %v4719 = vrot.slane %v4713, 1
        %v4720 = vrot.slane %v4714, 1
        %v4721 = vsel %vm4252, 0.0, %v4719
        %v4722 = vsel %vm4252, 0.0, %v4720
        %v4723 = vld [vmem:[%s49] sm:$0xff]
        %v4724 = vld [vmem:[%s49 + $0x8] sm:$0xff]
        %v4725 = vld [vmem:[%s49 + $0x10] sm:$0xff]
        %v4726 = vld [vmem:[%s49 + $0x18] sm:$0xff]
        %v4727 = vld [vmem:[%s49 + $0x20] sm:$0xff]
        %v4728 = vld [vmem:[%s49 + $0x28] sm:$0xff]
        %v4729 = vld [vmem:[%s49 + $0x30] sm:$0xff]
        %v4730 = vld [vmem:[%s49 + $0x38] sm:$0xff]
        %v4731 = vld [vmem:[%s49 + $0x40] sm:$0xff]
        %v4732 = vld [vmem:[%s49 + $0x48] sm:$0xff]
        %v4733 = vld [vmem:[%s49 + $0x50] sm:$0xff]
        %v4734 = vld [vmem:[%s49 + $0x58] sm:$0xff]
        %v4735 = vld [vmem:[%s49 + $0x60] sm:$0xff]
        %v4736 = vld [vmem:[%s49 + $0x68] sm:$0xff]
        %v4737 = vld [vmem:[%s49 + $0x70] sm:$0xff]
        %v4738 = vld [vmem:[%s49 + $0x78] sm:$0xff]
        %v4739 = vld [vmem:[%s49 + $0x80] sm:$0xff]
        %v4740 = vld [vmem:[%s49 + $0x88] sm:$0xff]
        %v4741 = vld [vmem:[%s49 + $0x90] sm:$0xff]
        %v4742 = vld [vmem:[%s49 + $0x98] sm:$0xff]
        %v4743 = vld [vmem:[%s49 + $0xa0] sm:$0xff]
        %v4744 = vld [vmem:[%s49 + $0xa8] sm:$0xff]
        %v4745 = vld [vmem:[%s49 + $0xb0] sm:$0xff]
        %v4746 = vld [vmem:[%s49 + $0xb8] sm:$0xff]
        %v4747 = vld [vmem:[%s49 + $0xc0] sm:$0xff]
        %v4748 = vld [vmem:[%s49 + $0xc8] sm:$0xff]
        %v4749 = vld [vmem:[%s49 + $0xd0] sm:$0xff]
        %v4750 = vld [vmem:[%s49 + $0xd8] sm:$0xff]
        %v4751 = vld [vmem:[%s49 + $0xe0] sm:$0xff]
        %v4752 = vld [vmem:[%s49 + $0xe8] sm:$0xff]
        %v4753 = vld [vmem:[%s49 + $0xf0] sm:$0xff]
        %v4754 = vld [vmem:[%s49 + $0xf8] sm:$0xff]
        %v4755 = vld [vmem:[%s49 + $0x100] sm:$0xff]
        %v4756 = vld [vmem:[%s49 + $0x108] sm:$0xff]
        %v4757 = vld [vmem:[%s49 + $0x110] sm:$0xff]
        %v4758 = vld [vmem:[%s49 + $0x118] sm:$0xff]
        %v4759 = vld [vmem:[%s49 + $0x120] sm:$0xff]
        %v4760 = vld [vmem:[%s49 + $0x128] sm:$0xff]
        %v4761 = vld [vmem:[%s49 + $0x130] sm:$0xff]
        %v4762 = vld [vmem:[%s49 + $0x138] sm:$0xff]
        %v4763 = vld [vmem:[%s49 + $0x140] sm:$0xff]
        %v4764 = vld [vmem:[%s49 + $0x148] sm:$0xff]
        %v4765 = vld [vmem:[%s49 + $0x150] sm:$0xff]
        %v4766 = vld [vmem:[%s49 + $0x158] sm:$0xff]
        %v4767 = vld [vmem:[%s49 + $0x160] sm:$0xff]
        %v4768 = vld [vmem:[%s49 + $0x168] sm:$0xff]
        %v4769 = vld [vmem:[%s49 + $0x170] sm:$0xff]
        %v4770 = vld [vmem:[%s49 + $0x178] sm:$0xff]
        %v4771 = vld [vmem:[%s49 + $0x180] sm:$0xff]
        %v4772 = vld [vmem:[%s49 + $0x188] sm:$0xff]
        %v4773 = vld [vmem:[%s49 + $0x190] sm:$0xff]
        %v4774 = vld [vmem:[%s49 + $0x198] sm:$0xff]
        %v4775 = vld [vmem:[%s49 + $0x1a0] sm:$0xff]
        %v4776 = vld [vmem:[%s49 + $0x1a8] sm:$0xff]
        %v4777 = vld [vmem:[%s49 + $0x1b0] sm:$0xff]
        %v4778 = vld [vmem:[%s49 + $0x1b8] sm:$0xff]
        %v4779 = vld [vmem:[%s49 + $0x1c0] sm:$0xff]
        %v4780 = vld [vmem:[%s49 + $0x1c8] sm:$0xff]
        %v4781 = vld [vmem:[%s49 + $0x1d0] sm:$0xff]
        %v4782 = vld [vmem:[%s49 + $0x1d8] sm:$0xff]
        %v4783 = vld [vmem:[%s49 + $0x1e0] sm:$0xff]
        %v4784 = vld [vmem:[%s49 + $0x1e8] sm:$0xff]
        %v4785 = vld [vmem:[%s49 + $0x1f0] sm:$0xff]
        %v4786 = vld [vmem:[%s49 + $0x1f8] sm:$0xff]
        %v4787 = vld [vmem:[%s49 + $0x200] sm:$0xff]
        %v4788 = vld [vmem:[%s49 + $0x208] sm:$0xff]
        %v4789 = vld [vmem:[%s49 + $0x210] sm:$0xff]
        %v4790 = vld [vmem:[%s49 + $0x218] sm:$0xff]
        %v4791 = vld [vmem:[%s49 + $0x220] sm:$0xff]
        %v4792 = vld [vmem:[%s49 + $0x228] sm:$0xff]
        %v4793 = vld [vmem:[%s49 + $0x230] sm:$0xff]
        %v4794 = vld [vmem:[%s49 + $0x238] sm:$0xff]
        %v4795 = vld [vmem:[%s49 + $0x240] sm:$0xff]
        %v4796 = vld [vmem:[%s49 + $0x248] sm:$0xff]
        %v4797 = vld [vmem:[%s49 + $0x250] sm:$0xff]
        %v4798 = vld [vmem:[%s49 + $0x258] sm:$0xff]
        %v4799 = vld [vmem:[%s49 + $0x260] sm:$0xff]
        %v4800 = vld [vmem:[%s49 + $0x268] sm:$0xff]
        %v4801 = vld [vmem:[%s49 + $0x270] sm:$0xff]
        %v4802 = vld [vmem:[%s49 + $0x278] sm:$0xff]
        %v4803 = vld [vmem:[%s49 + $0x280] sm:$0xff]
        %v4804 = vld [vmem:[%s49 + $0x288] sm:$0xff]
        %v4805 = vld [vmem:[%s49 + $0x290] sm:$0xff]
        %v4806 = vld [vmem:[%s49 + $0x298] sm:$0xff]
        %v4807 = vld [vmem:[%s49 + $0x2a0] sm:$0xff]
        %v4808 = vld [vmem:[%s49 + $0x2a8] sm:$0xff]
        %v4809 = vld [vmem:[%s49 + $0x2b0] sm:$0xff]
        %v4810 = vld [vmem:[%s49 + $0x2b8] sm:$0xff]
        %v4811 = vld [vmem:[%s49 + $0x2c0] sm:$0xff]
        %v4812 = vld [vmem:[%s49 + $0x2c8] sm:$0xff]
        %v4813 = vld [vmem:[%s49 + $0x2d0] sm:$0xff]
        %v4814 = vld [vmem:[%s49 + $0x2d8] sm:$0xff]
        %v4815 = vld [vmem:[%s49 + $0x2e0] sm:$0xff]
        %v4816 = vld [vmem:[%s49 + $0x2e8] sm:$0xff]
        %v4817 = vld [vmem:[%s49 + $0x2f0] sm:$0xff]
        %v4818 = vld [vmem:[%s49 + $0x2f8] sm:$0xff]
        %v4819 = vpack.c.bf16 %v4717, %v4717
        %v4820 = vpack.c.bf16 %v4718, %v4718
        %v4821 = vpack.c.bf16 %v4713, %v4713
        %v4822 = vpack.c.bf16 %v4714, %v4714
        %v4823 = vpack.c.bf16 %v4721, %v4721
        %v4824 = vpack.c.bf16 %v4722, %v4722
        %v4825 = vld [vmem:[%s51] sm:$0x77]
        %v4827 = vperm.slane %v4825, 0
        %v4828 = vperm.slane %v4825, 4
        %v4831 = vperm.slane %v4827, 0
        %v4832 = vperm.slane %v4828, 0
        %v4929 = vunpack.c.l.b16 %v4723
        %v4930 = vunpack.c.h.b16 %v4723
        %v4931 = vunpack.c.l.b16 %v4724
        %v4932 = vunpack.c.h.b16 %v4724
        %v4933 = vunpack.c.l.b16 %v4725
        %v4934 = vunpack.c.h.b16 %v4725
        %v4935 = vunpack.c.l.b16 %v4726
        %v4936 = vunpack.c.h.b16 %v4726
        %v4937 = vunpack.c.l.b16 %v4727
        %v4938 = vunpack.c.h.b16 %v4727
        %v4939 = vunpack.c.l.b16 %v4728
        %v4940 = vunpack.c.h.b16 %v4728
        %v4941 = vunpack.c.l.b16 %v4729
        %v4942 = vunpack.c.h.b16 %v4729
        %v4943 = vunpack.c.l.b16 %v4730
        %v4944 = vunpack.c.h.b16 %v4730
        %v4945 = vunpack.c.l.b16 %v4731
        %v4946 = vunpack.c.h.b16 %v4731
        %v4947 = vunpack.c.l.b16 %v4732
        %v4948 = vunpack.c.h.b16 %v4732
        %v4949 = vunpack.c.l.b16 %v4733
        %v4950 = vunpack.c.h.b16 %v4733
        %v4951 = vunpack.c.l.b16 %v4734
        %v4952 = vunpack.c.h.b16 %v4734
        %v4953 = vunpack.c.l.b16 %v4735
        %v4954 = vunpack.c.h.b16 %v4735
        %v4955 = vunpack.c.l.b16 %v4736
        %v4956 = vunpack.c.h.b16 %v4736
        %v4957 = vunpack.c.l.b16 %v4737
        %v4958 = vunpack.c.h.b16 %v4737
        %v4959 = vunpack.c.l.b16 %v4738
        %v4960 = vunpack.c.h.b16 %v4738
        %v4961 = vunpack.c.l.b16 %v4739
        %v4962 = vunpack.c.h.b16 %v4739
        %v4963 = vunpack.c.l.b16 %v4740
        %v4964 = vunpack.c.h.b16 %v4740
        %v4965 = vunpack.c.l.b16 %v4741
        %v4966 = vunpack.c.h.b16 %v4741
        %v4967 = vunpack.c.l.b16 %v4742
        %v4968 = vunpack.c.h.b16 %v4742
        %v4969 = vunpack.c.l.b16 %v4743
        %v4970 = vunpack.c.h.b16 %v4743
        %v4971 = vunpack.c.l.b16 %v4744
        %v4972 = vunpack.c.h.b16 %v4744
        %v4973 = vunpack.c.l.b16 %v4745
        %v4974 = vunpack.c.h.b16 %v4745
        %v4975 = vunpack.c.l.b16 %v4746
        %v4976 = vunpack.c.h.b16 %v4746
        %v4977 = vunpack.c.l.b16 %v4747
        %v4978 = vunpack.c.h.b16 %v4747
        %v4979 = vunpack.c.l.b16 %v4748
        %v4980 = vunpack.c.h.b16 %v4748
        %v4981 = vunpack.c.l.b16 %v4749
        %v4982 = vunpack.c.h.b16 %v4749
        %v4983 = vunpack.c.l.b16 %v4750
        %v4984 = vunpack.c.h.b16 %v4750
        %v4985 = vunpack.c.l.b16 %v4751
        %v4986 = vunpack.c.h.b16 %v4751
        %v4987 = vunpack.c.l.b16 %v4752
        %v4988 = vunpack.c.h.b16 %v4752
        %v4989 = vunpack.c.l.b16 %v4753
        %v4990 = vunpack.c.h.b16 %v4753
        %v4991 = vunpack.c.l.b16 %v4754
        %v4992 = vunpack.c.h.b16 %v4754
        %v4993 = vunpack.c.l.b16 %v4755
        %v4994 = vunpack.c.h.b16 %v4755
        %v4995 = vunpack.c.l.b16 %v4756
        %v4996 = vunpack.c.h.b16 %v4756
        %v4997 = vunpack.c.l.b16 %v4757
        %v4998 = vunpack.c.h.b16 %v4757
        %v4999 = vunpack.c.l.b16 %v4758
        %v5000 = vunpack.c.h.b16 %v4758
        %v5001 = vunpack.c.l.b16 %v4759
        %v5002 = vunpack.c.h.b16 %v4759
        %v5003 = vunpack.c.l.b16 %v4760
        %v5004 = vunpack.c.h.b16 %v4760
        %v5005 = vunpack.c.l.b16 %v4761
        %v5006 = vunpack.c.h.b16 %v4761
        %v5007 = vunpack.c.l.b16 %v4762
        %v5008 = vunpack.c.h.b16 %v4762
        %v5009 = vunpack.c.l.b16 %v4763
        %v5010 = vunpack.c.h.b16 %v4763
        %v5011 = vunpack.c.l.b16 %v4764
        %v5012 = vunpack.c.h.b16 %v4764
        %v5013 = vunpack.c.l.b16 %v4765
        %v5014 = vunpack.c.h.b16 %v4765
        %v5015 = vunpack.c.l.b16 %v4766
        %v5016 = vunpack.c.h.b16 %v4766
        %v5017 = vunpack.c.l.b16 %v4767
        %v5018 = vunpack.c.h.b16 %v4767
        %v5019 = vunpack.c.l.b16 %v4768
        %v5020 = vunpack.c.h.b16 %v4768
        %v5021 = vunpack.c.l.b16 %v4769
        %v5022 = vunpack.c.h.b16 %v4769
        %v5023 = vunpack.c.l.b16 %v4770
        %v5024 = vunpack.c.h.b16 %v4770
        %v5025 = vunpack.c.l.b16 %v4771
        %v5026 = vunpack.c.h.b16 %v4771
        %v5027 = vunpack.c.l.b16 %v4772
        %v5028 = vunpack.c.h.b16 %v4772
        %v5029 = vunpack.c.l.b16 %v4773
        %v5030 = vunpack.c.h.b16 %v4773
        %v5031 = vunpack.c.l.b16 %v4774
        %v5032 = vunpack.c.h.b16 %v4774
        %v5033 = vunpack.c.l.b16 %v4775
        %v5034 = vunpack.c.h.b16 %v4775
        %v5035 = vunpack.c.l.b16 %v4776
        %v5036 = vunpack.c.h.b16 %v4776
        %v5037 = vunpack.c.l.b16 %v4777
        %v5038 = vunpack.c.h.b16 %v4777
        %v5039 = vunpack.c.l.b16 %v4778
        %v5040 = vunpack.c.h.b16 %v4778
        %v5041 = vunpack.c.l.b16 %v4779
        %v5042 = vunpack.c.h.b16 %v4779
        %v5043 = vunpack.c.l.b16 %v4780
        %v5044 = vunpack.c.h.b16 %v4780
        %v5045 = vunpack.c.l.b16 %v4781
        %v5046 = vunpack.c.h.b16 %v4781
        %v5047 = vunpack.c.l.b16 %v4782
        %v5048 = vunpack.c.h.b16 %v4782
        %v5049 = vunpack.c.l.b16 %v4783
        %v5050 = vunpack.c.h.b16 %v4783
        %v5051 = vunpack.c.l.b16 %v4784
        %v5052 = vunpack.c.h.b16 %v4784
        %v5053 = vunpack.c.l.b16 %v4785
        %v5054 = vunpack.c.h.b16 %v4785
        %v5055 = vunpack.c.l.b16 %v4786
        %v5056 = vunpack.c.h.b16 %v4786
        %v5057 = vunpack.c.l.b16 %v4787
        %v5058 = vunpack.c.h.b16 %v4787
        %v5059 = vunpack.c.l.b16 %v4788
        %v5060 = vunpack.c.h.b16 %v4788
        %v5061 = vunpack.c.l.b16 %v4789
        %v5062 = vunpack.c.h.b16 %v4789
        %v5063 = vunpack.c.l.b16 %v4790
        %v5064 = vunpack.c.h.b16 %v4790
        %v5065 = vunpack.c.l.b16 %v4791
        %v5066 = vunpack.c.h.b16 %v4791
        %v5067 = vunpack.c.l.b16 %v4792
        %v5068 = vunpack.c.h.b16 %v4792
        %v5069 = vunpack.c.l.b16 %v4793
        %v5070 = vunpack.c.h.b16 %v4793
        %v5071 = vunpack.c.l.b16 %v4794
        %v5072 = vunpack.c.h.b16 %v4794
        %v5073 = vunpack.c.l.b16 %v4795
        %v5074 = vunpack.c.h.b16 %v4795
        %v5075 = vunpack.c.l.b16 %v4796
        %v5076 = vunpack.c.h.b16 %v4796
        %v5077 = vunpack.c.l.b16 %v4797
        %v5078 = vunpack.c.h.b16 %v4797
        %v5079 = vunpack.c.l.b16 %v4798
        %v5080 = vunpack.c.h.b16 %v4798
        %v5081 = vunpack.c.l.b16 %v4799
        %v5082 = vunpack.c.h.b16 %v4799
        %v5083 = vunpack.c.l.b16 %v4800
        %v5084 = vunpack.c.h.b16 %v4800
        %v5085 = vunpack.c.l.b16 %v4801
        %v5086 = vunpack.c.h.b16 %v4801
        %v5087 = vunpack.c.l.b16 %v4802
        %v5088 = vunpack.c.h.b16 %v4802
        %v5089 = vunpack.c.l.b16 %v4803
        %v5090 = vunpack.c.h.b16 %v4803
        %v5091 = vunpack.c.l.b16 %v4804
        %v5092 = vunpack.c.h.b16 %v4804
        %v5093 = vunpack.c.l.b16 %v4805
        %v5094 = vunpack.c.h.b16 %v4805
        %v5095 = vunpack.c.l.b16 %v4806
        %v5096 = vunpack.c.h.b16 %v4806
        %v5097 = vunpack.c.l.b16 %v4807
        %v5098 = vunpack.c.h.b16 %v4807
        %v5099 = vunpack.c.l.b16 %v4808
        %v5100 = vunpack.c.h.b16 %v4808
        %v5101 = vunpack.c.l.b16 %v4809
        %v5102 = vunpack.c.h.b16 %v4809
        %v5103 = vunpack.c.l.b16 %v4810
        %v5104 = vunpack.c.h.b16 %v4810
        %v5105 = vunpack.c.l.b16 %v4811
        %v5106 = vunpack.c.h.b16 %v4811
        %v5107 = vunpack.c.l.b16 %v4812
        %v5108 = vunpack.c.h.b16 %v4812
        %v5109 = vunpack.c.l.b16 %v4813
        %v5110 = vunpack.c.h.b16 %v4813
        %v5111 = vunpack.c.l.b16 %v4814
        %v5112 = vunpack.c.h.b16 %v4814
        %v5113 = vunpack.c.l.b16 %v4815
        %v5114 = vunpack.c.h.b16 %v4815
        %v5115 = vunpack.c.l.b16 %v4816
        %v5116 = vunpack.c.h.b16 %v4816
        %v5117 = vunpack.c.l.b16 %v4817
        %v5118 = vunpack.c.h.b16 %v4817
        %v5119 = vunpack.c.l.b16 %v4818
        %v5120 = vunpack.c.h.b16 %v4818
        %v5121 = vpack.c.b16 %v4931, %v4929
        %v5122 = vpack.c.b16 %v4932, %v4930
        %v5123 = vpack.c.b16 %v4935, %v4933
        %v5124 = vpack.c.b16 %v4936, %v4934
        %v5125 = vpack.c.b16 %v4939, %v4937
        %v5126 = vpack.c.b16 %v4940, %v4938
        %v5127 = vpack.c.b16 %v4943, %v4941
        %v5128 = vpack.c.b16 %v4944, %v4942
        %v5129 = vpack.c.b16 %v4947, %v4945
        %v5130 = vpack.c.b16 %v4948, %v4946
        %v5131 = vpack.c.b16 %v4951, %v4949
        %v5132 = vpack.c.b16 %v4952, %v4950
        %v5133 = vpack.c.b16 %v4955, %v4953
        %v5134 = vpack.c.b16 %v4956, %v4954
        %v5135 = vpack.c.b16 %v4959, %v4957
        %v5136 = vpack.c.b16 %v4960, %v4958
        %v5137 = vpack.c.b16 %v4963, %v4961
        %v5138 = vpack.c.b16 %v4964, %v4962
        %v5139 = vpack.c.b16 %v4967, %v4965
        %v5140 = vpack.c.b16 %v4968, %v4966
        %v5141 = vpack.c.b16 %v4971, %v4969
        %v5142 = vpack.c.b16 %v4972, %v4970
        %v5143 = vpack.c.b16 %v4975, %v4973
        %v5144 = vpack.c.b16 %v4976, %v4974
        %v5145 = vpack.c.b16 %v4979, %v4977
        %v5146 = vpack.c.b16 %v4980, %v4978
        %v5147 = vpack.c.b16 %v4983, %v4981
        %v5148 = vpack.c.b16 %v4984, %v4982
        %v5149 = vpack.c.b16 %v4987, %v4985
        %v5150 = vpack.c.b16 %v4988, %v4986
        %v5151 = vpack.c.b16 %v4991, %v4989
        %v5152 = vpack.c.b16 %v4992, %v4990
        %v5153 = vpack.c.b16 %v4995, %v4993
        %v5154 = vpack.c.b16 %v4996, %v4994
        %v5155 = vpack.c.b16 %v4999, %v4997
        %v5156 = vpack.c.b16 %v5000, %v4998
        %v5157 = vpack.c.b16 %v5003, %v5001
        %v5158 = vpack.c.b16 %v5004, %v5002
        %v5159 = vpack.c.b16 %v5007, %v5005
        %v5160 = vpack.c.b16 %v5008, %v5006
        %v5161 = vpack.c.b16 %v5011, %v5009
        %v5162 = vpack.c.b16 %v5012, %v5010
        %v5163 = vpack.c.b16 %v5015, %v5013
        %v5164 = vpack.c.b16 %v5016, %v5014
        %v5165 = vpack.c.b16 %v5019, %v5017
        %v5166 = vpack.c.b16 %v5020, %v5018
        %v5167 = vpack.c.b16 %v5023, %v5021
        %v5168 = vpack.c.b16 %v5024, %v5022
        %v5169 = vpack.c.b16 %v5027, %v5025
        %v5170 = vpack.c.b16 %v5028, %v5026
        %v5171 = vpack.c.b16 %v5031, %v5029
        %v5172 = vpack.c.b16 %v5032, %v5030
        %v5173 = vpack.c.b16 %v5035, %v5033
        %v5174 = vpack.c.b16 %v5036, %v5034
        %v5175 = vpack.c.b16 %v5039, %v5037
        %v5176 = vpack.c.b16 %v5040, %v5038
        %v5177 = vpack.c.b16 %v5043, %v5041
        %v5178 = vpack.c.b16 %v5044, %v5042
        %v5179 = vpack.c.b16 %v5047, %v5045
        %v5180 = vpack.c.b16 %v5048, %v5046
        %v5181 = vpack.c.b16 %v5051, %v5049
        %v5182 = vpack.c.b16 %v5052, %v5050
        %v5183 = vpack.c.b16 %v5055, %v5053
        %v5184 = vpack.c.b16 %v5056, %v5054
        %v5185 = vpack.c.b16 %v5059, %v5057
        %v5186 = vpack.c.b16 %v5060, %v5058
        %v5187 = vpack.c.b16 %v5063, %v5061
        %v5188 = vpack.c.b16 %v5064, %v5062
        %v5189 = vpack.c.b16 %v5067, %v5065
        %v5190 = vpack.c.b16 %v5068, %v5066
        %v5191 = vpack.c.b16 %v5071, %v5069
        %v5192 = vpack.c.b16 %v5072, %v5070
        %v5193 = vpack.c.b16 %v5075, %v5073
        %v5194 = vpack.c.b16 %v5076, %v5074
        %v5195 = vpack.c.b16 %v5079, %v5077
        %v5196 = vpack.c.b16 %v5080, %v5078
        %v5197 = vpack.c.b16 %v5083, %v5081
        %v5198 = vpack.c.b16 %v5084, %v5082
        %v5199 = vpack.c.b16 %v5087, %v5085
        %v5200 = vpack.c.b16 %v5088, %v5086
        %v5201 = vpack.c.b16 %v5091, %v5089
        %v5202 = vpack.c.b16 %v5092, %v5090
        %v5203 = vpack.c.b16 %v5095, %v5093
        %v5204 = vpack.c.b16 %v5096, %v5094
        %v5205 = vpack.c.b16 %v5099, %v5097
        %v5206 = vpack.c.b16 %v5100, %v5098
        %v5207 = vpack.c.b16 %v5103, %v5101
        %v5208 = vpack.c.b16 %v5104, %v5102
        %v5209 = vpack.c.b16 %v5107, %v5105
        %v5210 = vpack.c.b16 %v5108, %v5106
        %v5211 = vpack.c.b16 %v5111, %v5109
        %v5212 = vpack.c.b16 %v5112, %v5110
        %v5213 = vpack.c.b16 %v5115, %v5113
        %v5214 = vpack.c.b16 %v5116, %v5114
        %v5215 = vpack.c.b16 %v5119, %v5117
        %v5216 = vpack.c.b16 %v5120, %v5118
        %5313 = vmatpush.bf16.msra.mxu0 %v5135
        %5314 = vmatpush.bf16.msra.mxu0 %v5133
        %5315 = vmatpush.bf16.msra.mxu0 %v5131
        %5316 = vmatpush.bf16.msra.mxu0 %v5129
        %5317 = vmatpush.bf16.msra.mxu0 %v5127
        %5318 = vmatpush.bf16.msra.mxu0 %v5125
        %5319 = vmatpush.bf16.msra.mxu0 %v5123
        %5320 = vmatpush.bf16.msra.mxu0 %v5121
        %5321 = vmatmul.bf16.gmra.mxu0 %v4819
        %v5322 = vpop.f32.mrf.mxu0
        %v5323 = vadd.f32 %v4831, %v5322
        %v5324 = vpop.f32.mrf.mxu0
        %5325 = vdwg.mxu0
        %5326 = vmatpush.bf16.msra.mxu0 %v5151
        %5327 = vmatpush.bf16.msra.mxu0 %v5149
        %5328 = vmatpush.bf16.msra.mxu0 %v5147
        %5329 = vmatpush.bf16.msra.mxu0 %v5145
        %5330 = vmatpush.bf16.msra.mxu0 %v5143
        %5331 = vmatpush.bf16.msra.mxu0 %v5141
        %5332 = vmatpush.bf16.msra.mxu0 %v5139
        %5333 = vmatpush.bf16.msra.mxu0 %v5137
        %5334 = vmatmul.bf16.gmra.mxu0 %v4820
        %v5335 = vpop.f32.mrf.mxu0
        %v5336 = vadd.f32 %v5323, %v5335
        %v5337 = vpop.f32.mrf.mxu0
        %5338 = vdwg.mxu0
        %5339 = vmatpush.bf16.msra.mxu0 %v5167
        %5340 = vmatpush.bf16.msra.mxu0 %v5165
        %5341 = vmatpush.bf16.msra.mxu0 %v5163
        %5342 = vmatpush.bf16.msra.mxu0 %v5161
        %5343 = vmatpush.bf16.msra.mxu0 %v5159
        %5344 = vmatpush.bf16.msra.mxu0 %v5157
        %5345 = vmatpush.bf16.msra.mxu0 %v5155
        %5346 = vmatpush.bf16.msra.mxu0 %v5153
        %5347 = vmatmul.bf16.gmra.mxu0 %v4821
        %v5348 = vpop.f32.mrf.mxu0
        %v5349 = vadd.f32 %v5336, %v5348
        %v5350 = vpop.f32.mrf.mxu0
        %5351 = vdwg.mxu0
        %5352 = vmatpush.bf16.msra.mxu0 %v5183
        %5353 = vmatpush.bf16.msra.mxu0 %v5181
        %5354 = vmatpush.bf16.msra.mxu0 %v5179
        %5355 = vmatpush.bf16.msra.mxu0 %v5177
        %5356 = vmatpush.bf16.msra.mxu0 %v5175
        %5357 = vmatpush.bf16.msra.mxu0 %v5173
        %5358 = vmatpush.bf16.msra.mxu0 %v5171
        %5359 = vmatpush.bf16.msra.mxu0 %v5169
        %5360 = vmatmul.bf16.gmra.mxu0 %v4822
        %v5361 = vpop.f32.mrf.mxu0
        %v5362 = vadd.f32 %v5349, %v5361
        %v5363 = vpop.f32.mrf.mxu0
        %5364 = vdwg.mxu0
        %5365 = vmatpush.bf16.msra.mxu0 %v5199
        %5366 = vmatpush.bf16.msra.mxu0 %v5197
        %5367 = vmatpush.bf16.msra.mxu0 %v5195
        %5368 = vmatpush.bf16.msra.mxu0 %v5193
        %5369 = vmatpush.bf16.msra.mxu0 %v5191
        %5370 = vmatpush.bf16.msra.mxu0 %v5189
        %5371 = vmatpush.bf16.msra.mxu0 %v5187
        %5372 = vmatpush.bf16.msra.mxu0 %v5185
        %5373 = vmatmul.bf16.gmra.mxu0 %v4823
        %v5374 = vpop.f32.mrf.mxu0
        %v5375 = vadd.f32 %v5362, %v5374
        %v5376 = vpop.f32.mrf.mxu0
        %5377 = vdwg.mxu0
        %5378 = vmatpush.bf16.msra.mxu0 %v5215
        %5379 = vmatpush.bf16.msra.mxu0 %v5213
        %5380 = vmatpush.bf16.msra.mxu0 %v5211
        %5381 = vmatpush.bf16.msra.mxu0 %v5209
        %5382 = vmatpush.bf16.msra.mxu0 %v5207
        %5383 = vmatpush.bf16.msra.mxu0 %v5205
        %5384 = vmatpush.bf16.msra.mxu0 %v5203
        %5385 = vmatpush.bf16.msra.mxu0 %v5201
        %5386 = vmatmul.bf16.gmra.mxu0 %v4824
        %v5387 = vpop.f32.mrf.mxu0
        %v5388 = vadd.f32 %v5375, %v5387
        %v5389 = vpop.f32.mrf.mxu0
        %5390 = vdwg.mxu0
        %5391 = vmatpush.bf16.msra.mxu0 %v5136
        %5392 = vmatpush.bf16.msra.mxu0 %v5134
        %5393 = vmatpush.bf16.msra.mxu0 %v5132
        %5394 = vmatpush.bf16.msra.mxu0 %v5130
        %5395 = vmatpush.bf16.msra.mxu0 %v5128
        %5396 = vmatpush.bf16.msra.mxu0 %v5126
        %5397 = vmatpush.bf16.msra.mxu0 %v5124
        %5398 = vmatpush.bf16.msra.mxu0 %v5122
        %5399 = vmatmul.bf16.gmra.mxu0 %v4819
        %v5400 = vpop.f32.mrf.mxu0
        %v5401 = vadd.f32 %v4832, %v5400
        %v5402 = vpop.f32.mrf.mxu0
        %5403 = vdwg.mxu0
        %5404 = vmatpush.bf16.msra.mxu0 %v5152
        %5405 = vmatpush.bf16.msra.mxu0 %v5150
        %5406 = vmatpush.bf16.msra.mxu0 %v5148
        %5407 = vmatpush.bf16.msra.mxu0 %v5146
        %5408 = vmatpush.bf16.msra.mxu0 %v5144
        %5409 = vmatpush.bf16.msra.mxu0 %v5142
        %5410 = vmatpush.bf16.msra.mxu0 %v5140
        %5411 = vmatpush.bf16.msra.mxu0 %v5138
        %5412 = vmatmul.bf16.gmra.mxu0 %v4820
        %v5413 = vpop.f32.mrf.mxu0
        %v5414 = vadd.f32 %v5401, %v5413
        %v5415 = vpop.f32.mrf.mxu0
        %5416 = vdwg.mxu0
        %5417 = vmatpush.bf16.msra.mxu0 %v5168
        %5418 = vmatpush.bf16.msra.mxu0 %v5166
        %5419 = vmatpush.bf16.msra.mxu0 %v5164
        %5420 = vmatpush.bf16.msra.mxu0 %v5162
        %5421 = vmatpush.bf16.msra.mxu0 %v5160
        %5422 = vmatpush.bf16.msra.mxu0 %v5158
        %5423 = vmatpush.bf16.msra.mxu0 %v5156
        %5424 = vmatpush.bf16.msra.mxu0 %v5154
        %5425 = vmatmul.bf16.gmra.mxu0 %v4821
        %v5426 = vpop.f32.mrf.mxu0
        %v5427 = vadd.f32 %v5414, %v5426
        %v5428 = vpop.f32.mrf.mxu0
        %5429 = vdwg.mxu0
        %5430 = vmatpush.bf16.msra.mxu0 %v5184
        %5431 = vmatpush.bf16.msra.mxu0 %v5182
        %5432 = vmatpush.bf16.msra.mxu0 %v5180
        %5433 = vmatpush.bf16.msra.mxu0 %v5178
        %5434 = vmatpush.bf16.msra.mxu0 %v5176
        %5435 = vmatpush.bf16.msra.mxu0 %v5174
        %5436 = vmatpush.bf16.msra.mxu0 %v5172
        %5437 = vmatpush.bf16.msra.mxu0 %v5170
        %5438 = vmatmul.bf16.gmra.mxu0 %v4822
        %v5439 = vpop.f32.mrf.mxu0
        %v5440 = vadd.f32 %v5427, %v5439
        %v5441 = vpop.f32.mrf.mxu0
        %5442 = vdwg.mxu0
        %5443 = vmatpush.bf16.msra.mxu0 %v5200
        %5444 = vmatpush.bf16.msra.mxu0 %v5198
        %5445 = vmatpush.bf16.msra.mxu0 %v5196
        %5446 = vmatpush.bf16.msra.mxu0 %v5194
        %5447 = vmatpush.bf16.msra.mxu0 %v5192
        %5448 = vmatpush.bf16.msra.mxu0 %v5190
        %5449 = vmatpush.bf16.msra.mxu0 %v5188
        %5450 = vmatpush.bf16.msra.mxu0 %v5186
        %5451 = vmatmul.bf16.gmra.mxu0 %v4823
        %v5452 = vpop.f32.mrf.mxu0
        %v5453 = vadd.f32 %v5440, %v5452
        %v5454 = vpop.f32.mrf.mxu0
        %5455 = vdwg.mxu0
        %5456 = vmatpush.bf16.msra.mxu0 %v5216
        %5457 = vmatpush.bf16.msra.mxu0 %v5214
        %5458 = vmatpush.bf16.msra.mxu0 %v5212
        %5459 = vmatpush.bf16.msra.mxu0 %v5210
        %5460 = vmatpush.bf16.msra.mxu0 %v5208
        %5461 = vmatpush.bf16.msra.mxu0 %v5206
        %5462 = vmatpush.bf16.msra.mxu0 %v5204
        %5463 = vmatpush.bf16.msra.mxu0 %v5202
        %5464 = vmatmul.bf16.gmra.mxu0 %v4824
        %v5465 = vpop.f32.mrf.mxu0
        %v5466 = vadd.f32 %v5453, %v5465
        %v5467 = vpop.f32.mrf.mxu0
        %5468 = vdwg.mxu0
        %v5469 = vrot.slane %v5388, 4
        %v5470 = vadd.f32 %v5388, %v5469
        %v5471 = vrot.slane %v5470, 2
        %v5472 = vadd.f32 %v5470, %v5471
        %v5473 = vrot.slane %v5472, 1
        %v5474 = vadd.f32 %v5472, %v5473
        %v5475 = vrot.slane %v5466, 4
        %v5476 = vadd.f32 %v5466, %v5475
        %v5477 = vrot.slane %v5476, 2
        %v5478 = vadd.f32 %v5476, %v5477
        %v5479 = vrot.slane %v5478, 1
        %v5480 = vadd.f32 %v5478, %v5479
        %v5481 = vadd.f32 %v5474, %v5480
        %5482 = vadd.xlane.f32.xlu0 %v5481
        %v5483 = vpop.xlane.xlu0 %5482
        %v5484 = vmul.f32 %v5483, 0.00048828125
        %v5485 = vsub.f32 %v5388, %v5484
        %v5486 = vsub.f32 %v5466, %v5484
        %v5487 = vmul.f32 %v5485, %v5485
        %v5488 = vmul.f32 %v5486, %v5486
        %v5489 = vrot.slane %v5487, 4
        %v5490 = vadd.f32 %v5487, %v5489
        %v5491 = vrot.slane %v5490, 2
        %v5492 = vadd.f32 %v5490, %v5491
        %v5493 = vrot.slane %v5492, 1
        %v5494 = vadd.f32 %v5492, %v5493
        %v5495 = vrot.slane %v5488, 4
        %v5496 = vadd.f32 %v5488, %v5495
        %v5497 = vrot.slane %v5496, 2
        %v5498 = vadd.f32 %v5496, %v5497
        %v5499 = vrot.slane %v5498, 1
        %v5500 = vadd.f32 %v5498, %v5499
        %v5501 = vadd.f32 %v5494, %v5500
        %5502 = vadd.xlane.f32.xlu0 %v5501
        %v5503 = vpop.xlane.xlu0 %5502
        %v5504 = vmul.f32 %v5503, 0.00048828125
        %v5505 = vadd.f32 %v5504, 1e-05
        %v5506 = vrsqrt.pop %v5505
        %v5507 = vmul.f32 %v5506, %v5505
        %v5508 = vmul.f32 %v5507, %v5506
        %v5509 = vmul.f32 0.5, %v5508
        %v5510 = vsub.f32 1.5, %v5509
        %v5511 = vmul.f32 %v5506, %v5510
        %vm5512 = vweird.f32 %v5505
        %vm5513 = vweird.f32 %v5506
        %vm5514 = vmor %vm5512, %vm5513
        %v5515 = vsel %vm5514, %v5506, %v5511
        %v5516 = vmul.f32 %v4825, %v5515
        %v5518 = vperm.slane %v5516, 1
        %v5519 = vperm.slane %v5516, 5
        %v5522 = vperm.slane %v5518, 1
        %v5523 = vperm.slane %v5519, 1
        %v5524 = vmul.f32 %v5485, %v5522
        %v5525 = vmul.f32 %v5486, %v5523
        %v5526 = vperm.slane %v4825, 2
        %v5527 = vperm.slane %v4825, 6
        %v5530 = vperm.slane %v5526, 2
        %v5531 = vperm.slane %v5527, 2
        %v5532 = vadd.f32 %v5524, %v5530
        %v5533 = vadd.f32 %v5525, %v5531
        %v5534 = vmul.f32 %v5532, 0.5
        %v5535 = vmul.f32 %v5533, 0.5
        %v5536 = vmul.f32 %v5532, 0.044715
        %v5537 = vmul.f32 %v5533, 0.044715
        %v5538 = vmul.f32 %v5536, %v5532
        %v5539 = vmul.f32 %v5537, %v5533
        %v5540 = vmul.f32 %v5538, %v5532
        %v5541 = vmul.f32 %v5539, %v5533
        %v5542 = vadd.f32 %v5532, %v5540
        %v5543 = vadd.f32 %v5533, %v5541
        %v5544 = vmul.f32 %v5542, 0.7978846
        %v5545 = vmul.f32 %v5543, 0.7978846
        %v5546 = vtanh.pop %v5544
        %v5547 = vtanh.pop %v5545
        %v5548 = vadd.f32 %v5546, 1.0
        %v5549 = vadd.f32 %v5547, 1.0
        %v5550 = vmul.f32 %v5534, %v5548
        %v5551 = vmul.f32 %v5535, %v5549
        %v5552 = vperm.slane %v2069, 0
        %v5553 = vperm.slane %v2089, 0
        %v5554 = vadd.f32 %v5550, %v5552
        %v5555 = vadd.f32 %v5551, %v5553
        %v5556 = vld [vmem:[%s5] sm:$0xf]
        %v5557 = vld [vmem:[%s5 + $0x4] sm:$0xf]
        %v5558 = vpack.c.bf16 %v5554, %v5554
        %v5559 = vpack.c.bf16 %v5555, %v5555
        %v5562 = vunpack.c.l.b16 %v5556
        %v5563 = vunpack.c.l.b16 %v5557
        %v5564 = vpack.c.b16 %v5563, %v5562
        %v5566 = vsel %vm2323, %v5564, 0
        %vm5568 = vcmask 1043456
        %v5570 = vsel %vm5568, %v5558, 0
        %v5573 = vsel %vm5568, %v5559, 0
        %5575 = vmatpush.bf16.msra.mxu0 0
        %5576 = vmatpush.bf16.msra.mxu0 0
        %5577 = vmatpush.bf16.msra.mxu0 0
        %5578 = vmatpush.bf16.msra.mxu0 0
        %5579 = vmatpush.bf16.msra.mxu0 0
        %5580 = vmatpush.bf16.msra.mxu0 0
        %5581 = vmatpush.bf16.msra.mxu0 0
        %5582 = vmatpush.bf16.msra.mxu0 %v5570
        %5583 = vmatmul.bf16.gmra.mxu0 %v5566
        %v5584 = vpop.f32.mrf.mxu0
        %v5585 = vadd.f32 0.0, %v5584
        %v5586 = vpop.f32.mrf.mxu0
        %v5587 = vadd.f32 0.0, %v5586
        %5588 = vdwg.mxu0
        %5589 = vmatpush.bf16.msra.mxu0 0
        %5590 = vmatpush.bf16.msra.mxu0 0
        %5591 = vmatpush.bf16.msra.mxu0 0
        %5592 = vmatpush.bf16.msra.mxu0 0
        %5593 = vmatpush.bf16.msra.mxu0 0
        %5594 = vmatpush.bf16.msra.mxu0 0
        %5595 = vmatpush.bf16.msra.mxu0 0
        %5596 = vmatpush.bf16.msra.mxu0 %v5573
        %5597 = vmatmul.bf16.gmra.mxu0 %v5566
        %v5598 = vpop.f32.mrf.mxu0
        %v5599 = vadd.f32 0.0, %v5598
        %v5600 = vpop.f32.mrf.mxu0
        %v5601 = vadd.f32 0.0, %v5600
        %5602 = vdwg.mxu0
        %v5603 = vrot.slane %v5585, 7
        %v5604 = vrot.slane %v5599, 7
        %v5605 = vrot.slane %v5587, 7
        %v5606 = vrot.slane %v5601, 7
        %v5607 = vsel %vm2182, %v5603, %v5605
        %v5608 = vsel %vm2182, %v5604, %v5606
        %v5609 = vsel %vm2182, %v5605, %v5603
        %v5610 = vsel %vm2182, %v5606, %v5604
        %v5611 = vsel %vm2174, 0.0, %v5609
        %v5612 = vsel %vm2174, 0.0, %v5610
        %v5613 = vsel %vm2175, 0.0, %v5607
        %v5614 = vsel %vm2175, 0.0, %v5608
        %v5615 = vrot.slane %v5585, 1
        %v5616 = vrot.slane %v5599, 1
        %v5617 = vrot.slane %v5587, 1
        %v5618 = vrot.slane %v5601, 1
        %v5619 = vsel %vm2199, %v5615, %v5617
        %v5620 = vsel %vm2199, %v5616, %v5618
        %v5621 = vsel %vm2199, %v5617, %v5615
        %v5622 = vsel %vm2199, %v5618, %v5616
        %v5623 = vsel %vm3550, 0.0, %v5619
        %v5624 = vsel %vm3550, 0.0, %v5620
        %v5625 = vsel %vm3551, 0.0, %v5621
        %v5626 = vsel %vm3551, 0.0, %v5622
        %v5627 = vld [vmem:[%s53] sm:$0xf]
        %v5628 = vld [vmem:[%s53 + $0x4] sm:$0xf]
        %v5629 = vld [vmem:[%s53 + $0x8] sm:$0xf]
        %v5630 = vld [vmem:[%s53 + $0xc] sm:$0xf]
        %v5631 = vld [vmem:[%s53 + $0x10] sm:$0xf]
        %v5632 = vld [vmem:[%s53 + $0x14] sm:$0xf]
        %v5633 = vld [vmem:[%s53 + $0x18] sm:$0xf]
        %v5634 = vld [vmem:[%s53 + $0x1c] sm:$0xf]
        %v5635 = vld [vmem:[%s53 + $0x20] sm:$0xf]
        %v5636 = vld [vmem:[%s53 + $0x24] sm:$0xf]
        %v5637 = vld [vmem:[%s53 + $0x28] sm:$0xf]
        %v5638 = vld [vmem:[%s53 + $0x2c] sm:$0xf]
        %v5639 = vld [vmem:[%s53 + $0x30] sm:$0xf]
        %v5640 = vld [vmem:[%s53 + $0x34] sm:$0xf]
        %v5641 = vld [vmem:[%s53 + $0x38] sm:$0xf]
        %v5642 = vld [vmem:[%s53 + $0x3c] sm:$0xf]
        %v5643 = vld [vmem:[%s53 + $0x40] sm:$0xf]
        %v5644 = vld [vmem:[%s53 + $0x44] sm:$0xf]
        %v5645 = vld [vmem:[%s53 + $0x48] sm:$0xf]
        %v5646 = vld [vmem:[%s53 + $0x4c] sm:$0xf]
        %v5647 = vld [vmem:[%s53 + $0x50] sm:$0xf]
        %v5648 = vld [vmem:[%s53 + $0x54] sm:$0xf]
        %v5649 = vld [vmem:[%s53 + $0x58] sm:$0xf]
        %v5650 = vld [vmem:[%s53 + $0x5c] sm:$0xf]
        %v5651 = vld [vmem:[%s53 + $0x60] sm:$0xf]
        %v5652 = vld [vmem:[%s53 + $0x64] sm:$0xf]
        %v5653 = vld [vmem:[%s53 + $0x68] sm:$0xf]
        %v5654 = vld [vmem:[%s53 + $0x6c] sm:$0xf]
        %v5655 = vld [vmem:[%s53 + $0x70] sm:$0xf]
        %v5656 = vld [vmem:[%s53 + $0x74] sm:$0xf]
        %v5657 = vld [vmem:[%s53 + $0x78] sm:$0xf]
        %v5658 = vld [vmem:[%s53 + $0x7c] sm:$0xf]
        %v5659 = vld [vmem:[%s53 + $0x80] sm:$0xf]
        %v5660 = vld [vmem:[%s53 + $0x84] sm:$0xf]
        %v5661 = vld [vmem:[%s53 + $0x88] sm:$0xf]
        %v5662 = vld [vmem:[%s53 + $0x8c] sm:$0xf]
        %v5663 = vld [vmem:[%s53 + $0x90] sm:$0xf]
        %v5664 = vld [vmem:[%s53 + $0x94] sm:$0xf]
        %v5665 = vld [vmem:[%s53 + $0x98] sm:$0xf]
        %v5666 = vld [vmem:[%s53 + $0x9c] sm:$0xf]
        %v5667 = vld [vmem:[%s53 + $0xa0] sm:$0xf]
        %v5668 = vld [vmem:[%s53 + $0xa4] sm:$0xf]
        %v5669 = vld [vmem:[%s53 + $0xa8] sm:$0xf]
        %v5670 = vld [vmem:[%s53 + $0xac] sm:$0xf]
        %v5671 = vld [vmem:[%s53 + $0xb0] sm:$0xf]
        %v5672 = vld [vmem:[%s53 + $0xb4] sm:$0xf]
        %v5673 = vld [vmem:[%s53 + $0xb8] sm:$0xf]
        %v5674 = vld [vmem:[%s53 + $0xbc] sm:$0xf]
        %v5675 = vld [vmem:[%s53 + $0xc0] sm:$0xf]
        %v5676 = vld [vmem:[%s53 + $0xc4] sm:$0xf]
        %v5677 = vld [vmem:[%s53 + $0xc8] sm:$0xf]
        %v5678 = vld [vmem:[%s53 + $0xcc] sm:$0xf]
        %v5679 = vld [vmem:[%s53 + $0xd0] sm:$0xf]
        %v5680 = vld [vmem:[%s53 + $0xd4] sm:$0xf]
        %v5681 = vld [vmem:[%s53 + $0xd8] sm:$0xf]
        %v5682 = vld [vmem:[%s53 + $0xdc] sm:$0xf]
        %v5683 = vld [vmem:[%s53 + $0xe0] sm:$0xf]
        %v5684 = vld [vmem:[%s53 + $0xe4] sm:$0xf]
        %v5685 = vld [vmem:[%s53 + $0xe8] sm:$0xf]
        %v5686 = vld [vmem:[%s53 + $0xec] sm:$0xf]
        %v5687 = vld [vmem:[%s53 + $0xf0] sm:$0xf]
        %v5688 = vld [vmem:[%s53 + $0xf4] sm:$0xf]
        %v5689 = vld [vmem:[%s53 + $0xf8] sm:$0xf]
        %v5690 = vld [vmem:[%s53 + $0xfc] sm:$0xf]
        %v5691 = vld [vmem:[%s53 + $0x100] sm:$0xf]
        %v5692 = vld [vmem:[%s53 + $0x104] sm:$0xf]
        %v5693 = vld [vmem:[%s53 + $0x108] sm:$0xf]
        %v5694 = vld [vmem:[%s53 + $0x10c] sm:$0xf]
        %v5695 = vld [vmem:[%s53 + $0x110] sm:$0xf]
        %v5696 = vld [vmem:[%s53 + $0x114] sm:$0xf]
        %v5697 = vld [vmem:[%s53 + $0x118] sm:$0xf]
        %v5698 = vld [vmem:[%s53 + $0x11c] sm:$0xf]
        %v5699 = vld [vmem:[%s53 + $0x120] sm:$0xf]
        %v5700 = vld [vmem:[%s53 + $0x124] sm:$0xf]
        %v5701 = vld [vmem:[%s53 + $0x128] sm:$0xf]
        %v5702 = vld [vmem:[%s53 + $0x12c] sm:$0xf]
        %v5703 = vld [vmem:[%s53 + $0x130] sm:$0xf]
        %v5704 = vld [vmem:[%s53 + $0x134] sm:$0xf]
        %v5705 = vld [vmem:[%s53 + $0x138] sm:$0xf]
        %v5706 = vld [vmem:[%s53 + $0x13c] sm:$0xf]
        %v5707 = vld [vmem:[%s53 + $0x140] sm:$0xf]
        %v5708 = vld [vmem:[%s53 + $0x144] sm:$0xf]
        %v5709 = vld [vmem:[%s53 + $0x148] sm:$0xf]
        %v5710 = vld [vmem:[%s53 + $0x14c] sm:$0xf]
        %v5711 = vld [vmem:[%s53 + $0x150] sm:$0xf]
        %v5712 = vld [vmem:[%s53 + $0x154] sm:$0xf]
        %v5713 = vld [vmem:[%s53 + $0x158] sm:$0xf]
        %v5714 = vld [vmem:[%s53 + $0x15c] sm:$0xf]
        %v5715 = vld [vmem:[%s53 + $0x160] sm:$0xf]
        %v5716 = vld [vmem:[%s53 + $0x164] sm:$0xf]
        %v5717 = vld [vmem:[%s53 + $0x168] sm:$0xf]
        %v5718 = vld [vmem:[%s53 + $0x16c] sm:$0xf]
        %v5719 = vld [vmem:[%s53 + $0x170] sm:$0xf]
        %v5720 = vld [vmem:[%s53 + $0x174] sm:$0xf]
        %v5721 = vld [vmem:[%s53 + $0x178] sm:$0xf]
        %v5722 = vld [vmem:[%s53 + $0x17c] sm:$0xf]
        %v5723 = vpack.c.bf16 %v5613, %v5611
        %v5724 = vpack.c.bf16 %v5614, %v5612
        %v5725 = vpack.c.bf16 %v5587, %v5585
        %v5726 = vpack.c.bf16 %v5601, %v5599
        %v5727 = vpack.c.bf16 %v5625, %v5623
        %v5728 = vpack.c.bf16 %v5626, %v5624
        %v5729 = vrot.slane %v4243, 7
        %v5730 = vrot.slane %v4244, 7
        %v5731 = vsel %vm2182, %v5729, %v5730
        %v5732 = vsel %vm2182, %v5730, %v5729
        %v5733 = vsel %vm2174, 0.0, %v5732
        %v5734 = vsel %vm2175, 0.0, %v5731
        %v5735 = vrot.slane %v4243, 1
        %v5736 = vrot.slane %v4244, 1
        %v5737 = vsel %vm2199, %v5735, %v5736
        %v5738 = vsel %vm2199, %v5736, %v5735
        %v5739 = vsel %vm3550, 0.0, %v5737
        %v5740 = vsel %vm3551, 0.0, %v5738
        %v5741 = vld [vmem:[%s55] sm:$0xf]
        %v5742 = vld [vmem:[%s55 + $0x4] sm:$0xf]
        %v5743 = vld [vmem:[%s55 + $0x8] sm:$0xf]
        %v5744 = vld [vmem:[%s55 + $0xc] sm:$0xf]
        %v5745 = vld [vmem:[%s55 + $0x10] sm:$0xf]
        %v5746 = vld [vmem:[%s55 + $0x14] sm:$0xf]
        %v5747 = vld [vmem:[%s55 + $0x18] sm:$0xf]
        %v5748 = vld [vmem:[%s55 + $0x1c] sm:$0xf]
        %v5749 = vld [vmem:[%s55 + $0x20] sm:$0xf]
        %v5750 = vld [vmem:[%s55 + $0x24] sm:$0xf]
        %v5751 = vld [vmem:[%s55 + $0x28] sm:$0xf]
        %v5752 = vld [vmem:[%s55 + $0x2c] sm:$0xf]
        %v5753 = vld [vmem:[%s55 + $0x30] sm:$0xf]
        %v5754 = vld [vmem:[%s55 + $0x34] sm:$0xf]
        %v5755 = vld [vmem:[%s55 + $0x38] sm:$0xf]
        %v5756 = vld [vmem:[%s55 + $0x3c] sm:$0xf]
        %v5757 = vld [vmem:[%s55 + $0x40] sm:$0xf]
        %v5758 = vld [vmem:[%s55 + $0x44] sm:$0xf]
        %v5759 = vld [vmem:[%s55 + $0x48] sm:$0xf]
        %v5760 = vld [vmem:[%s55 + $0x4c] sm:$0xf]
        %v5761 = vld [vmem:[%s55 + $0x50] sm:$0xf]
        %v5762 = vld [vmem:[%s55 + $0x54] sm:$0xf]
        %v5763 = vld [vmem:[%s55 + $0x58] sm:$0xf]
        %v5764 = vld [vmem:[%s55 + $0x5c] sm:$0xf]
        %v5765 = vld [vmem:[%s55 + $0x60] sm:$0xf]
        %v5766 = vld [vmem:[%s55 + $0x64] sm:$0xf]
        %v5767 = vld [vmem:[%s55 + $0x68] sm:$0xf]
        %v5768 = vld [vmem:[%s55 + $0x6c] sm:$0xf]
        %v5769 = vld [vmem:[%s55 + $0x70] sm:$0xf]
        %v5770 = vld [vmem:[%s55 + $0x74] sm:$0xf]
        %v5771 = vld [vmem:[%s55 + $0x78] sm:$0xf]
        %v5772 = vld [vmem:[%s55 + $0x7c] sm:$0xf]
        %v5773 = vld [vmem:[%s55 + $0x80] sm:$0xf]
        %v5774 = vld [vmem:[%s55 + $0x84] sm:$0xf]
        %v5775 = vld [vmem:[%s55 + $0x88] sm:$0xf]
        %v5776 = vld [vmem:[%s55 + $0x8c] sm:$0xf]
        %v5777 = vld [vmem:[%s55 + $0x90] sm:$0xf]
        %v5778 = vld [vmem:[%s55 + $0x94] sm:$0xf]
        %v5779 = vld [vmem:[%s55 + $0x98] sm:$0xf]
        %v5780 = vld [vmem:[%s55 + $0x9c] sm:$0xf]
        %v5781 = vld [vmem:[%s55 + $0xa0] sm:$0xf]
        %v5782 = vld [vmem:[%s55 + $0xa4] sm:$0xf]
        %v5783 = vld [vmem:[%s55 + $0xa8] sm:$0xf]
        %v5784 = vld [vmem:[%s55 + $0xac] sm:$0xf]
        %v5785 = vld [vmem:[%s55 + $0xb0] sm:$0xf]
        %v5786 = vld [vmem:[%s55 + $0xb4] sm:$0xf]
        %v5787 = vld [vmem:[%s55 + $0xb8] sm:$0xf]
        %v5788 = vld [vmem:[%s55 + $0xbc] sm:$0xf]
        %v5789 = vpack.c.bf16 %v5734, %v5733
        %v5790 = vpack.c.bf16 %v4244, %v4243
        %v5791 = vpack.c.bf16 %v5740, %v5739
        %v5840 = vunpack.c.l.b16 %v5741
        %v5841 = vunpack.c.l.b16 %v5742
        %v5842 = vunpack.c.l.b16 %v5743
        %v5843 = vunpack.c.l.b16 %v5744
        %v5844 = vunpack.c.l.b16 %v5745
        %v5845 = vunpack.c.l.b16 %v5746
        %v5846 = vunpack.c.l.b16 %v5747
        %v5847 = vunpack.c.l.b16 %v5748
        %v5848 = vunpack.c.l.b16 %v5749
        %v5849 = vunpack.c.l.b16 %v5750
        %v5850 = vunpack.c.l.b16 %v5751
        %v5851 = vunpack.c.l.b16 %v5752
        %v5852 = vunpack.c.l.b16 %v5753
        %v5853 = vunpack.c.l.b16 %v5754
        %v5854 = vunpack.c.l.b16 %v5755
        %v5855 = vunpack.c.l.b16 %v5756
        %v5856 = vunpack.c.l.b16 %v5757
        %v5857 = vunpack.c.l.b16 %v5758
        %v5858 = vunpack.c.l.b16 %v5759
        %v5859 = vunpack.c.l.b16 %v5760
        %v5860 = vunpack.c.l.b16 %v5761
        %v5861 = vunpack.c.l.b16 %v5762
        %v5862 = vunpack.c.l.b16 %v5763
        %v5863 = vunpack.c.l.b16 %v5764
        %v5864 = vunpack.c.l.b16 %v5765
        %v5865 = vunpack.c.l.b16 %v5766
        %v5866 = vunpack.c.l.b16 %v5767
        %v5867 = vunpack.c.l.b16 %v5768
        %v5868 = vunpack.c.l.b16 %v5769
        %v5869 = vunpack.c.l.b16 %v5770
        %v5870 = vunpack.c.l.b16 %v5771
        %v5871 = vunpack.c.l.b16 %v5772
        %v5872 = vunpack.c.l.b16 %v5773
        %v5873 = vunpack.c.l.b16 %v5774
        %v5874 = vunpack.c.l.b16 %v5775
        %v5875 = vunpack.c.l.b16 %v5776
        %v5876 = vunpack.c.l.b16 %v5777
        %v5877 = vunpack.c.l.b16 %v5778
        %v5878 = vunpack.c.l.b16 %v5779
        %v5879 = vunpack.c.l.b16 %v5780
        %v5880 = vunpack.c.l.b16 %v5781
        %v5881 = vunpack.c.l.b16 %v5782
        %v5882 = vunpack.c.l.b16 %v5783
        %v5883 = vunpack.c.l.b16 %v5784
        %v5884 = vunpack.c.l.b16 %v5785
        %v5885 = vunpack.c.l.b16 %v5786
        %v5886 = vunpack.c.l.b16 %v5787
        %v5887 = vunpack.c.l.b16 %v5788
        %v5888 = vpack.c.b16 %v5841, %v5840
        %v5889 = vpack.c.b16 %v5843, %v5842
        %v5890 = vpack.c.b16 %v5845, %v5844
        %v5891 = vpack.c.b16 %v5847, %v5846
        %v5892 = vpack.c.b16 %v5849, %v5848
        %v5893 = vpack.c.b16 %v5851, %v5850
        %v5894 = vpack.c.b16 %v5853, %v5852
        %v5895 = vpack.c.b16 %v5855, %v5854
        %v5896 = vpack.c.b16 %v5857, %v5856
        %v5897 = vpack.c.b16 %v5859, %v5858
        %v5898 = vpack.c.b16 %v5861, %v5860
        %v5899 = vpack.c.b16 %v5863, %v5862
        %v5900 = vpack.c.b16 %v5865, %v5864
        %v5901 = vpack.c.b16 %v5867, %v5866
        %v5902 = vpack.c.b16 %v5869, %v5868
        %v5903 = vpack.c.b16 %v5871, %v5870
        %v5904 = vpack.c.b16 %v5873, %v5872
        %v5905 = vpack.c.b16 %v5875, %v5874
        %v5906 = vpack.c.b16 %v5877, %v5876
        %v5907 = vpack.c.b16 %v5879, %v5878
        %v5908 = vpack.c.b16 %v5881, %v5880
        %v5909 = vpack.c.b16 %v5883, %v5882
        %v5910 = vpack.c.b16 %v5885, %v5884
        %v5911 = vpack.c.b16 %v5887, %v5886
        %5936 = vmatpush.bf16.msra.mxu0 %v5895
        %5937 = vmatpush.bf16.msra.mxu0 %v5894
        %5938 = vmatpush.bf16.msra.mxu0 %v5893
        %5939 = vmatpush.bf16.msra.mxu0 %v5892
        %5940 = vmatpush.bf16.msra.mxu0 %v5891
        %5941 = vmatpush.bf16.msra.mxu0 %v5890
        %5942 = vmatpush.bf16.msra.mxu0 %v5889
        %5943 = vmatpush.bf16.msra.mxu0 %v5888
        %5944 = vmatmul.bf16.gmra.mxu0 %v5789
        %v5945 = vpop.f32.mrf.mxu0
        %v5946 = vadd.f32 0.0, %v5945
        %v5947 = vpop.f32.mrf.mxu0
        %v5948 = vadd.f32 0.0, %v5947
        %5949 = vdwg.mxu0
        %5950 = vmatpush.bf16.msra.mxu0 %v5903
        %5951 = vmatpush.bf16.msra.mxu0 %v5902
        %5952 = vmatpush.bf16.msra.mxu0 %v5901
        %5953 = vmatpush.bf16.msra.mxu0 %v5900
        %5954 = vmatpush.bf16.msra.mxu0 %v5899
        %5955 = vmatpush.bf16.msra.mxu0 %v5898
        %5956 = vmatpush.bf16.msra.mxu0 %v5897
        %5957 = vmatpush.bf16.msra.mxu0 %v5896
        %5958 = vmatmul.bf16.gmra.mxu0 %v5790
        %v5959 = vpop.f32.mrf.mxu0
        %v5960 = vadd.f32 %v5946, %v5959
        %v5961 = vpop.f32.mrf.mxu0
        %v5962 = vadd.f32 %v5948, %v5961
        %5963 = vdwg.mxu0
        %5964 = vmatpush.bf16.msra.mxu0 %v5911
        %5965 = vmatpush.bf16.msra.mxu0 %v5910
        %5966 = vmatpush.bf16.msra.mxu0 %v5909
        %5967 = vmatpush.bf16.msra.mxu0 %v5908
        %5968 = vmatpush.bf16.msra.mxu0 %v5907
        %5969 = vmatpush.bf16.msra.mxu0 %v5906
        %5970 = vmatpush.bf16.msra.mxu0 %v5905
        %5971 = vmatpush.bf16.msra.mxu0 %v5904
        %5972 = vmatmul.bf16.gmra.mxu0 %v5791
        %v5973 = vpop.f32.mrf.mxu0
        %v5974 = vadd.f32 %v5960, %v5973
        %v5975 = vpop.f32.mrf.mxu0
        %v5976 = vadd.f32 %v5962, %v5975
        %5977 = vdwg.mxu0
        %v6074 = vunpack.c.l.b16 %v5627
        %v6075 = vunpack.c.l.b16 %v5628
        %v6076 = vunpack.c.l.b16 %v5629
        %v6077 = vunpack.c.l.b16 %v5630
        %v6078 = vunpack.c.l.b16 %v5631
        %v6079 = vunpack.c.l.b16 %v5632
        %v6080 = vunpack.c.l.b16 %v5633
        %v6081 = vunpack.c.l.b16 %v5634
        %v6082 = vunpack.c.l.b16 %v5635
        %v6083 = vunpack.c.l.b16 %v5636
        %v6084 = vunpack.c.l.b16 %v5637
        %v6085 = vunpack.c.l.b16 %v5638
        %v6086 = vunpack.c.l.b16 %v5639
        %v6087 = vunpack.c.l.b16 %v5640
        %v6088 = vunpack.c.l.b16 %v5641
        %v6089 = vunpack.c.l.b16 %v5642
        %v6090 = vunpack.c.l.b16 %v5643
        %v6091 = vunpack.c.l.b16 %v5644
        %v6092 = vunpack.c.l.b16 %v5645
        %v6093 = vunpack.c.l.b16 %v5646
        %v6094 = vunpack.c.l.b16 %v5647
        %v6095 = vunpack.c.l.b16 %v5648
        %v6096 = vunpack.c.l.b16 %v5649
        %v6097 = vunpack.c.l.b16 %v5650
        %v6098 = vunpack.c.l.b16 %v5651
        %v6099 = vunpack.c.l.b16 %v5652
        %v6100 = vunpack.c.l.b16 %v5653
        %v6101 = vunpack.c.l.b16 %v5654
        %v6102 = vunpack.c.l.b16 %v5655
        %v6103 = vunpack.c.l.b16 %v5656
        %v6104 = vunpack.c.l.b16 %v5657
        %v6105 = vunpack.c.l.b16 %v5658
        %v6106 = vunpack.c.l.b16 %v5659
        %v6107 = vunpack.c.l.b16 %v5660
        %v6108 = vunpack.c.l.b16 %v5661
        %v6109 = vunpack.c.l.b16 %v5662
        %v6110 = vunpack.c.l.b16 %v5663
        %v6111 = vunpack.c.l.b16 %v5664
        %v6112 = vunpack.c.l.b16 %v5665
        %v6113 = vunpack.c.l.b16 %v5666
        %v6114 = vunpack.c.l.b16 %v5667
        %v6115 = vunpack.c.l.b16 %v5668
        %v6116 = vunpack.c.l.b16 %v5669
        %v6117 = vunpack.c.l.b16 %v5670
        %v6118 = vunpack.c.l.b16 %v5671
        %v6119 = vunpack.c.l.b16 %v5672
        %v6120 = vunpack.c.l.b16 %v5673
        %v6121 = vunpack.c.l.b16 %v5674
        %v6122 = vunpack.c.l.b16 %v5675
        %v6123 = vunpack.c.l.b16 %v5676
        %v6124 = vunpack.c.l.b16 %v5677
        %v6125 = vunpack.c.l.b16 %v5678
        %v6126 = vunpack.c.l.b16 %v5679
        %v6127 = vunpack.c.l.b16 %v5680
        %v6128 = vunpack.c.l.b16 %v5681
        %v6129 = vunpack.c.l.b16 %v5682
        %v6130 = vunpack.c.l.b16 %v5683
        %v6131 = vunpack.c.l.b16 %v5684
        %v6132 = vunpack.c.l.b16 %v5685
        %v6133 = vunpack.c.l.b16 %v5686
        %v6134 = vunpack.c.l.b16 %v5687
        %v6135 = vunpack.c.l.b16 %v5688
        %v6136 = vunpack.c.l.b16 %v5689
        %v6137 = vunpack.c.l.b16 %v5690
        %v6138 = vunpack.c.l.b16 %v5691
        %v6139 = vunpack.c.l.b16 %v5692
        %v6140 = vunpack.c.l.b16 %v5693
        %v6141 = vunpack.c.l.b16 %v5694
        %v6142 = vunpack.c.l.b16 %v5695
        %v6143 = vunpack.c.l.b16 %v5696
        %v6144 = vunpack.c.l.b16 %v5697
        %v6145 = vunpack.c.l.b16 %v5698
        %v6146 = vunpack.c.l.b16 %v5699
        %v6147 = vunpack.c.l.b16 %v5700
        %v6148 = vunpack.c.l.b16 %v5701
        %v6149 = vunpack.c.l.b16 %v5702
        %v6150 = vunpack.c.l.b16 %v5703
        %v6151 = vunpack.c.l.b16 %v5704
        %v6152 = vunpack.c.l.b16 %v5705
        %v6153 = vunpack.c.l.b16 %v5706
        %v6154 = vunpack.c.l.b16 %v5707
        %v6155 = vunpack.c.l.b16 %v5708
        %v6156 = vunpack.c.l.b16 %v5709
        %v6157 = vunpack.c.l.b16 %v5710
        %v6158 = vunpack.c.l.b16 %v5711
        %v6159 = vunpack.c.l.b16 %v5712
        %v6160 = vunpack.c.l.b16 %v5713
        %v6161 = vunpack.c.l.b16 %v5714
        %v6162 = vunpack.c.l.b16 %v5715
        %v6163 = vunpack.c.l.b16 %v5716
        %v6164 = vunpack.c.l.b16 %v5717
        %v6165 = vunpack.c.l.b16 %v5718
        %v6166 = vunpack.c.l.b16 %v5719
        %v6167 = vunpack.c.l.b16 %v5720
        %v6168 = vunpack.c.l.b16 %v5721
        %v6169 = vunpack.c.l.b16 %v5722
        %v6170 = vpack.c.b16 %v6075, %v6074
        %v6171 = vpack.c.b16 %v6077, %v6076
        %v6172 = vpack.c.b16 %v6079, %v6078
        %v6173 = vpack.c.b16 %v6081, %v6080
        %v6174 = vpack.c.b16 %v6083, %v6082
        %v6175 = vpack.c.b16 %v6085, %v6084
        %v6176 = vpack.c.b16 %v6087, %v6086
        %v6177 = vpack.c.b16 %v6089, %v6088
        %v6178 = vpack.c.b16 %v6091, %v6090
        %v6179 = vpack.c.b16 %v6093, %v6092
        %v6180 = vpack.c.b16 %v6095, %v6094
        %v6181 = vpack.c.b16 %v6097, %v6096
        %v6182 = vpack.c.b16 %v6099, %v6098
        %v6183 = vpack.c.b16 %v6101, %v6100
        %v6184 = vpack.c.b16 %v6103, %v6102
        %v6185 = vpack.c.b16 %v6105, %v6104
        %v6186 = vpack.c.b16 %v6107, %v6106
        %v6187 = vpack.c.b16 %v6109, %v6108
        %v6188 = vpack.c.b16 %v6111, %v6110
        %v6189 = vpack.c.b16 %v6113, %v6112
        %v6190 = vpack.c.b16 %v6115, %v6114
        %v6191 = vpack.c.b16 %v6117, %v6116
        %v6192 = vpack.c.b16 %v6119, %v6118
        %v6193 = vpack.c.b16 %v6121, %v6120
        %v6194 = vpack.c.b16 %v6123, %v6122
        %v6195 = vpack.c.b16 %v6125, %v6124
        %v6196 = vpack.c.b16 %v6127, %v6126
        %v6197 = vpack.c.b16 %v6129, %v6128
        %v6198 = vpack.c.b16 %v6131, %v6130
        %v6199 = vpack.c.b16 %v6133, %v6132
        %v6200 = vpack.c.b16 %v6135, %v6134
        %v6201 = vpack.c.b16 %v6137, %v6136
        %v6202 = vpack.c.b16 %v6139, %v6138
        %v6203 = vpack.c.b16 %v6141, %v6140
        %v6204 = vpack.c.b16 %v6143, %v6142
        %v6205 = vpack.c.b16 %v6145, %v6144
        %v6206 = vpack.c.b16 %v6147, %v6146
        %v6207 = vpack.c.b16 %v6149, %v6148
        %v6208 = vpack.c.b16 %v6151, %v6150
        %v6209 = vpack.c.b16 %v6153, %v6152
        %v6210 = vpack.c.b16 %v6155, %v6154
        %v6211 = vpack.c.b16 %v6157, %v6156
        %v6212 = vpack.c.b16 %v6159, %v6158
        %v6213 = vpack.c.b16 %v6161, %v6160
        %v6214 = vpack.c.b16 %v6163, %v6162
        %v6215 = vpack.c.b16 %v6165, %v6164
        %v6216 = vpack.c.b16 %v6167, %v6166
        %v6217 = vpack.c.b16 %v6169, %v6168
        %6266 = vmatpush.bf16.msra.mxu0 %v6177
        %6267 = vmatpush.bf16.msra.mxu0 %v6176
        %6268 = vmatpush.bf16.msra.mxu0 %v6175
        %6269 = vmatpush.bf16.msra.mxu0 %v6174
        %6270 = vmatpush.bf16.msra.mxu0 %v6173
        %6271 = vmatpush.bf16.msra.mxu0 %v6172
        %6272 = vmatpush.bf16.msra.mxu0 %v6171
        %6273 = vmatpush.bf16.msra.mxu0 %v6170
        %6274 = vmatmul.bf16.gmra.mxu0 %v5723
        %v6275 = vpop.f32.mrf.mxu0
        %v6276 = vadd.f32 %v5974, %v6275
        %v6277 = vpop.f32.mrf.mxu0
        %v6278 = vadd.f32 %v5976, %v6277
        %6279 = vdwg.mxu0
        %6280 = vmatpush.bf16.msra.mxu0 %v6185
        %6281 = vmatpush.bf16.msra.mxu0 %v6184
        %6282 = vmatpush.bf16.msra.mxu0 %v6183
        %6283 = vmatpush.bf16.msra.mxu0 %v6182
        %6284 = vmatpush.bf16.msra.mxu0 %v6181
        %6285 = vmatpush.bf16.msra.mxu0 %v6180
        %6286 = vmatpush.bf16.msra.mxu0 %v6179
        %6287 = vmatpush.bf16.msra.mxu0 %v6178
        %6288 = vmatmul.bf16.gmra.mxu0 %v5724
        %v6289 = vpop.f32.mrf.mxu0
        %v6290 = vadd.f32 %v6276, %v6289
        %v6291 = vpop.f32.mrf.mxu0
        %v6292 = vadd.f32 %v6278, %v6291
        %6293 = vdwg.mxu0
        %6294 = vmatpush.bf16.msra.mxu0 %v6193
        %6295 = vmatpush.bf16.msra.mxu0 %v6192
        %6296 = vmatpush.bf16.msra.mxu0 %v6191
        %6297 = vmatpush.bf16.msra.mxu0 %v6190
        %6298 = vmatpush.bf16.msra.mxu0 %v6189
        %6299 = vmatpush.bf16.msra.mxu0 %v6188
        %6300 = vmatpush.bf16.msra.mxu0 %v6187
        %6301 = vmatpush.bf16.msra.mxu0 %v6186
        %6302 = vmatmul.bf16.gmra.mxu0 %v5725
        %v6303 = vpop.f32.mrf.mxu0
        %v6304 = vadd.f32 %v6290, %v6303
        %v6305 = vpop.f32.mrf.mxu0
        %v6306 = vadd.f32 %v6292, %v6305
        %6307 = vdwg.mxu0
        %6308 = vmatpush.bf16.msra.mxu0 %v6201
        %6309 = vmatpush.bf16.msra.mxu0 %v6200
        %6310 = vmatpush.bf16.msra.mxu0 %v6199
        %6311 = vmatpush.bf16.msra.mxu0 %v6198
        %6312 = vmatpush.bf16.msra.mxu0 %v6197
        %6313 = vmatpush.bf16.msra.mxu0 %v6196
        %6314 = vmatpush.bf16.msra.mxu0 %v6195
        %6315 = vmatpush.bf16.msra.mxu0 %v6194
        %6316 = vmatmul.bf16.gmra.mxu0 %v5726
        %v6317 = vpop.f32.mrf.mxu0
        %v6318 = vadd.f32 %v6304, %v6317
        %v6319 = vpop.f32.mrf.mxu0
        %v6320 = vadd.f32 %v6306, %v6319
        %6321 = vdwg.mxu0
        %6322 = vmatpush.bf16.msra.mxu0 %v6209
        %6323 = vmatpush.bf16.msra.mxu0 %v6208
        %6324 = vmatpush.bf16.msra.mxu0 %v6207
        %6325 = vmatpush.bf16.msra.mxu0 %v6206
        %6326 = vmatpush.bf16.msra.mxu0 %v6205
        %6327 = vmatpush.bf16.msra.mxu0 %v6204
        %6328 = vmatpush.bf16.msra.mxu0 %v6203
        %6329 = vmatpush.bf16.msra.mxu0 %v6202
        %6330 = vmatmul.bf16.gmra.mxu0 %v5727
        %v6331 = vpop.f32.mrf.mxu0
        %v6332 = vadd.f32 %v6318, %v6331
        %v6333 = vpop.f32.mrf.mxu0
        %v6334 = vadd.f32 %v6320, %v6333
        %6335 = vdwg.mxu0
        %6336 = vmatpush.bf16.msra.mxu0 %v6217
        %6337 = vmatpush.bf16.msra.mxu0 %v6216
        %6338 = vmatpush.bf16.msra.mxu0 %v6215
        %6339 = vmatpush.bf16.msra.mxu0 %v6214
        %6340 = vmatpush.bf16.msra.mxu0 %v6213
        %6341 = vmatpush.bf16.msra.mxu0 %v6212
        %6342 = vmatpush.bf16.msra.mxu0 %v6211
        %6343 = vmatpush.bf16.msra.mxu0 %v6210
        %6344 = vmatmul.bf16.gmra.mxu0 %v5728
        %v6345 = vpop.f32.mrf.mxu0
        %v6346 = vadd.f32 %v6332, %v6345
        %v6347 = vpop.f32.mrf.mxu0
        %v6348 = vadd.f32 %v6334, %v6347
        %6349 = vdwg.mxu0
        %v6350 = vld [vmem:[%s57] sm:$0x7]
        %v6351 = vperm.slane %v6350, 0
        %v6352 = vadd.f32 %v6346, %v6351
        %v6353 = vadd.f32 %v6348, %v6351
        %v6354 = vadd.f32 %v6352, %v6353
        %v6355 = vrot.slane %v6354, 4
        %v6356 = vadd.f32 %v6354, %v6355
        %v6357 = vrot.slane %v6356, 2
        %v6358 = vadd.f32 %v6356, %v6357
        %v6359 = vrot.slane %v6358, 1
        %v6360 = vadd.f32 %v6358, %v6359
        %6361 = vmatpush.msra.mxu0 %v1730
        %6362 = vmatpush.msra.mxu0 %v1729
        %6363 = vmatpush.msra.mxu0 %v1728
        %6364 = vmatpush.msra.mxu0 %v1727
        %6365 = vmatpush.msra.mxu0 %v1726
        %6366 = vmatpush.msra.mxu0 %v1725
        %6367 = vmatpush.msra.mxu0 %v1724
        %6368 = vmatpush.msra.mxu0 %v1723
        %6369 = vmatpush.msra.mxu0 %v1722
        %6370 = vmatpush.msra.mxu0 %v1721
        %6371 = vmatpush.msra.mxu0 %v1720
        %6372 = vmatpush.msra.mxu0 %v1719
        %6373 = vmatpush.msra.mxu0 %v1718
        %6374 = vmatpush.msra.mxu0 %v1717
        %6375 = vmatpush.msra.mxu0 %v1716
        %6376 = vmatpush.msra.mxu0 %v1715
        %6377 = vmatmul.f32.gmra.mxu0 %v6360
        %v6378 = vpop.f32.mrf.mxu0
        %v6379 = vadd.f32 0.0, %v6378
        %6380 = vdwg.mxu0
        %v6381 = vmul.f32 %v6379, 0.00390625
        %v6383 = vsel %vm2323, %v6381, 0
        %6385 = vmatpush.msra.mxu0 0.0
        %6386 = vmatpush.msra.mxu0 0.0
        %6387 = vmatpush.msra.mxu0 0.0
        %6388 = vmatpush.msra.mxu0 0.0
        %6389 = vmatpush.msra.mxu0 0.0
        %6390 = vmatpush.msra.mxu0 0.0
        %6391 = vmatpush.msra.mxu0 0.0
        %6392 = vmatpush.msra.mxu0 0.0
        %6393 = vmatpush.msra.mxu0 0.0
        %6394 = vmatpush.msra.mxu0 0.0
        %6395 = vmatpush.msra.mxu0 0.0
        %6396 = vmatpush.msra.mxu0 0.0
        %6397 = vmatpush.msra.mxu0 0.0
        %6398 = vmatpush.msra.mxu0 0.0
        %6399 = vmatpush.msra.mxu0 0.0
        %6400 = vmatpush.msra.mxu0 %v1731
        %6401 = vmatmul.f32.gmra.mxu0 %v6383
        %v6402 = vpop.f32.mrf.mxu0
        %v6403 = vadd.f32 0.0, %v6402
        %6404 = vdwg.mxu0
        %v6405 = vperm.slane %v6403, 0
        %v6406 = vsub.f32 %v6352, %v6405
        %v6407 = vsub.f32 %v6353, %v6405
        %v6408 = vmul.f32 %v6406, %v6406
        %v6409 = vmul.f32 %v6407, %v6407
        %v6410 = vadd.f32 %v6408, %v6409
        %v6411 = vrot.slane %v6410, 4
        %v6412 = vadd.f32 %v6410, %v6411
        %v6413 = vrot.slane %v6412, 2
        %v6414 = vadd.f32 %v6412, %v6413
        %v6415 = vrot.slane %v6414, 1
        %v6416 = vadd.f32 %v6414, %v6415
        %6417 = vmatpush.msra.mxu0 %v1730
        %6418 = vmatpush.msra.mxu0 %v1729
        %6419 = vmatpush.msra.mxu0 %v1728
        %6420 = vmatpush.msra.mxu0 %v1727
        %6421 = vmatpush.msra.mxu0 %v1726
        %6422 = vmatpush.msra.mxu0 %v1725
        %6423 = vmatpush.msra.mxu0 %v1724
        %6424 = vmatpush.msra.mxu0 %v1723
        %6425 = vmatpush.msra.mxu0 %v1722
        %6426 = vmatpush.msra.mxu0 %v1721
        %6427 = vmatpush.msra.mxu0 %v1720
        %6428 = vmatpush.msra.mxu0 %v1719
        %6429 = vmatpush.msra.mxu0 %v1718
        %6430 = vmatpush.msra.mxu0 %v1717
        %6431 = vmatpush.msra.mxu0 %v1716
        %6432 = vmatpush.msra.mxu0 %v1715
        %6433 = vmatmul.f32.gmra.mxu0 %v6416
        %v6434 = vpop.f32.mrf.mxu0
        %v6435 = vadd.f32 0.0, %v6434
        %6436 = vdwg.mxu0
        %v6437 = vmul.f32 %v6435, 0.00390625
        %v6438 = vadd.f32 %v6437, 1e-05
        %v6439 = vrsqrt.pop %v6438
        %v6440 = vmul.f32 %v6439, %v6438
        %v6441 = vmul.f32 %v6440, %v6439
        %v6442 = vmul.f32 0.5, %v6441
        %v6443 = vsub.f32 1.5, %v6442
        %v6444 = vmul.f32 %v6439, %v6443
        %vm6445 = vweird.f32 %v6438
        %vm6446 = vweird.f32 %v6439
        %vm6447 = vmor %vm6445, %vm6446
        %v6448 = vsel %vm6447, %v6439, %v6444
        %v6450 = vsel %vm2323, %v6448, 0
        %6452 = vmatpush.msra.mxu0 0.0
        %6453 = vmatpush.msra.mxu0 0.0
        %6454 = vmatpush.msra.mxu0 0.0
        %6455 = vmatpush.msra.mxu0 0.0
        %6456 = vmatpush.msra.mxu0 0.0
        %6457 = vmatpush.msra.mxu0 0.0
        %6458 = vmatpush.msra.mxu0 0.0
        %6459 = vmatpush.msra.mxu0 0.0
        %6460 = vmatpush.msra.mxu0 0.0
        %6461 = vmatpush.msra.mxu0 0.0
        %6462 = vmatpush.msra.mxu0 0.0
        %6463 = vmatpush.msra.mxu0 0.0
        %6464 = vmatpush.msra.mxu0 0.0
        %6465 = vmatpush.msra.mxu0 0.0
        %6466 = vmatpush.msra.mxu0 0.0
        %6467 = vmatpush.msra.mxu0 %v1731
        %6468 = vmatmul.f32.gmra.mxu0 %v6450
        %v6469 = vpop.f32.mrf.mxu0
        %v6470 = vadd.f32 0.0, %v6469
        %6471 = vdwg.mxu0
        %v6473 = vrot.slane %v6470, 7
        %v6475 = vmul.f32 %v6350, %v6473
        %v6476 = vperm.slane %v6475, 1
        %v6477 = vmul.f32 %v6406, %v6476
        %v6478 = vmul.f32 %v6407, %v6476
        %v6479 = vperm.slane %v6350, 2
        %v6480 = vadd.f32 %v6477, %v6479
        %v6481 = vadd.f32 %v6478, %v6479
        %v6482 = vmul.f32 %v6480, 0.5
        %v6483 = vmul.f32 %v6481, 0.5
        %v6484 = vmul.f32 %v6480, 0.044715
        %v6485 = vmul.f32 %v6481, 0.044715
        %v6486 = vmul.f32 %v6484, %v6480
        %v6487 = vmul.f32 %v6485, %v6481
        %v6488 = vmul.f32 %v6486, %v6480
        %v6489 = vmul.f32 %v6487, %v6481
        %v6490 = vadd.f32 %v6480, %v6488
        %v6491 = vadd.f32 %v6481, %v6489
        %v6492 = vmul.f32 %v6490, 0.7978846
        %v6493 = vmul.f32 %v6491, 0.7978846
        %v6494 = vtanh.pop %v6492
        %v6495 = vtanh.pop %v6493
        %v6496 = vadd.f32 %v6494, 1.0
        %v6497 = vadd.f32 %v6495, 1.0
        %v6498 = vmul.f32 %v6482, %v6496
        %v6499 = vmul.f32 %v6483, %v6497
        %v6500 = vrot.slane %v6498, 7
        %v6501 = vrot.slane %v6499, 7
        %v6502 = vsel %vm2182, %v6500, %v6501
        %v6503 = vsel %vm2182, %v6501, %v6500
        %v6504 = vsel %vm2174, 0.0, %v6503
        %v6505 = vsel %vm2175, 0.0, %v6502
        %v6506 = vrot.slane %v6498, 1
        %v6507 = vrot.slane %v6499, 1
        %v6508 = vsel %vm2199, %v6506, %v6507
        %v6509 = vsel %vm2199, %v6507, %v6506
        %v6510 = vsel %vm3550, 0.0, %v6508
        %v6511 = vsel %vm3551, 0.0, %v6509
        %v6512 = vld [vmem:[%s59] sm:$0xf]
        %v6513 = vld [vmem:[%s59 + $0x4] sm:$0xf]
        %v6514 = vld [vmem:[%s59 + $0x8] sm:$0xf]
        %v6515 = vld [vmem:[%s59 + $0xc] sm:$0xf]
        %v6516 = vld [vmem:[%s59 + $0x10] sm:$0xf]
        %v6517 = vld [vmem:[%s59 + $0x14] sm:$0xf]
        %v6518 = vld [vmem:[%s59 + $0x18] sm:$0xf]
        %v6519 = vld [vmem:[%s59 + $0x1c] sm:$0xf]
        %v6520 = vld [vmem:[%s59 + $0x20] sm:$0xf]
        %v6521 = vld [vmem:[%s59 + $0x24] sm:$0xf]
        %v6522 = vld [vmem:[%s59 + $0x28] sm:$0xf]
        %v6523 = vld [vmem:[%s59 + $0x2c] sm:$0xf]
        %v6524 = vld [vmem:[%s59 + $0x30] sm:$0xf]
        %v6525 = vld [vmem:[%s59 + $0x34] sm:$0xf]
        %v6526 = vld [vmem:[%s59 + $0x38] sm:$0xf]
        %v6527 = vld [vmem:[%s59 + $0x3c] sm:$0xf]
        %v6528 = vld [vmem:[%s59 + $0x40] sm:$0xf]
        %v6529 = vld [vmem:[%s59 + $0x44] sm:$0xf]
        %v6530 = vld [vmem:[%s59 + $0x48] sm:$0xf]
        %v6531 = vld [vmem:[%s59 + $0x4c] sm:$0xf]
        %v6532 = vld [vmem:[%s59 + $0x50] sm:$0xf]
        %v6533 = vld [vmem:[%s59 + $0x54] sm:$0xf]
        %v6534 = vld [vmem:[%s59 + $0x58] sm:$0xf]
        %v6535 = vld [vmem:[%s59 + $0x5c] sm:$0xf]
        %v6536 = vld [vmem:[%s59 + $0x60] sm:$0xf]
        %v6537 = vld [vmem:[%s59 + $0x64] sm:$0xf]
        %v6538 = vld [vmem:[%s59 + $0x68] sm:$0xf]
        %v6539 = vld [vmem:[%s59 + $0x6c] sm:$0xf]
        %v6540 = vld [vmem:[%s59 + $0x70] sm:$0xf]
        %v6541 = vld [vmem:[%s59 + $0x74] sm:$0xf]
        %v6542 = vld [vmem:[%s59 + $0x78] sm:$0xf]
        %v6543 = vld [vmem:[%s59 + $0x7c] sm:$0xf]
        %v6544 = vld [vmem:[%s59 + $0x80] sm:$0xf]
        %v6545 = vld [vmem:[%s59 + $0x84] sm:$0xf]
        %v6546 = vld [vmem:[%s59 + $0x88] sm:$0xf]
        %v6547 = vld [vmem:[%s59 + $0x8c] sm:$0xf]
        %v6548 = vld [vmem:[%s59 + $0x90] sm:$0xf]
        %v6549 = vld [vmem:[%s59 + $0x94] sm:$0xf]
        %v6550 = vld [vmem:[%s59 + $0x98] sm:$0xf]
        %v6551 = vld [vmem:[%s59 + $0x9c] sm:$0xf]
        %v6552 = vld [vmem:[%s59 + $0xa0] sm:$0xf]
        %v6553 = vld [vmem:[%s59 + $0xa4] sm:$0xf]
        %v6554 = vld [vmem:[%s59 + $0xa8] sm:$0xf]
        %v6555 = vld [vmem:[%s59 + $0xac] sm:$0xf]
        %v6556 = vld [vmem:[%s59 + $0xb0] sm:$0xf]
        %v6557 = vld [vmem:[%s59 + $0xb4] sm:$0xf]
        %v6558 = vld [vmem:[%s59 + $0xb8] sm:$0xf]
        %v6559 = vld [vmem:[%s59 + $0xbc] sm:$0xf]
        %v6560 = vpack.c.bf16 %v6505, %v6504
        %v6561 = vpack.c.bf16 %v6499, %v6498
        %v6562 = vpack.c.bf16 %v6511, %v6510
        %v6563 = vld [vmem:[%s61] sm:$0x7]
        %v6564 = vperm.slane %v6563, 0
        %v6613 = vunpack.c.l.b16 %v6512
        %v6614 = vunpack.c.l.b16 %v6513
        %v6615 = vunpack.c.l.b16 %v6514
        %v6616 = vunpack.c.l.b16 %v6515
        %v6617 = vunpack.c.l.b16 %v6516
        %v6618 = vunpack.c.l.b16 %v6517
        %v6619 = vunpack.c.l.b16 %v6518
        %v6620 = vunpack.c.l.b16 %v6519
        %v6621 = vunpack.c.l.b16 %v6520
        %v6622 = vunpack.c.l.b16 %v6521
        %v6623 = vunpack.c.l.b16 %v6522
        %v6624 = vunpack.c.l.b16 %v6523
        %v6625 = vunpack.c.l.b16 %v6524
        %v6626 = vunpack.c.l.b16 %v6525
        %v6627 = vunpack.c.l.b16 %v6526
        %v6628 = vunpack.c.l.b16 %v6527
        %v6629 = vunpack.c.l.b16 %v6528
        %v6630 = vunpack.c.l.b16 %v6529
        %v6631 = vunpack.c.l.b16 %v6530
        %v6632 = vunpack.c.l.b16 %v6531
        %v6633 = vunpack.c.l.b16 %v6532
        %v6634 = vunpack.c.l.b16 %v6533
        %v6635 = vunpack.c.l.b16 %v6534
        %v6636 = vunpack.c.l.b16 %v6535
        %v6637 = vunpack.c.l.b16 %v6536
        %v6638 = vunpack.c.l.b16 %v6537
        %v6639 = vunpack.c.l.b16 %v6538
        %v6640 = vunpack.c.l.b16 %v6539
        %v6641 = vunpack.c.l.b16 %v6540
        %v6642 = vunpack.c.l.b16 %v6541
        %v6643 = vunpack.c.l.b16 %v6542
        %v6644 = vunpack.c.l.b16 %v6543
        %v6645 = vunpack.c.l.b16 %v6544
        %v6646 = vunpack.c.l.b16 %v6545
        %v6647 = vunpack.c.l.b16 %v6546
        %v6648 = vunpack.c.l.b16 %v6547
        %v6649 = vunpack.c.l.b16 %v6548
        %v6650 = vunpack.c.l.b16 %v6549
        %v6651 = vunpack.c.l.b16 %v6550
        %v6652 = vunpack.c.l.b16 %v6551
        %v6653 = vunpack.c.l.b16 %v6552
        %v6654 = vunpack.c.l.b16 %v6553
        %v6655 = vunpack.c.l.b16 %v6554
        %v6656 = vunpack.c.l.b16 %v6555
        %v6657 = vunpack.c.l.b16 %v6556
        %v6658 = vunpack.c.l.b16 %v6557
        %v6659 = vunpack.c.l.b16 %v6558
        %v6660 = vunpack.c.l.b16 %v6559
        %v6661 = vpack.c.b16 %v6614, %v6613
        %v6662 = vpack.c.b16 %v6616, %v6615
        %v6663 = vpack.c.b16 %v6618, %v6617
        %v6664 = vpack.c.b16 %v6620, %v6619
        %v6665 = vpack.c.b16 %v6622, %v6621
        %v6666 = vpack.c.b16 %v6624, %v6623
        %v6667 = vpack.c.b16 %v6626, %v6625
        %v6668 = vpack.c.b16 %v6628, %v6627
        %v6669 = vpack.c.b16 %v6630, %v6629
        %v6670 = vpack.c.b16 %v6632, %v6631
        %v6671 = vpack.c.b16 %v6634, %v6633
        %v6672 = vpack.c.b16 %v6636, %v6635
        %v6673 = vpack.c.b16 %v6638, %v6637
        %v6674 = vpack.c.b16 %v6640, %v6639
        %v6675 = vpack.c.b16 %v6642, %v6641
        %v6676 = vpack.c.b16 %v6644, %v6643
        %v6677 = vpack.c.b16 %v6646, %v6645
        %v6678 = vpack.c.b16 %v6648, %v6647
        %v6679 = vpack.c.b16 %v6650, %v6649
        %v6680 = vpack.c.b16 %v6652, %v6651
        %v6681 = vpack.c.b16 %v6654, %v6653
        %v6682 = vpack.c.b16 %v6656, %v6655
        %v6683 = vpack.c.b16 %v6658, %v6657
        %v6684 = vpack.c.b16 %v6660, %v6659
        %6709 = vmatpush.bf16.msra.mxu0 %v6668
        %6710 = vmatpush.bf16.msra.mxu0 %v6667
        %6711 = vmatpush.bf16.msra.mxu0 %v6666
        %6712 = vmatpush.bf16.msra.mxu0 %v6665
        %6713 = vmatpush.bf16.msra.mxu0 %v6664
        %6714 = vmatpush.bf16.msra.mxu0 %v6663
        %6715 = vmatpush.bf16.msra.mxu0 %v6662
        %6716 = vmatpush.bf16.msra.mxu0 %v6661
        %6717 = vmatmul.bf16.gmra.mxu0 %v6560
        %v6718 = vpop.f32.mrf.mxu0
        %v6719 = vadd.f32 %v6564, %v6718
        %v6720 = vpop.f32.mrf.mxu0
        %v6721 = vadd.f32 %v6564, %v6720
        %6722 = vdwg.mxu0
        %6723 = vmatpush.bf16.msra.mxu0 %v6676
        %6724 = vmatpush.bf16.msra.mxu0 %v6675
        %6725 = vmatpush.bf16.msra.mxu0 %v6674
        %6726 = vmatpush.bf16.msra.mxu0 %v6673
        %6727 = vmatpush.bf16.msra.mxu0 %v6672
        %6728 = vmatpush.bf16.msra.mxu0 %v6671
        %6729 = vmatpush.bf16.msra.mxu0 %v6670
        %6730 = vmatpush.bf16.msra.mxu0 %v6669
        %6731 = vmatmul.bf16.gmra.mxu0 %v6561
        %v6732 = vpop.f32.mrf.mxu0
        %v6733 = vadd.f32 %v6719, %v6732
        %v6734 = vpop.f32.mrf.mxu0
        %v6735 = vadd.f32 %v6721, %v6734
        %6736 = vdwg.mxu0
        %6737 = vmatpush.bf16.msra.mxu0 %v6684
        %6738 = vmatpush.bf16.msra.mxu0 %v6683
        %6739 = vmatpush.bf16.msra.mxu0 %v6682
        %6740 = vmatpush.bf16.msra.mxu0 %v6681
        %6741 = vmatpush.bf16.msra.mxu0 %v6680
        %6742 = vmatpush.bf16.msra.mxu0 %v6679
        %6743 = vmatpush.bf16.msra.mxu0 %v6678
        %6744 = vmatpush.bf16.msra.mxu0 %v6677
        %6745 = vmatmul.bf16.gmra.mxu0 %v6562
        %v6746 = vpop.f32.mrf.mxu0
        %v6747 = vadd.f32 %v6733, %v6746
        %v6748 = vpop.f32.mrf.mxu0
        %v6749 = vadd.f32 %v6735, %v6748
        %6750 = vdwg.mxu0
        %v6751 = vadd.f32 %v6747, %v6749
        %v6752 = vrot.slane %v6751, 4
        %v6753 = vadd.f32 %v6751, %v6752
        %v6754 = vrot.slane %v6753, 2
        %v6755 = vadd.f32 %v6753, %v6754
        %v6756 = vrot.slane %v6755, 1
        %v6757 = vadd.f32 %v6755, %v6756
        %6758 = vmatpush.msra.mxu0 %v1730
        %6759 = vmatpush.msra.mxu0 %v1729
        %6760 = vmatpush.msra.mxu0 %v1728
        %6761 = vmatpush.msra.mxu0 %v1727
        %6762 = vmatpush.msra.mxu0 %v1726
        %6763 = vmatpush.msra.mxu0 %v1725
        %6764 = vmatpush.msra.mxu0 %v1724
        %6765 = vmatpush.msra.mxu0 %v1723
        %6766 = vmatpush.msra.mxu0 %v1722
        %6767 = vmatpush.msra.mxu0 %v1721
        %6768 = vmatpush.msra.mxu0 %v1720
        %6769 = vmatpush.msra.mxu0 %v1719
        %6770 = vmatpush.msra.mxu0 %v1718
        %6771 = vmatpush.msra.mxu0 %v1717
        %6772 = vmatpush.msra.mxu0 %v1716
        %6773 = vmatpush.msra.mxu0 %v1715
        %6774 = vmatmul.f32.gmra.mxu0 %v6757
        %v6775 = vpop.f32.mrf.mxu0
        %v6776 = vadd.f32 0.0, %v6775
        %6777 = vdwg.mxu0
        %v6778 = vmul.f32 %v6776, 0.00390625
        %v6780 = vsel %vm2323, %v6778, 0
        %6782 = vmatpush.msra.mxu0 0.0
        %6783 = vmatpush.msra.mxu0 0.0
        %6784 = vmatpush.msra.mxu0 0.0
        %6785 = vmatpush.msra.mxu0 0.0
        %6786 = vmatpush.msra.mxu0 0.0
        %6787 = vmatpush.msra.mxu0 0.0
        %6788 = vmatpush.msra.mxu0 0.0
        %6789 = vmatpush.msra.mxu0 0.0
        %6790 = vmatpush.msra.mxu0 0.0
        %6791 = vmatpush.msra.mxu0 0.0
        %6792 = vmatpush.msra.mxu0 0.0
        %6793 = vmatpush.msra.mxu0 0.0
        %6794 = vmatpush.msra.mxu0 0.0
        %6795 = vmatpush.msra.mxu0 0.0
        %6796 = vmatpush.msra.mxu0 0.0
        %6797 = vmatpush.msra.mxu0 %v1731
        %6798 = vmatmul.f32.gmra.mxu0 %v6780
        %v6799 = vpop.f32.mrf.mxu0
        %v6800 = vadd.f32 0.0, %v6799
        %6801 = vdwg.mxu0
        %v6802 = vperm.slane %v6800, 0
        %v6803 = vsub.f32 %v6747, %v6802
        %v6804 = vsub.f32 %v6749, %v6802
        %v6805 = vmul.f32 %v6803, %v6803
        %v6806 = vmul.f32 %v6804, %v6804
        %v6807 = vadd.f32 %v6805, %v6806
        %v6808 = vrot.slane %v6807, 4
        %v6809 = vadd.f32 %v6807, %v6808
        %v6810 = vrot.slane %v6809, 2
        %v6811 = vadd.f32 %v6809, %v6810
        %v6812 = vrot.slane %v6811, 1
        %v6813 = vadd.f32 %v6811, %v6812
        %6814 = vmatpush.msra.mxu0 %v1730
        %6815 = vmatpush.msra.mxu0 %v1729
        %6816 = vmatpush.msra.mxu0 %v1728
        %6817 = vmatpush.msra.mxu0 %v1727
        %6818 = vmatpush.msra.mxu0 %v1726
        %6819 = vmatpush.msra.mxu0 %v1725
        %6820 = vmatpush.msra.mxu0 %v1724
        %6821 = vmatpush.msra.mxu0 %v1723
        %6822 = vmatpush.msra.mxu0 %v1722
        %6823 = vmatpush.msra.mxu0 %v1721
        %6824 = vmatpush.msra.mxu0 %v1720
        %6825 = vmatpush.msra.mxu0 %v1719
        %6826 = vmatpush.msra.mxu0 %v1718
        %6827 = vmatpush.msra.mxu0 %v1717
        %6828 = vmatpush.msra.mxu0 %v1716
        %6829 = vmatpush.msra.mxu0 %v1715
        %6830 = vmatmul.f32.gmra.mxu0 %v6813
        %v6831 = vpop.f32.mrf.mxu0
        %v6832 = vadd.f32 0.0, %v6831
        %6833 = vdwg.mxu0
        %v6834 = vmul.f32 %v6832, 0.00390625
        %v6835 = vadd.f32 %v6834, 1e-05
        %v6836 = vrsqrt.pop %v6835
        %v6837 = vmul.f32 %v6836, %v6835
        %v6838 = vmul.f32 %v6837, %v6836
        %v6839 = vmul.f32 0.5, %v6838
        %v6840 = vsub.f32 1.5, %v6839
        %v6841 = vmul.f32 %v6836, %v6840
        %vm6842 = vweird.f32 %v6835
        %vm6843 = vweird.f32 %v6836
        %vm6844 = vmor %vm6842, %vm6843
        %v6845 = vsel %vm6844, %v6836, %v6841
        %v6847 = vsel %vm2323, %v6845, 0
        %6849 = vmatpush.msra.mxu0 0.0
        %6850 = vmatpush.msra.mxu0 0.0
        %6851 = vmatpush.msra.mxu0 0.0
        %6852 = vmatpush.msra.mxu0 0.0
        %6853 = vmatpush.msra.mxu0 0.0
        %6854 = vmatpush.msra.mxu0 0.0
        %6855 = vmatpush.msra.mxu0 0.0
        %6856 = vmatpush.msra.mxu0 0.0
        %6857 = vmatpush.msra.mxu0 0.0
        %6858 = vmatpush.msra.mxu0 0.0
        %6859 = vmatpush.msra.mxu0 0.0
        %6860 = vmatpush.msra.mxu0 0.0
        %6861 = vmatpush.msra.mxu0 0.0
        %6862 = vmatpush.msra.mxu0 0.0
        %6863 = vmatpush.msra.mxu0 0.0
        %6864 = vmatpush.msra.mxu0 %v1731
        %6865 = vmatmul.f32.gmra.mxu0 %v6847
        %v6866 = vpop.f32.mrf.mxu0
        %v6867 = vadd.f32 0.0, %v6866
        %6868 = vdwg.mxu0
        %v6870 = vrot.slane %v6867, 7
        %v6872 = vmul.f32 %v6563, %v6870
        %v6873 = vperm.slane %v6872, 1
        %v6874 = vmul.f32 %v6803, %v6873
        %v6875 = vmul.f32 %v6804, %v6873
        %v6876 = vperm.slane %v6563, 2
        %v6877 = vadd.f32 %v6874, %v6876
        %v6878 = vadd.f32 %v6875, %v6876
        %v6879 = vmul.f32 %v6877, 0.5
        %v6880 = vmul.f32 %v6878, 0.5
        %v6881 = vmul.f32 %v6877, 0.044715
        %v6882 = vmul.f32 %v6878, 0.044715
        %v6883 = vmul.f32 %v6881, %v6877
        %v6884 = vmul.f32 %v6882, %v6878
        %v6885 = vmul.f32 %v6883, %v6877
        %v6886 = vmul.f32 %v6884, %v6878
        %v6887 = vadd.f32 %v6877, %v6885
        %v6888 = vadd.f32 %v6878, %v6886
        %v6889 = vmul.f32 %v6887, 0.7978846
        %v6890 = vmul.f32 %v6888, 0.7978846
        %v6891 = vtanh.pop %v6889
        %v6892 = vtanh.pop %v6890
        %v6893 = vadd.f32 %v6891, 1.0
        %v6894 = vadd.f32 %v6892, 1.0
        %v6895 = vmul.f32 %v6879, %v6893
        %v6896 = vmul.f32 %v6880, %v6894
        %v6897 = vperm.slane %v2126, 0
        %v6898 = vadd.f32 %v6895, %v6897
        %v6899 = vadd.f32 %v6896, %v6897
        %v6900 = vld [vmem:[%s7] sm:$0xf]
        %v6901 = vld [vmem:[%s7 + $0x4] sm:$0xf]
        %v6902 = vld [vmem:[%s7 + $0x8] sm:$0xf]
        %v6903 = vld [vmem:[%s7 + $0xc] sm:$0xf]
        %v6904 = vpack.c.bf16 %v6899, %v6898
        %v6909 = vunpack.c.l.b16 %v6900
        %v6910 = vunpack.c.l.b16 %v6901
        %v6911 = vunpack.c.l.b16 %v6902
        %v6912 = vunpack.c.l.b16 %v6903
        %v6913 = vpack.c.b16 %v6910, %v6909
        %v6914 = vpack.c.b16 %v6912, %v6911
        %vm6915 = vcmask 130048
        %v6917 = vsel %vm6915, %v6913, 0
        %v6920 = vsel %vm6915, %v6914, 0
        %6922 = vmatpush.bf16.msra.mxu0 0
        %6923 = vmatpush.bf16.msra.mxu0 0
        %6924 = vmatpush.bf16.msra.mxu0 0
        %6925 = vmatpush.bf16.msra.mxu0 0
        %6926 = vmatpush.bf16.msra.mxu0 0
        %6927 = vmatpush.bf16.msra.mxu0 0
        %6928 = vmatpush.bf16.msra.mxu0 0
        %6929 = vmatpush.bf16.msra.mxu0 %v6904
        %6930 = vmatmul.bf16.gmra.mxu0 %v6917
        %v6931 = vpop.f32.mrf.mxu0
        %v6932 = vadd.f32 0.0, %v6931
        %v6933 = vpop.f32.mrf.mxu0
        %v6934 = vadd.f32 0.0, %v6933
        %6935 = vmatmul.bf16.gmra.mxu0 %v6920
        %v6936 = vpop.f32.mrf.mxu0
        %v6937 = vadd.f32 0.0, %v6936
        %v6938 = vpop.f32.mrf.mxu0
        %v6939 = vadd.f32 0.0, %v6938
        %6940 = vdwg.mxu0
        %v6941 = vrot.slane %v6932, 7
        %v6942 = vrot.slane %v6934, 7
        %v6943 = vrot.slane %v6937, 7
        %v6944 = vrot.slane %v6939, 7
        %v6945 = vsel %vm2182, %v6943, %v6944
        %v6946 = vsel %vm2182, %v6942, %v6943
        %v6947 = vsel %vm2182, %v6941, %v6942
        %v6948 = vsel %vm2182, %v6944, %v6941
        %v6949 = vsel %vm2174, 0.0, %v6948
        %v6950 = vsel %vm2175, 0.0, %v6947
        %v6951 = vsel %vm2176, 0.0, %v6946
        %v6952 = vsel %vm2177, 0.0, %v6945
        %v6953 = vrot.slane %v6932, 1
        %v6954 = vrot.slane %v6934, 1
        %v6955 = vrot.slane %v6937, 1
        %v6956 = vrot.slane %v6939, 1
        %v6957 = vsel %vm2199, %v6955, %v6956
        %v6958 = vsel %vm2199, %v6954, %v6955
        %v6959 = vsel %vm2199, %v6953, %v6954
        %v6960 = vsel %vm2199, %v6956, %v6953
        %v6961 = vsel %vm2191, 0.0, %v6959
        %v6962 = vsel %vm2192, 0.0, %v6958
        %v6963 = vsel %vm2193, 0.0, %v6957
        %v6964 = vsel %vm2194, 0.0, %v6960
        %v6965 = vld [vmem:[%s63] sm:$0xf]
        %v6966 = vld [vmem:[%s63 + $0x4] sm:$0xf]
        %v6967 = vld [vmem:[%s63 + $0x8] sm:$0xf]
        %v6968 = vld [vmem:[%s63 + $0xc] sm:$0xf]
        %v6969 = vld [vmem:[%s63 + $0x10] sm:$0xf]
        %v6970 = vld [vmem:[%s63 + $0x14] sm:$0xf]
        %v6971 = vld [vmem:[%s63 + $0x18] sm:$0xf]
        %v6972 = vld [vmem:[%s63 + $0x1c] sm:$0xf]
        %v6973 = vld [vmem:[%s63 + $0x20] sm:$0xf]
        %v6974 = vld [vmem:[%s63 + $0x24] sm:$0xf]
        %v6975 = vld [vmem:[%s63 + $0x28] sm:$0xf]
        %v6976 = vld [vmem:[%s63 + $0x2c] sm:$0xf]
        %v6977 = vld [vmem:[%s63 + $0x30] sm:$0xf]
        %v6978 = vld [vmem:[%s63 + $0x34] sm:$0xf]
        %v6979 = vld [vmem:[%s63 + $0x38] sm:$0xf]
        %v6980 = vld [vmem:[%s63 + $0x3c] sm:$0xf]
        %v6981 = vld [vmem:[%s63 + $0x40] sm:$0xf]
        %v6982 = vld [vmem:[%s63 + $0x44] sm:$0xf]
        %v6983 = vld [vmem:[%s63 + $0x48] sm:$0xf]
        %v6984 = vld [vmem:[%s63 + $0x4c] sm:$0xf]
        %v6985 = vld [vmem:[%s63 + $0x50] sm:$0xf]
        %v6986 = vld [vmem:[%s63 + $0x54] sm:$0xf]
        %v6987 = vld [vmem:[%s63 + $0x58] sm:$0xf]
        %v6988 = vld [vmem:[%s63 + $0x5c] sm:$0xf]
        %v6989 = vld [vmem:[%s63 + $0x60] sm:$0xf]
        %v6990 = vld [vmem:[%s63 + $0x64] sm:$0xf]
        %v6991 = vld [vmem:[%s63 + $0x68] sm:$0xf]
        %v6992 = vld [vmem:[%s63 + $0x6c] sm:$0xf]
        %v6993 = vld [vmem:[%s63 + $0x70] sm:$0xf]
        %v6994 = vld [vmem:[%s63 + $0x74] sm:$0xf]
        %v6995 = vld [vmem:[%s63 + $0x78] sm:$0xf]
        %v6996 = vld [vmem:[%s63 + $0x7c] sm:$0xf]
        %v6997 = vld [vmem:[%s63 + $0x80] sm:$0xf]
        %v6998 = vld [vmem:[%s63 + $0x84] sm:$0xf]
        %v6999 = vld [vmem:[%s63 + $0x88] sm:$0xf]
        %v7000 = vld [vmem:[%s63 + $0x8c] sm:$0xf]
        %v7001 = vld [vmem:[%s63 + $0x90] sm:$0xf]
        %v7002 = vld [vmem:[%s63 + $0x94] sm:$0xf]
        %v7003 = vld [vmem:[%s63 + $0x98] sm:$0xf]
        %v7004 = vld [vmem:[%s63 + $0x9c] sm:$0xf]
        %v7005 = vld [vmem:[%s63 + $0xa0] sm:$0xf]
        %v7006 = vld [vmem:[%s63 + $0xa4] sm:$0xf]
        %v7007 = vld [vmem:[%s63 + $0xa8] sm:$0xf]
        %v7008 = vld [vmem:[%s63 + $0xac] sm:$0xf]
        %v7009 = vld [vmem:[%s63 + $0xb0] sm:$0xf]
        %v7010 = vld [vmem:[%s63 + $0xb4] sm:$0xf]
        %v7011 = vld [vmem:[%s63 + $0xb8] sm:$0xf]
        %v7012 = vld [vmem:[%s63 + $0xbc] sm:$0xf]
        %v7013 = vpack.c.bf16 %v6950, %v6949
        %v7014 = vpack.c.bf16 %v6934, %v6932
        %v7015 = vpack.c.bf16 %v6962, %v6961
        %v7016 = vpack.c.bf16 %v6952, %v6951
        %v7017 = vpack.c.bf16 %v6939, %v6937
        %v7018 = vpack.c.bf16 %v6964, %v6963
        %v7019 = vrot.slane %v3527, 7
        %v7020 = vrot.slane %v3528, 7
        %v7021 = vrot.slane %v3529, 7
        %v7022 = vrot.slane %v3530, 7
        %v7023 = vsel %vm2182, %v7021, %v7022
        %v7024 = vsel %vm2182, %v7020, %v7021
        %v7025 = vsel %vm2182, %v7019, %v7020
        %v7026 = vsel %vm2182, %v7022, %v7019
        %v7027 = vsel %vm2174, 0.0, %v7026
        %v7028 = vsel %vm2175, 0.0, %v7025
        %v7029 = vsel %vm2176, 0.0, %v7024
        %v7030 = vsel %vm2177, 0.0, %v7023
        %v7031 = vrot.slane %v3527, 1
        %v7032 = vrot.slane %v3528, 1
        %v7033 = vrot.slane %v3529, 1
        %v7034 = vrot.slane %v3530, 1
        %v7035 = vsel %vm2199, %v7033, %v7034
        %v7036 = vsel %vm2199, %v7032, %v7033
        %v7037 = vsel %vm2199, %v7031, %v7032
        %v7038 = vsel %vm2199, %v7034, %v7031
        %v7039 = vsel %vm2191, 0.0, %v7037
        %v7040 = vsel %vm2192, 0.0, %v7036
        %v7041 = vsel %vm2193, 0.0, %v7035
        %v7042 = vsel %vm2194, 0.0, %v7038
        %7047 = vrot.lane.b32.xlu0 %v3527, 64
        %v7048 = vpop.permute.xlu0 %7047
        %7049 = vrot.lane.b32.xlu0 %v3528, 64
        %v7050 = vpop.permute.xlu0 %7049
        %7051 = vrot.lane.b32.xlu0 %v3529, 64
        %v7052 = vpop.permute.xlu0 %7051
        %7053 = vrot.lane.b32.xlu0 %v3530, 64
        %v7054 = vpop.permute.xlu0 %7053
        %v7059 = vsel %vm2537, %v7027, %v7048
        %v7060 = vsel %vm2537, %v7028, %v7050
        %v7061 = vsel %vm2537, %v7029, %v7052
        %v7062 = vsel %vm2537, %v7030, %v7054
        %v7063 = vld [vmem:[%s65] sm:$0xf]
        %v7064 = vld [vmem:[%s65 + $0x4] sm:$0xf]
        %v7065 = vld [vmem:[%s65 + $0x8] sm:$0xf]
        %v7066 = vld [vmem:[%s65 + $0xc] sm:$0xf]
        %v7067 = vld [vmem:[%s65 + $0x10] sm:$0xf]
        %v7068 = vld [vmem:[%s65 + $0x14] sm:$0xf]
        %v7069 = vld [vmem:[%s65 + $0x18] sm:$0xf]
        %v7070 = vld [vmem:[%s65 + $0x1c] sm:$0xf]
        %v7071 = vld [vmem:[%s65 + $0x20] sm:$0xf]
        %v7072 = vld [vmem:[%s65 + $0x24] sm:$0xf]
        %v7073 = vld [vmem:[%s65 + $0x28] sm:$0xf]
        %v7074 = vld [vmem:[%s65 + $0x2c] sm:$0xf]
        %v7075 = vld [vmem:[%s65 + $0x30] sm:$0xf]
        %v7076 = vld [vmem:[%s65 + $0x34] sm:$0xf]
        %v7077 = vld [vmem:[%s65 + $0x38] sm:$0xf]
        %v7078 = vld [vmem:[%s65 + $0x3c] sm:$0xf]
        %v7079 = vld [vmem:[%s65 + $0x40] sm:$0xf]
        %v7080 = vld [vmem:[%s65 + $0x44] sm:$0xf]
        %v7081 = vld [vmem:[%s65 + $0x48] sm:$0xf]
        %v7082 = vld [vmem:[%s65 + $0x4c] sm:$0xf]
        %v7083 = vld [vmem:[%s65 + $0x50] sm:$0xf]
        %v7084 = vld [vmem:[%s65 + $0x54] sm:$0xf]
        %v7085 = vld [vmem:[%s65 + $0x58] sm:$0xf]
        %v7086 = vld [vmem:[%s65 + $0x5c] sm:$0xf]
        %v7087 = vpack.c.bf16 %v7060, %v7059
        %v7088 = vpack.c.bf16 %v7040, %v7039
        %v7089 = vpack.c.bf16 %v7062, %v7061
        %v7090 = vpack.c.bf16 %v7042, %v7041
        %v7115 = vunpack.c.l.b16 %v7063
        %v7116 = vunpack.c.l.b16 %v7064
        %v7117 = vunpack.c.l.b16 %v7065
        %v7118 = vunpack.c.l.b16 %v7066
        %v7119 = vunpack.c.l.b16 %v7067
        %v7120 = vunpack.c.l.b16 %v7068
        %v7121 = vunpack.c.l.b16 %v7069
        %v7122 = vunpack.c.l.b16 %v7070
        %v7123 = vunpack.c.l.b16 %v7071
        %v7124 = vunpack.c.l.b16 %v7072
        %v7125 = vunpack.c.l.b16 %v7073
        %v7126 = vunpack.c.l.b16 %v7074
        %v7127 = vunpack.c.l.b16 %v7075
        %v7128 = vunpack.c.l.b16 %v7076
        %v7129 = vunpack.c.l.b16 %v7077
        %v7130 = vunpack.c.l.b16 %v7078
        %v7131 = vunpack.c.l.b16 %v7079
        %v7132 = vunpack.c.l.b16 %v7080
        %v7133 = vunpack.c.l.b16 %v7081
        %v7134 = vunpack.c.l.b16 %v7082
        %v7135 = vunpack.c.l.b16 %v7083
        %v7136 = vunpack.c.l.b16 %v7084
        %v7137 = vunpack.c.l.b16 %v7085
        %v7138 = vunpack.c.l.b16 %v7086
        %v7139 = vpack.c.b16 %v7116, %v7115
        %v7140 = vpack.c.b16 %v7118, %v7117
        %v7141 = vpack.c.b16 %v7120, %v7119
        %v7142 = vpack.c.b16 %v7122, %v7121
        %v7143 = vpack.c.b16 %v7124, %v7123
        %v7144 = vpack.c.b16 %v7126, %v7125
        %v7145 = vpack.c.b16 %v7128, %v7127
        %v7146 = vpack.c.b16 %v7130, %v7129
        %v7147 = vpack.c.b16 %v7132, %v7131
        %v7148 = vpack.c.b16 %v7134, %v7133
        %v7149 = vpack.c.b16 %v7136, %v7135
        %v7150 = vpack.c.b16 %v7138, %v7137
        %v7164 = vsel %vm2537, %v7088, 0
        %v7167 = vsel %vm2537, %v7090, 0
        %7169 = vmatpush.bf16.msra.mxu0 %v7146
        %7170 = vmatpush.bf16.msra.mxu0 %v7145
        %7171 = vmatpush.bf16.msra.mxu0 %v7144
        %7172 = vmatpush.bf16.msra.mxu0 %v7143
        %7173 = vmatpush.bf16.msra.mxu0 %v7142
        %7174 = vmatpush.bf16.msra.mxu0 %v7141
        %7175 = vmatpush.bf16.msra.mxu0 %v7140
        %7176 = vmatpush.bf16.msra.mxu0 %v7139
        %7177 = vmatmul.bf16.gmra.mxu0 %v7087
        %v7178 = vpop.f32.mrf.mxu0
        %v7179 = vadd.f32 0.0, %v7178
        %v7180 = vpop.f32.mrf.mxu0
        %v7181 = vadd.f32 0.0, %v7180
        %7182 = vmatmul.bf16.gmra.mxu0 %v7089
        %v7183 = vpop.f32.mrf.mxu0
        %v7184 = vadd.f32 0.0, %v7183
        %v7185 = vpop.f32.mrf.mxu0
        %v7186 = vadd.f32 0.0, %v7185
        %7187 = vdwg.mxu0
        %7188 = vmatpush.bf16.msra.mxu0 0
        %7189 = vmatpush.bf16.msra.mxu0 0
        %7190 = vmatpush.bf16.msra.mxu0 0
        %7191 = vmatpush.bf16.msra.mxu0 0
        %7192 = vmatpush.bf16.msra.mxu0 %v7150
        %7193 = vmatpush.bf16.msra.mxu0 %v7149
        %7194 = vmatpush.bf16.msra.mxu0 %v7148
        %7195 = vmatpush.bf16.msra.mxu0 %v7147
        %7196 = vmatmul.bf16.gmra.mxu0 %v7164
        %v7197 = vpop.f32.mrf.mxu0
        %v7198 = vadd.f32 %v7179, %v7197
        %v7199 = vpop.f32.mrf.mxu0
        %v7200 = vadd.f32 %v7181, %v7199
        %7201 = vmatmul.bf16.gmra.mxu0 %v7167
        %v7202 = vpop.f32.mrf.mxu0
        %v7203 = vadd.f32 %v7184, %v7202
        %v7204 = vpop.f32.mrf.mxu0
        %v7205 = vadd.f32 %v7186, %v7204
        %7206 = vdwg.mxu0
        %v7255 = vunpack.c.l.b16 %v6965
        %v7256 = vunpack.c.l.b16 %v6966
        %v7257 = vunpack.c.l.b16 %v6967
        %v7258 = vunpack.c.l.b16 %v6968
        %v7259 = vunpack.c.l.b16 %v6969
        %v7260 = vunpack.c.l.b16 %v6970
        %v7261 = vunpack.c.l.b16 %v6971
        %v7262 = vunpack.c.l.b16 %v6972
        %v7263 = vunpack.c.l.b16 %v6973
        %v7264 = vunpack.c.l.b16 %v6974
        %v7265 = vunpack.c.l.b16 %v6975
        %v7266 = vunpack.c.l.b16 %v6976
        %v7267 = vunpack.c.l.b16 %v6977
        %v7268 = vunpack.c.l.b16 %v6978
        %v7269 = vunpack.c.l.b16 %v6979
        %v7270 = vunpack.c.l.b16 %v6980
        %v7271 = vunpack.c.l.b16 %v6981
        %v7272 = vunpack.c.l.b16 %v6982
        %v7273 = vunpack.c.l.b16 %v6983
        %v7274 = vunpack.c.l.b16 %v6984
        %v7275 = vunpack.c.l.b16 %v6985
        %v7276 = vunpack.c.l.b16 %v6986
        %v7277 = vunpack.c.l.b16 %v6987
        %v7278 = vunpack.c.l.b16 %v6988
        %v7279 = vunpack.c.l.b16 %v6989
        %v7280 = vunpack.c.l.b16 %v6990
        %v7281 = vunpack.c.l.b16 %v6991
        %v7282 = vunpack.c.l.b16 %v6992
        %v7283 = vunpack.c.l.b16 %v6993
        %v7284 = vunpack.c.l.b16 %v6994
        %v7285 = vunpack.c.l.b16 %v6995
        %v7286 = vunpack.c.l.b16 %v6996
        %v7287 = vunpack.c.l.b16 %v6997
        %v7288 = vunpack.c.l.b16 %v6998
        %v7289 = vunpack.c.l.b16 %v6999
        %v7290 = vunpack.c.l.b16 %v7000
        %v7291 = vunpack.c.l.b16 %v7001
        %v7292 = vunpack.c.l.b16 %v7002
        %v7293 = vunpack.c.l.b16 %v7003
        %v7294 = vunpack.c.l.b16 %v7004
        %v7295 = vunpack.c.l.b16 %v7005
        %v7296 = vunpack.c.l.b16 %v7006
        %v7297 = vunpack.c.l.b16 %v7007
        %v7298 = vunpack.c.l.b16 %v7008
        %v7299 = vunpack.c.l.b16 %v7009
        %v7300 = vunpack.c.l.b16 %v7010
        %v7301 = vunpack.c.l.b16 %v7011
        %v7302 = vunpack.c.l.b16 %v7012
        %v7303 = vpack.c.b16 %v7256, %v7255
        %v7304 = vpack.c.b16 %v7258, %v7257
        %v7305 = vpack.c.b16 %v7260, %v7259
        %v7306 = vpack.c.b16 %v7262, %v7261
        %v7307 = vpack.c.b16 %v7264, %v7263
        %v7308 = vpack.c.b16 %v7266, %v7265
        %v7309 = vpack.c.b16 %v7268, %v7267
        %v7310 = vpack.c.b16 %v7270, %v7269
        %v7311 = vpack.c.b16 %v7272, %v7271
        %v7312 = vpack.c.b16 %v7274, %v7273
        %v7313 = vpack.c.b16 %v7276, %v7275
        %v7314 = vpack.c.b16 %v7278, %v7277
        %v7315 = vpack.c.b16 %v7280, %v7279
        %v7316 = vpack.c.b16 %v7282, %v7281
        %v7317 = vpack.c.b16 %v7284, %v7283
        %v7318 = vpack.c.b16 %v7286, %v7285
        %v7319 = vpack.c.b16 %v7288, %v7287
        %v7320 = vpack.c.b16 %v7290, %v7289
        %v7321 = vpack.c.b16 %v7292, %v7291
        %v7322 = vpack.c.b16 %v7294, %v7293
        %v7323 = vpack.c.b16 %v7296, %v7295
        %v7324 = vpack.c.b16 %v7298, %v7297
        %v7325 = vpack.c.b16 %v7300, %v7299
        %v7326 = vpack.c.b16 %v7302, %v7301
        %7351 = vmatpush.bf16.msra.mxu0 %v7310
        %7352 = vmatpush.bf16.msra.mxu0 %v7309
        %7353 = vmatpush.bf16.msra.mxu0 %v7308
        %7354 = vmatpush.bf16.msra.mxu0 %v7307
        %7355 = vmatpush.bf16.msra.mxu0 %v7306
        %7356 = vmatpush.bf16.msra.mxu0 %v7305
        %7357 = vmatpush.bf16.msra.mxu0 %v7304
        %7358 = vmatpush.bf16.msra.mxu0 %v7303
        %7359 = vmatmul.bf16.gmra.mxu0 %v7013
        %v7360 = vpop.f32.mrf.mxu0
        %v7361 = vadd.f32 %v7198, %v7360
        %v7362 = vpop.f32.mrf.mxu0
        %v7363 = vadd.f32 %v7200, %v7362
        %7364 = vmatmul.bf16.gmra.mxu0 %v7016
        %v7365 = vpop.f32.mrf.mxu0
        %v7366 = vadd.f32 %v7203, %v7365
        %v7367 = vpop.f32.mrf.mxu0
        %v7368 = vadd.f32 %v7205, %v7367
        %7369 = vdwg.mxu0
        %7370 = vmatpush.bf16.msra.mxu0 %v7318
        %7371 = vmatpush.bf16.msra.mxu0 %v7317
        %7372 = vmatpush.bf16.msra.mxu0 %v7316
        %7373 = vmatpush.bf16.msra.mxu0 %v7315
        %7374 = vmatpush.bf16.msra.mxu0 %v7314
        %7375 = vmatpush.bf16.msra.mxu0 %v7313
        %7376 = vmatpush.bf16.msra.mxu0 %v7312
        %7377 = vmatpush.bf16.msra.mxu0 %v7311
        %7378 = vmatmul.bf16.gmra.mxu0 %v7014
        %v7379 = vpop.f32.mrf.mxu0
        %v7380 = vadd.f32 %v7361, %v7379
        %v7381 = vpop.f32.mrf.mxu0
        %v7382 = vadd.f32 %v7363, %v7381
        %7383 = vmatmul.bf16.gmra.mxu0 %v7017
        %v7384 = vpop.f32.mrf.mxu0
        %v7385 = vadd.f32 %v7366, %v7384
        %v7386 = vpop.f32.mrf.mxu0
        %v7387 = vadd.f32 %v7368, %v7386
        %7388 = vdwg.mxu0
        %7389 = vmatpush.bf16.msra.mxu0 %v7326
        %7390 = vmatpush.bf16.msra.mxu0 %v7325
        %7391 = vmatpush.bf16.msra.mxu0 %v7324
        %7392 = vmatpush.bf16.msra.mxu0 %v7323
        %7393 = vmatpush.bf16.msra.mxu0 %v7322
        %7394 = vmatpush.bf16.msra.mxu0 %v7321
        %7395 = vmatpush.bf16.msra.mxu0 %v7320
        %7396 = vmatpush.bf16.msra.mxu0 %v7319
        %7397 = vmatmul.bf16.gmra.mxu0 %v7015
        %v7398 = vpop.f32.mrf.mxu0
        %v7399 = vadd.f32 %v7380, %v7398
        %v7400 = vpop.f32.mrf.mxu0
        %v7401 = vadd.f32 %v7382, %v7400
        %7402 = vmatmul.bf16.gmra.mxu0 %v7018
        %v7403 = vpop.f32.mrf.mxu0
        %v7404 = vadd.f32 %v7385, %v7403
        %v7405 = vpop.f32.mrf.mxu0
        %v7406 = vadd.f32 %v7387, %v7405
        %7407 = vdwg.mxu0
        %v7408 = vld [vmem:[%s67] sm:$0x7]
        %v7409 = vperm.slane %v7408, 0
        %v7410 = vadd.f32 %v7399, %v7409
        %v7411 = vadd.f32 %v7401, %v7409
        %v7412 = vadd.f32 %v7404, %v7409
        %v7413 = vadd.f32 %v7406, %v7409
        %v7414 = vsel %vm2537, %v7410, 0.0
        %v7415 = vsel %vm2537, %v7411, 0.0
        %v7416 = vadd.f32 %v7414, %v7415
        %v7417 = vsel %vm2537, %v7412, 0.0
        %v7418 = vadd.f32 %v7416, %v7417
        %v7419 = vsel %vm2537, %v7413, 0.0
        %v7420 = vadd.f32 %v7418, %v7419
        %v7421 = vrot.slane %v7420, 4
        %v7422 = vadd.f32 %v7420, %v7421
        %v7423 = vrot.slane %v7422, 2
        %v7424 = vadd.f32 %v7422, %v7423
        %v7425 = vrot.slane %v7424, 1
        %v7426 = vadd.f32 %v7424, %v7425
        %v7428 = vsel %vm2537, %v7426, 0
        %7430 = vmatpush.msra.mxu0 0.0
        %7431 = vmatpush.msra.mxu0 0.0
        %7432 = vmatpush.msra.mxu0 0.0
        %7433 = vmatpush.msra.mxu0 0.0
        %7434 = vmatpush.msra.mxu0 0.0
        %7435 = vmatpush.msra.mxu0 0.0
        %7436 = vmatpush.msra.mxu0 0.0
        %7437 = vmatpush.msra.mxu0 0.0
        %7438 = vmatpush.msra.mxu0 %v1713
        %7439 = vmatpush.msra.mxu0 %v1712
        %7440 = vmatpush.msra.mxu0 %v1711
        %7441 = vmatpush.msra.mxu0 %v1710
        %7442 = vmatpush.msra.mxu0 %v1709
        %7443 = vmatpush.msra.mxu0 %v1708
        %7444 = vmatpush.msra.mxu0 %v1707
        %7445 = vmatpush.msra.mxu0 %v1706
        %7446 = vmatmul.f32.gmra.mxu0 %v7428
        %v7447 = vpop.f32.mrf.mxu0
        %v7448 = vadd.f32 0.0, %v7447
        %7449 = vdwg.mxu0
        %v7450 = vmul.f32 %v7448, 0.00390625
        %v7452 = vsel %vm2323, %v7450, 0
        %7454 = vmatpush.msra.mxu0 0.0
        %7455 = vmatpush.msra.mxu0 0.0
        %7456 = vmatpush.msra.mxu0 0.0
        %7457 = vmatpush.msra.mxu0 0.0
        %7458 = vmatpush.msra.mxu0 0.0
        %7459 = vmatpush.msra.mxu0 0.0
        %7460 = vmatpush.msra.mxu0 0.0
        %7461 = vmatpush.msra.mxu0 0.0
        %7462 = vmatpush.msra.mxu0 0.0
        %7463 = vmatpush.msra.mxu0 0.0
        %7464 = vmatpush.msra.mxu0 0.0
        %7465 = vmatpush.msra.mxu0 0.0
        %7466 = vmatpush.msra.mxu0 0.0
        %7467 = vmatpush.msra.mxu0 0.0
        %7468 = vmatpush.msra.mxu0 0.0
        %7469 = vmatpush.msra.mxu0 %v1714
        %7470 = vmatmul.f32.gmra.mxu0 %v7452
        %v7471 = vpop.f32.mrf.mxu0
        %v7472 = vadd.f32 0.0, %v7471
        %7473 = vdwg.mxu0
        %v7474 = vperm.slane %v7472, 0
        %v7475 = vsub.f32 %v7410, %v7474
        %v7476 = vsub.f32 %v7411, %v7474
        %v7477 = vsub.f32 %v7412, %v7474
        %v7478 = vsub.f32 %v7413, %v7474
        %v7479 = vmul.f32 %v7475, %v7475
        %v7480 = vmul.f32 %v7476, %v7476
        %v7481 = vmul.f32 %v7477, %v7477
        %v7482 = vmul.f32 %v7478, %v7478
        %v7483 = vsel %vm2537, %v7479, 0.0
        %v7484 = vsel %vm2537, %v7480, 0.0
        %v7485 = vadd.f32 %v7483, %v7484
        %v7486 = vsel %vm2537, %v7481, 0.0
        %v7487 = vadd.f32 %v7485, %v7486
        %v7488 = vsel %vm2537, %v7482, 0.0
        %v7489 = vadd.f32 %v7487, %v7488
        %v7490 = vrot.slane %v7489, 4
        %v7491 = vadd.f32 %v7489, %v7490
        %v7492 = vrot.slane %v7491, 2
        %v7493 = vadd.f32 %v7491, %v7492
        %v7494 = vrot.slane %v7493, 1
        %v7495 = vadd.f32 %v7493, %v7494
        %v7497 = vsel %vm2537, %v7495, 0
        %7499 = vmatpush.msra.mxu0 0.0
        %7500 = vmatpush.msra.mxu0 0.0
        %7501 = vmatpush.msra.mxu0 0.0
        %7502 = vmatpush.msra.mxu0 0.0
        %7503 = vmatpush.msra.mxu0 0.0
        %7504 = vmatpush.msra.mxu0 0.0
        %7505 = vmatpush.msra.mxu0 0.0
        %7506 = vmatpush.msra.mxu0 0.0
        %7507 = vmatpush.msra.mxu0 %v1713
        %7508 = vmatpush.msra.mxu0 %v1712
        %7509 = vmatpush.msra.mxu0 %v1711
        %7510 = vmatpush.msra.mxu0 %v1710
        %7511 = vmatpush.msra.mxu0 %v1709
        %7512 = vmatpush.msra.mxu0 %v1708
        %7513 = vmatpush.msra.mxu0 %v1707
        %7514 = vmatpush.msra.mxu0 %v1706
        %7515 = vmatmul.f32.gmra.mxu0 %v7497
        %v7516 = vpop.f32.mrf.mxu0
        %v7517 = vadd.f32 0.0, %v7516
        %7518 = vdwg.mxu0
        %v7519 = vmul.f32 %v7517, 0.00390625
        %v7520 = vadd.f32 %v7519, 1e-05
        %v7521 = vrsqrt.pop %v7520
        %v7522 = vmul.f32 %v7521, %v7520
        %v7523 = vmul.f32 %v7522, %v7521
        %v7524 = vmul.f32 0.5, %v7523
        %v7525 = vsub.f32 1.5, %v7524
        %v7526 = vmul.f32 %v7521, %v7525
        %vm7527 = vweird.f32 %v7520
        %vm7528 = vweird.f32 %v7521
        %vm7529 = vmor %vm7527, %vm7528
        %v7530 = vsel %vm7529, %v7521, %v7526
        %v7532 = vsel %vm2323, %v7530, 0
        %7534 = vmatpush.msra.mxu0 0.0
        %7535 = vmatpush.msra.mxu0 0.0
        %7536 = vmatpush.msra.mxu0 0.0
        %7537 = vmatpush.msra.mxu0 0.0
        %7538 = vmatpush.msra.mxu0 0.0
        %7539 = vmatpush.msra.mxu0 0.0
        %7540 = vmatpush.msra.mxu0 0.0
        %7541 = vmatpush.msra.mxu0 0.0
        %7542 = vmatpush.msra.mxu0 0.0
        %7543 = vmatpush.msra.mxu0 0.0
        %7544 = vmatpush.msra.mxu0 0.0
        %7545 = vmatpush.msra.mxu0 0.0
        %7546 = vmatpush.msra.mxu0 0.0
        %7547 = vmatpush.msra.mxu0 0.0
        %7548 = vmatpush.msra.mxu0 0.0
        %7549 = vmatpush.msra.mxu0 %v1714
        %7550 = vmatmul.f32.gmra.mxu0 %v7532
        %v7551 = vpop.f32.mrf.mxu0
        %v7552 = vadd.f32 0.0, %v7551
        %7553 = vdwg.mxu0
        %v7555 = vrot.slane %v7552, 7
        %v7557 = vmul.f32 %v7408, %v7555
        %v7558 = vperm.slane %v7557, 1
        %v7559 = vmul.f32 %v7475, %v7558
        %v7560 = vmul.f32 %v7476, %v7558
        %v7561 = vmul.f32 %v7477, %v7558
        %v7562 = vmul.f32 %v7478, %v7558
        %v7563 = vperm.slane %v7408, 2
        %v7564 = vadd.f32 %v7559, %v7563
        %v7565 = vadd.f32 %v7560, %v7563
        %v7566 = vadd.f32 %v7561, %v7563
        %v7567 = vadd.f32 %v7562, %v7563
        %v7568 = vmul.f32 %v7564, 0.5
        %v7569 = vmul.f32 %v7565, 0.5
        %v7570 = vmul.f32 %v7566, 0.5
        %v7571 = vmul.f32 %v7567, 0.5
        %v7572 = vmul.f32 %v7564, 0.044715
        %v7573 = vmul.f32 %v7565, 0.044715
        %v7574 = vmul.f32 %v7566, 0.044715
        %v7575 = vmul.f32 %v7567, 0.044715
        %v7576 = vmul.f32 %v7572, %v7564
        %v7577 = vmul.f32 %v7573, %v7565
        %v7578 = vmul.f32 %v7574, %v7566
        %v7579 = vmul.f32 %v7575, %v7567
        %v7580 = vmul.f32 %v7576, %v7564
        %v7581 = vmul.f32 %v7577, %v7565
        %v7582 = vmul.f32 %v7578, %v7566
        %v7583 = vmul.f32 %v7579, %v7567
        %v7584 = vadd.f32 %v7564, %v7580
        %v7585 = vadd.f32 %v7565, %v7581
        %v7586 = vadd.f32 %v7566, %v7582
        %v7587 = vadd.f32 %v7567, %v7583
        %v7588 = vmul.f32 %v7584, 0.7978846
        %v7589 = vmul.f32 %v7585, 0.7978846
        %v7590 = vmul.f32 %v7586, 0.7978846
        %v7591 = vmul.f32 %v7587, 0.7978846
        %v7592 = vtanh.pop %v7588
        %v7593 = vtanh.pop %v7589
        %v7594 = vtanh.pop %v7590
        %v7595 = vtanh.pop %v7591
        %v7596 = vadd.f32 %v7592, 1.0
        %v7597 = vadd.f32 %v7593, 1.0
        %v7598 = vadd.f32 %v7594, 1.0
        %v7599 = vadd.f32 %v7595, 1.0
        %v7600 = vmul.f32 %v7568, %v7596
        %v7601 = vmul.f32 %v7569, %v7597
        %v7602 = vmul.f32 %v7570, %v7598
        %v7603 = vmul.f32 %v7571, %v7599
        %v7604 = vrot.slane %v7600, 7
        %v7605 = vrot.slane %v7601, 7
        %v7606 = vrot.slane %v7602, 7
        %v7607 = vrot.slane %v7603, 7
        %v7608 = vsel %vm2182, %v7606, %v7607
        %v7609 = vsel %vm2182, %v7605, %v7606
        %v7610 = vsel %vm2182, %v7604, %v7605
        %v7611 = vsel %vm2182, %v7607, %v7604
        %v7612 = vsel %vm2174, 0.0, %v7611
        %v7613 = vsel %vm2175, 0.0, %v7610
        %v7614 = vsel %vm2176, 0.0, %v7609
        %v7615 = vsel %vm2177, 0.0, %v7608
        %v7616 = vrot.slane %v7600, 1
        %v7617 = vrot.slane %v7601, 1
        %v7618 = vrot.slane %v7602, 1
        %v7619 = vrot.slane %v7603, 1
        %v7620 = vsel %vm2199, %v7618, %v7619
        %v7621 = vsel %vm2199, %v7617, %v7618
        %v7622 = vsel %vm2199, %v7616, %v7617
        %v7623 = vsel %vm2199, %v7619, %v7616
        %v7624 = vsel %vm2191, 0.0, %v7622
        %v7625 = vsel %vm2192, 0.0, %v7621
        %v7626 = vsel %vm2193, 0.0, %v7620
        %v7627 = vsel %vm2194, 0.0, %v7623
        %7632 = vrot.lane.b32.xlu0 %v7600, 64
        %v7633 = vpop.permute.xlu0 %7632
        %7634 = vrot.lane.b32.xlu0 %v7601, 64
        %v7635 = vpop.permute.xlu0 %7634
        %7636 = vrot.lane.b32.xlu0 %v7602, 64
        %v7637 = vpop.permute.xlu0 %7636
        %7638 = vrot.lane.b32.xlu0 %v7603, 64
        %v7639 = vpop.permute.xlu0 %7638
        %v7644 = vsel %vm2537, %v7612, %v7633
        %v7645 = vsel %vm2537, %v7613, %v7635
        %v7646 = vsel %vm2537, %v7614, %v7637
        %v7647 = vsel %vm2537, %v7615, %v7639
        %v7648 = vld [vmem:[%s69] sm:$0xf]
        %v7649 = vld [vmem:[%s69 + $0x4] sm:$0xf]
        %v7650 = vld [vmem:[%s69 + $0x8] sm:$0xf]
        %v7651 = vld [vmem:[%s69 + $0xc] sm:$0xf]
        %v7652 = vld [vmem:[%s69 + $0x10] sm:$0xf]
        %v7653 = vld [vmem:[%s69 + $0x14] sm:$0xf]
        %v7654 = vld [vmem:[%s69 + $0x18] sm:$0xf]
        %v7655 = vld [vmem:[%s69 + $0x1c] sm:$0xf]
        %v7656 = vld [vmem:[%s69 + $0x20] sm:$0xf]
        %v7657 = vld [vmem:[%s69 + $0x24] sm:$0xf]
        %v7658 = vld [vmem:[%s69 + $0x28] sm:$0xf]
        %v7659 = vld [vmem:[%s69 + $0x2c] sm:$0xf]
        %v7660 = vld [vmem:[%s69 + $0x30] sm:$0xf]
        %v7661 = vld [vmem:[%s69 + $0x34] sm:$0xf]
        %v7662 = vld [vmem:[%s69 + $0x38] sm:$0xf]
        %v7663 = vld [vmem:[%s69 + $0x3c] sm:$0xf]
        %v7664 = vld [vmem:[%s69 + $0x40] sm:$0xf]
        %v7665 = vld [vmem:[%s69 + $0x44] sm:$0xf]
        %v7666 = vld [vmem:[%s69 + $0x48] sm:$0xf]
        %v7667 = vld [vmem:[%s69 + $0x4c] sm:$0xf]
        %v7668 = vld [vmem:[%s69 + $0x50] sm:$0xf]
        %v7669 = vld [vmem:[%s69 + $0x54] sm:$0xf]
        %v7670 = vld [vmem:[%s69 + $0x58] sm:$0xf]
        %v7671 = vld [vmem:[%s69 + $0x5c] sm:$0xf]
        %v7672 = vpack.c.bf16 %v7645, %v7644
        %v7673 = vpack.c.bf16 %v7625, %v7624
        %v7674 = vpack.c.bf16 %v7647, %v7646
        %v7675 = vpack.c.bf16 %v7627, %v7626
        %v7676 = vld [vmem:[%s71] sm:$0x7]
        %v7677 = vperm.slane %v7676, 0
        %v7702 = vunpack.c.l.b16 %v7648
        %v7703 = vunpack.c.l.b16 %v7649
        %v7704 = vunpack.c.l.b16 %v7650
        %v7705 = vunpack.c.l.b16 %v7651
        %v7706 = vunpack.c.l.b16 %v7652
        %v7707 = vunpack.c.l.b16 %v7653
        %v7708 = vunpack.c.l.b16 %v7654
        %v7709 = vunpack.c.l.b16 %v7655
        %v7710 = vunpack.c.l.b16 %v7656
        %v7711 = vunpack.c.l.b16 %v7657
        %v7712 = vunpack.c.l.b16 %v7658
        %v7713 = vunpack.c.l.b16 %v7659
        %v7714 = vunpack.c.l.b16 %v7660
        %v7715 = vunpack.c.l.b16 %v7661
        %v7716 = vunpack.c.l.b16 %v7662
        %v7717 = vunpack.c.l.b16 %v7663
        %v7718 = vunpack.c.l.b16 %v7664
        %v7719 = vunpack.c.l.b16 %v7665
        %v7720 = vunpack.c.l.b16 %v7666
        %v7721 = vunpack.c.l.b16 %v7667
        %v7722 = vunpack.c.l.b16 %v7668
        %v7723 = vunpack.c.l.b16 %v7669
        %v7724 = vunpack.c.l.b16 %v7670
        %v7725 = vunpack.c.l.b16 %v7671
        %v7726 = vpack.c.b16 %v7703, %v7702
        %v7727 = vpack.c.b16 %v7705, %v7704
        %v7728 = vpack.c.b16 %v7707, %v7706
        %v7729 = vpack.c.b16 %v7709, %v7708
        %v7730 = vpack.c.b16 %v7711, %v7710
        %v7731 = vpack.c.b16 %v7713, %v7712
        %v7732 = vpack.c.b16 %v7715, %v7714
        %v7733 = vpack.c.b16 %v7717, %v7716
        %v7734 = vpack.c.b16 %v7719, %v7718
        %v7735 = vpack.c.b16 %v7721, %v7720
        %v7736 = vpack.c.b16 %v7723, %v7722
        %v7737 = vpack.c.b16 %v7725, %v7724
        %v7751 = vsel %vm2537, %v7673, 0
        %v7754 = vsel %vm2537, %v7675, 0
        %7756 = vmatpush.bf16.msra.mxu0 %v7733
        %7757 = vmatpush.bf16.msra.mxu0 %v7732
        %7758 = vmatpush.bf16.msra.mxu0 %v7731
        %7759 = vmatpush.bf16.msra.mxu0 %v7730
        %7760 = vmatpush.bf16.msra.mxu0 %v7729
        %7761 = vmatpush.bf16.msra.mxu0 %v7728
        %7762 = vmatpush.bf16.msra.mxu0 %v7727
        %7763 = vmatpush.bf16.msra.mxu0 %v7726
        %7764 = vmatmul.bf16.gmra.mxu0 %v7672
        %v7765 = vpop.f32.mrf.mxu0
        %v7766 = vadd.f32 %v7677, %v7765
        %v7767 = vpop.f32.mrf.mxu0
        %v7768 = vadd.f32 %v7677, %v7767
        %7769 = vmatmul.bf16.gmra.mxu0 %v7674
        %v7770 = vpop.f32.mrf.mxu0
        %v7771 = vadd.f32 %v7677, %v7770
        %v7772 = vpop.f32.mrf.mxu0
        %v7773 = vadd.f32 %v7677, %v7772
        %7774 = vdwg.mxu0
        %7775 = vmatpush.bf16.msra.mxu0 0
        %7776 = vmatpush.bf16.msra.mxu0 0
        %7777 = vmatpush.bf16.msra.mxu0 0
        %7778 = vmatpush.bf16.msra.mxu0 0
        %7779 = vmatpush.bf16.msra.mxu0 %v7737
        %7780 = vmatpush.bf16.msra.mxu0 %v7736
        %7781 = vmatpush.bf16.msra.mxu0 %v7735
        %7782 = vmatpush.bf16.msra.mxu0 %v7734
        %7783 = vmatmul.bf16.gmra.mxu0 %v7751
        %v7784 = vpop.f32.mrf.mxu0
        %v7785 = vadd.f32 %v7766, %v7784
        %v7786 = vpop.f32.mrf.mxu0
        %v7787 = vadd.f32 %v7768, %v7786
        %7788 = vmatmul.bf16.gmra.mxu0 %v7754
        %v7789 = vpop.f32.mrf.mxu0
        %v7790 = vadd.f32 %v7771, %v7789
        %v7791 = vpop.f32.mrf.mxu0
        %v7792 = vadd.f32 %v7773, %v7791
        %7793 = vdwg.mxu0
        %v7794 = vsel %vm2537, %v7785, 0.0
        %v7795 = vsel %vm2537, %v7787, 0.0
        %v7796 = vadd.f32 %v7794, %v7795
        %v7797 = vsel %vm2537, %v7790, 0.0
        %v7798 = vadd.f32 %v7796, %v7797
        %v7799 = vsel %vm2537, %v7792, 0.0
        %v7800 = vadd.f32 %v7798, %v7799
        %v7801 = vrot.slane %v7800, 4
        %v7802 = vadd.f32 %v7800, %v7801
        %v7803 = vrot.slane %v7802, 2
        %v7804 = vadd.f32 %v7802, %v7803
        %v7805 = vrot.slane %v7804, 1
        %v7806 = vadd.f32 %v7804, %v7805
        %v7808 = vsel %vm2537, %v7806, 0
        %7810 = vmatpush.msra.mxu0 0.0
        %7811 = vmatpush.msra.mxu0 0.0
        %7812 = vmatpush.msra.mxu0 0.0
        %7813 = vmatpush.msra.mxu0 0.0
        %7814 = vmatpush.msra.mxu0 0.0
        %7815 = vmatpush.msra.mxu0 0.0
        %7816 = vmatpush.msra.mxu0 0.0
        %7817 = vmatpush.msra.mxu0 0.0
        %7818 = vmatpush.msra.mxu0 %v1713
        %7819 = vmatpush.msra.mxu0 %v1712
        %7820 = vmatpush.msra.mxu0 %v1711
        %7821 = vmatpush.msra.mxu0 %v1710
        %7822 = vmatpush.msra.mxu0 %v1709
        %7823 = vmatpush.msra.mxu0 %v1708
        %7824 = vmatpush.msra.mxu0 %v1707
        %7825 = vmatpush.msra.mxu0 %v1706
        %7826 = vmatmul.f32.gmra.mxu0 %v7808
        %v7827 = vpop.f32.mrf.mxu0
        %v7828 = vadd.f32 0.0, %v7827
        %7829 = vdwg.mxu0
        %v7830 = vmul.f32 %v7828, 0.00390625
        %v7832 = vsel %vm2323, %v7830, 0
        %7834 = vmatpush.msra.mxu0 0.0
        %7835 = vmatpush.msra.mxu0 0.0
        %7836 = vmatpush.msra.mxu0 0.0
        %7837 = vmatpush.msra.mxu0 0.0
        %7838 = vmatpush.msra.mxu0 0.0
        %7839 = vmatpush.msra.mxu0 0.0
        %7840 = vmatpush.msra.mxu0 0.0
        %7841 = vmatpush.msra.mxu0 0.0
        %7842 = vmatpush.msra.mxu0 0.0
        %7843 = vmatpush.msra.mxu0 0.0
        %7844 = vmatpush.msra.mxu0 0.0
        %7845 = vmatpush.msra.mxu0 0.0
        %7846 = vmatpush.msra.mxu0 0.0
        %7847 = vmatpush.msra.mxu0 0.0
        %7848 = vmatpush.msra.mxu0 0.0
        %7849 = vmatpush.msra.mxu0 %v1714
        %7850 = vmatmul.f32.gmra.mxu0 %v7832
        %v7851 = vpop.f32.mrf.mxu0
        %v7852 = vadd.f32 0.0, %v7851
        %7853 = vdwg.mxu0
        %v7854 = vperm.slane %v7852, 0
        %v7855 = vsub.f32 %v7785, %v7854
        %v7856 = vsub.f32 %v7787, %v7854
        %v7857 = vsub.f32 %v7790, %v7854
        %v7858 = vsub.f32 %v7792, %v7854
        %v7859 = vmul.f32 %v7855, %v7855
        %v7860 = vmul.f32 %v7856, %v7856
        %v7861 = vmul.f32 %v7857, %v7857
        %v7862 = vmul.f32 %v7858, %v7858
        %v7863 = vsel %vm2537, %v7859, 0.0
        %v7864 = vsel %vm2537, %v7860, 0.0
        %v7865 = vadd.f32 %v7863, %v7864
        %v7866 = vsel %vm2537, %v7861, 0.0
        %v7867 = vadd.f32 %v7865, %v7866
        %v7868 = vsel %vm2537, %v7862, 0.0
        %v7869 = vadd.f32 %v7867, %v7868
        %v7870 = vrot.slane %v7869, 4
        %v7871 = vadd.f32 %v7869, %v7870
        %v7872 = vrot.slane %v7871, 2
        %v7873 = vadd.f32 %v7871, %v7872
        %v7874 = vrot.slane %v7873, 1
        %v7875 = vadd.f32 %v7873, %v7874
        %v7877 = vsel %vm2537, %v7875, 0
        %7879 = vmatpush.msra.mxu0 0.0
        %7880 = vmatpush.msra.mxu0 0.0
        %7881 = vmatpush.msra.mxu0 0.0
        %7882 = vmatpush.msra.mxu0 0.0
        %7883 = vmatpush.msra.mxu0 0.0
        %7884 = vmatpush.msra.mxu0 0.0
        %7885 = vmatpush.msra.mxu0 0.0
        %7886 = vmatpush.msra.mxu0 0.0
        %7887 = vmatpush.msra.mxu0 %v1713
        %7888 = vmatpush.msra.mxu0 %v1712
        %7889 = vmatpush.msra.mxu0 %v1711
        %7890 = vmatpush.msra.mxu0 %v1710
        %7891 = vmatpush.msra.mxu0 %v1709
        %7892 = vmatpush.msra.mxu0 %v1708
        %7893 = vmatpush.msra.mxu0 %v1707
        %7894 = vmatpush.msra.mxu0 %v1706
        %7895 = vmatmul.f32.gmra.mxu0 %v7877
        %v7896 = vpop.f32.mrf.mxu0
        %v7897 = vadd.f32 0.0, %v7896
        %7898 = vdwg.mxu0
        %v7899 = vmul.f32 %v7897, 0.00390625
        %v7900 = vadd.f32 %v7899, 1e-05
        %v7901 = vrsqrt.pop %v7900
        %v7902 = vmul.f32 %v7901, %v7900
        %v7903 = vmul.f32 %v7902, %v7901
        %v7904 = vmul.f32 0.5, %v7903
        %v7905 = vsub.f32 1.5, %v7904
        %v7906 = vmul.f32 %v7901, %v7905
        %vm7907 = vweird.f32 %v7900
        %vm7908 = vweird.f32 %v7901
        %vm7909 = vmor %vm7907, %vm7908
        %v7910 = vsel %vm7909, %v7901, %v7906
        %v7912 = vsel %vm2323, %v7910, 0
        %7914 = vmatpush.msra.mxu0 0.0
        %7915 = vmatpush.msra.mxu0 0.0
        %7916 = vmatpush.msra.mxu0 0.0
        %7917 = vmatpush.msra.mxu0 0.0
        %7918 = vmatpush.msra.mxu0 0.0
        %7919 = vmatpush.msra.mxu0 0.0
        %7920 = vmatpush.msra.mxu0 0.0
        %7921 = vmatpush.msra.mxu0 0.0
        %7922 = vmatpush.msra.mxu0 0.0
        %7923 = vmatpush.msra.mxu0 0.0
        %7924 = vmatpush.msra.mxu0 0.0
        %7925 = vmatpush.msra.mxu0 0.0
        %7926 = vmatpush.msra.mxu0 0.0
        %7927 = vmatpush.msra.mxu0 0.0
        %7928 = vmatpush.msra.mxu0 0.0
        %7929 = vmatpush.msra.mxu0 %v1714
        %7930 = vmatmul.f32.gmra.mxu0 %v7912
        %v7931 = vpop.f32.mrf.mxu0
        %v7932 = vadd.f32 0.0, %v7931
        %7933 = vdwg.mxu0
        %v7935 = vrot.slane %v7932, 7
        %v7937 = vmul.f32 %v7676, %v7935
        %v7938 = vperm.slane %v7937, 1
        %v7939 = vmul.f32 %v7855, %v7938
        %v7940 = vmul.f32 %v7856, %v7938
        %v7941 = vmul.f32 %v7857, %v7938
        %v7942 = vmul.f32 %v7858, %v7938
        %v7943 = vperm.slane %v7676, 2
        %v7944 = vadd.f32 %v7939, %v7943
        %v7945 = vadd.f32 %v7940, %v7943
        %v7946 = vadd.f32 %v7941, %v7943
        %v7947 = vadd.f32 %v7942, %v7943
        %v7948 = vmul.f32 %v7944, 0.5
        %v7949 = vmul.f32 %v7945, 0.5
        %v7950 = vmul.f32 %v7946, 0.5
        %v7951 = vmul.f32 %v7947, 0.5
        %v7952 = vmul.f32 %v7944, 0.044715
        %v7953 = vmul.f32 %v7945, 0.044715
        %v7954 = vmul.f32 %v7946, 0.044715
        %v7955 = vmul.f32 %v7947, 0.044715
        %v7956 = vmul.f32 %v7952, %v7944
        %v7957 = vmul.f32 %v7953, %v7945
        %v7958 = vmul.f32 %v7954, %v7946
        %v7959 = vmul.f32 %v7955, %v7947
        %v7960 = vmul.f32 %v7956, %v7944
        %v7961 = vmul.f32 %v7957, %v7945
        %v7962 = vmul.f32 %v7958, %v7946
        %v7963 = vmul.f32 %v7959, %v7947
        %v7964 = vadd.f32 %v7944, %v7960
        %v7965 = vadd.f32 %v7945, %v7961
        %v7966 = vadd.f32 %v7946, %v7962
        %v7967 = vadd.f32 %v7947, %v7963
        %v7968 = vmul.f32 %v7964, 0.7978846
        %v7969 = vmul.f32 %v7965, 0.7978846
        %v7970 = vmul.f32 %v7966, 0.7978846
        %v7971 = vmul.f32 %v7967, 0.7978846
        %v7972 = vtanh.pop %v7968
        %v7973 = vtanh.pop %v7969
        %v7974 = vtanh.pop %v7970
        %v7975 = vtanh.pop %v7971
        %v7976 = vadd.f32 %v7972, 1.0
        %v7977 = vadd.f32 %v7973, 1.0
        %v7978 = vadd.f32 %v7974, 1.0
        %v7979 = vadd.f32 %v7975, 1.0
        %v7980 = vmul.f32 %v7948, %v7976
        %v7981 = vmul.f32 %v7949, %v7977
        %v7982 = vmul.f32 %v7950, %v7978
        %v7983 = vmul.f32 %v7951, %v7979
        %v7984 = vperm.slane %v2163, 0
        %v7985 = vadd.f32 %v7980, %v7984
        %v7986 = vadd.f32 %v7981, %v7984
        %v7987 = vadd.f32 %v7982, %v7984
        %v7988 = vadd.f32 %v7983, %v7984
        %v7989 = vrot.slane %v7985, 7
        %v7990 = vrot.slane %v7986, 7
        %v7991 = vrot.slane %v7987, 7
        %v7992 = vrot.slane %v7988, 7
        %v7993 = vsel %vm2182, %v7991, %v7992
        %v7994 = vsel %vm2182, %v7990, %v7991
        %v7995 = vsel %vm2182, %v7989, %v7990
        %v7996 = vsel %vm2182, %v7992, %v7989
        %v7997 = vsel %vm2174, 0.0, %v7996
        %v7998 = vsel %vm2175, 0.0, %v7995
        %v7999 = vsel %vm2176, 0.0, %v7994
        %v8000 = vsel %vm2177, 0.0, %v7993
        %v8001 = vrot.slane %v7985, 1
        %v8002 = vrot.slane %v7986, 1
        %v8003 = vrot.slane %v7987, 1
        %v8004 = vrot.slane %v7988, 1
        %v8005 = vsel %vm2199, %v8003, %v8004
        %v8006 = vsel %vm2199, %v8002, %v8003
        %v8007 = vsel %vm2199, %v8001, %v8002
        %v8008 = vsel %vm2199, %v8004, %v8001
        %v8009 = vsel %vm2191, 0.0, %v8007
        %v8010 = vsel %vm2192, 0.0, %v8006
        %v8011 = vsel %vm2193, 0.0, %v8005
        %v8012 = vsel %vm2194, 0.0, %v8008
        %8017 = vrot.lane.b32.xlu0 %v7985, 64
        %v8018 = vpop.permute.xlu0 %8017
        %8019 = vrot.lane.b32.xlu0 %v7986, 64
        %v8020 = vpop.permute.xlu0 %8019
        %8021 = vrot.lane.b32.xlu0 %v7987, 64
        %v8022 = vpop.permute.xlu0 %8021
        %8023 = vrot.lane.b32.xlu0 %v7988, 64
        %v8024 = vpop.permute.xlu0 %8023
        %v8029 = vsel %vm2537, %v7997, %v8018
        %v8030 = vsel %vm2537, %v7998, %v8020
        %v8031 = vsel %vm2537, %v7999, %v8022
        %v8032 = vsel %vm2537, %v8000, %v8024
        %v8033 = vld [vmem:[%s73] sm:$0xf]
        %v8034 = vld [vmem:[%s73 + $0x4] sm:$0xf]
        %v8035 = vld [vmem:[%s73 + $0x8] sm:$0xf]
        %v8036 = vld [vmem:[%s73 + $0xc] sm:$0xf]
        %v8037 = vld [vmem:[%s73 + $0x10] sm:$0xf]
        %v8038 = vld [vmem:[%s73 + $0x14] sm:$0xf]
        %v8039 = vld [vmem:[%s73 + $0x18] sm:$0xf]
        %v8040 = vld [vmem:[%s73 + $0x1c] sm:$0xf]
        %v8041 = vld [vmem:[%s73 + $0x20] sm:$0xf]
        %v8042 = vld [vmem:[%s73 + $0x24] sm:$0xf]
        %v8043 = vld [vmem:[%s73 + $0x28] sm:$0xf]
        %v8044 = vld [vmem:[%s73 + $0x2c] sm:$0xf]
        %v8045 = vld [vmem:[%s73 + $0x30] sm:$0xf]
        %v8046 = vld [vmem:[%s73 + $0x34] sm:$0xf]
        %v8047 = vld [vmem:[%s73 + $0x38] sm:$0xf]
        %v8048 = vld [vmem:[%s73 + $0x3c] sm:$0xf]
        %v8049 = vld [vmem:[%s73 + $0x40] sm:$0xf]
        %v8050 = vld [vmem:[%s73 + $0x44] sm:$0xf]
        %v8051 = vld [vmem:[%s73 + $0x48] sm:$0xf]
        %v8052 = vld [vmem:[%s73 + $0x4c] sm:$0xf]
        %v8053 = vld [vmem:[%s73 + $0x50] sm:$0xf]
        %v8054 = vld [vmem:[%s73 + $0x54] sm:$0xf]
        %v8055 = vld [vmem:[%s73 + $0x58] sm:$0xf]
        %v8056 = vld [vmem:[%s73 + $0x5c] sm:$0xf]
        %v8057 = vpack.c.bf16 %v8030, %v8029
        %v8058 = vpack.c.bf16 %v8010, %v8009
        %v8059 = vpack.c.bf16 %v8032, %v8031
        %v8060 = vpack.c.bf16 %v8012, %v8011
        %v8061 = vld [vmem:[%s75] sm:$0xf]
        %v8062 = vld [vmem:[%s75 + $0x4] sm:$0xf]
        %v8063 = vld [vmem:[%s75 + $0x8] sm:$0xf]
        %v8064 = vld [vmem:[%s75 + $0xc] sm:$0xf]
        %v8065 = vld [vmem:[%s75 + $0x10] sm:$0xf]
        %v8066 = vld [vmem:[%s75 + $0x14] sm:$0xf]
        %v8067 = vld [vmem:[%s75 + $0x18] sm:$0xf]
        %v8068 = vld [vmem:[%s75 + $0x1c] sm:$0xf]
        %v8069 = vld [vmem:[%s75 + $0x20] sm:$0xf]
        %v8070 = vld [vmem:[%s75 + $0x24] sm:$0xf]
        %v8071 = vld [vmem:[%s75 + $0x28] sm:$0xf]
        %v8072 = vld [vmem:[%s75 + $0x2c] sm:$0xf]
        %v8085 = vunpack.c.l.b16 %v8061
        %v8086 = vunpack.c.l.b16 %v8062
        %v8087 = vunpack.c.l.b16 %v8063
        %v8088 = vunpack.c.l.b16 %v8064
        %v8089 = vunpack.c.l.b16 %v8065
        %v8090 = vunpack.c.l.b16 %v8066
        %v8091 = vunpack.c.l.b16 %v8067
        %v8092 = vunpack.c.l.b16 %v8068
        %v8093 = vunpack.c.l.b16 %v8069
        %v8094 = vunpack.c.l.b16 %v8070
        %v8095 = vunpack.c.l.b16 %v8071
        %v8096 = vunpack.c.l.b16 %v8072
        %v8097 = vpack.c.b16 %v8086, %v8085
        %v8098 = vpack.c.b16 %v8088, %v8087
        %v8099 = vpack.c.b16 %v8090, %v8089
        %v8100 = vpack.c.b16 %v8092, %v8091
        %v8101 = vpack.c.b16 %v8094, %v8093
        %v8102 = vpack.c.b16 %v8096, %v8095
        %8109 = vmatpush.bf16.msra.mxu0 0
        %8110 = vmatpush.bf16.msra.mxu0 0
        %8111 = vmatpush.bf16.msra.mxu0 %v8102
        %8112 = vmatpush.bf16.msra.mxu0 %v8101
        %8113 = vmatpush.bf16.msra.mxu0 %v8100
        %8114 = vmatpush.bf16.msra.mxu0 %v8099
        %8115 = vmatpush.bf16.msra.mxu0 %v8098
        %8116 = vmatpush.bf16.msra.mxu0 %v8097
        %8117 = vmatmul.bf16.gmra.mxu0 %v2932
        %v8118 = vpop.f32.mrf.mxu0
        %v8119 = vadd.f32 0.0, %v8118
        %v8120 = vpop.f32.mrf.mxu0
        %v8121 = vadd.f32 0.0, %v8120
        %8122 = vmatmul.bf16.gmra.mxu0 %v2935
        %v8123 = vpop.f32.mrf.mxu0
        %v8124 = vadd.f32 0.0, %v8123
        %v8125 = vpop.f32.mrf.mxu0
        %v8126 = vadd.f32 0.0, %v8125
        %8127 = vdwg.mxu0
        %v8152 = vunpack.c.l.b16 %v8033
        %v8153 = vunpack.c.l.b16 %v8034
        %v8154 = vunpack.c.l.b16 %v8035
        %v8155 = vunpack.c.l.b16 %v8036
        %v8156 = vunpack.c.l.b16 %v8037
        %v8157 = vunpack.c.l.b16 %v8038
        %v8158 = vunpack.c.l.b16 %v8039
        %v8159 = vunpack.c.l.b16 %v8040
        %v8160 = vunpack.c.l.b16 %v8041
        %v8161 = vunpack.c.l.b16 %v8042
        %v8162 = vunpack.c.l.b16 %v8043
        %v8163 = vunpack.c.l.b16 %v8044
        %v8164 = vunpack.c.l.b16 %v8045
        %v8165 = vunpack.c.l.b16 %v8046
        %v8166 = vunpack.c.l.b16 %v8047
        %v8167 = vunpack.c.l.b16 %v8048
        %v8168 = vunpack.c.l.b16 %v8049
        %v8169 = vunpack.c.l.b16 %v8050
        %v8170 = vunpack.c.l.b16 %v8051
        %v8171 = vunpack.c.l.b16 %v8052
        %v8172 = vunpack.c.l.b16 %v8053
        %v8173 = vunpack.c.l.b16 %v8054
        %v8174 = vunpack.c.l.b16 %v8055
        %v8175 = vunpack.c.l.b16 %v8056
        %v8176 = vpack.c.b16 %v8153, %v8152
        %v8177 = vpack.c.b16 %v8155, %v8154
        %v8178 = vpack.c.b16 %v8157, %v8156
        %v8179 = vpack.c.b16 %v8159, %v8158
        %v8180 = vpack.c.b16 %v8161, %v8160
        %v8181 = vpack.c.b16 %v8163, %v8162
        %v8182 = vpack.c.b16 %v8165, %v8164
        %v8183 = vpack.c.b16 %v8167, %v8166
        %v8184 = vpack.c.b16 %v8169, %v8168
        %v8185 = vpack.c.b16 %v8171, %v8170
        %v8186 = vpack.c.b16 %v8173, %v8172
        %v8187 = vpack.c.b16 %v8175, %v8174
        %v8201 = vsel %vm2537, %v8058, 0
        %v8204 = vsel %vm2537, %v8060, 0
        %8206 = vmatpush.bf16.msra.mxu0 %v8183
        %8207 = vmatpush.bf16.msra.mxu0 %v8182
        %8208 = vmatpush.bf16.msra.mxu0 %v8181
        %8209 = vmatpush.bf16.msra.mxu0 %v8180
        %8210 = vmatpush.bf16.msra.mxu0 %v8179
        %8211 = vmatpush.bf16.msra.mxu0 %v8178
        %8212 = vmatpush.bf16.msra.mxu0 %v8177
        %8213 = vmatpush.bf16.msra.mxu0 %v8176
        %8214 = vmatmul.bf16.gmra.mxu0 %v8057
        %v8215 = vpop.f32.mrf.mxu0
        %v8216 = vadd.f32 %v8119, %v8215
        %v8217 = vpop.f32.mrf.mxu0
        %v8218 = vadd.f32 %v8121, %v8217
        %8219 = vmatmul.bf16.gmra.mxu0 %v8059
        %v8220 = vpop.f32.mrf.mxu0
        %v8221 = vadd.f32 %v8124, %v8220
        %v8222 = vpop.f32.mrf.mxu0
        %v8223 = vadd.f32 %v8126, %v8222
        %8224 = vdwg.mxu0
        %8225 = vmatpush.bf16.msra.mxu0 0
        %8226 = vmatpush.bf16.msra.mxu0 0
        %8227 = vmatpush.bf16.msra.mxu0 0
        %8228 = vmatpush.bf16.msra.mxu0 0
        %8229 = vmatpush.bf16.msra.mxu0 %v8187
        %8230 = vmatpush.bf16.msra.mxu0 %v8186
        %8231 = vmatpush.bf16.msra.mxu0 %v8185
        %8232 = vmatpush.bf16.msra.mxu0 %v8184
        %8233 = vmatmul.bf16.gmra.mxu0 %v8201
        %v8234 = vpop.f32.mrf.mxu0
        %v8235 = vadd.f32 %v8216, %v8234
        %v8236 = vpop.f32.mrf.mxu0
        %v8237 = vadd.f32 %v8218, %v8236
        %8238 = vmatmul.bf16.gmra.mxu0 %v8204
        %v8239 = vpop.f32.mrf.mxu0
        %v8240 = vadd.f32 %v8221, %v8239
        %v8241 = vpop.f32.mrf.mxu0
        %v8242 = vadd.f32 %v8223, %v8241
        %8243 = vdwg.mxu0
        %v8244 = vld [vmem:[%s77] sm:$0x7]
        %v8245 = vperm.slane %v8244, 0
        %v8246 = vadd.f32 %v8235, %v8245
        %v8247 = vadd.f32 %v8237, %v8245
        %v8248 = vadd.f32 %v8240, %v8245
        %v8249 = vadd.f32 %v8242, %v8245
        %v8250 = vsel %vm2285, %v8246, 0.0
        %v8251 = vsel %vm2285, %v8247, 0.0
        %v8252 = vadd.f32 %v8250, %v8251
        %v8253 = vsel %vm2285, %v8248, 0.0
        %v8254 = vadd.f32 %v8252, %v8253
        %v8255 = vsel %vm2285, %v8249, 0.0
        %v8256 = vadd.f32 %v8254, %v8255
        %v8257 = vrot.slane %v8256, 4
        %v8258 = vadd.f32 %v8256, %v8257
        %v8259 = vrot.slane %v8258, 2
        %v8260 = vadd.f32 %v8258, %v8259
        %v8261 = vrot.slane %v8260, 1
        %v8262 = vadd.f32 %v8260, %v8261
        %v8264 = vsel %vm2285, %v8262, 0
        %8266 = vmatpush.msra.mxu0 0.0
        %8267 = vmatpush.msra.mxu0 0.0
        %8268 = vmatpush.msra.mxu0 0.0
        %8269 = vmatpush.msra.mxu0 0.0
        %8270 = vmatpush.msra.mxu0 0.0
        %8271 = vmatpush.msra.mxu0 0.0
        %8272 = vmatpush.msra.mxu0 0.0
        %8273 = vmatpush.msra.mxu0 0.0
        %8274 = vmatpush.msra.mxu0 0.0
        %8275 = vmatpush.msra.mxu0 0.0
        %8276 = vmatpush.msra.mxu0 0.0
        %8277 = vmatpush.msra.mxu0 0.0
        %8278 = vmatpush.msra.mxu0 %v1704
        %8279 = vmatpush.msra.mxu0 %v1703
        %8280 = vmatpush.msra.mxu0 %v1702
        %8281 = vmatpush.msra.mxu0 %v1701
        %8282 = vmatmul.f32.gmra.mxu0 %v8264
        %v8283 = vpop.f32.mrf.mxu0
        %v8284 = vadd.f32 0.0, %v8283
        %8285 = vdwg.mxu0
        %v8286 = vmul.f32 %v8284, 0.0078125
        %v8288 = vsel %vm2323, %v8286, 0
        %8290 = vmatpush.msra.mxu0 0.0
        %8291 = vmatpush.msra.mxu0 0.0
        %8292 = vmatpush.msra.mxu0 0.0
        %8293 = vmatpush.msra.mxu0 0.0
        %8294 = vmatpush.msra.mxu0 0.0
        %8295 = vmatpush.msra.mxu0 0.0
        %8296 = vmatpush.msra.mxu0 0.0
        %8297 = vmatpush.msra.mxu0 0.0
        %8298 = vmatpush.msra.mxu0 0.0
        %8299 = vmatpush.msra.mxu0 0.0
        %8300 = vmatpush.msra.mxu0 0.0
        %8301 = vmatpush.msra.mxu0 0.0
        %8302 = vmatpush.msra.mxu0 0.0
        %8303 = vmatpush.msra.mxu0 0.0
        %8304 = vmatpush.msra.mxu0 0.0
        %8305 = vmatpush.msra.mxu0 %v1705
        %8306 = vmatmul.f32.gmra.mxu0 %v8288
        %v8307 = vpop.f32.mrf.mxu0
        %v8308 = vadd.f32 0.0, %v8307
        %8309 = vdwg.mxu0
        %v8310 = vperm.slane %v8308, 0
        %v8311 = vsub.f32 %v8246, %v8310
        %v8312 = vsub.f32 %v8247, %v8310
        %v8313 = vsub.f32 %v8248, %v8310
        %v8314 = vsub.f32 %v8249, %v8310
        %v8315 = vmul.f32 %v8311, %v8311
        %v8316 = vmul.f32 %v8312, %v8312
        %v8317 = vmul.f32 %v8313, %v8313
        %v8318 = vmul.f32 %v8314, %v8314
        %v8319 = vsel %vm2285, %v8315, 0.0
        %v8320 = vsel %vm2285, %v8316, 0.0
        %v8321 = vadd.f32 %v8319, %v8320
        %v8322 = vsel %vm2285, %v8317, 0.0
        %v8323 = vadd.f32 %v8321, %v8322
        %v8324 = vsel %vm2285, %v8318, 0.0
        %v8325 = vadd.f32 %v8323, %v8324
        %v8326 = vrot.slane %v8325, 4
        %v8327 = vadd.f32 %v8325, %v8326
        %v8328 = vrot.slane %v8327, 2
        %v8329 = vadd.f32 %v8327, %v8328
        %v8330 = vrot.slane %v8329, 1
        %v8331 = vadd.f32 %v8329, %v8330
        %v8333 = vsel %vm2285, %v8331, 0
        %8335 = vmatpush.msra.mxu0 0.0
        %8336 = vmatpush.msra.mxu0 0.0
        %8337 = vmatpush.msra.mxu0 0.0
        %8338 = vmatpush.msra.mxu0 0.0
        %8339 = vmatpush.msra.mxu0 0.0
        %8340 = vmatpush.msra.mxu0 0.0
        %8341 = vmatpush.msra.mxu0 0.0
        %8342 = vmatpush.msra.mxu0 0.0
        %8343 = vmatpush.msra.mxu0 0.0
        %8344 = vmatpush.msra.mxu0 0.0
        %8345 = vmatpush.msra.mxu0 0.0
        %8346 = vmatpush.msra.mxu0 0.0
        %8347 = vmatpush.msra.mxu0 %v1704
        %8348 = vmatpush.msra.mxu0 %v1703
        %8349 = vmatpush.msra.mxu0 %v1702
        %8350 = vmatpush.msra.mxu0 %v1701
        %8351 = vmatmul.f32.gmra.mxu0 %v8333
        %v8352 = vpop.f32.mrf.mxu0
        %v8353 = vadd.f32 0.0, %v8352
        %8354 = vdwg.mxu0
        %v8355 = vmul.f32 %v8353, 0.0078125
        %v8356 = vadd.f32 %v8355, 1e-05
        %v8357 = vrsqrt.pop %v8356
        %v8358 = vmul.f32 %v8357, %v8356
        %v8359 = vmul.f32 %v8358, %v8357
        %v8360 = vmul.f32 0.5, %v8359
        %v8361 = vsub.f32 1.5, %v8360
        %v8362 = vmul.f32 %v8357, %v8361
        %vm8363 = vweird.f32 %v8356
        %vm8364 = vweird.f32 %v8357
        %vm8365 = vmor %vm8363, %vm8364
        %v8366 = vsel %vm8365, %v8357, %v8362
        %v8368 = vsel %vm2323, %v8366, 0
        %8370 = vmatpush.msra.mxu0 0.0
        %8371 = vmatpush.msra.mxu0 0.0
        %8372 = vmatpush.msra.mxu0 0.0
        %8373 = vmatpush.msra.mxu0 0.0
        %8374 = vmatpush.msra.mxu0 0.0
        %8375 = vmatpush.msra.mxu0 0.0
        %8376 = vmatpush.msra.mxu0 0.0
        %8377 = vmatpush.msra.mxu0 0.0
        %8378 = vmatpush.msra.mxu0 0.0
        %8379 = vmatpush.msra.mxu0 0.0
        %8380 = vmatpush.msra.mxu0 0.0
        %8381 = vmatpush.msra.mxu0 0.0
        %8382 = vmatpush.msra.mxu0 0.0
        %8383 = vmatpush.msra.mxu0 0.0
        %8384 = vmatpush.msra.mxu0 0.0
        %8385 = vmatpush.msra.mxu0 %v1705
        %8386 = vmatmul.f32.gmra.mxu0 %v8368
        %v8387 = vpop.f32.mrf.mxu0
        %v8388 = vadd.f32 0.0, %v8387
        %8389 = vdwg.mxu0
        %v8391 = vrot.slane %v8388, 7
        %v8393 = vmul.f32 %v8244, %v8391
        %v8394 = vperm.slane %v8393, 1
        %v8395 = vmul.f32 %v8311, %v8394
        %v8396 = vmul.f32 %v8312, %v8394
        %v8397 = vmul.f32 %v8313, %v8394
        %v8398 = vmul.f32 %v8314, %v8394
        %v8399 = vperm.slane %v8244, 2
        %v8400 = vadd.f32 %v8395, %v8399
        %v8401 = vadd.f32 %v8396, %v8399
        %v8402 = vadd.f32 %v8397, %v8399
        %v8403 = vadd.f32 %v8398, %v8399
        %v8404 = vmul.f32 %v8400, 0.5
        %v8405 = vmul.f32 %v8401, 0.5
        %v8406 = vmul.f32 %v8402, 0.5
        %v8407 = vmul.f32 %v8403, 0.5
        %v8408 = vmul.f32 %v8400, 0.044715
        %v8409 = vmul.f32 %v8401, 0.044715
        %v8410 = vmul.f32 %v8402, 0.044715
        %v8411 = vmul.f32 %v8403, 0.044715
        %v8412 = vmul.f32 %v8408, %v8400
        %v8413 = vmul.f32 %v8409, %v8401
        %v8414 = vmul.f32 %v8410, %v8402
        %v8415 = vmul.f32 %v8411, %v8403
        %v8416 = vmul.f32 %v8412, %v8400
        %v8417 = vmul.f32 %v8413, %v8401
        %v8418 = vmul.f32 %v8414, %v8402
        %v8419 = vmul.f32 %v8415, %v8403
        %v8420 = vadd.f32 %v8400, %v8416
        %v8421 = vadd.f32 %v8401, %v8417
        %v8422 = vadd.f32 %v8402, %v8418
        %v8423 = vadd.f32 %v8403, %v8419
        %v8424 = vmul.f32 %v8420, 0.7978846
        %v8425 = vmul.f32 %v8421, 0.7978846
        %v8426 = vmul.f32 %v8422, 0.7978846
        %v8427 = vmul.f32 %v8423, 0.7978846
        %v8428 = vtanh.pop %v8424
        %v8429 = vtanh.pop %v8425
        %v8430 = vtanh.pop %v8426
        %v8431 = vtanh.pop %v8427
        %v8432 = vadd.f32 %v8428, 1.0
        %v8433 = vadd.f32 %v8429, 1.0
        %v8434 = vadd.f32 %v8430, 1.0
        %v8435 = vadd.f32 %v8431, 1.0
        %v8436 = vmul.f32 %v8404, %v8432
        %v8437 = vmul.f32 %v8405, %v8433
        %v8438 = vmul.f32 %v8406, %v8434
        %v8439 = vmul.f32 %v8407, %v8435
        %v8440 = vld [vmem:[%s111] sm:$0x1]
        %v8441 = vpack.c.bf16 %v8437, %v8436
        %v8442 = vpack.c.bf16 %v8439, %v8438
        %v8443 = vld [vmem:[#allocation3] sm:$0x1]
        %8445 = vset.pattern.permute.xlu0 0
        %8446 = vperm.xlu0 %8445, %v8443
        %v8447 = vpop.permute.xlu0 %8446
        %v8449 = vperm.slane %v8447, 0
        %v8451 = vsel %vm2285, %v8440, 0
        %v8454 = vsel %vm2285, %v8441, 0
        %v8457 = vsel %vm2285, %v8442, 0
        %8459 = vmatpush.bf16.xpose.msra.mxu0 0
        %8460 = vmatpush.bf16.xpose.msra.mxu0 0
        %8461 = vmatpush.bf16.xpose.msra.mxu0 0
        %8462 = vmatpush.bf16.xpose.msra.mxu0 0
        %8463 = vmatpush.bf16.xpose.msra.mxu0 0
        %8464 = vmatpush.bf16.xpose.msra.mxu0 0
        %8465 = vmatpush.bf16.xpose.msra.mxu0 %v8457
        %8466 = vmatpush.bf16.xpose.msra.mxu0 %v8454
        %8467 = vmatmul.bf16.gmra.mxu0 %v8451
        %v8468 = vpop.f32.mrf.mxu0
        %v8469 = vadd.f32 %v8449, %v8468
        %v8470 = vpop.f32.mrf.mxu0
        %8471 = vdwg.mxu0
        %vm8472 = vcmask 253952
        %8473 = vst.msk [vmem:[%s1691] sm:$0x1] %vm8472, %v8469
        %s8474 = sand.u32 %s1346, 1
        %s8475 = scalar_lea.sflag [#allocation5], %s8474
        %s8476 = sand.u32 %s1346, 1
        %s8477 = scalar_lea.vmem [#allocation4], %s8476
        // Predicated region
        $region249: #{forward.1} parent=247 // pred_check
          %p8478 = pneg %p1356
        $region250: #{forward.1} parent=247 // pred_check_branch
          %8480 = sbr.rel (%p8478) target = $region252
        $region251: #{forward.1} parent=247 // pred_region
          %8482 = vsyncadd %s8475, 0
          %s8483 = scalar_lea.hbm %s115, %s131
          %s8485 = sshll.u32 %s8477, 4
          %s8486 = int_to_ptr.vmem [resolvable:$true] %s8485
          %s8487 = sshll.u32 %s8483, 4
          %s8488 = int_to_ptr.hbm [resolvable:$true] %s8487
          %8490 = dma.vmem_to_hbm [thread:$0]  %s8486, 16, %s8488, %s8475
        $region252: #{forward.1} parent=247 // pred_fallthru
          _
      $region248: #{forward.1} parent=5 // pred_fallthru
        _
      %p8491 = scmp.le.s32.totalorder 2, %s126
      // Predicated region
      $region253: #{forward.1} parent=5 // pred_check
        %p8492 = pneg %p8491
      $region254: #{forward.1} parent=5 // pred_check_branch
        %8494 = sbr.rel (%p8492) target = $region256
      $region255: #{forward.1} parent=5 // pred_region
        %s8495 = ssub.s32 %s126, 2
        // Predicated region
        $region257: #{forward.1} parent=255 // pred_check
          %p8496 = pneg %p1362
        $region258: #{forward.1} parent=255 // pred_check_branch
          %8498 = sbr.rel (%p8496) target = $region260
        $region259: #{forward.1} parent=255 // pred_region
          %s8499 = sand.u32 %s1347, 1
          %s8500 = scalar_lea.sflag [#allocation5], %s8499
          %s8501 = sand.u32 %s1347, 1
          %s8502 = scalar_lea.vmem [#allocation4], %s8501
          %8504 = dma.done %s8500, 16
        $region260: #{forward.1} parent=255 // pred_fallthru
          _
      $region256: #{forward.1} parent=5 // pred_fallthru
        _
    $region6: #{forward.1} parent=1 // loop_footer
      %s130 = sadd.s32 1, %s126
    $region7: #{forward.1} parent=1 // loop_footer_branch
      %125 = sbr.rel target = $region3
    $region8: #{forward.1} parent=1 // loop_exit
      _
    %8505 = vsyncpa [#allocation5], 1
    %s8506 = scalar_lea.sflag [#allocation5], 1
    %8507 = vsyncpa %s8506, 1

</llo_original>
